<compile_context>
chip_gen: v5e
topology: v5e:2x2
jax: 0.10.0
libtpu: 0.0.40
codegen_flags: <defaults>
</compile_context>

<pallas_src>
import jax
import jax.numpy as jnp
import numpy as np
from jax.experimental import pallas as pl
from jax.experimental.pallas import tpu as pltpu


# ---------------------------------------------------------------------------
# helpers
# ---------------------------------------------------------------------------

def _round_up(x, m):
    return ((x + m - 1) // m) * m


def _blocking(rows, cap):
    """Row block (multiple of 8, <= cap) and padded row count with >= 2 steps.

    >= 2 grid steps keeps both v7x TensorCores busy; `cap` keeps the
    double-buffered blocks well inside v7x's 64 MiB per-core VMEM.
    """
    r_blk = min(cap, _round_up(pl.cdiv(rows, 2), 8))
    r_blk = max(r_blk, 8)
    n_steps = max(2, pl.cdiv(rows, r_blk))
    return r_blk, n_steps * r_blk


# ---------------------------------------------------------------------------
# fused conv3x3 + 2x2 max-pool + bias + ReLU
# ---------------------------------------------------------------------------

def conv_relu_pool_kernel(p_ref, w_ref, b_ref, o_ref):
    # p_ref: (4, r_blk, K) bf16  -- im2col rows for the 4 pooling positions
    # w_ref: (K, Cout)     bf16     b_ref: (1, Cout) f32
    # o_ref: (r_blk, Cout) bf16
    q, r, k = p_ref.shape
    x = p_ref[...].reshape(q * r, k)                       # leading-dim merge
    y = jnp.dot(x, w_ref[...], preferred_element_type=jnp.float32)
    # 2x2 max-pool across the 4 quadrants (static sublane slices).
    pooled = jnp.maximum(jnp.maximum(y[0 * r:1 * r], y[1 * r:2 * r]),
                         jnp.maximum(y[2 * r:3 * r], y[3 * r:4 * r]))
    # bias + ReLU after the max (monotone -> identical result, 1 pass not 4).
    pooled = jnp.maximum(pooled + b_ref[...], 0.0)
    o_ref[...] = pooled.astype(o_ref.dtype)


def conv3x3_relu_pool(x_nhwc, w_hwio, b):
    """3x3 conv (pad=1) + bias + ReLU + 2x2 max-pool, fused in one kernel."""
    n, h, w_, cin = x_nhwc.shape
    cout = w_hwio.shape[-1]
    ho, wo = h // 2, w_ // 2
    k = 9 * cin
    rows = n * ho * wo

    xp = jnp.pad(x_nhwc, ((0, 0), (1, 1), (1, 1), (0, 0))).astype(jnp.bfloat16)

    # im2col restricted to one 2x2 pooling-window position (dy, dx):
    # (rows, 9*Cin) lane-dense matrix.  Pure data-movement glue done by XLA.
    def quadrant_patches(dy, dx):
        cols = []
        for kh in range(3):
            for kw in range(3):
                sl = xp[:, dy + kh: dy + kh + 2 * ho: 2,
                        dx + kw: dx + kw + 2 * wo: 2, :]
                cols.append(sl.reshape(rows, cin))
        return jnp.concatenate(cols, axis=-1)              # (rows, 9*Cin)

    # one stacked array -> one DMA stream / double-buffer pair in the kernel
    p = jnp.stack([quadrant_patches(0, 0), quadrant_patches(0, 1),
                   quadrant_patches(1, 0), quadrant_patches(1, 1)], axis=0)

    r_blk, rows_pad = _blocking(rows, cap=512)
    if rows_pad != rows:
        p = jnp.pad(p, ((0, 0), (0, rows_pad - rows), (0, 0)))

    w2 = w_hwio.reshape(k, cout).astype(jnp.bfloat16)      # (kh,kw,ci) -> rows
    b2 = b.reshape(1, cout).astype(jnp.float32)

    grid = (rows_pad // r_blk,)
    out = pl.pallas_call(
        conv_relu_pool_kernel,
        out_shape=jax.ShapeDtypeStruct((rows_pad, cout), jnp.bfloat16),
        grid_spec=pltpu.PrefetchScalarGridSpec(
            num_scalar_prefetch=0,
            grid=grid,
            in_specs=[pl.BlockSpec((4, r_blk, k), lambda i: (0, i, 0)),
                      pl.BlockSpec((k, cout), lambda i: (0, 0)),
                      pl.BlockSpec((1, cout), lambda i: (0, 0))],
            out_specs=pl.BlockSpec((r_blk, cout), lambda i: (i, 0)),
        ),
        compiler_params=pltpu.CompilerParams(
            dimension_semantics=("parallel",),
            vmem_limit_bytes=32 * 1024 * 1024),
    )(p, w2, b2)

    return out[:rows].reshape(n, ho, wo, cout)


# ---------------------------------------------------------------------------
# fused 4-layer MLP head (weights VMEM-resident, gridded over batch rows)
# ---------------------------------------------------------------------------

def mlp_kernel(x_ref, w1_ref, b1_ref, w2_ref, b2_ref,
               w3_ref, b3_ref, w4_ref, b4_ref, o_ref):
    h = jnp.dot(x_ref[...], w1_ref[...], preferred_element_type=jnp.float32)
    h = jnp.maximum(h + b1_ref[...], 0.0).astype(jnp.bfloat16)
    h = jnp.dot(h, w2_ref[...], preferred_element_type=jnp.float32)
    h = jnp.maximum(h + b2_ref[...], 0.0).astype(jnp.bfloat16)
    h = jnp.dot(h, w3_ref[...], preferred_element_type=jnp.float32)
    h = jnp.maximum(h + b3_ref[...], 0.0).astype(jnp.bfloat16)
    h = jnp.dot(h, w4_ref[...], preferred_element_type=jnp.float32)
    o_ref[...] = (h + b4_ref[...]).astype(o_ref.dtype)


def mlp_head(x, p):
    m, d_in = x.shape
    n_out = p['fw4'].shape[1]

    m_blk, m_pad = _blocking(m, cap=256)
    xb = x.astype(jnp.bfloat16)
    if m_pad != m:
        xb = jnp.pad(xb, ((0, m_pad - m), (0, 0)))

    weights = [p['fw1'].astype(jnp.bfloat16), p['fb1'].reshape(1, -1),
               p['fw2'].astype(jnp.bfloat16), p['fb2'].reshape(1, -1),
               p['fw3'].astype(jnp.bfloat16), p['fb3'].reshape(1, -1),
               p['fw4'].astype(jnp.bfloat16), p['fb4'].reshape(1, -1)]

    def resident(shape):
        # constant index_map -> block never changes -> DMA'd once, VMEM-resident
        return pl.BlockSpec(shape, lambda i: (0, 0))

    grid = (m_pad // m_blk,)
    out = pl.pallas_call(
        mlp_kernel,
        out_shape=jax.ShapeDtypeStruct((m_pad, n_out), jnp.float32),
        grid_spec=pltpu.PrefetchScalarGridSpec(
            num_scalar_prefetch=0,
            grid=grid,
            in_specs=[pl.BlockSpec((m_blk, d_in), lambda i: (i, 0))] +
                     [resident(w.shape) for w in weights],
            out_specs=pl.BlockSpec((m_blk, n_out), lambda i: (i, 0)),
        ),
        compiler_params=pltpu.CompilerParams(
            dimension_semantics=("parallel",),
            vmem_limit_bytes=32 * 1024 * 1024),
    )(xb, *weights)

    return out[:m]


# ---------------------------------------------------------------------------
# full forward
# ---------------------------------------------------------------------------

def cnn_forward(x_nchw, p):
    x = jnp.transpose(x_nchw, (0, 2, 3, 1))                # NCHW -> NHWC
    x = conv3x3_relu_pool(x, p['w1'], p['b1'])             # (N,14,14,16)
    x = conv3x3_relu_pool(x, p['w2'], p['b2'])             # (N, 7, 7,32)
    n = x.shape[0]
    # match torch's x.view(-1, 32*7*7) on NCHW tensors (channel-major flatten)
    x = jnp.transpose(x, (0, 3, 1, 2)).reshape(n, 32 * 7 * 7)
    return mlp_head(x, p)


# ---------------------------------------------------------------------------
# params & pure-JAX reference
# ---------------------------------------------------------------------------

def init_params(key):
    def u(k, shape, fan_in):
        bound = 1.0 / np.sqrt(fan_in)
        return jax.random.uniform(k, shape, jnp.float32, -bound, bound)
    ks = jax.random.split(key, 12)
    p = {}
    p['w1'] = u(ks[0], (3, 3, 1, 16), 1 * 9)
    p['b1'] = u(ks[1], (16,), 1 * 9)
    p['w2'] = u(ks[2], (3, 3, 16, 32), 16 * 9)
    p['b2'] = u(ks[3], (32,), 16 * 9)
    p['fw1'] = u(ks[4], (32 * 7 * 7, 512), 32 * 7 * 7)
    p['fb1'] = u(ks[5], (512,), 32 * 7 * 7)
    p['fw2'] = u(ks[6], (512, 512), 512)
    p['fb2'] = u(ks[7], (512,), 512)
    p['fw3'] = u(ks[8], (512, 128), 512)
    p['fb3'] = u(ks[9], (128,), 512)
    p['fw4'] = u(ks[10], (128, 10), 128)
    p['fb4'] = u(ks[11], (10,), 128)
    return p


def cnn_reference(x_nchw, p):
    x = jnp.transpose(x_nchw, (0, 2, 3, 1))

    def conv(x, w, b):
        y = jax.lax.conv_general_dilated(
            x, w, window_strides=(1, 1), padding=((1, 1), (1, 1)),
            dimension_numbers=('NHWC', 'HWIO', 'NHWC'))
        return jax.nn.relu(y + b)

    def pool(x):
        return jax.lax.reduce_window(x, -jnp.inf, jax.lax.max,
                                     (1, 2, 2, 1), (1, 2, 2, 1), 'VALID')

    x = pool(conv(x, p['w1'], p['b1']))
    x = pool(conv(x, p['w2'], p['b2']))
    n = x.shape[0]
    x = jnp.transpose(x, (0, 3, 1, 2)).reshape(n, 32 * 7 * 7)
    x = jax.nn.relu(x @ p['fw1'] + p['fb1'])
    x = jax.nn.relu(x @ p['fw2'] + p['fb2'])
    x = jax.nn.relu(x @ p['fw3'] + p['fb3'])
    x = x @ p['fw4'] + p['fb4']
    return x


if __name__ == "__main__":
    key = jax.random.PRNGKey(0)
    pkey, xkey = jax.random.split(key)
    params = init_params(pkey)
    # PyTorch-style NCHW input; 28x28 implied by fc1 = Linear(32*7*7, 512)
    x = jax.random.normal(xkey, (2, 1, 28, 28), jnp.float32)

    out = jax.block_until_ready(jax.jit(cnn_forward)(x, params))
    ref = jax.block_until_ready(cnn_reference(x, params))

    assert out.shape == (2, 10)
    # bf16 activations/weights with f32 accumulation -> slightly wider tolerance
    np.testing.assert_allclose(np.asarray(out), np.asarray(ref),
                               rtol=2e-2, atol=2e-2)
    print("KERNEL_OK")
</pallas_src>

<mosaic_0001>
module attributes {stable_mosaic.version = 11 : i64} {
  func.func @conv_relu_pool_kernel(%arg0: i32, %arg1: memref<4x200x9xbf16, #tpu.memory_space<vmem>>, %arg2: memref<9x16xbf16, #tpu.memory_space<vmem>>, %arg3: memref<1x16xf32, #tpu.memory_space<vmem>>, %arg4: memref<200x16xbf16, #tpu.memory_space<vmem>>) attributes {dimension_semantics = [#tpu.dimension_semantics<parallel>], iteration_bounds = array<i64: 2>, scalar_prefetch = 0 : i64, scratch_operands = 0 : i64, tpu.core_type = #tpu.core_type<tc>, window_params = [{transform_indices = @transform_0, window_bounds = array<i64: 4, 200, 9>}, {pipeline_mode = #tpu.pipeline_mode<synchronous>, transform_indices = @transform_1, window_bounds = array<i64: 9, 16>}, {pipeline_mode = #tpu.pipeline_mode<synchronous>, transform_indices = @transform_2, window_bounds = array<i64: 1, 16>}, {transform_indices = @transform_3, window_bounds = array<i64: 200, 16>}]} {
    %c0 = arith.constant 0 : index
    %c0_0 = arith.constant 0 : index
    %c0_1 = arith.constant 0 : index
    %0 = vector.load %arg1[%c0, %c0_0, %c0_1] : memref<4x200x9xbf16, #tpu.memory_space<vmem>>, vector<4x200x9xbf16>
    %1 = vector.shape_cast %0 : vector<4x200x9xbf16> to vector<800x9xbf16>
    %c0_2 = arith.constant 0 : index
    %c0_3 = arith.constant 0 : index
    %2 = vector.load %arg2[%c0_2, %c0_3] : memref<9x16xbf16, #tpu.memory_space<vmem>>, vector<9x16xbf16>
    %cst = arith.constant dense<0.000000e+00> : vector<800x16xf32>
    %3 = tpu.matmul %1, %2, %cst {dimension_numbers = #tpu.dot_dimension_numbers<[1], [0], [0], [1], [0, 0, 1, 1], [], []>} : vector<800x9xbf16>, vector<9x16xbf16>, vector<800x16xf32> -> vector<800x16xf32>
    %4 = vector.extract_strided_slice %3 {offsets = [0, 0], sizes = [200, 16], strides = [1, 1]} : vector<800x16xf32> to vector<200x16xf32>
    %5 = vector.extract_strided_slice %3 {offsets = [200, 0], sizes = [200, 16], strides = [1, 1]} : vector<800x16xf32> to vector<200x16xf32>
    %6 = arith.maximumf %4, %5 : vector<200x16xf32>
    %7 = vector.extract_strided_slice %3 {offsets = [400, 0], sizes = [200, 16], strides = [1, 1]} : vector<800x16xf32> to vector<200x16xf32>
    %8 = vector.extract_strided_slice %3 {offsets = [600, 0], sizes = [200, 16], strides = [1, 1]} : vector<800x16xf32> to vector<200x16xf32>
    %9 = arith.maximumf %7, %8 : vector<200x16xf32>
    %10 = arith.maximumf %6, %9 : vector<200x16xf32>
    %c0_4 = arith.constant 0 : index
    %c0_5 = arith.constant 0 : index
    %11 = vector.load %arg3[%c0_4, %c0_5] : memref<1x16xf32, #tpu.memory_space<vmem>>, vector<1x16xf32>
    %12 = vector.broadcast %11 : vector<1x16xf32> to vector<200x16xf32>
    %13 = arith.addf %10, %12 : vector<200x16xf32>
    %cst_6 = arith.constant 0.000000e+00 : f32
    %14 = vector.broadcast %cst_6 : f32 to vector<200x16xf32>
    %15 = arith.maximumf %13, %14 : vector<200x16xf32>
    %16 = arith.truncf %15 : vector<200x16xf32> to vector<200x16xbf16>
    %c0_7 = arith.constant 0 : index
    %c0_8 = arith.constant 0 : index
    %17 = vector.load %arg4[%c0_7, %c0_8] : memref<200x16xbf16, #tpu.memory_space<vmem>>, vector<200x16xbf16>
    tpu.vector_store %arg4[%c0_7, %c0_8], %16 {strides = array<i32>} : memref<200x16xbf16, #tpu.memory_space<vmem>>, vector<200x16xbf16>,
    return
  }
  func.func @transform_0(%arg0: i32) -> (i32, i32, i32) {
    %c0_i32 = arith.constant 0 : i32
    %c0_i32_0 = arith.constant 0 : i32
    %c0_i32_1 = arith.constant 0 : i32
    return %c0_i32, %arg0, %c0_i32_0 : i32, i32, i32
  }
  func.func @transform_1(%arg0: i32) -> (i32, i32) {
    %c0_i32 = arith.constant 0 : i32
    %c0_i32_0 = arith.constant 0 : i32
    %c0_i32_1 = arith.constant 0 : i32
    return %c0_i32, %c0_i32_0 : i32, i32
  }
  func.func @transform_2(%arg0: i32) -> (i32, i32) {
    %c0_i32 = arith.constant 0 : i32
    %c0_i32_0 = arith.constant 0 : i32
    %c0_i32_1 = arith.constant 0 : i32
    return %c0_i32, %c0_i32_0 : i32, i32
  }
  func.func @transform_3(%arg0: i32) -> (i32, i32) {
    %c0_i32 = arith.constant 0 : i32
    %c0_i32_0 = arith.constant 0 : i32
    return %arg0, %c0_i32 : i32, i32
  }
}

module attributes {stable_mosaic.version = 11 : i64} {
  func.func @conv_relu_pool_kernel(%arg0: i32, %arg1: memref<4x56x144xbf16, #tpu.memory_space<vmem>>, %arg2: memref<144x32xbf16, #tpu.memory_space<vmem>>, %arg3: memref<1x32xf32, #tpu.memory_space<vmem>>, %arg4: memref<56x32xbf16, #tpu.memory_space<vmem>>) attributes {dimension_semantics = [#tpu.dimension_semantics<parallel>], iteration_bounds = array<i64: 2>, scalar_prefetch = 0 : i64, scratch_operands = 0 : i64, tpu.core_type = #tpu.core_type<tc>, window_params = [{transform_indices = @transform_0, window_bounds = array<i64: 4, 56, 144>}, {pipeline_mode = #tpu.pipeline_mode<synchronous>, transform_indices = @transform_1, window_bounds = array<i64: 144, 32>}, {pipeline_mode = #tpu.pipeline_mode<synchronous>, transform_indices = @transform_2, window_bounds = array<i64: 1, 32>}, {transform_indices = @transform_3, window_bounds = array<i64: 56, 32>}]} {
    %c0 = arith.constant 0 : index
    %c0_0 = arith.constant 0 : index
    %c0_1 = arith.constant 0 : index
    %0 = vector.load %arg1[%c0, %c0_0, %c0_1] : memref<4x56x144xbf16, #tpu.memory_space<vmem>>, vector<4x56x144xbf16>
    %1 = vector.shape_cast %0 : vector<4x56x144xbf16> to vector<224x144xbf16>
    %c0_2 = arith.constant 0 : index
    %c0_3 = arith.constant 0 : index
    %2 = vector.load %arg2[%c0_2, %c0_3] : memref<144x32xbf16, #tpu.memory_space<vmem>>, vector<144x32xbf16>
    %cst = arith.constant dense<0.000000e+00> : vector<224x32xf32>
    %3 = tpu.matmul %1, %2, %cst {dimension_numbers = #tpu.dot_dimension_numbers<[1], [0], [0], [1], [0, 0, 1, 1], [], []>} : vector<224x144xbf16>, vector<144x32xbf16>, vector<224x32xf32> -> vector<224x32xf32>
    %4 = vector.extract_strided_slice %3 {offsets = [0, 0], sizes = [56, 32], strides = [1, 1]} : vector<224x32xf32> to vector<56x32xf32>
    %5 = vector.extract_strided_slice %3 {offsets = [56, 0], sizes = [56, 32], strides = [1, 1]} : vector<224x32xf32> to vector<56x32xf32>
    %6 = arith.maximumf %4, %5 : vector<56x32xf32>
    %7 = vector.extract_strided_slice %3 {offsets = [112, 0], sizes = [56, 32], strides = [1, 1]} : vector<224x32xf32> to vector<56x32xf32>
    %8 = vector.extract_strided_slice %3 {offsets = [168, 0], sizes = [56, 32], strides = [1, 1]} : vector<224x32xf32> to vector<56x32xf32>
    %9 = arith.maximumf %7, %8 : vector<56x32xf32>
    %10 = arith.maximumf %6, %9 : vector<56x32xf32>
    %c0_4 = arith.constant 0 : index
    %c0_5 = arith.constant 0 : index
    %11 = vector.load %arg3[%c0_4, %c0_5] : memref<1x32xf32, #tpu.memory_space<vmem>>, vector<1x32xf32>
    %12 = vector.broadcast %11 : vector<1x32xf32> to vector<56x32xf32>
    %13 = arith.addf %10, %12 : vector<56x32xf32>
    %cst_6 = arith.constant 0.000000e+00 : f32
    %14 = vector.broadcast %cst_6 : f32 to vector<56x32xf32>
    %15 = arith.maximumf %13, %14 : vector<56x32xf32>
    %16 = arith.truncf %15 : vector<56x32xf32> to vector<56x32xbf16>
    %c0_7 = arith.constant 0 : index
    %c0_8 = arith.constant 0 : index
    %17 = vector.load %arg4[%c0_7, %c0_8] : memref<56x32xbf16, #tpu.memory_space<vmem>>, vector<56x32xbf16>
    tpu.vector_store %arg4[%c0_7, %c0_8], %16 {strides = array<i32>} : memref<56x32xbf16, #tpu.memory_space<vmem>>, vector<56x32xbf16>,
    return
  }
  func.func @transform_0(%arg0: i32) -> (i32, i32, i32) {
    %c0_i32 = arith.constant 0 : i32
    %c0_i32_0 = arith.constant 0 : i32
    %c0_i32_1 = arith.constant 0 : i32
    return %c0_i32, %arg0, %c0_i32_0 : i32, i32, i32
  }
  func.func @transform_1(%arg0: i32) -> (i32, i32) {
    %c0_i32 = arith.constant 0 : i32
    %c0_i32_0 = arith.constant 0 : i32
    %c0_i32_1 = arith.constant 0 : i32
    return %c0_i32, %c0_i32_0 : i32, i32
  }
  func.func @transform_2(%arg0: i32) -> (i32, i32) {
    %c0_i32 = arith.constant 0 : i32
    %c0_i32_0 = arith.constant 0 : i32
    %c0_i32_1 = arith.constant 0 : i32
    return %c0_i32, %c0_i32_0 : i32, i32
  }
  func.func @transform_3(%arg0: i32) -> (i32, i32) {
    %c0_i32 = arith.constant 0 : i32
    %c0_i32_0 = arith.constant 0 : i32
    return %arg0, %c0_i32 : i32, i32
  }
}

module attributes {stable_mosaic.version = 11 : i64} {
  func.func @mlp_kernel(%arg0: i32, %arg1: memref<8x1568xbf16, #tpu.memory_space<vmem>>, %arg2: memref<1568x512xbf16, #tpu.memory_space<vmem>>, %arg3: memref<1x512xf32, #tpu.memory_space<vmem>>, %arg4: memref<512x512xbf16, #tpu.memory_space<vmem>>, %arg5: memref<1x512xf32, #tpu.memory_space<vmem>>, %arg6: memref<512x128xbf16, #tpu.memory_space<vmem>>, %arg7: memref<1x128xf32, #tpu.memory_space<vmem>>, %arg8: memref<128x10xbf16, #tpu.memory_space<vmem>>, %arg9: memref<1x10xf32, #tpu.memory_space<vmem>>, %arg10: memref<8x10xf32, #tpu.memory_space<vmem>>) attributes {dimension_semantics = [#tpu.dimension_semantics<parallel>], iteration_bounds = array<i64: 2>, scalar_prefetch = 0 : i64, scratch_operands = 0 : i64, tpu.core_type = #tpu.core_type<tc>, window_params = [{transform_indices = @transform_0, window_bounds = array<i64: 8, 1568>}, {pipeline_mode = #tpu.pipeline_mode<synchronous>, transform_indices = @transform_1, window_bounds = array<i64: 1568, 512>}, {pipeline_mode = #tpu.pipeline_mode<synchronous>, transform_indices = @transform_2, window_bounds = array<i64: 1, 512>}, {pipeline_mode = #tpu.pipeline_mode<synchronous>, transform_indices = @transform_3, window_bounds = array<i64: 512, 512>}, {pipeline_mode = #tpu.pipeline_mode<synchronous>, transform_indices = @transform_4, window_bounds = array<i64: 1, 512>}, {pipeline_mode = #tpu.pipeline_mode<synchronous>, transform_indices = @transform_5, window_bounds = array<i64: 512, 128>}, {pipeline_mode = #tpu.pipeline_mode<synchronous>, transform_indices = @transform_6, window_bounds = array<i64: 1, 128>}, {pipeline_mode = #tpu.pipeline_mode<synchronous>, transform_indices = @transform_7, window_bounds = array<i64: 128, 10>}, {pipeline_mode = #tpu.pipeline_mode<synchronous>, transform_indices = @transform_8, window_bounds = array<i64: 1, 10>}, {transform_indices = @transform_9, window_bounds = array<i64: 8, 10>}]} {
    %c0 = arith.constant 0 : index
    %c0_0 = arith.constant 0 : index
    %0 = vector.load %arg1[%c0, %c0_0] : memref<8x1568xbf16, #tpu.memory_space<vmem>>, vector<8x1568xbf16>
    %c0_1 = arith.constant 0 : index
    %c0_2 = arith.constant 0 : index
    %1 = vector.load %arg2[%c0_1, %c0_2] : memref<1568x512xbf16, #tpu.memory_space<vmem>>, vector<1568x512xbf16>
    %cst = arith.constant dense<0.000000e+00> : vector<8x512xf32>
    %2 = tpu.matmul %0, %1, %cst {dimension_numbers = #tpu.dot_dimension_numbers<[1], [0], [0], [1], [0, 0, 1, 1], [], []>} : vector<8x1568xbf16>, vector<1568x512xbf16>, vector<8x512xf32> -> vector<8x512xf32>
    %c0_3 = arith.constant 0 : index
    %c0_4 = arith.constant 0 : index
    %3 = vector.load %arg3[%c0_3, %c0_4] : memref<1x512xf32, #tpu.memory_space<vmem>>, vector<1x512xf32>
    %4 = vector.broadcast %3 : vector<1x512xf32> to vector<8x512xf32>
    %5 = arith.addf %2, %4 : vector<8x512xf32>
    %cst_5 = arith.constant 0.000000e+00 : f32
    %6 = vector.broadcast %cst_5 : f32 to vector<8x512xf32>
    %7 = arith.maximumf %5, %6 : vector<8x512xf32>
    %8 = arith.truncf %7 : vector<8x512xf32> to vector<8x512xbf16>
    %c0_6 = arith.constant 0 : index
    %c0_7 = arith.constant 0 : index
    %9 = vector.load %arg4[%c0_6, %c0_7] : memref<512x512xbf16, #tpu.memory_space<vmem>>, vector<512x512xbf16>
    %cst_8 = arith.constant dense<0.000000e+00> : vector<8x512xf32>
    %10 = tpu.matmul %8, %9, %cst_8 {dimension_numbers = #tpu.dot_dimension_numbers<[1], [0], [0], [1], [0, 0, 1, 1], [], []>} : vector<8x512xbf16>, vector<512x512xbf16>, vector<8x512xf32> -> vector<8x512xf32>
    %c0_9 = arith.constant 0 : index
    %c0_10 = arith.constant 0 : index
    %11 = vector.load %arg5[%c0_9, %c0_10] : memref<1x512xf32, #tpu.memory_space<vmem>>, vector<1x512xf32>
    %12 = vector.broadcast %11 : vector<1x512xf32> to vector<8x512xf32>
    %13 = arith.addf %10, %12 : vector<8x512xf32>
    %cst_11 = arith.constant 0.000000e+00 : f32
    %14 = vector.broadcast %cst_11 : f32 to vector<8x512xf32>
    %15 = arith.maximumf %13, %14 : vector<8x512xf32>
    %16 = arith.truncf %15 : vector<8x512xf32> to vector<8x512xbf16>
    %c0_12 = arith.constant 0 : index
    %c0_13 = arith.constant 0 : index
    %17 = vector.load %arg6[%c0_12, %c0_13] : memref<512x128xbf16, #tpu.memory_space<vmem>>, vector<512x128xbf16>
    %cst_14 = arith.constant dense<0.000000e+00> : vector<8x128xf32>
    %18 = tpu.matmul %16, %17, %cst_14 {dimension_numbers = #tpu.dot_dimension_numbers<[1], [0], [0], [1], [0, 0, 1, 1], [], []>} : vector<8x512xbf16>, vector<512x128xbf16>, vector<8x128xf32> -> vector<8x128xf32>
    %c0_15 = arith.constant 0 : index
    %c0_16 = arith.constant 0 : index
    %19 = vector.load %arg7[%c0_15, %c0_16] : memref<1x128xf32, #tpu.memory_space<vmem>>, vector<1x128xf32>
    %20 = vector.broadcast %19 : vector<1x128xf32> to vector<8x128xf32>
    %21 = arith.addf %18, %20 : vector<8x128xf32>
    %cst_17 = arith.constant 0.000000e+00 : f32
    %22 = vector.broadcast %cst_17 : f32 to vector<8x128xf32>
    %23 = arith.maximumf %21, %22 : vector<8x128xf32>
    %24 = arith.truncf %23 : vector<8x128xf32> to vector<8x128xbf16>
    %c0_18 = arith.constant 0 : index
    %c0_19 = arith.constant 0 : index
    %25 = vector.load %arg8[%c0_18, %c0_19] : memref<128x10xbf16, #tpu.memory_space<vmem>>, vector<128x10xbf16>
    %cst_20 = arith.constant dense<0.000000e+00> : vector<8x10xf32>
    %26 = tpu.matmul %24, %25, %cst_20 {dimension_numbers = #tpu.dot_dimension_numbers<[1], [0], [0], [1], [0, 0, 1, 1], [], []>} : vector<8x128xbf16>, vector<128x10xbf16>, vector<8x10xf32> -> vector<8x10xf32>
    %c0_21 = arith.constant 0 : index
    %c0_22 = arith.constant 0 : index
    %27 = vector.load %arg9[%c0_21, %c0_22] : memref<1x10xf32, #tpu.memory_space<vmem>>, vector<1x10xf32>
    %28 = vector.broadcast %27 : vector<1x10xf32> to vector<8x10xf32>
    %29 = arith.addf %26, %28 : vector<8x10xf32>
    %c0_23 = arith.constant 0 : index
    %c0_24 = arith.constant 0 : index
    %30 = vector.load %arg10[%c0_23, %c0_24] : memref<8x10xf32, #tpu.memory_space<vmem>>, vector<8x10xf32>
    tpu.vector_store %arg10[%c0_23, %c0_24], %29 {strides = array<i32>} : memref<8x10xf32, #tpu.memory_space<vmem>>, vector<8x10xf32>,
    return
  }
  func.func @transform_0(%arg0: i32) -> (i32, i32) {
    %c0_i32 = arith.constant 0 : i32
    %c0_i32_0 = arith.constant 0 : i32
    return %arg0, %c0_i32 : i32, i32
  }
  func.func @transform_1(%arg0: i32) -> (i32, i32) {
    %c0_i32 = arith.constant 0 : i32
    %c0_i32_0 = arith.constant 0 : i32
    %c0_i32_1 = arith.constant 0 : i32
    return %c0_i32, %c0_i32_0 : i32, i32
  }
  func.func @transform_2(%arg0: i32) -> (i32, i32) {
    %c0_i32 = arith.constant 0 : i32
    %c0_i32_0 = arith.constant 0 : i32
    %c0_i32_1 = arith.constant 0 : i32
    return %c0_i32, %c0_i32_0 : i32, i32
  }
  func.func @transform_3(%arg0: i32) -> (i32, i32) {
    %c0_i32 = arith.constant 0 : i32
    %c0_i32_0 = arith.constant 0 : i32
    %c0_i32_1 = arith.constant 0 : i32
    return %c0_i32, %c0_i32_0 : i32, i32
  }
  func.func @transform_4(%arg0: i32) -> (i32, i32) {
    %c0_i32 = arith.constant 0 : i32
    %c0_i32_0 = arith.constant 0 : i32
    %c0_i32_1 = arith.constant 0 : i32
    return %c0_i32, %c0_i32_0 : i32, i32
  }
  func.func @transform_5(%arg0: i32) -> (i32, i32) {
    %c0_i32 = arith.constant 0 : i32
    %c0_i32_0 = arith.constant 0 : i32
    %c0_i32_1 = arith.constant 0 : i32
    return %c0_i32, %c0_i32_0 : i32, i32
  }
  func.func @transform_6(%arg0: i32) -> (i32, i32) {
    %c0_i32 = arith.constant 0 : i32
    %c0_i32_0 = arith.constant 0 : i32
    %c0_i32_1 = arith.constant 0 : i32
    return %c0_i32, %c0_i32_0 : i32, i32
  }
  func.func @transform_7(%arg0: i32) -> (i32, i32) {
    %c0_i32 = arith.constant 0 : i32
    %c0_i32_0 = arith.constant 0 : i32
    %c0_i32_1 = arith.constant 0 : i32
    return %c0_i32, %c0_i32_0 : i32, i32
  }
  func.func @transform_8(%arg0: i32) -> (i32, i32) {
    %c0_i32 = arith.constant 0 : i32
    %c0_i32_0 = arith.constant 0 : i32
    %c0_i32_1 = arith.constant 0 : i32
    return %c0_i32, %c0_i32_0 : i32, i32
  }
  func.func @transform_9(%arg0: i32) -> (i32, i32) {
    %c0_i32 = arith.constant 0 : i32
    %c0_i32_0 = arith.constant 0 : i32
    return %arg0, %c0_i32 : i32, i32
  }
}

</mosaic_0001>

<llo_original>
// kernel: cnn_forward.3
$region0: #{cnn_forward.3}
  #allocation0 [shape = 'u32[]', space=smem, size = 0x4, offset = 0x4, fixed_abs, tag = 'smem constant byte address 0x4 - core index']
  #allocation1 [shape = 'u32[72,128]{1,0:T(1,128)}', space=vmem, size = 0x9000, scoped, tag = 'internal scratch']
  %s0 = inlined_call_operand.vmem [shape: bf16[4,400,9], index: 0, kind: input, shape index: {}]
  %s1 = inlined_call_operand.vmem [shape: bf16[9,16], index: 1, kind: input, shape index: {}]
  %s2 = inlined_call_operand.hbm [shape: f32[1,16], index: 2, kind: input, shape index: {}]
  %s3 = inlined_call_operand.vmem [shape: bf16[400,16], index: 3, kind: output, shape index: {}]
  %s4 = sld [smem:[#allocation0]]
  $region90: #{cnn_forward.3} parent=0
    _
  %s6 = ssub.s32 1, %s4
  %s7 = scalar_select 0, %s6, %s4
  $region1: #{cnn_forward.3} parent=0
    #allocation2 [shape = 'u8[409600]{0}', space=vmem, size = 0x64000, scoped, tag = 'input window, operand 0']
    #allocation3 [shape = 'u8[512]{0}', space=vmem, size = 0x400, scoped, tag = 'input window, operand 2, single buffered']
    #allocation4 [shape = 's32[2]{0}', space=sflag, size = 0x8, scoped, tag = 'scoped memory for cnn_forward.3']
    %8 = vsyncpa [#allocation4], 0
    loop: start=0, step=1, limit=4
    $region2: #{cnn_forward.3} parent=1 // loop_pre_header
      _
    $region3: #{cnn_forward.3} parent=1 // loop_header
      %s10 = sphi 0, %s14
      %p11 = scmp.ge.s32.totalorder %s10, 4
      %s20 = sphi 0, %s22
      %s23 = sphi 0, %s20
      %s24 = sphi 0, %s23
      %s40 = sphi 0, %s24
      %s44 = sphi 0, %s44
      %s46 = sphi 0, %s44
      %s47 = sphi 0, %s46
      %s61 = sphi 0, %s47
      %s65 = sphi 0, %s65
      %s67 = sphi 0, %s65
      %s68 = sphi 0, %s67
      %s82 = sphi 0, %s68
      %s88 = sphi 0, %s90
      %s91 = sphi 0, %s88
      %s92 = sphi 0, %s91
      %s108 = sphi 0, %s92
    $region4: #{cnn_forward.3} parent=1 // loop_header_branch
      %13 = sbr.rel (%p11) target = $region8
    $region5: #{cnn_forward.3} parent=1 // loop_body
      %s15 = ssub.s32 %s10, 1
      %s16 = ssub.s32 %s10, 2
      %s17 = sadd.s32 %s10, 1
      %s18 = ssub.s32 %s10, %s17
      %p19 = scmp.eq.s32.totalorder %s18, 0
      %s21 = sadd.s32 %s20, 1
      %s22 = scalar_select %p19, %s20, %s21
      %p25 = pneg %p19
      %p26 = scmp.eq.s32.totalorder %s10, 1
      %p27 = por %p25, %p26
      %p28 = scmp.ne.s32.totalorder %s20, %s23
      %p29 = scmp.eq.s32.totalorder %s10, 0
      %p30 = por %p28, %p29
      %p31 = scmp.ne.s32.totalorder %s20, %s23
      %p32 = scmp.eq.s32.totalorder %s15, 1
      %p33 = por %p31, %p32
      %p34 = scmp.ne.s32.totalorder %s23, %s24
      %p35 = scmp.eq.s32.totalorder %s15, 0
      %p36 = por %p34, %p35
      %p37 = scmp.ne.s32.totalorder %s23, %s24
      %p38 = scmp.eq.s32.totalorder %s16, 1
      %p39 = por %p37, %p38
      %p41 = scmp.ne.s32.totalorder %s24, %s40
      %p42 = scmp.eq.s32.totalorder %s16, 0
      %p43 = por %p41, %p42
      %s45 = sadd.s32 %s44, 1
      %p48 = scmp.eq.s32.totalorder %s10, 1
      %p49 = scmp.ne.s32.totalorder %s44, %s46
      %p50 = scmp.eq.s32.totalorder %s10, 0
      %p51 = por %p49, %p50
      %p52 = scmp.ne.s32.totalorder %s44, %s46
      %p53 = scmp.eq.s32.totalorder %s15, 1
      %p54 = por %p52, %p53
      %p55 = scmp.ne.s32.totalorder %s46, %s47
      %p56 = scmp.eq.s32.totalorder %s15, 0
      %p57 = por %p55, %p56
      %p58 = scmp.ne.s32.totalorder %s46, %s47
      %p59 = scmp.eq.s32.totalorder %s16, 1
      %p60 = por %p58, %p59
      %p62 = scmp.ne.s32.totalorder %s47, %s61
      %p63 = scmp.eq.s32.totalorder %s16, 0
      %p64 = por %p62, %p63
      %s66 = sadd.s32 %s65, 1
      %p69 = scmp.eq.s32.totalorder %s10, 1
      %p70 = scmp.ne.s32.totalorder %s65, %s67
      %p71 = scmp.eq.s32.totalorder %s10, 0
      %p72 = por %p70, %p71
      %p73 = scmp.ne.s32.totalorder %s65, %s67
      %p74 = scmp.eq.s32.totalorder %s15, 1
      %p75 = por %p73, %p74
      %p76 = scmp.ne.s32.totalorder %s67, %s68
      %p77 = scmp.eq.s32.totalorder %s15, 0
      %p78 = por %p76, %p77
      %p79 = scmp.ne.s32.totalorder %s67, %s68
      %p80 = scmp.eq.s32.totalorder %s16, 1
      %p81 = por %p79, %p80
      %p83 = scmp.ne.s32.totalorder %s68, %s82
      %p84 = scmp.eq.s32.totalorder %s16, 0
      %p85 = por %p83, %p84
      %s86 = ssub.s32 %s10, %s17
      %p87 = scmp.eq.s32.totalorder %s86, 0
      %s89 = sadd.s32 %s88, 1
      %s90 = scalar_select %p87, %s88, %s89
      %p93 = pneg %p87
      %p94 = scmp.eq.s32.totalorder %s10, 1
      %p95 = por %p93, %p94
      %p96 = scmp.ne.s32.totalorder %s88, %s91
      %p97 = scmp.eq.s32.totalorder %s10, 0
      %p98 = por %p96, %p97
      %p99 = scmp.ne.s32.totalorder %s88, %s91
      %p100 = scmp.eq.s32.totalorder %s15, 1
      %p101 = por %p99, %p100
      %p102 = scmp.ne.s32.totalorder %s91, %s92
      %p103 = scmp.eq.s32.totalorder %s15, 0
      %p104 = por %p102, %p103
      %p105 = scmp.ne.s32.totalorder %s91, %s92
      %p106 = scmp.eq.s32.totalorder %s16, 1
      %p107 = por %p105, %p106
      %p109 = scmp.ne.s32.totalorder %s92, %s108
      %p110 = scmp.eq.s32.totalorder %s16, 0
      %p111 = por %p109, %p110
      %p112 = scmp.le.s32.totalorder 1, %s10
      %p113 = scmp.lt.s32.totalorder %s10, 3
      %p114 = pnand %p112, %p113
      %p115 = pneg %p114
      // Predicated region
      $region9: #{cnn_forward.3} parent=5 // pred_check
        _
      $region10: #{cnn_forward.3} parent=5 // pred_check_branch
        %117 = sbr.rel (%p114) target = $region12
      $region11: #{cnn_forward.3} parent=5 // pred_region
        %s118 = ssub.s32 %s10, 1
        // Predicated region
        $region13: #{cnn_forward.3} parent=11 // pred_check
          %p119 = pneg %p57
        $region14: #{cnn_forward.3} parent=11 // pred_check_branch
          %121 = sbr.rel (%p119) target = $region16
        $region15: #{cnn_forward.3} parent=11 // pred_region
          _
        $region16: #{cnn_forward.3} parent=11 // pred_fallthru
          _
        // Predicated region
        $region17: #{cnn_forward.3} parent=11 // pred_check
          %p122 = pneg %p78
        $region18: #{cnn_forward.3} parent=11 // pred_check_branch
          %124 = sbr.rel (%p122) target = $region20
        $region19: #{cnn_forward.3} parent=11 // pred_region
          %126 = vsyncadd [#allocation4], 0
          %s128 = sshll.u32 %s2, 4
          %s129 = int_to_ptr.hbm [resolvable:$true] %s128
          %s130 = sshll.u32 [#allocation3], 4
          %s131 = int_to_ptr.vmem [resolvable:$true] %s130
          %133 = dma.hbm_to_vmem [thread:$0]  %s129, 16, %s131, [#allocation4]
        $region20: #{cnn_forward.3} parent=11 // pred_fallthru
          _
      $region12: #{cnn_forward.3} parent=5 // pred_fallthru
        _
      %p134 = scmp.lt.s32.totalorder %s10, 2
      // Predicated region
      $region21: #{cnn_forward.3} parent=5 // pred_check
        %p135 = pneg %p134
      $region22: #{cnn_forward.3} parent=5 // pred_check_branch
        %137 = sbr.rel (%p135) target = $region24
      $region23: #{cnn_forward.3} parent=5 // pred_region
        // Predicated region
        $region25: #{cnn_forward.3} parent=23 // pred_check
          %p138 = pneg %p30
        $region26: #{cnn_forward.3} parent=23 // pred_check_branch
          %140 = sbr.rel (%p138) target = $region28
        $region27: #{cnn_forward.3} parent=23 // pred_region
          %s141 = sand.u32 %s20, 1
          %s142 = sand.u32 %s20, 1
          %s143 = smul.addr %s142, 400
          %s144 = scalar_lea.vmem [#allocation2], %s143
          %s145 = smul.u32 25, %s10
          %s146 = smul.addr %s145, 4
          %s147 = scalar_lea.vmem %s0, %s146
          // Predicated region
          $region29: #{cnn_forward.3} parent=27 // pred_check
            _
          $region30: #{cnn_forward.3} parent=27 // pred_check_branch
            %149 = sbr.rel (0) target = $region32
          $region31: #{cnn_forward.3} parent=27 // pred_region
            // Predicated region
            $region33: #{cnn_forward.3} parent=31 // pred_check
              _
            $region34: #{cnn_forward.3} parent=31 // pred_check_branch
              %151 = sbr.rel target = $region36
            $region35: #{cnn_forward.3} parent=31 // pred_region
              // Predicated region
              $region48: #{cnn_forward.3} parent=35 // pred_check
                _
              $region49: #{cnn_forward.3} parent=35 // pred_check_branch
                %365 = sbr.rel (0) target = $region51
              $region50: #{cnn_forward.3} parent=35 // pred_region
                loop: start=0, step=1, limit=1
                $region52: #{cnn_forward.3} parent=50 // loop_pre_header
                  _
                $region53: #{cnn_forward.3} parent=50 // loop_header
                  %s367 = sphi 0, %s371
                  %p368 = scmp.ge.s32.totalorder %s367, 1
                  %s372 = sphi %s147, %s147
                  %s373 = sphi %s144, %s144
                $region54: #{cnn_forward.3} parent=50 // loop_header_branch
                  %370 = sbr.rel (%p368) target = $region58
                $region55: #{cnn_forward.3} parent=50 // loop_body
                  _
                $region56: #{cnn_forward.3} parent=50 // loop_footer
                  %s371 = sadd.s32 1, %s367
                $region57: #{cnn_forward.3} parent=50 // loop_footer_branch
                  %366 = sbr.rel target = $region53
                $region58: #{cnn_forward.3} parent=50 // loop_exit
                  _
                %s375 = ssub.s32 16, 1
                loop: start=0, step=1, limit=1
                $region59: #{cnn_forward.3} parent=50 // loop_pre_header
                  _
                $region60: #{cnn_forward.3} parent=50 // loop_header
                  %s377 = sphi 0, %s381
                  %p378 = scmp.ge.s32.totalorder %s377, 1
                  %s382 = sphi %s147, %s147
                  %s383 = sphi %s144, %s144
                $region61: #{cnn_forward.3} parent=50 // loop_header_branch
                  %380 = sbr.rel (%p378) target = $region65
                $region62: #{cnn_forward.3} parent=50 // loop_body
                  %v384 = vld [vmem:[%s382] sm:%s375]
                  %385 = vst [vmem:[%s383] sm:%s375] %v384
                  %v386 = vld [vmem:[%s382 + $0x4] sm:%s375]
                  %387 = vst [vmem:[%s383 + $0x4] sm:%s375] %v386
                  %v388 = vld [vmem:[%s382 + $0x8] sm:%s375]
                  %389 = vst [vmem:[%s383 + $0x8] sm:%s375] %v388
                  %v390 = vld [vmem:[%s382 + $0xc] sm:%s375]
                  %391 = vst [vmem:[%s383 + $0xc] sm:%s375] %v390
                  %v392 = vld [vmem:[%s382 + $0x10] sm:%s375]
                  %393 = vst [vmem:[%s383 + $0x10] sm:%s375] %v392
                  %v394 = vld [vmem:[%s382 + $0x14] sm:%s375]
                  %395 = vst [vmem:[%s383 + $0x14] sm:%s375] %v394
                  %v396 = vld [vmem:[%s382 + $0x18] sm:%s375]
                  %397 = vst [vmem:[%s383 + $0x18] sm:%s375] %v396
                  %v398 = vld [vmem:[%s382 + $0x1c] sm:%s375]
                  %399 = vst [vmem:[%s383 + $0x1c] sm:%s375] %v398
                  %v400 = vld [vmem:[%s382 + $0x20] sm:%s375]
                  %401 = vst [vmem:[%s383 + $0x20] sm:%s375] %v400
                  %v402 = vld [vmem:[%s382 + $0x24] sm:%s375]
                  %403 = vst [vmem:[%s383 + $0x24] sm:%s375] %v402
                  %v404 = vld [vmem:[%s382 + $0x28] sm:%s375]
                  %405 = vst [vmem:[%s383 + $0x28] sm:%s375] %v404
                  %v406 = vld [vmem:[%s382 + $0x2c] sm:%s375]
                  %407 = vst [vmem:[%s383 + $0x2c] sm:%s375] %v406
                  %v408 = vld [vmem:[%s382 + $0x30] sm:%s375]
                  %409 = vst [vmem:[%s383 + $0x30] sm:%s375] %v408
                  %v410 = vld [vmem:[%s382 + $0x34] sm:%s375]
                  %411 = vst [vmem:[%s383 + $0x34] sm:%s375] %v410
                  %v412 = vld [vmem:[%s382 + $0x38] sm:%s375]
                  %413 = vst [vmem:[%s383 + $0x38] sm:%s375] %v412
                  %v414 = vld [vmem:[%s382 + $0x3c] sm:%s375]
                  %415 = vst [vmem:[%s383 + $0x3c] sm:%s375] %v414
                  %v416 = vld [vmem:[%s382 + $0x40] sm:%s375]
                  %417 = vst [vmem:[%s383 + $0x40] sm:%s375] %v416
                  %v418 = vld [vmem:[%s382 + $0x44] sm:%s375]
                  %419 = vst [vmem:[%s383 + $0x44] sm:%s375] %v418
                  %v420 = vld [vmem:[%s382 + $0x48] sm:%s375]
                  %421 = vst [vmem:[%s383 + $0x48] sm:%s375] %v420
                  %v422 = vld [vmem:[%s382 + $0x4c] sm:%s375]
                  %423 = vst [vmem:[%s383 + $0x4c] sm:%s375] %v422
                  %v424 = vld [vmem:[%s382 + $0x50] sm:%s375]
                  %425 = vst [vmem:[%s383 + $0x50] sm:%s375] %v424
                  %v426 = vld [vmem:[%s382 + $0x54] sm:%s375]
                  %427 = vst [vmem:[%s383 + $0x54] sm:%s375] %v426
                  %v428 = vld [vmem:[%s382 + $0x58] sm:%s375]
                  %429 = vst [vmem:[%s383 + $0x58] sm:%s375] %v428
                  %v430 = vld [vmem:[%s382 + $0x5c] sm:%s375]
                  %431 = vst [vmem:[%s383 + $0x5c] sm:%s375] %v430
                  %v432 = vld [vmem:[%s382 + $0x60] sm:%s375]
                  %433 = vst [vmem:[%s383 + $0x60] sm:%s375] %v432
                  %v434 = vld [vmem:[%s382 + $0xc8] sm:%s375]
                  %435 = vst [vmem:[%s383 + $0x64] sm:%s375] %v434
                  %v436 = vld [vmem:[%s382 + $0xcc] sm:%s375]
                  %437 = vst [vmem:[%s383 + $0x68] sm:%s375] %v436
                  %v438 = vld [vmem:[%s382 + $0xd0] sm:%s375]
                  %439 = vst [vmem:[%s383 + $0x6c] sm:%s375] %v438
                  %v440 = vld [vmem:[%s382 + $0xd4] sm:%s375]
                  %441 = vst [vmem:[%s383 + $0x70] sm:%s375] %v440
                  %v442 = vld [vmem:[%s382 + $0xd8] sm:%s375]
                  %443 = vst [vmem:[%s383 + $0x74] sm:%s375] %v442
                  %v444 = vld [vmem:[%s382 + $0xdc] sm:%s375]
                  %445 = vst [vmem:[%s383 + $0x78] sm:%s375] %v444
                  %v446 = vld [vmem:[%s382 + $0xe0] sm:%s375]
                  %447 = vst [vmem:[%s383 + $0x7c] sm:%s375] %v446
                  %v448 = vld [vmem:[%s382 + $0xe4] sm:%s375]
                  %449 = vst [vmem:[%s383 + $0x80] sm:%s375] %v448
                  %v450 = vld [vmem:[%s382 + $0xe8] sm:%s375]
                  %451 = vst [vmem:[%s383 + $0x84] sm:%s375] %v450
                  %v452 = vld [vmem:[%s382 + $0xec] sm:%s375]
                  %453 = vst [vmem:[%s383 + $0x88] sm:%s375] %v452
                  %v454 = vld [vmem:[%s382 + $0xf0] sm:%s375]
                  %455 = vst [vmem:[%s383 + $0x8c] sm:%s375] %v454
                  %v456 = vld [vmem:[%s382 + $0xf4] sm:%s375]
                  %457 = vst [vmem:[%s383 + $0x90] sm:%s375] %v456
                  %v458 = vld [vmem:[%s382 + $0xf8] sm:%s375]
                  %459 = vst [vmem:[%s383 + $0x94] sm:%s375] %v458
                  %v460 = vld [vmem:[%s382 + $0xfc] sm:%s375]
                  %461 = vst [vmem:[%s383 + $0x98] sm:%s375] %v460
                  %v462 = vld [vmem:[%s382 + $0x100] sm:%s375]
                  %463 = vst [vmem:[%s383 + $0x9c] sm:%s375] %v462
                  %v464 = vld [vmem:[%s382 + $0x104] sm:%s375]
                  %465 = vst [vmem:[%s383 + $0xa0] sm:%s375] %v464
                  %v466 = vld [vmem:[%s382 + $0x108] sm:%s375]
                  %467 = vst [vmem:[%s383 + $0xa4] sm:%s375] %v466
                  %v468 = vld [vmem:[%s382 + $0x10c] sm:%s375]
                  %469 = vst [vmem:[%s383 + $0xa8] sm:%s375] %v468
                  %v470 = vld [vmem:[%s382 + $0x110] sm:%s375]
                  %471 = vst [vmem:[%s383 + $0xac] sm:%s375] %v470
                  %v472 = vld [vmem:[%s382 + $0x114] sm:%s375]
                  %473 = vst [vmem:[%s383 + $0xb0] sm:%s375] %v472
                  %v474 = vld [vmem:[%s382 + $0x118] sm:%s375]
                  %475 = vst [vmem:[%s383 + $0xb4] sm:%s375] %v474
                  %v476 = vld [vmem:[%s382 + $0x11c] sm:%s375]
                  %477 = vst [vmem:[%s383 + $0xb8] sm:%s375] %v476
                  %v478 = vld [vmem:[%s382 + $0x120] sm:%s375]
                  %479 = vst [vmem:[%s383 + $0xbc] sm:%s375] %v478
                  %v480 = vld [vmem:[%s382 + $0x124] sm:%s375]
                  %481 = vst [vmem:[%s383 + $0xc0] sm:%s375] %v480
                  %v482 = vld [vmem:[%s382 + $0x128] sm:%s375]
                  %483 = vst [vmem:[%s383 + $0xc4] sm:%s375] %v482
                  %v484 = vld [vmem:[%s382 + $0x190] sm:%s375]
                  %485 = vst [vmem:[%s383 + $0xc8] sm:%s375] %v484
                  %v486 = vld [vmem:[%s382 + $0x194] sm:%s375]
                  %487 = vst [vmem:[%s383 + $0xcc] sm:%s375] %v486
                  %v488 = vld [vmem:[%s382 + $0x198] sm:%s375]
                  %489 = vst [vmem:[%s383 + $0xd0] sm:%s375] %v488
                  %v490 = vld [vmem:[%s382 + $0x19c] sm:%s375]
                  %491 = vst [vmem:[%s383 + $0xd4] sm:%s375] %v490
                  %v492 = vld [vmem:[%s382 + $0x1a0] sm:%s375]
                  %493 = vst [vmem:[%s383 + $0xd8] sm:%s375] %v492
                  %v494 = vld [vmem:[%s382 + $0x1a4] sm:%s375]
                  %495 = vst [vmem:[%s383 + $0xdc] sm:%s375] %v494
                  %v496 = vld [vmem:[%s382 + $0x1a8] sm:%s375]
                  %497 = vst [vmem:[%s383 + $0xe0] sm:%s375] %v496
                  %v498 = vld [vmem:[%s382 + $0x1ac] sm:%s375]
                  %499 = vst [vmem:[%s383 + $0xe4] sm:%s375] %v498
                  %v500 = vld [vmem:[%s382 + $0x1b0] sm:%s375]
                  %501 = vst [vmem:[%s383 + $0xe8] sm:%s375] %v500
                  %v502 = vld [vmem:[%s382 + $0x1b4] sm:%s375]
                  %503 = vst [vmem:[%s383 + $0xec] sm:%s375] %v502
                  %v504 = vld [vmem:[%s382 + $0x1b8] sm:%s375]
                  %505 = vst [vmem:[%s383 + $0xf0] sm:%s375] %v504
                  %v506 = vld [vmem:[%s382 + $0x1bc] sm:%s375]
                  %507 = vst [vmem:[%s383 + $0xf4] sm:%s375] %v506
                  %v508 = vld [vmem:[%s382 + $0x1c0] sm:%s375]
                  %509 = vst [vmem:[%s383 + $0xf8] sm:%s375] %v508
                  %v510 = vld [vmem:[%s382 + $0x1c4] sm:%s375]
                  %511 = vst [vmem:[%s383 + $0xfc] sm:%s375] %v510
                  %v512 = vld [vmem:[%s382 + $0x1c8] sm:%s375]
                  %513 = vst [vmem:[%s383 + $0x100] sm:%s375] %v512
                  %v514 = vld [vmem:[%s382 + $0x1cc] sm:%s375]
                  %515 = vst [vmem:[%s383 + $0x104] sm:%s375] %v514
                  %v516 = vld [vmem:[%s382 + $0x1d0] sm:%s375]
                  %517 = vst [vmem:[%s383 + $0x108] sm:%s375] %v516
                  %v518 = vld [vmem:[%s382 + $0x1d4] sm:%s375]
                  %519 = vst [vmem:[%s383 + $0x10c] sm:%s375] %v518
                  %v520 = vld [vmem:[%s382 + $0x1d8] sm:%s375]
                  %521 = vst [vmem:[%s383 + $0x110] sm:%s375] %v520
                  %v522 = vld [vmem:[%s382 + $0x1dc] sm:%s375]
                  %523 = vst [vmem:[%s383 + $0x114] sm:%s375] %v522
                  %v524 = vld [vmem:[%s382 + $0x1e0] sm:%s375]
                  %525 = vst [vmem:[%s383 + $0x118] sm:%s375] %v524
                  %v526 = vld [vmem:[%s382 + $0x1e4] sm:%s375]
                  %527 = vst [vmem:[%s383 + $0x11c] sm:%s375] %v526
                  %v528 = vld [vmem:[%s382 + $0x1e8] sm:%s375]
                  %529 = vst [vmem:[%s383 + $0x120] sm:%s375] %v528
                  %v530 = vld [vmem:[%s382 + $0x1ec] sm:%s375]
                  %531 = vst [vmem:[%s383 + $0x124] sm:%s375] %v530
                  %v532 = vld [vmem:[%s382 + $0x1f0] sm:%s375]
                  %533 = vst [vmem:[%s383 + $0x128] sm:%s375] %v532
                  %v534 = vld [vmem:[%s382 + $0x258] sm:%s375]
                  %535 = vst [vmem:[%s383 + $0x12c] sm:%s375] %v534
                  %v536 = vld [vmem:[%s382 + $0x25c] sm:%s375]
                  %537 = vst [vmem:[%s383 + $0x130] sm:%s375] %v536
                  %v538 = vld [vmem:[%s382 + $0x260] sm:%s375]
                  %539 = vst [vmem:[%s383 + $0x134] sm:%s375] %v538
                  %v540 = vld [vmem:[%s382 + $0x264] sm:%s375]
                  %541 = vst [vmem:[%s383 + $0x138] sm:%s375] %v540
                  %v542 = vld [vmem:[%s382 + $0x268] sm:%s375]
                  %543 = vst [vmem:[%s383 + $0x13c] sm:%s375] %v542
                  %v544 = vld [vmem:[%s382 + $0x26c] sm:%s375]
                  %545 = vst [vmem:[%s383 + $0x140] sm:%s375] %v544
                  %v546 = vld [vmem:[%s382 + $0x270] sm:%s375]
                  %547 = vst [vmem:[%s383 + $0x144] sm:%s375] %v546
                  %v548 = vld [vmem:[%s382 + $0x274] sm:%s375]
                  %549 = vst [vmem:[%s383 + $0x148] sm:%s375] %v548
                  %v550 = vld [vmem:[%s382 + $0x278] sm:%s375]
                  %551 = vst [vmem:[%s383 + $0x14c] sm:%s375] %v550
                  %v552 = vld [vmem:[%s382 + $0x27c] sm:%s375]
                  %553 = vst [vmem:[%s383 + $0x150] sm:%s375] %v552
                  %v554 = vld [vmem:[%s382 + $0x280] sm:%s375]
                  %555 = vst [vmem:[%s383 + $0x154] sm:%s375] %v554
                  %v556 = vld [vmem:[%s382 + $0x284] sm:%s375]
                  %557 = vst [vmem:[%s383 + $0x158] sm:%s375] %v556
                  %v558 = vld [vmem:[%s382 + $0x288] sm:%s375]
                  %559 = vst [vmem:[%s383 + $0x15c] sm:%s375] %v558
                  %v560 = vld [vmem:[%s382 + $0x28c] sm:%s375]
                  %561 = vst [vmem:[%s383 + $0x160] sm:%s375] %v560
                  %v562 = vld [vmem:[%s382 + $0x290] sm:%s375]
                  %563 = vst [vmem:[%s383 + $0x164] sm:%s375] %v562
                  %v564 = vld [vmem:[%s382 + $0x294] sm:%s375]
                  %565 = vst [vmem:[%s383 + $0x168] sm:%s375] %v564
                  %v566 = vld [vmem:[%s382 + $0x298] sm:%s375]
                  %567 = vst [vmem:[%s383 + $0x16c] sm:%s375] %v566
                  %v568 = vld [vmem:[%s382 + $0x29c] sm:%s375]
                  %569 = vst [vmem:[%s383 + $0x170] sm:%s375] %v568
                  %v570 = vld [vmem:[%s382 + $0x2a0] sm:%s375]
                  %571 = vst [vmem:[%s383 + $0x174] sm:%s375] %v570
                  %v572 = vld [vmem:[%s382 + $0x2a4] sm:%s375]
                  %573 = vst [vmem:[%s383 + $0x178] sm:%s375] %v572
                  %v574 = vld [vmem:[%s382 + $0x2a8] sm:%s375]
                  %575 = vst [vmem:[%s383 + $0x17c] sm:%s375] %v574
                  %v576 = vld [vmem:[%s382 + $0x2ac] sm:%s375]
                  %577 = vst [vmem:[%s383 + $0x180] sm:%s375] %v576
                  %v578 = vld [vmem:[%s382 + $0x2b0] sm:%s375]
                  %579 = vst [vmem:[%s383 + $0x184] sm:%s375] %v578
                  %v580 = vld [vmem:[%s382 + $0x2b4] sm:%s375]
                  %581 = vst [vmem:[%s383 + $0x188] sm:%s375] %v580
                  %v582 = vld [vmem:[%s382 + $0x2b8] sm:%s375]
                  %583 = vst [vmem:[%s383 + $0x18c] sm:%s375] %v582
                $region63: #{cnn_forward.3} parent=50 // loop_footer
                  %s381 = sadd.s32 1, %s377
                $region64: #{cnn_forward.3} parent=50 // loop_footer_branch
                  %376 = sbr.rel target = $region60
                $region65: #{cnn_forward.3} parent=50 // loop_exit
                  _
              $region51: #{cnn_forward.3} parent=35 // pred_fallthru
                _
            $region36: #{cnn_forward.3} parent=31 // pred_fallthru
              _
            // Predicated region
            $region37: #{cnn_forward.3} parent=31 // pred_check
              _
            $region38: #{cnn_forward.3} parent=31 // pred_check_branch
              %153 = sbr.rel (0) target = $region40
            $region39: #{cnn_forward.3} parent=31 // pred_region
              %s155 = ssub.s32 16, 1
              loop: start=0, step=1, limit=1
              $region41: #{cnn_forward.3} parent=39 // loop_pre_header
                _
              $region42: #{cnn_forward.3} parent=39 // loop_header
                %s157 = sphi 0, %s161
                %p158 = scmp.ge.s32.totalorder %s157, 1
                %s162 = sphi %s147, %s147
                %s163 = sphi %s144, %s144
              $region43: #{cnn_forward.3} parent=39 // loop_header_branch
                %160 = sbr.rel (%p158) target = $region47
              $region44: #{cnn_forward.3} parent=39 // loop_body
                %v164 = vld [vmem:[%s162] sm:%s155]
                %165 = vst [vmem:[%s163] sm:%s155] %v164
                %v166 = vld [vmem:[%s162 + $0x4] sm:%s155]
                %167 = vst [vmem:[%s163 + $0x4] sm:%s155] %v166
                %v168 = vld [vmem:[%s162 + $0x8] sm:%s155]
                %169 = vst [vmem:[%s163 + $0x8] sm:%s155] %v168
                %v170 = vld [vmem:[%s162 + $0xc] sm:%s155]
                %171 = vst [vmem:[%s163 + $0xc] sm:%s155] %v170
                %v172 = vld [vmem:[%s162 + $0x10] sm:%s155]
                %173 = vst [vmem:[%s163 + $0x10] sm:%s155] %v172
                %v174 = vld [vmem:[%s162 + $0x14] sm:%s155]
                %175 = vst [vmem:[%s163 + $0x14] sm:%s155] %v174
                %v176 = vld [vmem:[%s162 + $0x18] sm:%s155]
                %177 = vst [vmem:[%s163 + $0x18] sm:%s155] %v176
                %v178 = vld [vmem:[%s162 + $0x1c] sm:%s155]
                %179 = vst [vmem:[%s163 + $0x1c] sm:%s155] %v178
                %v180 = vld [vmem:[%s162 + $0x20] sm:%s155]
                %181 = vst [vmem:[%s163 + $0x20] sm:%s155] %v180
                %v182 = vld [vmem:[%s162 + $0x24] sm:%s155]
                %183 = vst [vmem:[%s163 + $0x24] sm:%s155] %v182
                %v184 = vld [vmem:[%s162 + $0x28] sm:%s155]
                %185 = vst [vmem:[%s163 + $0x28] sm:%s155] %v184
                %v186 = vld [vmem:[%s162 + $0x2c] sm:%s155]
                %187 = vst [vmem:[%s163 + $0x2c] sm:%s155] %v186
                %v188 = vld [vmem:[%s162 + $0x30] sm:%s155]
                %189 = vst [vmem:[%s163 + $0x30] sm:%s155] %v188
                %v190 = vld [vmem:[%s162 + $0x34] sm:%s155]
                %191 = vst [vmem:[%s163 + $0x34] sm:%s155] %v190
                %v192 = vld [vmem:[%s162 + $0x38] sm:%s155]
                %193 = vst [vmem:[%s163 + $0x38] sm:%s155] %v192
                %v194 = vld [vmem:[%s162 + $0x3c] sm:%s155]
                %195 = vst [vmem:[%s163 + $0x3c] sm:%s155] %v194
                %v196 = vld [vmem:[%s162 + $0x40] sm:%s155]
                %197 = vst [vmem:[%s163 + $0x40] sm:%s155] %v196
                %v198 = vld [vmem:[%s162 + $0x44] sm:%s155]
                %199 = vst [vmem:[%s163 + $0x44] sm:%s155] %v198
                %v200 = vld [vmem:[%s162 + $0x48] sm:%s155]
                %201 = vst [vmem:[%s163 + $0x48] sm:%s155] %v200
                %v202 = vld [vmem:[%s162 + $0x4c] sm:%s155]
                %203 = vst [vmem:[%s163 + $0x4c] sm:%s155] %v202
                %v204 = vld [vmem:[%s162 + $0x50] sm:%s155]
                %205 = vst [vmem:[%s163 + $0x50] sm:%s155] %v204
                %v206 = vld [vmem:[%s162 + $0x54] sm:%s155]
                %207 = vst [vmem:[%s163 + $0x54] sm:%s155] %v206
                %v208 = vld [vmem:[%s162 + $0x58] sm:%s155]
                %209 = vst [vmem:[%s163 + $0x58] sm:%s155] %v208
                %v210 = vld [vmem:[%s162 + $0x5c] sm:%s155]
                %211 = vst [vmem:[%s163 + $0x5c] sm:%s155] %v210
                %v212 = vld [vmem:[%s162 + $0x60] sm:%s155]
                %213 = vst [vmem:[%s163 + $0x60] sm:%s155] %v212
                %v214 = vld [vmem:[%s162 + $0xc8] sm:%s155]
                %215 = vst [vmem:[%s163 + $0x64] sm:%s155] %v214
                %v216 = vld [vmem:[%s162 + $0xcc] sm:%s155]
                %217 = vst [vmem:[%s163 + $0x68] sm:%s155] %v216
                %v218 = vld [vmem:[%s162 + $0xd0] sm:%s155]
                %219 = vst [vmem:[%s163 + $0x6c] sm:%s155] %v218
                %v220 = vld [vmem:[%s162 + $0xd4] sm:%s155]
                %221 = vst [vmem:[%s163 + $0x70] sm:%s155] %v220
                %v222 = vld [vmem:[%s162 + $0xd8] sm:%s155]
                %223 = vst [vmem:[%s163 + $0x74] sm:%s155] %v222
                %v224 = vld [vmem:[%s162 + $0xdc] sm:%s155]
                %225 = vst [vmem:[%s163 + $0x78] sm:%s155] %v224
                %v226 = vld [vmem:[%s162 + $0xe0] sm:%s155]
                %227 = vst [vmem:[%s163 + $0x7c] sm:%s155] %v226
                %v228 = vld [vmem:[%s162 + $0xe4] sm:%s155]
                %229 = vst [vmem:[%s163 + $0x80] sm:%s155] %v228
                %v230 = vld [vmem:[%s162 + $0xe8] sm:%s155]
                %231 = vst [vmem:[%s163 + $0x84] sm:%s155] %v230
                %v232 = vld [vmem:[%s162 + $0xec] sm:%s155]
                %233 = vst [vmem:[%s163 + $0x88] sm:%s155] %v232
                %v234 = vld [vmem:[%s162 + $0xf0] sm:%s155]
                %235 = vst [vmem:[%s163 + $0x8c] sm:%s155] %v234
                %v236 = vld [vmem:[%s162 + $0xf4] sm:%s155]
                %237 = vst [vmem:[%s163 + $0x90] sm:%s155] %v236
                %v238 = vld [vmem:[%s162 + $0xf8] sm:%s155]
                %239 = vst [vmem:[%s163 + $0x94] sm:%s155] %v238
                %v240 = vld [vmem:[%s162 + $0xfc] sm:%s155]
                %241 = vst [vmem:[%s163 + $0x98] sm:%s155] %v240
                %v242 = vld [vmem:[%s162 + $0x100] sm:%s155]
                %243 = vst [vmem:[%s163 + $0x9c] sm:%s155] %v242
                %v244 = vld [vmem:[%s162 + $0x104] sm:%s155]
                %245 = vst [vmem:[%s163 + $0xa0] sm:%s155] %v244
                %v246 = vld [vmem:[%s162 + $0x108] sm:%s155]
                %247 = vst [vmem:[%s163 + $0xa4] sm:%s155] %v246
                %v248 = vld [vmem:[%s162 + $0x10c] sm:%s155]
                %249 = vst [vmem:[%s163 + $0xa8] sm:%s155] %v248
                %v250 = vld [vmem:[%s162 + $0x110] sm:%s155]
                %251 = vst [vmem:[%s163 + $0xac] sm:%s155] %v250
                %v252 = vld [vmem:[%s162 + $0x114] sm:%s155]
                %253 = vst [vmem:[%s163 + $0xb0] sm:%s155] %v252
                %v254 = vld [vmem:[%s162 + $0x118] sm:%s155]
                %255 = vst [vmem:[%s163 + $0xb4] sm:%s155] %v254
                %v256 = vld [vmem:[%s162 + $0x11c] sm:%s155]
                %257 = vst [vmem:[%s163 + $0xb8] sm:%s155] %v256
                %v258 = vld [vmem:[%s162 + $0x120] sm:%s155]
                %259 = vst [vmem:[%s163 + $0xbc] sm:%s155] %v258
                %v260 = vld [vmem:[%s162 + $0x124] sm:%s155]
                %261 = vst [vmem:[%s163 + $0xc0] sm:%s155] %v260
                %v262 = vld [vmem:[%s162 + $0x128] sm:%s155]
                %263 = vst [vmem:[%s163 + $0xc4] sm:%s155] %v262
                %v264 = vld [vmem:[%s162 + $0x190] sm:%s155]
                %265 = vst [vmem:[%s163 + $0xc8] sm:%s155] %v264
                %v266 = vld [vmem:[%s162 + $0x194] sm:%s155]
                %267 = vst [vmem:[%s163 + $0xcc] sm:%s155] %v266
                %v268 = vld [vmem:[%s162 + $0x198] sm:%s155]
                %269 = vst [vmem:[%s163 + $0xd0] sm:%s155] %v268
                %v270 = vld [vmem:[%s162 + $0x19c] sm:%s155]
                %271 = vst [vmem:[%s163 + $0xd4] sm:%s155] %v270
                %v272 = vld [vmem:[%s162 + $0x1a0] sm:%s155]
                %273 = vst [vmem:[%s163 + $0xd8] sm:%s155] %v272
                %v274 = vld [vmem:[%s162 + $0x1a4] sm:%s155]
                %275 = vst [vmem:[%s163 + $0xdc] sm:%s155] %v274
                %v276 = vld [vmem:[%s162 + $0x1a8] sm:%s155]
                %277 = vst [vmem:[%s163 + $0xe0] sm:%s155] %v276
                %v278 = vld [vmem:[%s162 + $0x1ac] sm:%s155]
                %279 = vst [vmem:[%s163 + $0xe4] sm:%s155] %v278
                %v280 = vld [vmem:[%s162 + $0x1b0] sm:%s155]
                %281 = vst [vmem:[%s163 + $0xe8] sm:%s155] %v280
                %v282 = vld [vmem:[%s162 + $0x1b4] sm:%s155]
                %283 = vst [vmem:[%s163 + $0xec] sm:%s155] %v282
                %v284 = vld [vmem:[%s162 + $0x1b8] sm:%s155]
                %285 = vst [vmem:[%s163 + $0xf0] sm:%s155] %v284
                %v286 = vld [vmem:[%s162 + $0x1bc] sm:%s155]
                %287 = vst [vmem:[%s163 + $0xf4] sm:%s155] %v286
                %v288 = vld [vmem:[%s162 + $0x1c0] sm:%s155]
                %289 = vst [vmem:[%s163 + $0xf8] sm:%s155] %v288
                %v290 = vld [vmem:[%s162 + $0x1c4] sm:%s155]
                %291 = vst [vmem:[%s163 + $0xfc] sm:%s155] %v290
                %v292 = vld [vmem:[%s162 + $0x1c8] sm:%s155]
                %293 = vst [vmem:[%s163 + $0x100] sm:%s155] %v292
                %v294 = vld [vmem:[%s162 + $0x1cc] sm:%s155]
                %295 = vst [vmem:[%s163 + $0x104] sm:%s155] %v294
                %v296 = vld [vmem:[%s162 + $0x1d0] sm:%s155]
                %297 = vst [vmem:[%s163 + $0x108] sm:%s155] %v296
                %v298 = vld [vmem:[%s162 + $0x1d4] sm:%s155]
                %299 = vst [vmem:[%s163 + $0x10c] sm:%s155] %v298
                %v300 = vld [vmem:[%s162 + $0x1d8] sm:%s155]
                %301 = vst [vmem:[%s163 + $0x110] sm:%s155] %v300
                %v302 = vld [vmem:[%s162 + $0x1dc] sm:%s155]
                %303 = vst [vmem:[%s163 + $0x114] sm:%s155] %v302
                %v304 = vld [vmem:[%s162 + $0x1e0] sm:%s155]
                %305 = vst [vmem:[%s163 + $0x118] sm:%s155] %v304
                %v306 = vld [vmem:[%s162 + $0x1e4] sm:%s155]
                %307 = vst [vmem:[%s163 + $0x11c] sm:%s155] %v306
                %v308 = vld [vmem:[%s162 + $0x1e8] sm:%s155]
                %309 = vst [vmem:[%s163 + $0x120] sm:%s155] %v308
                %v310 = vld [vmem:[%s162 + $0x1ec] sm:%s155]
                %311 = vst [vmem:[%s163 + $0x124] sm:%s155] %v310
                %v312 = vld [vmem:[%s162 + $0x1f0] sm:%s155]
                %313 = vst [vmem:[%s163 + $0x128] sm:%s155] %v312
                %v314 = vld [vmem:[%s162 + $0x258] sm:%s155]
                %315 = vst [vmem:[%s163 + $0x12c] sm:%s155] %v314
                %v316 = vld [vmem:[%s162 + $0x25c] sm:%s155]
                %317 = vst [vmem:[%s163 + $0x130] sm:%s155] %v316
                %v318 = vld [vmem:[%s162 + $0x260] sm:%s155]
                %319 = vst [vmem:[%s163 + $0x134] sm:%s155] %v318
                %v320 = vld [vmem:[%s162 + $0x264] sm:%s155]
                %321 = vst [vmem:[%s163 + $0x138] sm:%s155] %v320
                %v322 = vld [vmem:[%s162 + $0x268] sm:%s155]
                %323 = vst [vmem:[%s163 + $0x13c] sm:%s155] %v322
                %v324 = vld [vmem:[%s162 + $0x26c] sm:%s155]
                %325 = vst [vmem:[%s163 + $0x140] sm:%s155] %v324
                %v326 = vld [vmem:[%s162 + $0x270] sm:%s155]
                %327 = vst [vmem:[%s163 + $0x144] sm:%s155] %v326
                %v328 = vld [vmem:[%s162 + $0x274] sm:%s155]
                %329 = vst [vmem:[%s163 + $0x148] sm:%s155] %v328
                %v330 = vld [vmem:[%s162 + $0x278] sm:%s155]
                %331 = vst [vmem:[%s163 + $0x14c] sm:%s155] %v330
                %v332 = vld [vmem:[%s162 + $0x27c] sm:%s155]
                %333 = vst [vmem:[%s163 + $0x150] sm:%s155] %v332
                %v334 = vld [vmem:[%s162 + $0x280] sm:%s155]
                %335 = vst [vmem:[%s163 + $0x154] sm:%s155] %v334
                %v336 = vld [vmem:[%s162 + $0x284] sm:%s155]
                %337 = vst [vmem:[%s163 + $0x158] sm:%s155] %v336
                %v338 = vld [vmem:[%s162 + $0x288] sm:%s155]
                %339 = vst [vmem:[%s163 + $0x15c] sm:%s155] %v338
                %v340 = vld [vmem:[%s162 + $0x28c] sm:%s155]
                %341 = vst [vmem:[%s163 + $0x160] sm:%s155] %v340
                %v342 = vld [vmem:[%s162 + $0x290] sm:%s155]
                %343 = vst [vmem:[%s163 + $0x164] sm:%s155] %v342
                %v344 = vld [vmem:[%s162 + $0x294] sm:%s155]
                %345 = vst [vmem:[%s163 + $0x168] sm:%s155] %v344
                %v346 = vld [vmem:[%s162 + $0x298] sm:%s155]
                %347 = vst [vmem:[%s163 + $0x16c] sm:%s155] %v346
                %v348 = vld [vmem:[%s162 + $0x29c] sm:%s155]
                %349 = vst [vmem:[%s163 + $0x170] sm:%s155] %v348
                %v350 = vld [vmem:[%s162 + $0x2a0] sm:%s155]
                %351 = vst [vmem:[%s163 + $0x174] sm:%s155] %v350
                %v352 = vld [vmem:[%s162 + $0x2a4] sm:%s155]
                %353 = vst [vmem:[%s163 + $0x178] sm:%s155] %v352
                %v354 = vld [vmem:[%s162 + $0x2a8] sm:%s155]
                %355 = vst [vmem:[%s163 + $0x17c] sm:%s155] %v354
                %v356 = vld [vmem:[%s162 + $0x2ac] sm:%s155]
                %357 = vst [vmem:[%s163 + $0x180] sm:%s155] %v356
                %v358 = vld [vmem:[%s162 + $0x2b0] sm:%s155]
                %359 = vst [vmem:[%s163 + $0x184] sm:%s155] %v358
                %v360 = vld [vmem:[%s162 + $0x2b4] sm:%s155]
                %361 = vst [vmem:[%s163 + $0x188] sm:%s155] %v360
                %v362 = vld [vmem:[%s162 + $0x2b8] sm:%s155]
                %363 = vst [vmem:[%s163 + $0x18c] sm:%s155] %v362
              $region45: #{cnn_forward.3} parent=39 // loop_footer
                %s161 = sadd.s32 1, %s157
              $region46: #{cnn_forward.3} parent=39 // loop_footer_branch
                %156 = sbr.rel target = $region42
              $region47: #{cnn_forward.3} parent=39 // loop_exit
                _
            $region40: #{cnn_forward.3} parent=31 // pred_fallthru
              _
          $region32: #{cnn_forward.3} parent=27 // pred_fallthru
            _
          %584 = vnop
        $region28: #{cnn_forward.3} parent=23 // pred_fallthru
          _
      $region24: #{cnn_forward.3} parent=5 // pred_fallthru
        _
      %p585 = scmp.le.s32.totalorder 1, %s10
      %p586 = scmp.lt.s32.totalorder %s10, 3
      %p587 = pnand %p585, %p586
      %p588 = pneg %p587
      // Predicated region
      $region66: #{cnn_forward.3} parent=5 // pred_check
        _
      $region67: #{cnn_forward.3} parent=5 // pred_check_branch
        %590 = sbr.rel (%p587) target = $region69
      $region68: #{cnn_forward.3} parent=5 // pred_region
        %s591 = ssub.s32 %s10, 1
        %s592 = sand.u32 %s23, 1
        %s593 = sand.u32 %s23, 1
        %s594 = smul.addr %s593, 400
        %s595 = scalar_lea.vmem [#allocation2], %s594
        // Predicated region
        $region70: #{cnn_forward.3} parent=68 // pred_check
          %p596 = pneg %p36
        $region71: #{cnn_forward.3} parent=68 // pred_check_branch
          %598 = sbr.rel (%p596) target = $region73
        $region72: #{cnn_forward.3} parent=68 // pred_region
          _
        $region73: #{cnn_forward.3} parent=68 // pred_fallthru
          _
        // Predicated region
        $region74: #{cnn_forward.3} parent=68 // pred_check
          %p599 = pneg %p78
        $region75: #{cnn_forward.3} parent=68 // pred_check_branch
          %601 = sbr.rel (%p599) target = $region77
        $region76: #{cnn_forward.3} parent=68 // pred_region
          %603 = dma.done [#allocation4], 16
        $region77: #{cnn_forward.3} parent=68 // pred_fallthru
          _
        %s604 = sand.u32 %s23, 1
        %s605 = sand.u32 %s23, 1
        %s606 = smul.addr %s605, 400
        %s607 = scalar_lea.vmem [#allocation2], %s606
        %p608 = pneg %p36
        %p609 = pneg %p33
        %p610 = pneg %p57
        %p611 = pneg %p54
        %p612 = pneg %p78
        %p613 = pneg %p75
        %p614 = pneg %p104
        %p615 = pneg %p101
        %s616 = smul.u32 25, %s15
        %p617 = scmp.lt.s32.totalorder %s616, 49
        %s618 = scalar_select %p617, %s616, 49
        %s619 = smul.addr %s618, 4
        %s620 = scalar_lea.vmem %s3, %s619
        %s621 = smul.u32 25, %s15
        %s622 = smul.u32 25, %s15
        %p623 = scmp.lt.s32.totalorder %s622, 49
        %s624 = scalar_select %p623, %s622, 49
        %s625 = smul.addr %s624, 4
        %s626 = scalar_lea.vmem %s3, %s625
        %s627 = smul.u32 25, %s15
        %v629 = vld [vmem:[%s595] sm:$0xf]
        %v630 = vld [vmem:[%s595 + $0x4] sm:$0xf]
        %v631 = vld [vmem:[%s595 + $0x8] sm:$0xf]
        %v632 = vld [vmem:[%s595 + $0xc] sm:$0xf]
        %v633 = vld [vmem:[%s595 + $0x10] sm:$0xf]
        %v634 = vld [vmem:[%s595 + $0x14] sm:$0xf]
        %v635 = vld [vmem:[%s595 + $0x18] sm:$0xf]
        %v636 = vld [vmem:[%s595 + $0x1c] sm:$0xf]
        %v637 = vld [vmem:[%s595 + $0x20] sm:$0xf]
        %v638 = vld [vmem:[%s595 + $0x24] sm:$0xf]
        %v639 = vld [vmem:[%s595 + $0x28] sm:$0xf]
        %v640 = vld [vmem:[%s595 + $0x2c] sm:$0xf]
        %v641 = vld [vmem:[%s595 + $0x30] sm:$0xf]
        %v642 = vld [vmem:[%s595 + $0x34] sm:$0xf]
        %v643 = vld [vmem:[%s595 + $0x38] sm:$0xf]
        %v644 = vld [vmem:[%s595 + $0x3c] sm:$0xf]
        %v645 = vld [vmem:[%s595 + $0x40] sm:$0xf]
        %v646 = vld [vmem:[%s595 + $0x44] sm:$0xf]
        %v647 = vld [vmem:[%s595 + $0x48] sm:$0xf]
        %v648 = vld [vmem:[%s595 + $0x4c] sm:$0xf]
        %v649 = vld [vmem:[%s595 + $0x50] sm:$0xf]
        %v650 = vld [vmem:[%s595 + $0x54] sm:$0xf]
        %v651 = vld [vmem:[%s595 + $0x58] sm:$0xf]
        %v652 = vld [vmem:[%s595 + $0x5c] sm:$0xf]
        %v653 = vld [vmem:[%s595 + $0x60] sm:$0xf]
        %v654 = vld [vmem:[%s595 + $0x64] sm:$0xf]
        %v655 = vld [vmem:[%s595 + $0x68] sm:$0xf]
        %v656 = vld [vmem:[%s595 + $0x6c] sm:$0xf]
        %v657 = vld [vmem:[%s595 + $0x70] sm:$0xf]
        %v658 = vld [vmem:[%s595 + $0x74] sm:$0xf]
        %v659 = vld [vmem:[%s595 + $0x78] sm:$0xf]
        %v660 = vld [vmem:[%s595 + $0x7c] sm:$0xf]
        %v661 = vld [vmem:[%s595 + $0x80] sm:$0xf]
        %v662 = vld [vmem:[%s595 + $0x84] sm:$0xf]
        %v663 = vld [vmem:[%s595 + $0x88] sm:$0xf]
        %v664 = vld [vmem:[%s595 + $0x8c] sm:$0xf]
        %v665 = vld [vmem:[%s595 + $0x90] sm:$0xf]
        %v666 = vld [vmem:[%s595 + $0x94] sm:$0xf]
        %v667 = vld [vmem:[%s595 + $0x98] sm:$0xf]
        %v668 = vld [vmem:[%s595 + $0x9c] sm:$0xf]
        %v669 = vld [vmem:[%s595 + $0xa0] sm:$0xf]
        %v670 = vld [vmem:[%s595 + $0xa4] sm:$0xf]
        %v671 = vld [vmem:[%s595 + $0xa8] sm:$0xf]
        %v672 = vld [vmem:[%s595 + $0xac] sm:$0xf]
        %v673 = vld [vmem:[%s595 + $0xb0] sm:$0xf]
        %v674 = vld [vmem:[%s595 + $0xb4] sm:$0xf]
        %v675 = vld [vmem:[%s595 + $0xb8] sm:$0xf]
        %v676 = vld [vmem:[%s595 + $0xbc] sm:$0xf]
        %v677 = vld [vmem:[%s595 + $0xc0] sm:$0xf]
        %v678 = vld [vmem:[%s595 + $0xc4] sm:$0xf]
        %v679 = vld [vmem:[%s595 + $0xc8] sm:$0xf]
        %v680 = vld [vmem:[%s595 + $0xcc] sm:$0xf]
        %v681 = vld [vmem:[%s595 + $0xd0] sm:$0xf]
        %v682 = vld [vmem:[%s595 + $0xd4] sm:$0xf]
        %v683 = vld [vmem:[%s595 + $0xd8] sm:$0xf]
        %v684 = vld [vmem:[%s595 + $0xdc] sm:$0xf]
        %v685 = vld [vmem:[%s595 + $0xe0] sm:$0xf]
        %v686 = vld [vmem:[%s595 + $0xe4] sm:$0xf]
        %v687 = vld [vmem:[%s595 + $0xe8] sm:$0xf]
        %v688 = vld [vmem:[%s595 + $0xec] sm:$0xf]
        %v689 = vld [vmem:[%s595 + $0xf0] sm:$0xf]
        %v690 = vld [vmem:[%s595 + $0xf4] sm:$0xf]
        %v691 = vld [vmem:[%s595 + $0xf8] sm:$0xf]
        %v692 = vld [vmem:[%s595 + $0xfc] sm:$0xf]
        %v693 = vld [vmem:[%s595 + $0x100] sm:$0xf]
        %v694 = vld [vmem:[%s595 + $0x104] sm:$0xf]
        %v695 = vld [vmem:[%s595 + $0x108] sm:$0xf]
        %v696 = vld [vmem:[%s595 + $0x10c] sm:$0xf]
        %v697 = vld [vmem:[%s595 + $0x110] sm:$0xf]
        %v698 = vld [vmem:[%s595 + $0x114] sm:$0xf]
        %v699 = vld [vmem:[%s595 + $0x118] sm:$0xf]
        %v700 = vld [vmem:[%s595 + $0x11c] sm:$0xf]
        %v701 = vld [vmem:[%s595 + $0x120] sm:$0xf]
        %v702 = vld [vmem:[%s595 + $0x124] sm:$0xf]
        %v703 = vld [vmem:[%s595 + $0x128] sm:$0xf]
        %v704 = vld [vmem:[%s595 + $0x12c] sm:$0xf]
        %v705 = vld [vmem:[%s595 + $0x130] sm:$0xf]
        %v706 = vld [vmem:[%s595 + $0x134] sm:$0xf]
        %v707 = vld [vmem:[%s595 + $0x138] sm:$0xf]
        %v708 = vld [vmem:[%s595 + $0x13c] sm:$0xf]
        %v709 = vld [vmem:[%s595 + $0x140] sm:$0xf]
        %v710 = vld [vmem:[%s595 + $0x144] sm:$0xf]
        %v711 = vld [vmem:[%s595 + $0x148] sm:$0xf]
        %v712 = vld [vmem:[%s595 + $0x14c] sm:$0xf]
        %v713 = vld [vmem:[%s595 + $0x150] sm:$0xf]
        %v714 = vld [vmem:[%s595 + $0x154] sm:$0xf]
        %v715 = vld [vmem:[%s595 + $0x158] sm:$0xf]
        %v716 = vld [vmem:[%s595 + $0x15c] sm:$0xf]
        %v717 = vld [vmem:[%s595 + $0x160] sm:$0xf]
        %v718 = vld [vmem:[%s595 + $0x164] sm:$0xf]
        %v719 = vld [vmem:[%s595 + $0x168] sm:$0xf]
        %v720 = vld [vmem:[%s595 + $0x16c] sm:$0xf]
        %v721 = vld [vmem:[%s595 + $0x170] sm:$0xf]
        %v722 = vld [vmem:[%s595 + $0x174] sm:$0xf]
        %v723 = vld [vmem:[%s595 + $0x178] sm:$0xf]
        %v724 = vld [vmem:[%s595 + $0x17c] sm:$0xf]
        %v725 = vld [vmem:[%s595 + $0x180] sm:$0xf]
        %v726 = vld [vmem:[%s595 + $0x184] sm:$0xf]
        %v727 = vld [vmem:[%s595 + $0x188] sm:$0xf]
        %v728 = vld [vmem:[%s595 + $0x18c] sm:$0xf]
        %v729 = vld [vmem:[%s1] sm:$0xf]
        %v730 = vld [vmem:[%s1 + $0x4] sm:$0x1]
        %v831 = vunpack.c.l.b16 %v629
        %v832 = vunpack.c.l.b16 %v630
        %v833 = vunpack.c.l.b16 %v631
        %v834 = vunpack.c.l.b16 %v632
        %v835 = vunpack.c.l.b16 %v633
        %v836 = vunpack.c.l.b16 %v634
        %v837 = vunpack.c.l.b16 %v635
        %v838 = vunpack.c.l.b16 %v636
        %v839 = vunpack.c.l.b16 %v637
        %v840 = vunpack.c.l.b16 %v638
        %v841 = vunpack.c.l.b16 %v639
        %v842 = vunpack.c.l.b16 %v640
        %v843 = vunpack.c.l.b16 %v641
        %v844 = vunpack.c.l.b16 %v642
        %v845 = vunpack.c.l.b16 %v643
        %v846 = vunpack.c.l.b16 %v644
        %v847 = vunpack.c.l.b16 %v645
        %v848 = vunpack.c.l.b16 %v646
        %v849 = vunpack.c.l.b16 %v647
        %v850 = vunpack.c.l.b16 %v648
        %v851 = vunpack.c.l.b16 %v649
        %v852 = vunpack.c.l.b16 %v650
        %v853 = vunpack.c.l.b16 %v651
        %v854 = vunpack.c.l.b16 %v652
        %v855 = vunpack.c.l.b16 %v653
        %v856 = vunpack.c.l.b16 %v654
        %v857 = vunpack.c.l.b16 %v655
        %v858 = vunpack.c.l.b16 %v656
        %v859 = vunpack.c.l.b16 %v657
        %v860 = vunpack.c.l.b16 %v658
        %v861 = vunpack.c.l.b16 %v659
        %v862 = vunpack.c.l.b16 %v660
        %v863 = vunpack.c.l.b16 %v661
        %v864 = vunpack.c.l.b16 %v662
        %v865 = vunpack.c.l.b16 %v663
        %v866 = vunpack.c.l.b16 %v664
        %v867 = vunpack.c.l.b16 %v665
        %v868 = vunpack.c.l.b16 %v666
        %v869 = vunpack.c.l.b16 %v667
        %v870 = vunpack.c.l.b16 %v668
        %v871 = vunpack.c.l.b16 %v669
        %v872 = vunpack.c.l.b16 %v670
        %v873 = vunpack.c.l.b16 %v671
        %v874 = vunpack.c.l.b16 %v672
        %v875 = vunpack.c.l.b16 %v673
        %v876 = vunpack.c.l.b16 %v674
        %v877 = vunpack.c.l.b16 %v675
        %v878 = vunpack.c.l.b16 %v676
        %v879 = vunpack.c.l.b16 %v677
        %v880 = vunpack.c.l.b16 %v678
        %v881 = vunpack.c.l.b16 %v679
        %v882 = vunpack.c.l.b16 %v680
        %v883 = vunpack.c.l.b16 %v681
        %v884 = vunpack.c.l.b16 %v682
        %v885 = vunpack.c.l.b16 %v683
        %v886 = vunpack.c.l.b16 %v684
        %v887 = vunpack.c.l.b16 %v685
        %v888 = vunpack.c.l.b16 %v686
        %v889 = vunpack.c.l.b16 %v687
        %v890 = vunpack.c.l.b16 %v688
        %v891 = vunpack.c.l.b16 %v689
        %v892 = vunpack.c.l.b16 %v690
        %v893 = vunpack.c.l.b16 %v691
        %v894 = vunpack.c.l.b16 %v692
        %v895 = vunpack.c.l.b16 %v693
        %v896 = vunpack.c.l.b16 %v694
        %v897 = vunpack.c.l.b16 %v695
        %v898 = vunpack.c.l.b16 %v696
        %v899 = vunpack.c.l.b16 %v697
        %v900 = vunpack.c.l.b16 %v698
        %v901 = vunpack.c.l.b16 %v699
        %v902 = vunpack.c.l.b16 %v700
        %v903 = vunpack.c.l.b16 %v701
        %v904 = vunpack.c.l.b16 %v702
        %v905 = vunpack.c.l.b16 %v703
        %v906 = vunpack.c.l.b16 %v704
        %v907 = vunpack.c.l.b16 %v705
        %v908 = vunpack.c.l.b16 %v706
        %v909 = vunpack.c.l.b16 %v707
        %v910 = vunpack.c.l.b16 %v708
        %v911 = vunpack.c.l.b16 %v709
        %v912 = vunpack.c.l.b16 %v710
        %v913 = vunpack.c.l.b16 %v711
        %v914 = vunpack.c.l.b16 %v712
        %v915 = vunpack.c.l.b16 %v713
        %v916 = vunpack.c.l.b16 %v714
        %v917 = vunpack.c.l.b16 %v715
        %v918 = vunpack.c.l.b16 %v716
        %v919 = vunpack.c.l.b16 %v717
        %v920 = vunpack.c.l.b16 %v718
        %v921 = vunpack.c.l.b16 %v719
        %v922 = vunpack.c.l.b16 %v720
        %v923 = vunpack.c.l.b16 %v721
        %v924 = vunpack.c.l.b16 %v722
        %v925 = vunpack.c.l.b16 %v723
        %v926 = vunpack.c.l.b16 %v724
        %v927 = vunpack.c.l.b16 %v725
        %v928 = vunpack.c.l.b16 %v726
        %v929 = vunpack.c.l.b16 %v727
        %v930 = vunpack.c.l.b16 %v728
        %v931 = vpack.c.b16 %v832, %v831
        %v932 = vpack.c.b16 %v834, %v833
        %v933 = vpack.c.b16 %v836, %v835
        %v934 = vpack.c.b16 %v838, %v837
        %v935 = vpack.c.b16 %v840, %v839
        %v936 = vpack.c.b16 %v842, %v841
        %v937 = vpack.c.b16 %v844, %v843
        %v938 = vpack.c.b16 %v846, %v845
        %v939 = vpack.c.b16 %v848, %v847
        %v940 = vpack.c.b16 %v850, %v849
        %v941 = vpack.c.b16 %v852, %v851
        %v942 = vpack.c.b16 %v854, %v853
        %v943 = vpack.c.b16 %v856, %v855
        %v944 = vpack.c.b16 %v858, %v857
        %v945 = vpack.c.b16 %v860, %v859
        %v946 = vpack.c.b16 %v862, %v861
        %v947 = vpack.c.b16 %v864, %v863
        %v948 = vpack.c.b16 %v866, %v865
        %v949 = vpack.c.b16 %v868, %v867
        %v950 = vpack.c.b16 %v870, %v869
        %v951 = vpack.c.b16 %v872, %v871
        %v952 = vpack.c.b16 %v874, %v873
        %v953 = vpack.c.b16 %v876, %v875
        %v954 = vpack.c.b16 %v878, %v877
        %v955 = vpack.c.b16 %v880, %v879
        %v956 = vpack.c.b16 %v882, %v881
        %v957 = vpack.c.b16 %v884, %v883
        %v958 = vpack.c.b16 %v886, %v885
        %v959 = vpack.c.b16 %v888, %v887
        %v960 = vpack.c.b16 %v890, %v889
        %v961 = vpack.c.b16 %v892, %v891
        %v962 = vpack.c.b16 %v894, %v893
        %v963 = vpack.c.b16 %v896, %v895
        %v964 = vpack.c.b16 %v898, %v897
        %v965 = vpack.c.b16 %v900, %v899
        %v966 = vpack.c.b16 %v902, %v901
        %v967 = vpack.c.b16 %v904, %v903
        %v968 = vpack.c.b16 %v906, %v905
        %v969 = vpack.c.b16 %v908, %v907
        %v970 = vpack.c.b16 %v910, %v909
        %v971 = vpack.c.b16 %v912, %v911
        %v972 = vpack.c.b16 %v914, %v913
        %v973 = vpack.c.b16 %v916, %v915
        %v974 = vpack.c.b16 %v918, %v917
        %v975 = vpack.c.b16 %v920, %v919
        %v976 = vpack.c.b16 %v922, %v921
        %v977 = vpack.c.b16 %v924, %v923
        %v978 = vpack.c.b16 %v926, %v925
        %v979 = vpack.c.b16 %v928, %v927
        %v980 = vpack.c.b16 %v930, %v929
        %v983 = vunpack.c.l.b16 %v729
        %v984 = vunpack.c.l.b16 %v730
        %v985 = vpack.c.b16 %v984, %v983
        %vm986 = vcmask 72704
        %v988 = vsel %vm986, %v931, 0
        %v991 = vsel %vm986, %v932, 0
        %v994 = vsel %vm986, %v933, 0
        %v997 = vsel %vm986, %v934, 0
        %v1000 = vsel %vm986, %v935, 0
        %v1003 = vsel %vm986, %v936, 0
        %v1006 = vsel %vm986, %v937, 0
        %v1009 = vsel %vm986, %v938, 0
        %v1012 = vsel %vm986, %v939, 0
        %v1015 = vsel %vm986, %v940, 0
        %v1018 = vsel %vm986, %v941, 0
        %v1021 = vsel %vm986, %v942, 0
        %v1024 = vsel %vm986, %v943, 0
        %v1027 = vsel %vm986, %v944, 0
        %v1030 = vsel %vm986, %v945, 0
        %v1033 = vsel %vm986, %v946, 0
        %v1036 = vsel %vm986, %v947, 0
        %v1039 = vsel %vm986, %v948, 0
        %v1042 = vsel %vm986, %v949, 0
        %v1045 = vsel %vm986, %v950, 0
        %v1048 = vsel %vm986, %v951, 0
        %v1051 = vsel %vm986, %v952, 0
        %v1054 = vsel %vm986, %v953, 0
        %v1057 = vsel %vm986, %v954, 0
        %v1060 = vsel %vm986, %v955, 0
        %v1063 = vsel %vm986, %v956, 0
        %v1066 = vsel %vm986, %v957, 0
        %v1069 = vsel %vm986, %v958, 0
        %v1072 = vsel %vm986, %v959, 0
        %v1075 = vsel %vm986, %v960, 0
        %v1078 = vsel %vm986, %v961, 0
        %v1081 = vsel %vm986, %v962, 0
        %v1084 = vsel %vm986, %v963, 0
        %v1087 = vsel %vm986, %v964, 0
        %v1090 = vsel %vm986, %v965, 0
        %v1093 = vsel %vm986, %v966, 0
        %v1096 = vsel %vm986, %v967, 0
        %v1099 = vsel %vm986, %v968, 0
        %v1102 = vsel %vm986, %v969, 0
        %v1105 = vsel %vm986, %v970, 0
        %v1108 = vsel %vm986, %v971, 0
        %v1111 = vsel %vm986, %v972, 0
        %v1114 = vsel %vm986, %v973, 0
        %v1117 = vsel %vm986, %v974, 0
        %v1120 = vsel %vm986, %v975, 0
        %v1123 = vsel %vm986, %v976, 0
        %v1126 = vsel %vm986, %v977, 0
        %v1129 = vsel %vm986, %v978, 0
        %v1132 = vsel %vm986, %v979, 0
        %v1135 = vsel %vm986, %v980, 0
        %vm1137 = vcmask 1043456
        %vm1138 = vcmask 1044480
        %v1139 = vsel %vm1137, 4294967295, 65535
        %v1140 = vsel %vm1138, %v1139, 0
        %v1142 = vand.u32 %v985, %v1140
        %1144 = vmatpush.bf16.msra.mxu0 0
        %1145 = vmatpush.bf16.msra.mxu0 0
        %1146 = vmatpush.bf16.msra.mxu0 0
        %1147 = vmatpush.bf16.msra.mxu0 0
        %1148 = vmatpush.bf16.msra.mxu0 0
        %1149 = vmatpush.bf16.msra.mxu0 0
        %1150 = vmatpush.bf16.msra.mxu0 0
        %1151 = vmatpush.bf16.msra.mxu0 %v1142
        %1152 = vmatmul.bf16.gmra.mxu0 %v988
        %v1153 = vpop.f32.mrf.mxu0
        %v1154 = vadd.f32 0.0, %v1153
        %v1155 = vpop.f32.mrf.mxu0
        %v1156 = vadd.f32 0.0, %v1155
        %1157 = vmatmul.bf16.gmra.mxu0 %v991
        %v1158 = vpop.f32.mrf.mxu0
        %v1159 = vadd.f32 0.0, %v1158
        %v1160 = vpop.f32.mrf.mxu0
        %v1161 = vadd.f32 0.0, %v1160
        %1162 = vmatmul.bf16.gmra.mxu0 %v994
        %v1163 = vpop.f32.mrf.mxu0
        %v1164 = vadd.f32 0.0, %v1163
        %v1165 = vpop.f32.mrf.mxu0
        %v1166 = vadd.f32 0.0, %v1165
        %1167 = vmatmul.bf16.gmra.mxu0 %v997
        %v1168 = vpop.f32.mrf.mxu0
        %v1169 = vadd.f32 0.0, %v1168
        %v1170 = vpop.f32.mrf.mxu0
        %v1171 = vadd.f32 0.0, %v1170
        %1172 = vmatmul.bf16.gmra.mxu0 %v1000
        %v1173 = vpop.f32.mrf.mxu0
        %v1174 = vadd.f32 0.0, %v1173
        %v1175 = vpop.f32.mrf.mxu0
        %v1176 = vadd.f32 0.0, %v1175
        %1177 = vmatmul.bf16.gmra.mxu0 %v1003
        %v1178 = vpop.f32.mrf.mxu0
        %v1179 = vadd.f32 0.0, %v1178
        %v1180 = vpop.f32.mrf.mxu0
        %v1181 = vadd.f32 0.0, %v1180
        %1182 = vmatmul.bf16.gmra.mxu0 %v1006
        %v1183 = vpop.f32.mrf.mxu0
        %v1184 = vadd.f32 0.0, %v1183
        %v1185 = vpop.f32.mrf.mxu0
        %v1186 = vadd.f32 0.0, %v1185
        %1187 = vmatmul.bf16.gmra.mxu0 %v1009
        %v1188 = vpop.f32.mrf.mxu0
        %v1189 = vadd.f32 0.0, %v1188
        %v1190 = vpop.f32.mrf.mxu0
        %v1191 = vadd.f32 0.0, %v1190
        %1192 = vmatmul.bf16.gmra.mxu0 %v1012
        %v1193 = vpop.f32.mrf.mxu0
        %v1194 = vadd.f32 0.0, %v1193
        %v1195 = vpop.f32.mrf.mxu0
        %v1196 = vadd.f32 0.0, %v1195
        %1197 = vmatmul.bf16.gmra.mxu0 %v1015
        %v1198 = vpop.f32.mrf.mxu0
        %v1199 = vadd.f32 0.0, %v1198
        %v1200 = vpop.f32.mrf.mxu0
        %v1201 = vadd.f32 0.0, %v1200
        %1202 = vmatmul.bf16.gmra.mxu0 %v1018
        %v1203 = vpop.f32.mrf.mxu0
        %v1204 = vadd.f32 0.0, %v1203
        %v1205 = vpop.f32.mrf.mxu0
        %v1206 = vadd.f32 0.0, %v1205
        %1207 = vmatmul.bf16.gmra.mxu0 %v1021
        %v1208 = vpop.f32.mrf.mxu0
        %v1209 = vadd.f32 0.0, %v1208
        %v1210 = vpop.f32.mrf.mxu0
        %v1211 = vadd.f32 0.0, %v1210
        %1212 = vmatmul.bf16.gmra.mxu0 %v1024
        %v1213 = vpop.f32.mrf.mxu0
        %v1214 = vadd.f32 0.0, %v1213
        %v1215 = vpop.f32.mrf.mxu0
        %v1216 = vadd.f32 0.0, %v1215
        %1217 = vmatmul.bf16.gmra.mxu0 %v1027
        %v1218 = vpop.f32.mrf.mxu0
        %v1219 = vadd.f32 0.0, %v1218
        %v1220 = vpop.f32.mrf.mxu0
        %v1221 = vadd.f32 0.0, %v1220
        %1222 = vmatmul.bf16.gmra.mxu0 %v1030
        %v1223 = vpop.f32.mrf.mxu0
        %v1224 = vadd.f32 0.0, %v1223
        %v1225 = vpop.f32.mrf.mxu0
        %v1226 = vadd.f32 0.0, %v1225
        %1227 = vmatmul.bf16.gmra.mxu0 %v1033
        %v1228 = vpop.f32.mrf.mxu0
        %v1229 = vadd.f32 0.0, %v1228
        %v1230 = vpop.f32.mrf.mxu0
        %v1231 = vadd.f32 0.0, %v1230
        %1232 = vmatmul.bf16.gmra.mxu0 %v1036
        %v1233 = vpop.f32.mrf.mxu0
        %v1234 = vadd.f32 0.0, %v1233
        %v1235 = vpop.f32.mrf.mxu0
        %v1236 = vadd.f32 0.0, %v1235
        %1237 = vmatmul.bf16.gmra.mxu0 %v1039
        %v1238 = vpop.f32.mrf.mxu0
        %v1239 = vadd.f32 0.0, %v1238
        %v1240 = vpop.f32.mrf.mxu0
        %v1241 = vadd.f32 0.0, %v1240
        %1242 = vmatmul.bf16.gmra.mxu0 %v1042
        %v1243 = vpop.f32.mrf.mxu0
        %v1244 = vadd.f32 0.0, %v1243
        %v1245 = vpop.f32.mrf.mxu0
        %v1246 = vadd.f32 0.0, %v1245
        %1247 = vmatmul.bf16.gmra.mxu0 %v1045
        %v1248 = vpop.f32.mrf.mxu0
        %v1249 = vadd.f32 0.0, %v1248
        %v1250 = vpop.f32.mrf.mxu0
        %v1251 = vadd.f32 0.0, %v1250
        %1252 = vmatmul.bf16.gmra.mxu0 %v1048
        %v1253 = vpop.f32.mrf.mxu0
        %v1254 = vadd.f32 0.0, %v1253
        %v1255 = vpop.f32.mrf.mxu0
        %v1256 = vadd.f32 0.0, %v1255
        %1257 = vmatmul.bf16.gmra.mxu0 %v1051
        %v1258 = vpop.f32.mrf.mxu0
        %v1259 = vadd.f32 0.0, %v1258
        %v1260 = vpop.f32.mrf.mxu0
        %v1261 = vadd.f32 0.0, %v1260
        %1262 = vmatmul.bf16.gmra.mxu0 %v1054
        %v1263 = vpop.f32.mrf.mxu0
        %v1264 = vadd.f32 0.0, %v1263
        %v1265 = vpop.f32.mrf.mxu0
        %v1266 = vadd.f32 0.0, %v1265
        %1267 = vmatmul.bf16.gmra.mxu0 %v1057
        %v1268 = vpop.f32.mrf.mxu0
        %v1269 = vadd.f32 0.0, %v1268
        %v1270 = vpop.f32.mrf.mxu0
        %v1271 = vadd.f32 0.0, %v1270
        %1272 = vmatmul.bf16.gmra.mxu0 %v1060
        %v1273 = vpop.f32.mrf.mxu0
        %v1274 = vadd.f32 0.0, %v1273
        %v1275 = vpop.f32.mrf.mxu0
        %v1276 = vadd.f32 0.0, %v1275
        %1277 = vmatmul.bf16.gmra.mxu0 %v1063
        %v1278 = vpop.f32.mrf.mxu0
        %v1279 = vadd.f32 0.0, %v1278
        %v1280 = vpop.f32.mrf.mxu0
        %v1281 = vadd.f32 0.0, %v1280
        %1282 = vmatmul.bf16.gmra.mxu0 %v1066
        %v1283 = vpop.f32.mrf.mxu0
        %v1284 = vadd.f32 0.0, %v1283
        %v1285 = vpop.f32.mrf.mxu0
        %v1286 = vadd.f32 0.0, %v1285
        %1287 = vmatmul.bf16.gmra.mxu0 %v1069
        %v1288 = vpop.f32.mrf.mxu0
        %v1289 = vadd.f32 0.0, %v1288
        %v1290 = vpop.f32.mrf.mxu0
        %v1291 = vadd.f32 0.0, %v1290
        %1292 = vmatmul.bf16.gmra.mxu0 %v1072
        %v1293 = vpop.f32.mrf.mxu0
        %v1294 = vadd.f32 0.0, %v1293
        %v1295 = vpop.f32.mrf.mxu0
        %v1296 = vadd.f32 0.0, %v1295
        %1297 = vmatmul.bf16.gmra.mxu0 %v1075
        %v1298 = vpop.f32.mrf.mxu0
        %v1299 = vadd.f32 0.0, %v1298
        %v1300 = vpop.f32.mrf.mxu0
        %v1301 = vadd.f32 0.0, %v1300
        %1302 = vmatmul.bf16.gmra.mxu0 %v1078
        %v1303 = vpop.f32.mrf.mxu0
        %v1304 = vadd.f32 0.0, %v1303
        %v1305 = vpop.f32.mrf.mxu0
        %v1306 = vadd.f32 0.0, %v1305
        %1307 = vmatmul.bf16.gmra.mxu0 %v1081
        %v1308 = vpop.f32.mrf.mxu0
        %v1309 = vadd.f32 0.0, %v1308
        %v1310 = vpop.f32.mrf.mxu0
        %v1311 = vadd.f32 0.0, %v1310
        %1312 = vmatmul.bf16.gmra.mxu0 %v1084
        %v1313 = vpop.f32.mrf.mxu0
        %v1314 = vadd.f32 0.0, %v1313
        %v1315 = vpop.f32.mrf.mxu0
        %v1316 = vadd.f32 0.0, %v1315
        %1317 = vmatmul.bf16.gmra.mxu0 %v1087
        %v1318 = vpop.f32.mrf.mxu0
        %v1319 = vadd.f32 0.0, %v1318
        %v1320 = vpop.f32.mrf.mxu0
        %v1321 = vadd.f32 0.0, %v1320
        %1322 = vmatmul.bf16.gmra.mxu0 %v1090
        %v1323 = vpop.f32.mrf.mxu0
        %v1324 = vadd.f32 0.0, %v1323
        %v1325 = vpop.f32.mrf.mxu0
        %v1326 = vadd.f32 0.0, %v1325
        %1327 = vmatmul.bf16.gmra.mxu0 %v1093
        %v1328 = vpop.f32.mrf.mxu0
        %v1329 = vadd.f32 0.0, %v1328
        %v1330 = vpop.f32.mrf.mxu0
        %v1331 = vadd.f32 0.0, %v1330
        %1332 = vmatmul.bf16.gmra.mxu0 %v1096
        %v1333 = vpop.f32.mrf.mxu0
        %v1334 = vadd.f32 0.0, %v1333
        %v1335 = vpop.f32.mrf.mxu0
        %v1336 = vadd.f32 0.0, %v1335
        %1337 = vmatmul.bf16.gmra.mxu0 %v1099
        %v1338 = vpop.f32.mrf.mxu0
        %v1339 = vadd.f32 0.0, %v1338
        %v1340 = vpop.f32.mrf.mxu0
        %v1341 = vadd.f32 0.0, %v1340
        %1342 = vmatmul.bf16.gmra.mxu0 %v1102
        %v1343 = vpop.f32.mrf.mxu0
        %v1344 = vadd.f32 0.0, %v1343
        %v1345 = vpop.f32.mrf.mxu0
        %v1346 = vadd.f32 0.0, %v1345
        %1347 = vmatmul.bf16.gmra.mxu0 %v1105
        %v1348 = vpop.f32.mrf.mxu0
        %v1349 = vadd.f32 0.0, %v1348
        %v1350 = vpop.f32.mrf.mxu0
        %v1351 = vadd.f32 0.0, %v1350
        %1352 = vmatmul.bf16.gmra.mxu0 %v1108
        %v1353 = vpop.f32.mrf.mxu0
        %v1354 = vadd.f32 0.0, %v1353
        %v1355 = vpop.f32.mrf.mxu0
        %v1356 = vadd.f32 0.0, %v1355
        %1357 = vmatmul.bf16.gmra.mxu0 %v1111
        %v1358 = vpop.f32.mrf.mxu0
        %v1359 = vadd.f32 0.0, %v1358
        %v1360 = vpop.f32.mrf.mxu0
        %v1361 = vadd.f32 0.0, %v1360
        %1362 = vmatmul.bf16.gmra.mxu0 %v1114
        %v1363 = vpop.f32.mrf.mxu0
        %v1364 = vadd.f32 0.0, %v1363
        %v1365 = vpop.f32.mrf.mxu0
        %v1366 = vadd.f32 0.0, %v1365
        %1367 = vmatmul.bf16.gmra.mxu0 %v1117
        %v1368 = vpop.f32.mrf.mxu0
        %v1369 = vadd.f32 0.0, %v1368
        %v1370 = vpop.f32.mrf.mxu0
        %v1371 = vadd.f32 0.0, %v1370
        %1372 = vmatmul.bf16.gmra.mxu0 %v1120
        %v1373 = vpop.f32.mrf.mxu0
        %v1374 = vadd.f32 0.0, %v1373
        %v1375 = vpop.f32.mrf.mxu0
        %v1376 = vadd.f32 0.0, %v1375
        %1377 = vmatmul.bf16.gmra.mxu0 %v1123
        %v1378 = vpop.f32.mrf.mxu0
        %v1379 = vadd.f32 0.0, %v1378
        %v1380 = vpop.f32.mrf.mxu0
        %v1381 = vadd.f32 0.0, %v1380
        %1382 = vmatmul.bf16.gmra.mxu0 %v1126
        %v1383 = vpop.f32.mrf.mxu0
        %v1384 = vadd.f32 0.0, %v1383
        %v1385 = vpop.f32.mrf.mxu0
        %v1386 = vadd.f32 0.0, %v1385
        %1387 = vmatmul.bf16.gmra.mxu0 %v1129
        %v1388 = vpop.f32.mrf.mxu0
        %v1389 = vadd.f32 0.0, %v1388
        %v1390 = vpop.f32.mrf.mxu0
        %v1391 = vadd.f32 0.0, %v1390
        %1392 = vmatmul.bf16.gmra.mxu0 %v1132
        %v1393 = vpop.f32.mrf.mxu0
        %v1394 = vadd.f32 0.0, %v1393
        %v1395 = vpop.f32.mrf.mxu0
        %v1396 = vadd.f32 0.0, %v1395
        %1397 = vmatmul.bf16.gmra.mxu0 %v1135
        %v1398 = vpop.f32.mrf.mxu0
        %v1399 = vadd.f32 0.0, %v1398
        %v1400 = vpop.f32.mrf.mxu0
        %v1401 = vadd.f32 0.0, %v1400
        %1402 = vdwg.mxu0
        %v1403 = vmax.f32 %v1154, %v1216
        %v1404 = vmax.f32 %v1156, %v1219
        %v1405 = vmax.f32 %v1159, %v1221
        %v1406 = vmax.f32 %v1161, %v1224
        %v1407 = vmax.f32 %v1164, %v1226
        %v1408 = vmax.f32 %v1166, %v1229
        %v1409 = vmax.f32 %v1169, %v1231
        %v1410 = vmax.f32 %v1171, %v1234
        %v1411 = vmax.f32 %v1174, %v1236
        %v1412 = vmax.f32 %v1176, %v1239
        %v1413 = vmax.f32 %v1179, %v1241
        %v1414 = vmax.f32 %v1181, %v1244
        %v1415 = vmax.f32 %v1184, %v1246
        %v1416 = vmax.f32 %v1186, %v1249
        %v1417 = vmax.f32 %v1189, %v1251
        %v1418 = vmax.f32 %v1191, %v1254
        %v1419 = vmax.f32 %v1194, %v1256
        %v1420 = vmax.f32 %v1196, %v1259
        %v1421 = vmax.f32 %v1199, %v1261
        %v1422 = vmax.f32 %v1201, %v1264
        %v1423 = vmax.f32 %v1204, %v1266
        %v1424 = vmax.f32 %v1206, %v1269
        %v1425 = vmax.f32 %v1209, %v1271
        %v1426 = vmax.f32 %v1211, %v1274
        %v1427 = vmax.f32 %v1214, %v1276
        %v1428 = vmax.f32 %v1279, %v1341
        %v1429 = vmax.f32 %v1281, %v1344
        %v1430 = vmax.f32 %v1284, %v1346
        %v1431 = vmax.f32 %v1286, %v1349
        %v1432 = vmax.f32 %v1289, %v1351
        %v1433 = vmax.f32 %v1291, %v1354
        %v1434 = vmax.f32 %v1294, %v1356
        %v1435 = vmax.f32 %v1296, %v1359
        %v1436 = vmax.f32 %v1299, %v1361
        %v1437 = vmax.f32 %v1301, %v1364
        %v1438 = vmax.f32 %v1304, %v1366
        %v1439 = vmax.f32 %v1306, %v1369
        %v1440 = vmax.f32 %v1309, %v1371
        %v1441 = vmax.f32 %v1311, %v1374
        %v1442 = vmax.f32 %v1314, %v1376
        %v1443 = vmax.f32 %v1316, %v1379
        %v1444 = vmax.f32 %v1319, %v1381
        %v1445 = vmax.f32 %v1321, %v1384
        %v1446 = vmax.f32 %v1324, %v1386
        %v1447 = vmax.f32 %v1326, %v1389
        %v1448 = vmax.f32 %v1329, %v1391
        %v1449 = vmax.f32 %v1331, %v1394
        %v1450 = vmax.f32 %v1334, %v1396
        %v1451 = vmax.f32 %v1336, %v1399
        %v1452 = vmax.f32 %v1339, %v1401
        %v1453 = vmax.f32 %v1403, %v1428
        %v1454 = vmax.f32 %v1404, %v1429
        %v1455 = vmax.f32 %v1405, %v1430
        %v1456 = vmax.f32 %v1406, %v1431
        %v1457 = vmax.f32 %v1407, %v1432
        %v1458 = vmax.f32 %v1408, %v1433
        %v1459 = vmax.f32 %v1409, %v1434
        %v1460 = vmax.f32 %v1410, %v1435
        %v1461 = vmax.f32 %v1411, %v1436
        %v1462 = vmax.f32 %v1412, %v1437
        %v1463 = vmax.f32 %v1413, %v1438
        %v1464 = vmax.f32 %v1414, %v1439
        %v1465 = vmax.f32 %v1415, %v1440
        %v1466 = vmax.f32 %v1416, %v1441
        %v1467 = vmax.f32 %v1417, %v1442
        %v1468 = vmax.f32 %v1418, %v1443
        %v1469 = vmax.f32 %v1419, %v1444
        %v1470 = vmax.f32 %v1420, %v1445
        %v1471 = vmax.f32 %v1421, %v1446
        %v1472 = vmax.f32 %v1422, %v1447
        %v1473 = vmax.f32 %v1423, %v1448
        %v1474 = vmax.f32 %v1424, %v1449
        %v1475 = vmax.f32 %v1425, %v1450
        %v1476 = vmax.f32 %v1426, %v1451
        %v1477 = vmax.f32 %v1427, %v1452
        %v1478 = vld [vmem:[#allocation3] sm:$0x1]
        %v1480 = vperm.slane %v1478, 0
        %v1482 = vadd.f32 %v1453, %v1480
        %v1483 = vadd.f32 %v1454, %v1480
        %v1484 = vadd.f32 %v1455, %v1480
        %v1485 = vadd.f32 %v1456, %v1480
        %v1486 = vadd.f32 %v1457, %v1480
        %v1487 = vadd.f32 %v1458, %v1480
        %v1488 = vadd.f32 %v1459, %v1480
        %v1489 = vadd.f32 %v1460, %v1480
        %v1490 = vadd.f32 %v1461, %v1480
        %v1491 = vadd.f32 %v1462, %v1480
        %v1492 = vadd.f32 %v1463, %v1480
        %v1493 = vadd.f32 %v1464, %v1480
        %v1494 = vadd.f32 %v1465, %v1480
        %v1495 = vadd.f32 %v1466, %v1480
        %v1496 = vadd.f32 %v1467, %v1480
        %v1497 = vadd.f32 %v1468, %v1480
        %v1498 = vadd.f32 %v1469, %v1480
        %v1499 = vadd.f32 %v1470, %v1480
        %v1500 = vadd.f32 %v1471, %v1480
        %v1501 = vadd.f32 %v1472, %v1480
        %v1502 = vadd.f32 %v1473, %v1480
        %v1503 = vadd.f32 %v1474, %v1480
        %v1504 = vadd.f32 %v1475, %v1480
        %v1505 = vadd.f32 %v1476, %v1480
        %v1506 = vadd.f32 %v1477, %v1480
        %v1507 = vmax.f32 %v1482, 0.0
        %v1508 = vmax.f32 %v1483, 0.0
        %v1509 = vmax.f32 %v1484, 0.0
        %v1510 = vmax.f32 %v1485, 0.0
        %v1511 = vmax.f32 %v1486, 0.0
        %v1512 = vmax.f32 %v1487, 0.0
        %v1513 = vmax.f32 %v1488, 0.0
        %v1514 = vmax.f32 %v1489, 0.0
        %v1515 = vmax.f32 %v1490, 0.0
        %v1516 = vmax.f32 %v1491, 0.0
        %v1517 = vmax.f32 %v1492, 0.0
        %v1518 = vmax.f32 %v1493, 0.0
        %v1519 = vmax.f32 %v1494, 0.0
        %v1520 = vmax.f32 %v1495, 0.0
        %v1521 = vmax.f32 %v1496, 0.0
        %v1522 = vmax.f32 %v1497, 0.0
        %v1523 = vmax.f32 %v1498, 0.0
        %v1524 = vmax.f32 %v1499, 0.0
        %v1525 = vmax.f32 %v1500, 0.0
        %v1526 = vmax.f32 %v1501, 0.0
        %v1527 = vmax.f32 %v1502, 0.0
        %v1528 = vmax.f32 %v1503, 0.0
        %v1529 = vmax.f32 %v1504, 0.0
        %v1530 = vmax.f32 %v1505, 0.0
        %v1531 = vmax.f32 %v1506, 0.0
        %v1532 = vpack.c.bf16 %v1507, %v1507
        %v1533 = vpack.c.bf16 %v1508, %v1508
        %v1534 = vpack.c.bf16 %v1509, %v1509
        %v1535 = vpack.c.bf16 %v1510, %v1510
        %v1536 = vpack.c.bf16 %v1511, %v1511
        %v1537 = vpack.c.bf16 %v1512, %v1512
        %v1538 = vpack.c.bf16 %v1513, %v1513
        %v1539 = vpack.c.bf16 %v1514, %v1514
        %v1540 = vpack.c.bf16 %v1515, %v1515
        %v1541 = vpack.c.bf16 %v1516, %v1516
        %v1542 = vpack.c.bf16 %v1517, %v1517
        %v1543 = vpack.c.bf16 %v1518, %v1518
        %v1544 = vpack.c.bf16 %v1519, %v1519
        %v1545 = vpack.c.bf16 %v1520, %v1520
        %v1546 = vpack.c.bf16 %v1521, %v1521
        %v1547 = vpack.c.bf16 %v1522, %v1522
        %v1548 = vpack.c.bf16 %v1523, %v1523
        %v1549 = vpack.c.bf16 %v1524, %v1524
        %v1550 = vpack.c.bf16 %v1525, %v1525
        %v1551 = vpack.c.bf16 %v1526, %v1526
        %v1552 = vpack.c.bf16 %v1527, %v1527
        %v1553 = vpack.c.bf16 %v1528, %v1528
        %v1554 = vpack.c.bf16 %v1529, %v1529
        %v1555 = vpack.c.bf16 %v1530, %v1530
        %v1556 = vpack.c.bf16 %v1531, %v1531
        %vm1557 = vcmask 125952
        %1558 = vst.msk [vmem:[%s626] sm:$0xf] %vm1557, %v1532
        %1559 = vst.msk [vmem:[%s626 + $0x4] sm:$0xf] %vm1557, %v1533
        %1560 = vst.msk [vmem:[%s626 + $0x8] sm:$0xf] %vm1557, %v1534
        %1561 = vst.msk [vmem:[%s626 + $0xc] sm:$0xf] %vm1557, %v1535
        %1562 = vst.msk [vmem:[%s626 + $0x10] sm:$0xf] %vm1557, %v1536
        %1563 = vst.msk [vmem:[%s626 + $0x14] sm:$0xf] %vm1557, %v1537
        %1564 = vst.msk [vmem:[%s626 + $0x18] sm:$0xf] %vm1557, %v1538
        %1565 = vst.msk [vmem:[%s626 + $0x1c] sm:$0xf] %vm1557, %v1539
        %1566 = vst.msk [vmem:[%s626 + $0x20] sm:$0xf] %vm1557, %v1540
        %1567 = vst.msk [vmem:[%s626 + $0x24] sm:$0xf] %vm1557, %v1541
        %1568 = vst.msk [vmem:[%s626 + $0x28] sm:$0xf] %vm1557, %v1542
        %1569 = vst.msk [vmem:[%s626 + $0x2c] sm:$0xf] %vm1557, %v1543
        %1570 = vst.msk [vmem:[%s626 + $0x30] sm:$0xf] %vm1557, %v1544
        %1571 = vst.msk [vmem:[%s626 + $0x34] sm:$0xf] %vm1557, %v1545
        %1572 = vst.msk [vmem:[%s626 + $0x38] sm:$0xf] %vm1557, %v1546
        %1573 = vst.msk [vmem:[%s626 + $0x3c] sm:$0xf] %vm1557, %v1547
        %1574 = vst.msk [vmem:[%s626 + $0x40] sm:$0xf] %vm1557, %v1548
        %1575 = vst.msk [vmem:[%s626 + $0x44] sm:$0xf] %vm1557, %v1549
        %1576 = vst.msk [vmem:[%s626 + $0x48] sm:$0xf] %vm1557, %v1550
        %1577 = vst.msk [vmem:[%s626 + $0x4c] sm:$0xf] %vm1557, %v1551
        %1578 = vst.msk [vmem:[%s626 + $0x50] sm:$0xf] %vm1557, %v1552
        %1579 = vst.msk [vmem:[%s626 + $0x54] sm:$0xf] %vm1557, %v1553
        %1580 = vst.msk [vmem:[%s626 + $0x58] sm:$0xf] %vm1557, %v1554
        %1581 = vst.msk [vmem:[%s626 + $0x5c] sm:$0xf] %vm1557, %v1555
        %1582 = vst.msk [vmem:[%s626 + $0x60] sm:$0xf] %vm1557, %v1556
        %s1583 = smul.u32 25, %s15
        %p1584 = scmp.lt.s32.totalorder %s1583, 49
        %s1585 = scalar_select %p1584, %s1583, 49
        %s1586 = smul.addr %s1585, 4
        %s1587 = scalar_lea.vmem %s3, %s1586
        // Predicated region
        $region78: #{cnn_forward.3} parent=68 // pred_check
          %p1588 = pneg %p101
        $region79: #{cnn_forward.3} parent=68 // pred_check_branch
          %1590 = sbr.rel (%p1588) target = $region81
        $region80: #{cnn_forward.3} parent=68 // pred_region
          %s1591 = smul.u32 25, %s15
        $region81: #{cnn_forward.3} parent=68 // pred_fallthru
          _
      $region69: #{cnn_forward.3} parent=5 // pred_fallthru
        _
      %p1592 = scmp.le.s32.totalorder 2, %s10
      // Predicated region
      $region82: #{cnn_forward.3} parent=5 // pred_check
        %p1593 = pneg %p1592
      $region83: #{cnn_forward.3} parent=5 // pred_check_branch
        %1595 = sbr.rel (%p1593) target = $region85
      $region84: #{cnn_forward.3} parent=5 // pred_region
        %s1596 = ssub.s32 %s10, 2
        // Predicated region
        $region86: #{cnn_forward.3} parent=84 // pred_check
          %p1597 = pneg %p107
        $region87: #{cnn_forward.3} parent=84 // pred_check_branch
          %1599 = sbr.rel (%p1597) target = $region89
        $region88: #{cnn_forward.3} parent=84 // pred_region
          %s1600 = smul.u32 25, %s16
          %p1601 = scmp.lt.s32.totalorder %s1600, 49
          %s1602 = scalar_select %p1601, %s1600, 49
          %s1603 = smul.addr %s1602, 4
          %s1604 = scalar_lea.vmem %s3, %s1603
        $region89: #{cnn_forward.3} parent=84 // pred_fallthru
          _
      $region85: #{cnn_forward.3} parent=5 // pred_fallthru
        _
    $region6: #{cnn_forward.3} parent=1 // loop_footer
      %s14 = sadd.s32 1, %s10
    $region7: #{cnn_forward.3} parent=1 // loop_footer_branch
      %9 = sbr.rel target = $region3
    $region8: #{cnn_forward.3} parent=1 // loop_exit
      _
    %1605 = vsyncpa [#allocation4], 1
    %s1606 = scalar_lea.sflag [#allocation4], 1
    %1607 = vsyncpa %s1606, 1

// kernel: cnn_forward.4
$region0: #{cnn_forward.4}
  #allocation0 [shape = 'u32[]', space=smem, size = 0x4, offset = 0x4, fixed_abs, tag = 'smem constant byte address 0x4 - core index']
  #allocation1 [shape = 'u32[72,128]{1,0:T(1,128)}', space=vmem, size = 0x9000, scoped, tag = 'internal scratch']
  %s0 = inlined_call_operand.vmem [shape: bf16[4,112,144], index: 0, kind: input, shape index: {}]
  %s1 = inlined_call_operand.vmem [shape: bf16[144,32], index: 1, kind: input, shape index: {}]
  %s2 = inlined_call_operand.vmem [shape: f32[1,32], index: 2, kind: input, shape index: {}]
  %s3 = inlined_call_operand.vmem [shape: bf16[112,32], index: 3, kind: output, shape index: {}]
  %s4 = sld [smem:[#allocation0]]
  $region83: #{cnn_forward.4} parent=0
    _
  %s6 = ssub.s32 1, %s4
  %s7 = scalar_select 0, %s6, %s4
  $region1: #{cnn_forward.4} parent=0
    #allocation2 [shape = 'u8[229376]{0}', space=vmem, size = 0x38000, scoped, tag = 'input window, operand 0']
    loop: start=0, step=1, limit=4
    $region2: #{cnn_forward.4} parent=1 // loop_pre_header
      _
    $region3: #{cnn_forward.4} parent=1 // loop_header
      %s9 = sphi 0, %s13
      %p10 = scmp.ge.s32.totalorder %s9, 4
      %s19 = sphi 0, %s21
      %s22 = sphi 0, %s19
      %s23 = sphi 0, %s22
      %s39 = sphi 0, %s23
      %s43 = sphi 0, %s43
      %s45 = sphi 0, %s43
      %s46 = sphi 0, %s45
      %s60 = sphi 0, %s46
      %s64 = sphi 0, %s64
      %s66 = sphi 0, %s64
      %s67 = sphi 0, %s66
      %s81 = sphi 0, %s67
      %s87 = sphi 0, %s89
      %s90 = sphi 0, %s87
      %s91 = sphi 0, %s90
      %s107 = sphi 0, %s91
    $region4: #{cnn_forward.4} parent=1 // loop_header_branch
      %12 = sbr.rel (%p10) target = $region8
    $region5: #{cnn_forward.4} parent=1 // loop_body
      %s14 = ssub.s32 %s9, 1
      %s15 = ssub.s32 %s9, 2
      %s16 = sadd.s32 %s9, 1
      %s17 = ssub.s32 %s9, %s16
      %p18 = scmp.eq.s32.totalorder %s17, 0
      %s20 = sadd.s32 %s19, 1
      %s21 = scalar_select %p18, %s19, %s20
      %p24 = pneg %p18
      %p25 = scmp.eq.s32.totalorder %s9, 1
      %p26 = por %p24, %p25
      %p27 = scmp.ne.s32.totalorder %s19, %s22
      %p28 = scmp.eq.s32.totalorder %s9, 0
      %p29 = por %p27, %p28
      %p30 = scmp.ne.s32.totalorder %s19, %s22
      %p31 = scmp.eq.s32.totalorder %s14, 1
      %p32 = por %p30, %p31
      %p33 = scmp.ne.s32.totalorder %s22, %s23
      %p34 = scmp.eq.s32.totalorder %s14, 0
      %p35 = por %p33, %p34
      %p36 = scmp.ne.s32.totalorder %s22, %s23
      %p37 = scmp.eq.s32.totalorder %s15, 1
      %p38 = por %p36, %p37
      %p40 = scmp.ne.s32.totalorder %s23, %s39
      %p41 = scmp.eq.s32.totalorder %s15, 0
      %p42 = por %p40, %p41
      %s44 = sadd.s32 %s43, 1
      %p47 = scmp.eq.s32.totalorder %s9, 1
      %p48 = scmp.ne.s32.totalorder %s43, %s45
      %p49 = scmp.eq.s32.totalorder %s9, 0
      %p50 = por %p48, %p49
      %p51 = scmp.ne.s32.totalorder %s43, %s45
      %p52 = scmp.eq.s32.totalorder %s14, 1
      %p53 = por %p51, %p52
      %p54 = scmp.ne.s32.totalorder %s45, %s46
      %p55 = scmp.eq.s32.totalorder %s14, 0
      %p56 = por %p54, %p55
      %p57 = scmp.ne.s32.totalorder %s45, %s46
      %p58 = scmp.eq.s32.totalorder %s15, 1
      %p59 = por %p57, %p58
      %p61 = scmp.ne.s32.totalorder %s46, %s60
      %p62 = scmp.eq.s32.totalorder %s15, 0
      %p63 = por %p61, %p62
      %s65 = sadd.s32 %s64, 1
      %p68 = scmp.eq.s32.totalorder %s9, 1
      %p69 = scmp.ne.s32.totalorder %s64, %s66
      %p70 = scmp.eq.s32.totalorder %s9, 0
      %p71 = por %p69, %p70
      %p72 = scmp.ne.s32.totalorder %s64, %s66
      %p73 = scmp.eq.s32.totalorder %s14, 1
      %p74 = por %p72, %p73
      %p75 = scmp.ne.s32.totalorder %s66, %s67
      %p76 = scmp.eq.s32.totalorder %s14, 0
      %p77 = por %p75, %p76
      %p78 = scmp.ne.s32.totalorder %s66, %s67
      %p79 = scmp.eq.s32.totalorder %s15, 1
      %p80 = por %p78, %p79
      %p82 = scmp.ne.s32.totalorder %s67, %s81
      %p83 = scmp.eq.s32.totalorder %s15, 0
      %p84 = por %p82, %p83
      %s85 = ssub.s32 %s9, %s16
      %p86 = scmp.eq.s32.totalorder %s85, 0
      %s88 = sadd.s32 %s87, 1
      %s89 = scalar_select %p86, %s87, %s88
      %p92 = pneg %p86
      %p93 = scmp.eq.s32.totalorder %s9, 1
      %p94 = por %p92, %p93
      %p95 = scmp.ne.s32.totalorder %s87, %s90
      %p96 = scmp.eq.s32.totalorder %s9, 0
      %p97 = por %p95, %p96
      %p98 = scmp.ne.s32.totalorder %s87, %s90
      %p99 = scmp.eq.s32.totalorder %s14, 1
      %p100 = por %p98, %p99
      %p101 = scmp.ne.s32.totalorder %s90, %s91
      %p102 = scmp.eq.s32.totalorder %s14, 0
      %p103 = por %p101, %p102
      %p104 = scmp.ne.s32.totalorder %s90, %s91
      %p105 = scmp.eq.s32.totalorder %s15, 1
      %p106 = por %p104, %p105
      %p108 = scmp.ne.s32.totalorder %s91, %s107
      %p109 = scmp.eq.s32.totalorder %s15, 0
      %p110 = por %p108, %p109
      %p111 = scmp.le.s32.totalorder 1, %s9
      %p112 = scmp.lt.s32.totalorder %s9, 3
      %p113 = pnand %p111, %p112
      %p114 = pneg %p113
      // Predicated region
      $region9: #{cnn_forward.4} parent=5 // pred_check
        _
      $region10: #{cnn_forward.4} parent=5 // pred_check_branch
        %116 = sbr.rel (%p113) target = $region12
      $region11: #{cnn_forward.4} parent=5 // pred_region
        %s117 = ssub.s32 %s9, 1
        // Predicated region
        $region13: #{cnn_forward.4} parent=11 // pred_check
          %p118 = pneg %p56
        $region14: #{cnn_forward.4} parent=11 // pred_check_branch
          %120 = sbr.rel (%p118) target = $region16
        $region15: #{cnn_forward.4} parent=11 // pred_region
          _
        $region16: #{cnn_forward.4} parent=11 // pred_fallthru
          _
        // Predicated region
        $region17: #{cnn_forward.4} parent=11 // pred_check
          %p121 = pneg %p77
        $region18: #{cnn_forward.4} parent=11 // pred_check_branch
          %123 = sbr.rel (%p121) target = $region20
        $region19: #{cnn_forward.4} parent=11 // pred_region
          _
        $region20: #{cnn_forward.4} parent=11 // pred_fallthru
          _
      $region12: #{cnn_forward.4} parent=5 // pred_fallthru
        _
      %p124 = scmp.lt.s32.totalorder %s9, 2
      // Predicated region
      $region21: #{cnn_forward.4} parent=5 // pred_check
        %p125 = pneg %p124
      $region22: #{cnn_forward.4} parent=5 // pred_check_branch
        %127 = sbr.rel (%p125) target = $region24
      $region23: #{cnn_forward.4} parent=5 // pred_region
        // Predicated region
        $region25: #{cnn_forward.4} parent=23 // pred_check
          %p128 = pneg %p29
        $region26: #{cnn_forward.4} parent=23 // pred_check_branch
          %130 = sbr.rel (%p128) target = $region28
        $region27: #{cnn_forward.4} parent=23 // pred_region
          %s131 = sand.u32 %s19, 1
          %s132 = sand.u32 %s19, 1
          %s133 = smul.addr %s132, 224
          %s134 = scalar_lea.vmem [#allocation2], %s133
          %s135 = smul.u32 7, %s9
          %s136 = smul.addr %s135, 2
          %s137 = smul.addr %s136, 4
          %s138 = scalar_lea.vmem %s0, %s137
          // Predicated region
          $region29: #{cnn_forward.4} parent=27 // pred_check
            _
          $region30: #{cnn_forward.4} parent=27 // pred_check_branch
            %140 = sbr.rel (0) target = $region32
          $region31: #{cnn_forward.4} parent=27 // pred_region
            // Predicated region
            $region33: #{cnn_forward.4} parent=31 // pred_check
              _
            $region34: #{cnn_forward.4} parent=31 // pred_check_branch
              %142 = sbr.rel (0) target = $region36
            $region35: #{cnn_forward.4} parent=31 // pred_region
              // Predicated region
              $region48: #{cnn_forward.4} parent=35 // pred_check
                _
              $region49: #{cnn_forward.4} parent=35 // pred_check_branch
                %212 = sbr.rel (0) target = $region51
              $region50: #{cnn_forward.4} parent=35 // pred_region
                loop: start=0, step=1, limit=1
                $region52: #{cnn_forward.4} parent=50 // loop_pre_header
                  _
                $region53: #{cnn_forward.4} parent=50 // loop_header
                  %s214 = sphi 0, %s218
                  %p215 = scmp.ge.s32.totalorder %s214, 1
                  %s219 = sphi %s138, %s138
                  %s220 = sphi %s134, %s134
                $region54: #{cnn_forward.4} parent=50 // loop_header_branch
                  %217 = sbr.rel (%p215) target = $region58
                $region55: #{cnn_forward.4} parent=50 // loop_body
                  %v221 = vld [vmem:[%s219] sm:$0xff]
                  %222 = vst [vmem:[%s220] sm:$0xff] %v221
                  %v223 = vld [vmem:[%s219 + $0x8] sm:$0xff]
                  %224 = vst [vmem:[%s220 + $0x8] sm:$0xff] %v223
                  %v225 = vld [vmem:[%s219 + $0x10] sm:$0xff]
                  %226 = vst [vmem:[%s220 + $0x10] sm:$0xff] %v225
                  %v227 = vld [vmem:[%s219 + $0x18] sm:$0xff]
                  %228 = vst [vmem:[%s220 + $0x18] sm:$0xff] %v227
                  %v229 = vld [vmem:[%s219 + $0x20] sm:$0xff]
                  %230 = vst [vmem:[%s220 + $0x20] sm:$0xff] %v229
                  %v231 = vld [vmem:[%s219 + $0x28] sm:$0xff]
                  %232 = vst [vmem:[%s220 + $0x28] sm:$0xff] %v231
                  %v233 = vld [vmem:[%s219 + $0x30] sm:$0xff]
                  %234 = vst [vmem:[%s220 + $0x30] sm:$0xff] %v233
                  %v235 = vld [vmem:[%s219 + $0x70] sm:$0xff]
                  %236 = vst [vmem:[%s220 + $0x38] sm:$0xff] %v235
                  %v237 = vld [vmem:[%s219 + $0x78] sm:$0xff]
                  %238 = vst [vmem:[%s220 + $0x40] sm:$0xff] %v237
                  %v239 = vld [vmem:[%s219 + $0x80] sm:$0xff]
                  %240 = vst [vmem:[%s220 + $0x48] sm:$0xff] %v239
                  %v241 = vld [vmem:[%s219 + $0x88] sm:$0xff]
                  %242 = vst [vmem:[%s220 + $0x50] sm:$0xff] %v241
                  %v243 = vld [vmem:[%s219 + $0x90] sm:$0xff]
                  %244 = vst [vmem:[%s220 + $0x58] sm:$0xff] %v243
                  %v245 = vld [vmem:[%s219 + $0x98] sm:$0xff]
                  %246 = vst [vmem:[%s220 + $0x60] sm:$0xff] %v245
                  %v247 = vld [vmem:[%s219 + $0xa0] sm:$0xff]
                  %248 = vst [vmem:[%s220 + $0x68] sm:$0xff] %v247
                  %v249 = vld [vmem:[%s219 + $0xe0] sm:$0xff]
                  %250 = vst [vmem:[%s220 + $0x70] sm:$0xff] %v249
                  %v251 = vld [vmem:[%s219 + $0xe8] sm:$0xff]
                  %252 = vst [vmem:[%s220 + $0x78] sm:$0xff] %v251
                  %v253 = vld [vmem:[%s219 + $0xf0] sm:$0xff]
                  %254 = vst [vmem:[%s220 + $0x80] sm:$0xff] %v253
                  %v255 = vld [vmem:[%s219 + $0xf8] sm:$0xff]
                  %256 = vst [vmem:[%s220 + $0x88] sm:$0xff] %v255
                  %v257 = vld [vmem:[%s219 + $0x100] sm:$0xff]
                  %258 = vst [vmem:[%s220 + $0x90] sm:$0xff] %v257
                  %v259 = vld [vmem:[%s219 + $0x108] sm:$0xff]
                  %260 = vst [vmem:[%s220 + $0x98] sm:$0xff] %v259
                  %v261 = vld [vmem:[%s219 + $0x110] sm:$0xff]
                  %262 = vst [vmem:[%s220 + $0xa0] sm:$0xff] %v261
                  %v263 = vld [vmem:[%s219 + $0x150] sm:$0xff]
                  %264 = vst [vmem:[%s220 + $0xa8] sm:$0xff] %v263
                  %v265 = vld [vmem:[%s219 + $0x158] sm:$0xff]
                  %266 = vst [vmem:[%s220 + $0xb0] sm:$0xff] %v265
                  %v267 = vld [vmem:[%s219 + $0x160] sm:$0xff]
                  %268 = vst [vmem:[%s220 + $0xb8] sm:$0xff] %v267
                  %v269 = vld [vmem:[%s219 + $0x168] sm:$0xff]
                  %270 = vst [vmem:[%s220 + $0xc0] sm:$0xff] %v269
                  %v271 = vld [vmem:[%s219 + $0x170] sm:$0xff]
                  %272 = vst [vmem:[%s220 + $0xc8] sm:$0xff] %v271
                  %v273 = vld [vmem:[%s219 + $0x178] sm:$0xff]
                  %274 = vst [vmem:[%s220 + $0xd0] sm:$0xff] %v273
                  %v275 = vld [vmem:[%s219 + $0x180] sm:$0xff]
                  %276 = vst [vmem:[%s220 + $0xd8] sm:$0xff] %v275
                $region56: #{cnn_forward.4} parent=50 // loop_footer
                  %s218 = sadd.s32 1, %s214
                $region57: #{cnn_forward.4} parent=50 // loop_footer_branch
                  %213 = sbr.rel target = $region53
                $region58: #{cnn_forward.4} parent=50 // loop_exit
                  _
              $region51: #{cnn_forward.4} parent=35 // pred_fallthru
                _
              // Predicated region
              $region59: #{cnn_forward.4} parent=35 // pred_check
                _
              $region60: #{cnn_forward.4} parent=35 // pred_check_branch
                %278 = sbr.rel target = $region62
              $region61: #{cnn_forward.4} parent=35 // pred_region
                _
              $region62: #{cnn_forward.4} parent=35 // pred_fallthru
                _
            $region36: #{cnn_forward.4} parent=31 // pred_fallthru
              _
            // Predicated region
            $region37: #{cnn_forward.4} parent=31 // pred_check
              _
            $region38: #{cnn_forward.4} parent=31 // pred_check_branch
              %144 = sbr.rel target = $region40
            $region39: #{cnn_forward.4} parent=31 // pred_region
              %s146 = ssub.s32 256, 1
              loop: start=0, step=1, limit=1
              $region41: #{cnn_forward.4} parent=39 // loop_pre_header
                _
              $region42: #{cnn_forward.4} parent=39 // loop_header
                %s148 = sphi 0, %s152
                %p149 = scmp.ge.s32.totalorder %s148, 1
                %s153 = sphi %s138, %s138
                %s154 = sphi %s134, %s134
              $region43: #{cnn_forward.4} parent=39 // loop_header_branch
                %151 = sbr.rel (%p149) target = $region47
              $region44: #{cnn_forward.4} parent=39 // loop_body
                %v155 = vld [vmem:[%s153] sm:%s146]
                %156 = vst [vmem:[%s154] sm:%s146] %v155
                %v157 = vld [vmem:[%s153 + $0x8] sm:%s146]
                %158 = vst [vmem:[%s154 + $0x8] sm:%s146] %v157
                %v159 = vld [vmem:[%s153 + $0x10] sm:%s146]
                %160 = vst [vmem:[%s154 + $0x10] sm:%s146] %v159
                %v161 = vld [vmem:[%s153 + $0x18] sm:%s146]
                %162 = vst [vmem:[%s154 + $0x18] sm:%s146] %v161
                %v163 = vld [vmem:[%s153 + $0x20] sm:%s146]
                %164 = vst [vmem:[%s154 + $0x20] sm:%s146] %v163
                %v165 = vld [vmem:[%s153 + $0x28] sm:%s146]
                %166 = vst [vmem:[%s154 + $0x28] sm:%s146] %v165
                %v167 = vld [vmem:[%s153 + $0x30] sm:%s146]
                %168 = vst [vmem:[%s154 + $0x30] sm:%s146] %v167
                %v169 = vld [vmem:[%s153 + $0x70] sm:%s146]
                %170 = vst [vmem:[%s154 + $0x38] sm:%s146] %v169
                %v171 = vld [vmem:[%s153 + $0x78] sm:%s146]
                %172 = vst [vmem:[%s154 + $0x40] sm:%s146] %v171
                %v173 = vld [vmem:[%s153 + $0x80] sm:%s146]
                %174 = vst [vmem:[%s154 + $0x48] sm:%s146] %v173
                %v175 = vld [vmem:[%s153 + $0x88] sm:%s146]
                %176 = vst [vmem:[%s154 + $0x50] sm:%s146] %v175
                %v177 = vld [vmem:[%s153 + $0x90] sm:%s146]
                %178 = vst [vmem:[%s154 + $0x58] sm:%s146] %v177
                %v179 = vld [vmem:[%s153 + $0x98] sm:%s146]
                %180 = vst [vmem:[%s154 + $0x60] sm:%s146] %v179
                %v181 = vld [vmem:[%s153 + $0xa0] sm:%s146]
                %182 = vst [vmem:[%s154 + $0x68] sm:%s146] %v181
                %v183 = vld [vmem:[%s153 + $0xe0] sm:%s146]
                %184 = vst [vmem:[%s154 + $0x70] sm:%s146] %v183
                %v185 = vld [vmem:[%s153 + $0xe8] sm:%s146]
                %186 = vst [vmem:[%s154 + $0x78] sm:%s146] %v185
                %v187 = vld [vmem:[%s153 + $0xf0] sm:%s146]
                %188 = vst [vmem:[%s154 + $0x80] sm:%s146] %v187
                %v189 = vld [vmem:[%s153 + $0xf8] sm:%s146]
                %190 = vst [vmem:[%s154 + $0x88] sm:%s146] %v189
                %v191 = vld [vmem:[%s153 + $0x100] sm:%s146]
                %192 = vst [vmem:[%s154 + $0x90] sm:%s146] %v191
                %v193 = vld [vmem:[%s153 + $0x108] sm:%s146]
                %194 = vst [vmem:[%s154 + $0x98] sm:%s146] %v193
                %v195 = vld [vmem:[%s153 + $0x110] sm:%s146]
                %196 = vst [vmem:[%s154 + $0xa0] sm:%s146] %v195
                %v197 = vld [vmem:[%s153 + $0x150] sm:%s146]
                %198 = vst [vmem:[%s154 + $0xa8] sm:%s146] %v197
                %v199 = vld [vmem:[%s153 + $0x158] sm:%s146]
                %200 = vst [vmem:[%s154 + $0xb0] sm:%s146] %v199
                %v201 = vld [vmem:[%s153 + $0x160] sm:%s146]
                %202 = vst [vmem:[%s154 + $0xb8] sm:%s146] %v201
                %v203 = vld [vmem:[%s153 + $0x168] sm:%s146]
                %204 = vst [vmem:[%s154 + $0xc0] sm:%s146] %v203
                %v205 = vld [vmem:[%s153 + $0x170] sm:%s146]
                %206 = vst [vmem:[%s154 + $0xc8] sm:%s146] %v205
                %v207 = vld [vmem:[%s153 + $0x178] sm:%s146]
                %208 = vst [vmem:[%s154 + $0xd0] sm:%s146] %v207
                %v209 = vld [vmem:[%s153 + $0x180] sm:%s146]
                %210 = vst [vmem:[%s154 + $0xd8] sm:%s146] %v209
              $region45: #{cnn_forward.4} parent=39 // loop_footer
                %s152 = sadd.s32 1, %s148
              $region46: #{cnn_forward.4} parent=39 // loop_footer_branch
                %147 = sbr.rel target = $region42
              $region47: #{cnn_forward.4} parent=39 // loop_exit
                _
            $region40: #{cnn_forward.4} parent=31 // pred_fallthru
              _
          $region32: #{cnn_forward.4} parent=27 // pred_fallthru
            _
          %279 = vnop
        $region28: #{cnn_forward.4} parent=23 // pred_fallthru
          _
      $region24: #{cnn_forward.4} parent=5 // pred_fallthru
        _
      %p280 = scmp.le.s32.totalorder 1, %s9
      %p281 = scmp.lt.s32.totalorder %s9, 3
      %p282 = pnand %p280, %p281
      %p283 = pneg %p282
      // Predicated region
      $region63: #{cnn_forward.4} parent=5 // pred_check
        _
      $region64: #{cnn_forward.4} parent=5 // pred_check_branch
        %285 = sbr.rel (%p282) target = $region66
      $region65: #{cnn_forward.4} parent=5 // pred_region
        %s286 = ssub.s32 %s9, 1
        %s287 = sand.u32 %s22, 1
        %s288 = sand.u32 %s22, 1
        %s289 = smul.addr %s288, 224
        %s290 = scalar_lea.vmem [#allocation2], %s289
        // Predicated region
        $region67: #{cnn_forward.4} parent=65 // pred_check
          %p291 = pneg %p35
        $region68: #{cnn_forward.4} parent=65 // pred_check_branch
          %293 = sbr.rel (%p291) target = $region70
        $region69: #{cnn_forward.4} parent=65 // pred_region
          _
        $region70: #{cnn_forward.4} parent=65 // pred_fallthru
          _
        %s294 = sand.u32 %s22, 1
        %s295 = sand.u32 %s22, 1
        %s296 = smul.addr %s295, 224
        %s297 = scalar_lea.vmem [#allocation2], %s296
        %p298 = pneg %p35
        %p299 = pneg %p32
        %p300 = pneg %p56
        %p301 = pneg %p53
        %p302 = pneg %p77
        %p303 = pneg %p74
        %p304 = pneg %p103
        %p305 = pneg %p100
        %s306 = smul.u32 7, %s14
        %p307 = scmp.lt.s32.totalorder %s306, 13
        %s308 = scalar_select %p307, %s306, 13
        %s309 = smul.addr %s308, 4
        %s310 = scalar_lea.vmem %s3, %s309
        %s311 = smul.u32 7, %s14
        %s312 = smul.u32 7, %s14
        %p313 = scmp.lt.s32.totalorder %s312, 13
        %s314 = scalar_select %p313, %s312, 13
        %s315 = smul.addr %s314, 4
        %s316 = scalar_lea.vmem %s3, %s315
        %s317 = smul.u32 7, %s14
        %v319 = vld [vmem:[%s290] sm:$0xff]
        %v320 = vld [vmem:[%s290 + $0x8] sm:$0xff]
        %v321 = vld [vmem:[%s290 + $0x10] sm:$0xff]
        %v322 = vld [vmem:[%s290 + $0x18] sm:$0xff]
        %v323 = vld [vmem:[%s290 + $0x20] sm:$0xff]
        %v324 = vld [vmem:[%s290 + $0x28] sm:$0xff]
        %v325 = vld [vmem:[%s290 + $0x30] sm:$0xff]
        %v326 = vld [vmem:[%s290 + $0x38] sm:$0xff]
        %v327 = vld [vmem:[%s290 + $0x40] sm:$0xff]
        %v328 = vld [vmem:[%s290 + $0x48] sm:$0xff]
        %v329 = vld [vmem:[%s290 + $0x50] sm:$0xff]
        %v330 = vld [vmem:[%s290 + $0x58] sm:$0xff]
        %v331 = vld [vmem:[%s290 + $0x60] sm:$0xff]
        %v332 = vld [vmem:[%s290 + $0x68] sm:$0xff]
        %v333 = vld [vmem:[%s290 + $0x70] sm:$0xff]
        %v334 = vld [vmem:[%s290 + $0x78] sm:$0xff]
        %v335 = vld [vmem:[%s290 + $0x80] sm:$0xff]
        %v336 = vld [vmem:[%s290 + $0x88] sm:$0xff]
        %v337 = vld [vmem:[%s290 + $0x90] sm:$0xff]
        %v338 = vld [vmem:[%s290 + $0x98] sm:$0xff]
        %v339 = vld [vmem:[%s290 + $0xa0] sm:$0xff]
        %v340 = vld [vmem:[%s290 + $0xa8] sm:$0xff]
        %v341 = vld [vmem:[%s290 + $0xb0] sm:$0xff]
        %v342 = vld [vmem:[%s290 + $0xb8] sm:$0xff]
        %v343 = vld [vmem:[%s290 + $0xc0] sm:$0xff]
        %v344 = vld [vmem:[%s290 + $0xc8] sm:$0xff]
        %v345 = vld [vmem:[%s290 + $0xd0] sm:$0xff]
        %v346 = vld [vmem:[%s290 + $0xd8] sm:$0xff]
        %v347 = vld [vmem:[%s1] sm:$0xf]
        %v348 = vld [vmem:[%s1 + $0x4] sm:$0xf]
        %v349 = vld [vmem:[%s1 + $0x8] sm:$0xf]
        %v350 = vld [vmem:[%s1 + $0xc] sm:$0xf]
        %v351 = vld [vmem:[%s1 + $0x10] sm:$0xf]
        %v352 = vld [vmem:[%s1 + $0x14] sm:$0xf]
        %v353 = vld [vmem:[%s1 + $0x18] sm:$0xf]
        %v354 = vld [vmem:[%s1 + $0x1c] sm:$0xf]
        %v355 = vld [vmem:[%s1 + $0x20] sm:$0xf]
        %v356 = vld [vmem:[%s1 + $0x24] sm:$0xf]
        %v357 = vld [vmem:[%s1 + $0x28] sm:$0xf]
        %v358 = vld [vmem:[%s1 + $0x2c] sm:$0xf]
        %v359 = vld [vmem:[%s1 + $0x30] sm:$0xf]
        %v360 = vld [vmem:[%s1 + $0x34] sm:$0xf]
        %v361 = vld [vmem:[%s1 + $0x38] sm:$0xf]
        %v362 = vld [vmem:[%s1 + $0x3c] sm:$0xf]
        %v363 = vld [vmem:[%s1 + $0x40] sm:$0xf]
        %v364 = vld [vmem:[%s1 + $0x44] sm:$0xf]
        %v393 = vunpack.c.l.b16 %v319
        %v394 = vunpack.c.h.b16 %v319
        %v395 = vunpack.c.l.b16 %v320
        %v396 = vunpack.c.h.b16 %v320
        %v397 = vunpack.c.l.b16 %v321
        %v398 = vunpack.c.h.b16 %v321
        %v399 = vunpack.c.l.b16 %v322
        %v400 = vunpack.c.h.b16 %v322
        %v401 = vunpack.c.l.b16 %v323
        %v402 = vunpack.c.h.b16 %v323
        %v403 = vunpack.c.l.b16 %v324
        %v404 = vunpack.c.h.b16 %v324
        %v405 = vunpack.c.l.b16 %v325
        %v406 = vunpack.c.h.b16 %v325
        %v407 = vunpack.c.l.b16 %v326
        %v408 = vunpack.c.h.b16 %v326
        %v409 = vunpack.c.l.b16 %v327
        %v410 = vunpack.c.h.b16 %v327
        %v411 = vunpack.c.l.b16 %v328
        %v412 = vunpack.c.h.b16 %v328
        %v413 = vunpack.c.l.b16 %v329
        %v414 = vunpack.c.h.b16 %v329
        %v415 = vunpack.c.l.b16 %v330
        %v416 = vunpack.c.h.b16 %v330
        %v417 = vunpack.c.l.b16 %v331
        %v418 = vunpack.c.h.b16 %v331
        %v419 = vunpack.c.l.b16 %v332
        %v420 = vunpack.c.h.b16 %v332
        %v421 = vunpack.c.l.b16 %v333
        %v422 = vunpack.c.h.b16 %v333
        %v423 = vunpack.c.l.b16 %v334
        %v424 = vunpack.c.h.b16 %v334
        %v425 = vunpack.c.l.b16 %v335
        %v426 = vunpack.c.h.b16 %v335
        %v427 = vunpack.c.l.b16 %v336
        %v428 = vunpack.c.h.b16 %v336
        %v429 = vunpack.c.l.b16 %v337
        %v430 = vunpack.c.h.b16 %v337
        %v431 = vunpack.c.l.b16 %v338
        %v432 = vunpack.c.h.b16 %v338
        %v433 = vunpack.c.l.b16 %v339
        %v434 = vunpack.c.h.b16 %v339
        %v435 = vunpack.c.l.b16 %v340
        %v436 = vunpack.c.h.b16 %v340
        %v437 = vunpack.c.l.b16 %v341
        %v438 = vunpack.c.h.b16 %v341
        %v439 = vunpack.c.l.b16 %v342
        %v440 = vunpack.c.h.b16 %v342
        %v441 = vunpack.c.l.b16 %v343
        %v442 = vunpack.c.h.b16 %v343
        %v443 = vunpack.c.l.b16 %v344
        %v444 = vunpack.c.h.b16 %v344
        %v445 = vunpack.c.l.b16 %v345
        %v446 = vunpack.c.h.b16 %v345
        %v447 = vunpack.c.l.b16 %v346
        %v448 = vunpack.c.h.b16 %v346
        %v449 = vpack.c.b16 %v395, %v393
        %v450 = vpack.c.b16 %v396, %v394
        %v451 = vpack.c.b16 %v399, %v397
        %v452 = vpack.c.b16 %v400, %v398
        %v453 = vpack.c.b16 %v403, %v401
        %v454 = vpack.c.b16 %v404, %v402
        %v455 = vpack.c.b16 %v407, %v405
        %v456 = vpack.c.b16 %v408, %v406
        %v457 = vpack.c.b16 %v411, %v409
        %v458 = vpack.c.b16 %v412, %v410
        %v459 = vpack.c.b16 %v415, %v413
        %v460 = vpack.c.b16 %v416, %v414
        %v461 = vpack.c.b16 %v419, %v417
        %v462 = vpack.c.b16 %v420, %v418
        %v463 = vpack.c.b16 %v423, %v421
        %v464 = vpack.c.b16 %v424, %v422
        %v465 = vpack.c.b16 %v427, %v425
        %v466 = vpack.c.b16 %v428, %v426
        %v467 = vpack.c.b16 %v431, %v429
        %v468 = vpack.c.b16 %v432, %v430
        %v469 = vpack.c.b16 %v435, %v433
        %v470 = vpack.c.b16 %v436, %v434
        %v471 = vpack.c.b16 %v439, %v437
        %v472 = vpack.c.b16 %v440, %v438
        %v473 = vpack.c.b16 %v443, %v441
        %v474 = vpack.c.b16 %v444, %v442
        %v475 = vpack.c.b16 %v447, %v445
        %v476 = vpack.c.b16 %v448, %v446
        %v509 = vunpack.c.l.b16 %v347
        %v510 = vunpack.c.l.b16 %v348
        %v511 = vunpack.c.l.b16 %v349
        %v512 = vunpack.c.l.b16 %v350
        %v513 = vunpack.c.l.b16 %v351
        %v514 = vunpack.c.l.b16 %v352
        %v515 = vunpack.c.l.b16 %v353
        %v516 = vunpack.c.l.b16 %v354
        %v517 = vunpack.c.l.b16 %v355
        %v518 = vunpack.c.l.b16 %v356
        %v519 = vunpack.c.l.b16 %v357
        %v520 = vunpack.c.l.b16 %v358
        %v521 = vunpack.c.l.b16 %v359
        %v522 = vunpack.c.l.b16 %v360
        %v523 = vunpack.c.l.b16 %v361
        %v524 = vunpack.c.l.b16 %v362
        %v525 = vunpack.c.l.b16 %v363
        %v526 = vunpack.c.l.b16 %v364
        %v527 = vpack.c.b16 %v510, %v509
        %v528 = vpack.c.b16 %v512, %v511
        %v529 = vpack.c.b16 %v514, %v513
        %v530 = vpack.c.b16 %v516, %v515
        %v531 = vpack.c.b16 %v518, %v517
        %v532 = vpack.c.b16 %v520, %v519
        %v533 = vpack.c.b16 %v522, %v521
        %v534 = vpack.c.b16 %v524, %v523
        %v535 = vpack.c.b16 %v526, %v525
        %vm545 = vcmask 130048
        %v547 = vsel %vm545, %v450, 0
        %v550 = vsel %vm545, %v452, 0
        %v553 = vsel %vm545, %v454, 0
        %v556 = vsel %vm545, %v456, 0
        %v559 = vsel %vm545, %v458, 0
        %v562 = vsel %vm545, %v460, 0
        %v565 = vsel %vm545, %v462, 0
        %v568 = vsel %vm545, %v464, 0
        %v571 = vsel %vm545, %v466, 0
        %v574 = vsel %vm545, %v468, 0
        %v577 = vsel %vm545, %v470, 0
        %v580 = vsel %vm545, %v472, 0
        %v583 = vsel %vm545, %v474, 0
        %v586 = vsel %vm545, %v476, 0
        %588 = vmatpush.bf16.msra.mxu0 %v534
        %589 = vmatpush.bf16.msra.mxu0 %v533
        %590 = vmatpush.bf16.msra.mxu0 %v532
        %591 = vmatpush.bf16.msra.mxu0 %v531
        %592 = vmatpush.bf16.msra.mxu0 %v530
        %593 = vmatpush.bf16.msra.mxu0 %v529
        %594 = vmatpush.bf16.msra.mxu0 %v528
        %595 = vmatpush.bf16.msra.mxu0 %v527
        %596 = vmatmul.bf16.gmra.mxu0 %v449
        %v597 = vpop.f32.mrf.mxu0
        %v598 = vadd.f32 0.0, %v597
        %v599 = vpop.f32.mrf.mxu0
        %v600 = vadd.f32 0.0, %v599
        %601 = vmatmul.bf16.gmra.mxu0 %v451
        %v602 = vpop.f32.mrf.mxu0
        %v603 = vadd.f32 0.0, %v602
        %v604 = vpop.f32.mrf.mxu0
        %v605 = vadd.f32 0.0, %v604
        %606 = vmatmul.bf16.gmra.mxu0 %v453
        %v607 = vpop.f32.mrf.mxu0
        %v608 = vadd.f32 0.0, %v607
        %v609 = vpop.f32.mrf.mxu0
        %v610 = vadd.f32 0.0, %v609
        %611 = vmatmul.bf16.gmra.mxu0 %v455
        %v612 = vpop.f32.mrf.mxu0
        %v613 = vadd.f32 0.0, %v612
        %v614 = vpop.f32.mrf.mxu0
        %v615 = vadd.f32 0.0, %v614
        %616 = vmatmul.bf16.gmra.mxu0 %v457
        %v617 = vpop.f32.mrf.mxu0
        %v618 = vadd.f32 0.0, %v617
        %v619 = vpop.f32.mrf.mxu0
        %v620 = vadd.f32 0.0, %v619
        %621 = vmatmul.bf16.gmra.mxu0 %v459
        %v622 = vpop.f32.mrf.mxu0
        %v623 = vadd.f32 0.0, %v622
        %v624 = vpop.f32.mrf.mxu0
        %v625 = vadd.f32 0.0, %v624
        %626 = vmatmul.bf16.gmra.mxu0 %v461
        %v627 = vpop.f32.mrf.mxu0
        %v628 = vadd.f32 0.0, %v627
        %v629 = vpop.f32.mrf.mxu0
        %v630 = vadd.f32 0.0, %v629
        %631 = vmatmul.bf16.gmra.mxu0 %v463
        %v632 = vpop.f32.mrf.mxu0
        %v633 = vadd.f32 0.0, %v632
        %v634 = vpop.f32.mrf.mxu0
        %v635 = vadd.f32 0.0, %v634
        %636 = vmatmul.bf16.gmra.mxu0 %v465
        %v637 = vpop.f32.mrf.mxu0
        %v638 = vadd.f32 0.0, %v637
        %v639 = vpop.f32.mrf.mxu0
        %v640 = vadd.f32 0.0, %v639
        %641 = vmatmul.bf16.gmra.mxu0 %v467
        %v642 = vpop.f32.mrf.mxu0
        %v643 = vadd.f32 0.0, %v642
        %v644 = vpop.f32.mrf.mxu0
        %v645 = vadd.f32 0.0, %v644
        %646 = vmatmul.bf16.gmra.mxu0 %v469
        %v647 = vpop.f32.mrf.mxu0
        %v648 = vadd.f32 0.0, %v647
        %v649 = vpop.f32.mrf.mxu0
        %v650 = vadd.f32 0.0, %v649
        %651 = vmatmul.bf16.gmra.mxu0 %v471
        %v652 = vpop.f32.mrf.mxu0
        %v653 = vadd.f32 0.0, %v652
        %v654 = vpop.f32.mrf.mxu0
        %v655 = vadd.f32 0.0, %v654
        %656 = vmatmul.bf16.gmra.mxu0 %v473
        %v657 = vpop.f32.mrf.mxu0
        %v658 = vadd.f32 0.0, %v657
        %v659 = vpop.f32.mrf.mxu0
        %v660 = vadd.f32 0.0, %v659
        %661 = vmatmul.bf16.gmra.mxu0 %v475
        %v662 = vpop.f32.mrf.mxu0
        %v663 = vadd.f32 0.0, %v662
        %v664 = vpop.f32.mrf.mxu0
        %v665 = vadd.f32 0.0, %v664
        %666 = vdwg.mxu0
        %667 = vmatpush.bf16.msra.mxu0 0
        %668 = vmatpush.bf16.msra.mxu0 0
        %669 = vmatpush.bf16.msra.mxu0 0
        %670 = vmatpush.bf16.msra.mxu0 0
        %671 = vmatpush.bf16.msra.mxu0 0
        %672 = vmatpush.bf16.msra.mxu0 0
        %673 = vmatpush.bf16.msra.mxu0 0
        %674 = vmatpush.bf16.msra.mxu0 %v535
        %675 = vmatmul.bf16.gmra.mxu0 %v547
        %v676 = vpop.f32.mrf.mxu0
        %v677 = vadd.f32 %v598, %v676
        %v678 = vpop.f32.mrf.mxu0
        %v679 = vadd.f32 %v600, %v678
        %680 = vmatmul.bf16.gmra.mxu0 %v550
        %v681 = vpop.f32.mrf.mxu0
        %v682 = vadd.f32 %v603, %v681
        %v683 = vpop.f32.mrf.mxu0
        %v684 = vadd.f32 %v605, %v683
        %685 = vmatmul.bf16.gmra.mxu0 %v553
        %v686 = vpop.f32.mrf.mxu0
        %v687 = vadd.f32 %v608, %v686
        %v688 = vpop.f32.mrf.mxu0
        %v689 = vadd.f32 %v610, %v688
        %690 = vmatmul.bf16.gmra.mxu0 %v556
        %v691 = vpop.f32.mrf.mxu0
        %v692 = vadd.f32 %v613, %v691
        %v693 = vpop.f32.mrf.mxu0
        %v694 = vadd.f32 %v615, %v693
        %695 = vmatmul.bf16.gmra.mxu0 %v559
        %v696 = vpop.f32.mrf.mxu0
        %v697 = vadd.f32 %v618, %v696
        %v698 = vpop.f32.mrf.mxu0
        %v699 = vadd.f32 %v620, %v698
        %700 = vmatmul.bf16.gmra.mxu0 %v562
        %v701 = vpop.f32.mrf.mxu0
        %v702 = vadd.f32 %v623, %v701
        %v703 = vpop.f32.mrf.mxu0
        %v704 = vadd.f32 %v625, %v703
        %705 = vmatmul.bf16.gmra.mxu0 %v565
        %v706 = vpop.f32.mrf.mxu0
        %v707 = vadd.f32 %v628, %v706
        %v708 = vpop.f32.mrf.mxu0
        %v709 = vadd.f32 %v630, %v708
        %710 = vmatmul.bf16.gmra.mxu0 %v568
        %v711 = vpop.f32.mrf.mxu0
        %v712 = vadd.f32 %v633, %v711
        %v713 = vpop.f32.mrf.mxu0
        %v714 = vadd.f32 %v635, %v713
        %715 = vmatmul.bf16.gmra.mxu0 %v571
        %v716 = vpop.f32.mrf.mxu0
        %v717 = vadd.f32 %v638, %v716
        %v718 = vpop.f32.mrf.mxu0
        %v719 = vadd.f32 %v640, %v718
        %720 = vmatmul.bf16.gmra.mxu0 %v574
        %v721 = vpop.f32.mrf.mxu0
        %v722 = vadd.f32 %v643, %v721
        %v723 = vpop.f32.mrf.mxu0
        %v724 = vadd.f32 %v645, %v723
        %725 = vmatmul.bf16.gmra.mxu0 %v577
        %v726 = vpop.f32.mrf.mxu0
        %v727 = vadd.f32 %v648, %v726
        %v728 = vpop.f32.mrf.mxu0
        %v729 = vadd.f32 %v650, %v728
        %730 = vmatmul.bf16.gmra.mxu0 %v580
        %v731 = vpop.f32.mrf.mxu0
        %v732 = vadd.f32 %v653, %v731
        %v733 = vpop.f32.mrf.mxu0
        %v734 = vadd.f32 %v655, %v733
        %735 = vmatmul.bf16.gmra.mxu0 %v583
        %v736 = vpop.f32.mrf.mxu0
        %v737 = vadd.f32 %v658, %v736
        %v738 = vpop.f32.mrf.mxu0
        %v739 = vadd.f32 %v660, %v738
        %740 = vmatmul.bf16.gmra.mxu0 %v586
        %v741 = vpop.f32.mrf.mxu0
        %v742 = vadd.f32 %v663, %v741
        %v743 = vpop.f32.mrf.mxu0
        %v744 = vadd.f32 %v665, %v743
        %745 = vdwg.mxu0
        %v746 = vmax.f32 %v677, %v694
        %v747 = vmax.f32 %v679, %v697
        %v748 = vmax.f32 %v682, %v699
        %v749 = vmax.f32 %v684, %v702
        %v750 = vmax.f32 %v687, %v704
        %v751 = vmax.f32 %v689, %v707
        %v752 = vmax.f32 %v692, %v709
        %v753 = vmax.f32 %v712, %v729
        %v754 = vmax.f32 %v714, %v732
        %v755 = vmax.f32 %v717, %v734
        %v756 = vmax.f32 %v719, %v737
        %v757 = vmax.f32 %v722, %v739
        %v758 = vmax.f32 %v724, %v742
        %v759 = vmax.f32 %v727, %v744
        %v760 = vmax.f32 %v746, %v753
        %v761 = vmax.f32 %v747, %v754
        %v762 = vmax.f32 %v748, %v755
        %v763 = vmax.f32 %v749, %v756
        %v764 = vmax.f32 %v750, %v757
        %v765 = vmax.f32 %v751, %v758
        %v766 = vmax.f32 %v752, %v759
        %v767 = vld [vmem:[%s2] sm:$0x1]
        %v769 = vperm.slane %v767, 0
        %v771 = vadd.f32 %v760, %v769
        %v772 = vadd.f32 %v761, %v769
        %v773 = vadd.f32 %v762, %v769
        %v774 = vadd.f32 %v763, %v769
        %v775 = vadd.f32 %v764, %v769
        %v776 = vadd.f32 %v765, %v769
        %v777 = vadd.f32 %v766, %v769
        %v778 = vmax.f32 %v771, 0.0
        %v779 = vmax.f32 %v772, 0.0
        %v780 = vmax.f32 %v773, 0.0
        %v781 = vmax.f32 %v774, 0.0
        %v782 = vmax.f32 %v775, 0.0
        %v783 = vmax.f32 %v776, 0.0
        %v784 = vmax.f32 %v777, 0.0
        %v785 = vpack.c.bf16 %v778, %v778
        %v786 = vpack.c.bf16 %v779, %v779
        %v787 = vpack.c.bf16 %v780, %v780
        %v788 = vpack.c.bf16 %v781, %v781
        %v789 = vpack.c.bf16 %v782, %v782
        %v790 = vpack.c.bf16 %v783, %v783
        %v791 = vpack.c.bf16 %v784, %v784
        %vm792 = vcmask 257024
        %793 = vst.msk [vmem:[%s316] sm:$0xf] %vm792, %v785
        %794 = vst.msk [vmem:[%s316 + $0x4] sm:$0xf] %vm792, %v786
        %795 = vst.msk [vmem:[%s316 + $0x8] sm:$0xf] %vm792, %v787
        %796 = vst.msk [vmem:[%s316 + $0xc] sm:$0xf] %vm792, %v788
        %797 = vst.msk [vmem:[%s316 + $0x10] sm:$0xf] %vm792, %v789
        %798 = vst.msk [vmem:[%s316 + $0x14] sm:$0xf] %vm792, %v790
        %799 = vst.msk [vmem:[%s316 + $0x18] sm:$0xf] %vm792, %v791
        %s800 = smul.u32 7, %s14
        %p801 = scmp.lt.s32.totalorder %s800, 13
        %s802 = scalar_select %p801, %s800, 13
        %s803 = smul.addr %s802, 4
        %s804 = scalar_lea.vmem %s3, %s803
        // Predicated region
        $region71: #{cnn_forward.4} parent=65 // pred_check
          %p805 = pneg %p100
        $region72: #{cnn_forward.4} parent=65 // pred_check_branch
          %807 = sbr.rel (%p805) target = $region74
        $region73: #{cnn_forward.4} parent=65 // pred_region
          %s808 = smul.u32 7, %s14
        $region74: #{cnn_forward.4} parent=65 // pred_fallthru
          _
      $region66: #{cnn_forward.4} parent=5 // pred_fallthru
        _
      %p809 = scmp.le.s32.totalorder 2, %s9
      // Predicated region
      $region75: #{cnn_forward.4} parent=5 // pred_check
        %p810 = pneg %p809
      $region76: #{cnn_forward.4} parent=5 // pred_check_branch
        %812 = sbr.rel (%p810) target = $region78
      $region77: #{cnn_forward.4} parent=5 // pred_region
        %s813 = ssub.s32 %s9, 2
        // Predicated region
        $region79: #{cnn_forward.4} parent=77 // pred_check
          %p814 = pneg %p106
        $region80: #{cnn_forward.4} parent=77 // pred_check_branch
          %816 = sbr.rel (%p814) target = $region82
        $region81: #{cnn_forward.4} parent=77 // pred_region
          %s817 = smul.u32 7, %s15
          %p818 = scmp.lt.s32.totalorder %s817, 13
          %s819 = scalar_select %p818, %s817, 13
          %s820 = smul.addr %s819, 4
          %s821 = scalar_lea.vmem %s3, %s820
        $region82: #{cnn_forward.4} parent=77 // pred_fallthru
          _
      $region78: #{cnn_forward.4} parent=5 // pred_fallthru
        _
    $region6: #{cnn_forward.4} parent=1 // loop_footer
      %s13 = sadd.s32 1, %s9
    $region7: #{cnn_forward.4} parent=1 // loop_footer_branch
      %8 = sbr.rel target = $region3
    $region8: #{cnn_forward.4} parent=1 // loop_exit
      _

// kernel: cnn_forward.5
$region0: #{cnn_forward.5}
  #allocation0 [shape = 'u32[]', space=smem, size = 0x4, offset = 0x4, fixed_abs, tag = 'smem constant byte address 0x4 - core index']
  #allocation1 [shape = 'u32[72,128]{1,0:T(1,128)}', space=vmem, size = 0x9000, scoped, tag = 'internal scratch']
  %s0 = inlined_call_operand.vmem [shape: bf16[16,1568], index: 0, kind: input, shape index: {}]
  %s1 = inlined_call_operand.vmem [shape: bf16[1568,512], index: 1, kind: input, shape index: {}]
  %s2 = inlined_call_operand.vmem [shape: f32[1,512], index: 2, kind: input, shape index: {}]
  %s3 = inlined_call_operand.vmem [shape: bf16[512,512], index: 3, kind: input, shape index: {}]
  %s4 = inlined_call_operand.vmem [shape: f32[1,512], index: 4, kind: input, shape index: {}]
  %s5 = inlined_call_operand.vmem [shape: bf16[512,128], index: 5, kind: input, shape index: {}]
  %s6 = inlined_call_operand.vmem [shape: f32[1,128], index: 6, kind: input, shape index: {}]
  %s7 = inlined_call_operand.vmem [shape: bf16[128,10], index: 7, kind: input, shape index: {}]
  %s8 = inlined_call_operand.vmem [shape: f32[1,10], index: 8, kind: input, shape index: {}]
  %s9 = inlined_call_operand.vmem [shape: f32[16,10], index: 9, kind: output, shape index: {}]
  %s10 = sld [smem:[#allocation0]]
  $region69: #{cnn_forward.5} parent=0
    _
  %s12 = ssub.s32 1, %s10
  %s13 = scalar_select 0, %s12, %s10
  loop: start=0, step=1, limit=4
  $region2: #{cnn_forward.5} parent=0 // loop_pre_header
    _
  $region3: #{cnn_forward.5} parent=0 // loop_header
    %s15 = sphi 0, %s19
    %p16 = scmp.ge.s32.totalorder %s15, 4
    %s25 = sphi 0, %s27
    %s28 = sphi 0, %s25
    %s29 = sphi 0, %s28
    %s45 = sphi 0, %s29
    %s49 = sphi 0, %s49
    %s51 = sphi 0, %s49
    %s52 = sphi 0, %s51
    %s66 = sphi 0, %s52
    %s70 = sphi 0, %s70
    %s72 = sphi 0, %s70
    %s73 = sphi 0, %s72
    %s87 = sphi 0, %s73
    %s91 = sphi 0, %s91
    %s93 = sphi 0, %s91
    %s94 = sphi 0, %s93
    %s108 = sphi 0, %s94
    %s112 = sphi 0, %s112
    %s114 = sphi 0, %s112
    %s115 = sphi 0, %s114
    %s129 = sphi 0, %s115
    %s133 = sphi 0, %s133
    %s135 = sphi 0, %s133
    %s136 = sphi 0, %s135
    %s150 = sphi 0, %s136
    %s154 = sphi 0, %s154
    %s156 = sphi 0, %s154
    %s157 = sphi 0, %s156
    %s171 = sphi 0, %s157
    %s175 = sphi 0, %s175
    %s177 = sphi 0, %s175
    %s178 = sphi 0, %s177
    %s192 = sphi 0, %s178
    %s196 = sphi 0, %s196
    %s198 = sphi 0, %s196
    %s199 = sphi 0, %s198
    %s213 = sphi 0, %s199
    %s219 = sphi 0, %s221
    %s222 = sphi 0, %s219
    %s223 = sphi 0, %s222
    %s239 = sphi 0, %s223
  $region4: #{cnn_forward.5} parent=0 // loop_header_branch
    %18 = sbr.rel (%p16) target = $region8
  $region5: #{cnn_forward.5} parent=0 // loop_body
    %s20 = ssub.s32 %s15, 1
    %s21 = ssub.s32 %s15, 2
    %s22 = sadd.s32 %s15, 1
    %s23 = ssub.s32 %s15, %s22
    %p24 = scmp.eq.s32.totalorder %s23, 0
    %s26 = sadd.s32 %s25, 1
    %s27 = scalar_select %p24, %s25, %s26
    %p30 = pneg %p24
    %p31 = scmp.eq.s32.totalorder %s15, 1
    %p32 = por %p30, %p31
    %p33 = scmp.ne.s32.totalorder %s25, %s28
    %p34 = scmp.eq.s32.totalorder %s15, 0
    %p35 = por %p33, %p34
    %p36 = scmp.ne.s32.totalorder %s25, %s28
    %p37 = scmp.eq.s32.totalorder %s20, 1
    %p38 = por %p36, %p37
    %p39 = scmp.ne.s32.totalorder %s28, %s29
    %p40 = scmp.eq.s32.totalorder %s20, 0
    %p41 = por %p39, %p40
    %p42 = scmp.ne.s32.totalorder %s28, %s29
    %p43 = scmp.eq.s32.totalorder %s21, 1
    %p44 = por %p42, %p43
    %p46 = scmp.ne.s32.totalorder %s29, %s45
    %p47 = scmp.eq.s32.totalorder %s21, 0
    %p48 = por %p46, %p47
    %s50 = sadd.s32 %s49, 1
    %p53 = scmp.eq.s32.totalorder %s15, 1
    %p54 = scmp.ne.s32.totalorder %s49, %s51
    %p55 = scmp.eq.s32.totalorder %s15, 0
    %p56 = por %p54, %p55
    %p57 = scmp.ne.s32.totalorder %s49, %s51
    %p58 = scmp.eq.s32.totalorder %s20, 1
    %p59 = por %p57, %p58
    %p60 = scmp.ne.s32.totalorder %s51, %s52
    %p61 = scmp.eq.s32.totalorder %s20, 0
    %p62 = por %p60, %p61
    %p63 = scmp.ne.s32.totalorder %s51, %s52
    %p64 = scmp.eq.s32.totalorder %s21, 1
    %p65 = por %p63, %p64
    %p67 = scmp.ne.s32.totalorder %s52, %s66
    %p68 = scmp.eq.s32.totalorder %s21, 0
    %p69 = por %p67, %p68
    %s71 = sadd.s32 %s70, 1
    %p74 = scmp.eq.s32.totalorder %s15, 1
    %p75 = scmp.ne.s32.totalorder %s70, %s72
    %p76 = scmp.eq.s32.totalorder %s15, 0
    %p77 = por %p75, %p76
    %p78 = scmp.ne.s32.totalorder %s70, %s72
    %p79 = scmp.eq.s32.totalorder %s20, 1
    %p80 = por %p78, %p79
    %p81 = scmp.ne.s32.totalorder %s72, %s73
    %p82 = scmp.eq.s32.totalorder %s20, 0
    %p83 = por %p81, %p82
    %p84 = scmp.ne.s32.totalorder %s72, %s73
    %p85 = scmp.eq.s32.totalorder %s21, 1
    %p86 = por %p84, %p85
    %p88 = scmp.ne.s32.totalorder %s73, %s87
    %p89 = scmp.eq.s32.totalorder %s21, 0
    %p90 = por %p88, %p89
    %s92 = sadd.s32 %s91, 1
    %p95 = scmp.eq.s32.totalorder %s15, 1
    %p96 = scmp.ne.s32.totalorder %s91, %s93
    %p97 = scmp.eq.s32.totalorder %s15, 0
    %p98 = por %p96, %p97
    %p99 = scmp.ne.s32.totalorder %s91, %s93
    %p100 = scmp.eq.s32.totalorder %s20, 1
    %p101 = por %p99, %p100
    %p102 = scmp.ne.s32.totalorder %s93, %s94
    %p103 = scmp.eq.s32.totalorder %s20, 0
    %p104 = por %p102, %p103
    %p105 = scmp.ne.s32.totalorder %s93, %s94
    %p106 = scmp.eq.s32.totalorder %s21, 1
    %p107 = por %p105, %p106
    %p109 = scmp.ne.s32.totalorder %s94, %s108
    %p110 = scmp.eq.s32.totalorder %s21, 0
    %p111 = por %p109, %p110
    %s113 = sadd.s32 %s112, 1
    %p116 = scmp.eq.s32.totalorder %s15, 1
    %p117 = scmp.ne.s32.totalorder %s112, %s114
    %p118 = scmp.eq.s32.totalorder %s15, 0
    %p119 = por %p117, %p118
    %p120 = scmp.ne.s32.totalorder %s112, %s114
    %p121 = scmp.eq.s32.totalorder %s20, 1
    %p122 = por %p120, %p121
    %p123 = scmp.ne.s32.totalorder %s114, %s115
    %p124 = scmp.eq.s32.totalorder %s20, 0
    %p125 = por %p123, %p124
    %p126 = scmp.ne.s32.totalorder %s114, %s115
    %p127 = scmp.eq.s32.totalorder %s21, 1
    %p128 = por %p126, %p127
    %p130 = scmp.ne.s32.totalorder %s115, %s129
    %p131 = scmp.eq.s32.totalorder %s21, 0
    %p132 = por %p130, %p131
    %s134 = sadd.s32 %s133, 1
    %p137 = scmp.eq.s32.totalorder %s15, 1
    %p138 = scmp.ne.s32.totalorder %s133, %s135
    %p139 = scmp.eq.s32.totalorder %s15, 0
    %p140 = por %p138, %p139
    %p141 = scmp.ne.s32.totalorder %s133, %s135
    %p142 = scmp.eq.s32.totalorder %s20, 1
    %p143 = por %p141, %p142
    %p144 = scmp.ne.s32.totalorder %s135, %s136
    %p145 = scmp.eq.s32.totalorder %s20, 0
    %p146 = por %p144, %p145
    %p147 = scmp.ne.s32.totalorder %s135, %s136
    %p148 = scmp.eq.s32.totalorder %s21, 1
    %p149 = por %p147, %p148
    %p151 = scmp.ne.s32.totalorder %s136, %s150
    %p152 = scmp.eq.s32.totalorder %s21, 0
    %p153 = por %p151, %p152
    %s155 = sadd.s32 %s154, 1
    %p158 = scmp.eq.s32.totalorder %s15, 1
    %p159 = scmp.ne.s32.totalorder %s154, %s156
    %p160 = scmp.eq.s32.totalorder %s15, 0
    %p161 = por %p159, %p160
    %p162 = scmp.ne.s32.totalorder %s154, %s156
    %p163 = scmp.eq.s32.totalorder %s20, 1
    %p164 = por %p162, %p163
    %p165 = scmp.ne.s32.totalorder %s156, %s157
    %p166 = scmp.eq.s32.totalorder %s20, 0
    %p167 = por %p165, %p166
    %p168 = scmp.ne.s32.totalorder %s156, %s157
    %p169 = scmp.eq.s32.totalorder %s21, 1
    %p170 = por %p168, %p169
    %p172 = scmp.ne.s32.totalorder %s157, %s171
    %p173 = scmp.eq.s32.totalorder %s21, 0
    %p174 = por %p172, %p173
    %s176 = sadd.s32 %s175, 1
    %p179 = scmp.eq.s32.totalorder %s15, 1
    %p180 = scmp.ne.s32.totalorder %s175, %s177
    %p181 = scmp.eq.s32.totalorder %s15, 0
    %p182 = por %p180, %p181
    %p183 = scmp.ne.s32.totalorder %s175, %s177
    %p184 = scmp.eq.s32.totalorder %s20, 1
    %p185 = por %p183, %p184
    %p186 = scmp.ne.s32.totalorder %s177, %s178
    %p187 = scmp.eq.s32.totalorder %s20, 0
    %p188 = por %p186, %p187
    %p189 = scmp.ne.s32.totalorder %s177, %s178
    %p190 = scmp.eq.s32.totalorder %s21, 1
    %p191 = por %p189, %p190
    %p193 = scmp.ne.s32.totalorder %s178, %s192
    %p194 = scmp.eq.s32.totalorder %s21, 0
    %p195 = por %p193, %p194
    %s197 = sadd.s32 %s196, 1
    %p200 = scmp.eq.s32.totalorder %s15, 1
    %p201 = scmp.ne.s32.totalorder %s196, %s198
    %p202 = scmp.eq.s32.totalorder %s15, 0
    %p203 = por %p201, %p202
    %p204 = scmp.ne.s32.totalorder %s196, %s198
    %p205 = scmp.eq.s32.totalorder %s20, 1
    %p206 = por %p204, %p205
    %p207 = scmp.ne.s32.totalorder %s198, %s199
    %p208 = scmp.eq.s32.totalorder %s20, 0
    %p209 = por %p207, %p208
    %p210 = scmp.ne.s32.totalorder %s198, %s199
    %p211 = scmp.eq.s32.totalorder %s21, 1
    %p212 = por %p210, %p211
    %p214 = scmp.ne.s32.totalorder %s199, %s213
    %p215 = scmp.eq.s32.totalorder %s21, 0
    %p216 = por %p214, %p215
    %s217 = ssub.s32 %s15, %s22
    %p218 = scmp.eq.s32.totalorder %s217, 0
    %s220 = sadd.s32 %s219, 1
    %s221 = scalar_select %p218, %s219, %s220
    %p224 = pneg %p218
    %p225 = scmp.eq.s32.totalorder %s15, 1
    %p226 = por %p224, %p225
    %p227 = scmp.ne.s32.totalorder %s219, %s222
    %p228 = scmp.eq.s32.totalorder %s15, 0
    %p229 = por %p227, %p228
    %p230 = scmp.ne.s32.totalorder %s219, %s222
    %p231 = scmp.eq.s32.totalorder %s20, 1
    %p232 = por %p230, %p231
    %p233 = scmp.ne.s32.totalorder %s222, %s223
    %p234 = scmp.eq.s32.totalorder %s20, 0
    %p235 = por %p233, %p234
    %p236 = scmp.ne.s32.totalorder %s222, %s223
    %p237 = scmp.eq.s32.totalorder %s21, 1
    %p238 = por %p236, %p237
    %p240 = scmp.ne.s32.totalorder %s223, %s239
    %p241 = scmp.eq.s32.totalorder %s21, 0
    %p242 = por %p240, %p241
    %p243 = scmp.le.s32.totalorder 1, %s15
    %p244 = scmp.lt.s32.totalorder %s15, 3
    %p245 = pnand %p243, %p244
    %p246 = pneg %p245
    // Predicated region
    $region9: #{cnn_forward.5} parent=5 // pred_check
      _
    $region10: #{cnn_forward.5} parent=5 // pred_check_branch
      %248 = sbr.rel (%p245) target = $region12
    $region11: #{cnn_forward.5} parent=5 // pred_region
      %s249 = ssub.s32 %s15, 1
      // Predicated region
      $region13: #{cnn_forward.5} parent=11 // pred_check
        %p250 = pneg %p62
      $region14: #{cnn_forward.5} parent=11 // pred_check_branch
        %252 = sbr.rel (%p250) target = $region16
      $region15: #{cnn_forward.5} parent=11 // pred_region
        _
      $region16: #{cnn_forward.5} parent=11 // pred_fallthru
        _
      // Predicated region
      $region17: #{cnn_forward.5} parent=11 // pred_check
        %p253 = pneg %p83
      $region18: #{cnn_forward.5} parent=11 // pred_check_branch
        %255 = sbr.rel (%p253) target = $region20
      $region19: #{cnn_forward.5} parent=11 // pred_region
        _
      $region20: #{cnn_forward.5} parent=11 // pred_fallthru
        _
      // Predicated region
      $region21: #{cnn_forward.5} parent=11 // pred_check
        %p256 = pneg %p104
      $region22: #{cnn_forward.5} parent=11 // pred_check_branch
        %258 = sbr.rel (%p256) target = $region24
      $region23: #{cnn_forward.5} parent=11 // pred_region
        _
      $region24: #{cnn_forward.5} parent=11 // pred_fallthru
        _
      // Predicated region
      $region25: #{cnn_forward.5} parent=11 // pred_check
        %p259 = pneg %p125
      $region26: #{cnn_forward.5} parent=11 // pred_check_branch
        %261 = sbr.rel (%p259) target = $region28
      $region27: #{cnn_forward.5} parent=11 // pred_region
        _
      $region28: #{cnn_forward.5} parent=11 // pred_fallthru
        _
      // Predicated region
      $region29: #{cnn_forward.5} parent=11 // pred_check
        %p262 = pneg %p146
      $region30: #{cnn_forward.5} parent=11 // pred_check_branch
        %264 = sbr.rel (%p262) target = $region32
      $region31: #{cnn_forward.5} parent=11 // pred_region
        _
      $region32: #{cnn_forward.5} parent=11 // pred_fallthru
        _
      // Predicated region
      $region33: #{cnn_forward.5} parent=11 // pred_check
        %p265 = pneg %p167
      $region34: #{cnn_forward.5} parent=11 // pred_check_branch
        %267 = sbr.rel (%p265) target = $region36
      $region35: #{cnn_forward.5} parent=11 // pred_region
        _
      $region36: #{cnn_forward.5} parent=11 // pred_fallthru
        _
      // Predicated region
      $region37: #{cnn_forward.5} parent=11 // pred_check
        %p268 = pneg %p188
      $region38: #{cnn_forward.5} parent=11 // pred_check_branch
        %270 = sbr.rel (%p268) target = $region40
      $region39: #{cnn_forward.5} parent=11 // pred_region
        _
      $region40: #{cnn_forward.5} parent=11 // pred_fallthru
        _
      // Predicated region
      $region41: #{cnn_forward.5} parent=11 // pred_check
        %p271 = pneg %p209
      $region42: #{cnn_forward.5} parent=11 // pred_check_branch
        %273 = sbr.rel (%p271) target = $region44
      $region43: #{cnn_forward.5} parent=11 // pred_region
        _
      $region44: #{cnn_forward.5} parent=11 // pred_fallthru
        _
    $region12: #{cnn_forward.5} parent=5 // pred_fallthru
      _
    %p274 = scmp.lt.s32.totalorder %s15, 2
    // Predicated region
    $region45: #{cnn_forward.5} parent=5 // pred_check
      %p275 = pneg %p274
    $region46: #{cnn_forward.5} parent=5 // pred_check_branch
      %277 = sbr.rel (%p275) target = $region48
    $region47: #{cnn_forward.5} parent=5 // pred_region
      // Predicated region
      $region49: #{cnn_forward.5} parent=47 // pred_check
        %p278 = pneg %p35
      $region50: #{cnn_forward.5} parent=47 // pred_check_branch
        %280 = sbr.rel (%p278) target = $region52
      $region51: #{cnn_forward.5} parent=47 // pred_region
        %p281 = scmp.lt.s32.totalorder %s15, 1
        %s282 = scalar_select %p281, %s15, 1
        %s283 = smul.addr %s282, 13
        %s284 = smul.addr %s283, 4
        %s285 = scalar_lea.vmem %s0, %s284
      $region52: #{cnn_forward.5} parent=47 // pred_fallthru
        _
    $region48: #{cnn_forward.5} parent=5 // pred_fallthru
      _
    %p286 = scmp.le.s32.totalorder 1, %s15
    %p287 = scmp.lt.s32.totalorder %s15, 3
    %p288 = pnand %p286, %p287
    %p289 = pneg %p288
    // Predicated region
    $region53: #{cnn_forward.5} parent=5 // pred_check
      _
    $region54: #{cnn_forward.5} parent=5 // pred_check_branch
      %291 = sbr.rel (%p288) target = $region56
    $region55: #{cnn_forward.5} parent=5 // pred_region
      %s292 = ssub.s32 %s15, 1
      %p293 = scmp.lt.s32.totalorder %s20, 1
      %s294 = scalar_select %p293, %s20, 1
      %s295 = smul.addr %s294, 13
      %s296 = smul.addr %s295, 4
      %s297 = scalar_lea.vmem %s0, %s296
      %p298 = pneg %p41
      %p299 = pneg %p38
      %p300 = pneg %p62
      %p301 = pneg %p59
      %p302 = pneg %p83
      %p303 = pneg %p80
      %p304 = pneg %p104
      %p305 = pneg %p101
      %p306 = pneg %p125
      %p307 = pneg %p122
      %p308 = pneg %p146
      %p309 = pneg %p143
      %p310 = pneg %p167
      %p311 = pneg %p164
      %p312 = pneg %p188
      %p313 = pneg %p185
      %p314 = pneg %p209
      %p315 = pneg %p206
      %p316 = pneg %p235
      %p317 = pneg %p232
      %p318 = scmp.lt.s32.totalorder %s20, 1
      %s319 = scalar_select %p318, %s20, 1
      %s320 = smul.addr %s319, 8
      %s321 = scalar_lea.vmem %s9, %s320
      %p322 = scmp.lt.s32.totalorder %s20, 1
      %s323 = scalar_select %p322, %s20, 1
      %s324 = smul.addr %s323, 13
      %s325 = smul.addr %s324, 4
      %s326 = scalar_lea.vmem %s0, %s325
      %p327 = scmp.lt.s32.totalorder %s20, 1
      %s328 = scalar_select %p327, %s20, 1
      %s329 = smul.addr %s328, 8
      %s330 = scalar_lea.vmem %s9, %s329
      %v332 = vld [vmem:[%s326] sm:$0xff]
      %v333 = vld [vmem:[%s326 + $0x8] sm:$0xff]
      %v334 = vld [vmem:[%s326 + $0x10] sm:$0xff]
      %v335 = vld [vmem:[%s326 + $0x18] sm:$0xff]
      %v336 = vld [vmem:[%s326 + $0x20] sm:$0xff]
      %v337 = vld [vmem:[%s326 + $0x28] sm:$0xff]
      %v338 = vld [vmem:[%s326 + $0x30] sm:$0xf]
      %v339 = vld [vmem:[%s1] sm:$0xff]
      %v340 = vld [vmem:[%s1 + $0x8] sm:$0xff]
      %v341 = vld [vmem:[%s1 + $0x10] sm:$0xff]
      %v342 = vld [vmem:[%s1 + $0x18] sm:$0xff]
      %v343 = vld [vmem:[%s1 + $0x20] sm:$0xff]
      %v344 = vld [vmem:[%s1 + $0x28] sm:$0xff]
      %v345 = vld [vmem:[%s1 + $0x30] sm:$0xff]
      %v346 = vld [vmem:[%s1 + $0x38] sm:$0xff]
      %v347 = vld [vmem:[%s1 + $0x40] sm:$0xff]
      %v348 = vld [vmem:[%s1 + $0x48] sm:$0xff]
      %v349 = vld [vmem:[%s1 + $0x50] sm:$0xff]
      %v350 = vld [vmem:[%s1 + $0x58] sm:$0xff]
      %v351 = vld [vmem:[%s1 + $0x60] sm:$0xff]
      %v352 = vld [vmem:[%s1 + $0x68] sm:$0xff]
      %v353 = vld [vmem:[%s1 + $0x70] sm:$0xff]
      %v354 = vld [vmem:[%s1 + $0x78] sm:$0xff]
      %v355 = vld [vmem:[%s1 + $0x80] sm:$0xff]
      %v356 = vld [vmem:[%s1 + $0x88] sm:$0xff]
      %v357 = vld [vmem:[%s1 + $0x90] sm:$0xff]
      %v358 = vld [vmem:[%s1 + $0x98] sm:$0xff]
      %v359 = vld [vmem:[%s1 + $0xa0] sm:$0xff]
      %v360 = vld [vmem:[%s1 + $0xa8] sm:$0xff]
      %v361 = vld [vmem:[%s1 + $0xb0] sm:$0xff]
      %v362 = vld [vmem:[%s1 + $0xb8] sm:$0xff]
      %v363 = vld [vmem:[%s1 + $0xc0] sm:$0xff]
      %v364 = vld [vmem:[%s1 + $0xc8] sm:$0xff]
      %v365 = vld [vmem:[%s1 + $0xd0] sm:$0xff]
      %v366 = vld [vmem:[%s1 + $0xd8] sm:$0xff]
      %v367 = vld [vmem:[%s1 + $0xe0] sm:$0xff]
      %v368 = vld [vmem:[%s1 + $0xe8] sm:$0xff]
      %v369 = vld [vmem:[%s1 + $0xf0] sm:$0xff]
      %v370 = vld [vmem:[%s1 + $0xf8] sm:$0xff]
      %v371 = vld [vmem:[%s1 + $0x100] sm:$0xff]
      %v372 = vld [vmem:[%s1 + $0x108] sm:$0xff]
      %v373 = vld [vmem:[%s1 + $0x110] sm:$0xff]
      %v374 = vld [vmem:[%s1 + $0x118] sm:$0xff]
      %v375 = vld [vmem:[%s1 + $0x120] sm:$0xff]
      %v376 = vld [vmem:[%s1 + $0x128] sm:$0xff]
      %v377 = vld [vmem:[%s1 + $0x130] sm:$0xff]
      %v378 = vld [vmem:[%s1 + $0x138] sm:$0xff]
      %v379 = vld [vmem:[%s1 + $0x140] sm:$0xff]
      %v380 = vld [vmem:[%s1 + $0x148] sm:$0xff]
      %v381 = vld [vmem:[%s1 + $0x150] sm:$0xff]
      %v382 = vld [vmem:[%s1 + $0x158] sm:$0xff]
      %v383 = vld [vmem:[%s1 + $0x160] sm:$0xff]
      %v384 = vld [vmem:[%s1 + $0x168] sm:$0xff]
      %v385 = vld [vmem:[%s1 + $0x170] sm:$0xff]
      %v386 = vld [vmem:[%s1 + $0x178] sm:$0xff]
      %v387 = vld [vmem:[%s1 + $0x180] sm:$0xff]
      %v388 = vld [vmem:[%s1 + $0x188] sm:$0xff]
      %v389 = vld [vmem:[%s1 + $0x190] sm:$0xff]
      %v390 = vld [vmem:[%s1 + $0x198] sm:$0xff]
      %v391 = vld [vmem:[%s1 + $0x1a0] sm:$0xff]
      %v392 = vld [vmem:[%s1 + $0x1a8] sm:$0xff]
      %v393 = vld [vmem:[%s1 + $0x1b0] sm:$0xff]
      %v394 = vld [vmem:[%s1 + $0x1b8] sm:$0xff]
      %v395 = vld [vmem:[%s1 + $0x1c0] sm:$0xff]
      %v396 = vld [vmem:[%s1 + $0x1c8] sm:$0xff]
      %v397 = vld [vmem:[%s1 + $0x1d0] sm:$0xff]
      %v398 = vld [vmem:[%s1 + $0x1d8] sm:$0xff]
      %v399 = vld [vmem:[%s1 + $0x1e0] sm:$0xff]
      %v400 = vld [vmem:[%s1 + $0x1e8] sm:$0xff]
      %v401 = vld [vmem:[%s1 + $0x1f0] sm:$0xff]
      %v402 = vld [vmem:[%s1 + $0x1f8] sm:$0xff]
      %v403 = vld [vmem:[%s1 + $0x200] sm:$0xff]
      %v404 = vld [vmem:[%s1 + $0x208] sm:$0xff]
      %v405 = vld [vmem:[%s1 + $0x210] sm:$0xff]
      %v406 = vld [vmem:[%s1 + $0x218] sm:$0xff]
      %v407 = vld [vmem:[%s1 + $0x220] sm:$0xff]
      %v408 = vld [vmem:[%s1 + $0x228] sm:$0xff]
      %v409 = vld [vmem:[%s1 + $0x230] sm:$0xff]
      %v410 = vld [vmem:[%s1 + $0x238] sm:$0xff]
      %v411 = vld [vmem:[%s1 + $0x240] sm:$0xff]
      %v412 = vld [vmem:[%s1 + $0x248] sm:$0xff]
      %v413 = vld [vmem:[%s1 + $0x250] sm:$0xff]
      %v414 = vld [vmem:[%s1 + $0x258] sm:$0xff]
      %v415 = vld [vmem:[%s1 + $0x260] sm:$0xff]
      %v416 = vld [vmem:[%s1 + $0x268] sm:$0xff]
      %v417 = vld [vmem:[%s1 + $0x270] sm:$0xff]
      %v418 = vld [vmem:[%s1 + $0x278] sm:$0xff]
      %v419 = vld [vmem:[%s1 + $0x280] sm:$0xff]
      %v420 = vld [vmem:[%s1 + $0x288] sm:$0xff]
      %v421 = vld [vmem:[%s1 + $0x290] sm:$0xff]
      %v422 = vld [vmem:[%s1 + $0x298] sm:$0xff]
      %v423 = vld [vmem:[%s1 + $0x2a0] sm:$0xff]
      %v424 = vld [vmem:[%s1 + $0x2a8] sm:$0xff]
      %v425 = vld [vmem:[%s1 + $0x2b0] sm:$0xff]
      %v426 = vld [vmem:[%s1 + $0x2b8] sm:$0xff]
      %v427 = vld [vmem:[%s1 + $0x2c0] sm:$0xff]
      %v428 = vld [vmem:[%s1 + $0x2c8] sm:$0xff]
      %v429 = vld [vmem:[%s1 + $0x2d0] sm:$0xff]
      %v430 = vld [vmem:[%s1 + $0x2d8] sm:$0xff]
      %v431 = vld [vmem:[%s1 + $0x2e0] sm:$0xff]
      %v432 = vld [vmem:[%s1 + $0x2e8] sm:$0xff]
      %v433 = vld [vmem:[%s1 + $0x2f0] sm:$0xff]
      %v434 = vld [vmem:[%s1 + $0x2f8] sm:$0xff]
      %v435 = vld [vmem:[%s1 + $0x300] sm:$0xff]
      %v436 = vld [vmem:[%s1 + $0x308] sm:$0xff]
      %v437 = vld [vmem:[%s1 + $0x310] sm:$0xff]
      %v438 = vld [vmem:[%s1 + $0x318] sm:$0xff]
      %v439 = vld [vmem:[%s1 + $0x320] sm:$0xff]
      %v440 = vld [vmem:[%s1 + $0x328] sm:$0xff]
      %v441 = vld [vmem:[%s1 + $0x330] sm:$0xff]
      %v442 = vld [vmem:[%s1 + $0x338] sm:$0xff]
      %v443 = vld [vmem:[%s1 + $0x340] sm:$0xff]
      %v444 = vld [vmem:[%s1 + $0x348] sm:$0xff]
      %v445 = vld [vmem:[%s1 + $0x350] sm:$0xff]
      %v446 = vld [vmem:[%s1 + $0x358] sm:$0xff]
      %v447 = vld [vmem:[%s1 + $0x360] sm:$0xff]
      %v448 = vld [vmem:[%s1 + $0x368] sm:$0xff]
      %v449 = vld [vmem:[%s1 + $0x370] sm:$0xff]
      %v450 = vld [vmem:[%s1 + $0x378] sm:$0xff]
      %v451 = vld [vmem:[%s1 + $0x380] sm:$0xff]
      %v452 = vld [vmem:[%s1 + $0x388] sm:$0xff]
      %v453 = vld [vmem:[%s1 + $0x390] sm:$0xff]
      %v454 = vld [vmem:[%s1 + $0x398] sm:$0xff]
      %v455 = vld [vmem:[%s1 + $0x3a0] sm:$0xff]
      %v456 = vld [vmem:[%s1 + $0x3a8] sm:$0xff]
      %v457 = vld [vmem:[%s1 + $0x3b0] sm:$0xff]
      %v458 = vld [vmem:[%s1 + $0x3b8] sm:$0xff]
      %v459 = vld [vmem:[%s1 + $0x3c0] sm:$0xff]
      %v460 = vld [vmem:[%s1 + $0x3c8] sm:$0xff]
      %v461 = vld [vmem:[%s1 + $0x3d0] sm:$0xff]
      %v462 = vld [vmem:[%s1 + $0x3d8] sm:$0xff]
      %v463 = vld [vmem:[%s1 + $0x3e0] sm:$0xff]
      %v464 = vld [vmem:[%s1 + $0x3e8] sm:$0xff]
      %v465 = vld [vmem:[%s1 + $0x3f0] sm:$0xff]
      %v466 = vld [vmem:[%s1 + $0x3f8] sm:$0xff]
      %v467 = vld [vmem:[%s1 + $0x400] sm:$0xff]
      %v468 = vld [vmem:[%s1 + $0x408] sm:$0xff]
      %v469 = vld [vmem:[%s1 + $0x410] sm:$0xff]
      %v470 = vld [vmem:[%s1 + $0x418] sm:$0xff]
      %v471 = vld [vmem:[%s1 + $0x420] sm:$0xff]
      %v472 = vld [vmem:[%s1 + $0x428] sm:$0xff]
      %v473 = vld [vmem:[%s1 + $0x430] sm:$0xff]
      %v474 = vld [vmem:[%s1 + $0x438] sm:$0xff]
      %v475 = vld [vmem:[%s1 + $0x440] sm:$0xff]
      %v476 = vld [vmem:[%s1 + $0x448] sm:$0xff]
      %v477 = vld [vmem:[%s1 + $0x450] sm:$0xff]
      %v478 = vld [vmem:[%s1 + $0x458] sm:$0xff]
      %v479 = vld [vmem:[%s1 + $0x460] sm:$0xff]
      %v480 = vld [vmem:[%s1 + $0x468] sm:$0xff]
      %v481 = vld [vmem:[%s1 + $0x470] sm:$0xff]
      %v482 = vld [vmem:[%s1 + $0x478] sm:$0xff]
      %v483 = vld [vmem:[%s1 + $0x480] sm:$0xff]
      %v484 = vld [vmem:[%s1 + $0x488] sm:$0xff]
      %v485 = vld [vmem:[%s1 + $0x490] sm:$0xff]
      %v486 = vld [vmem:[%s1 + $0x498] sm:$0xff]
      %v487 = vld [vmem:[%s1 + $0x4a0] sm:$0xff]
      %v488 = vld [vmem:[%s1 + $0x4a8] sm:$0xff]
      %v489 = vld [vmem:[%s1 + $0x4b0] sm:$0xff]
      %v490 = vld [vmem:[%s1 + $0x4b8] sm:$0xff]
      %v491 = vld [vmem:[%s1 + $0x4c0] sm:$0xff]
      %v492 = vld [vmem:[%s1 + $0x4c8] sm:$0xff]
      %v493 = vld [vmem:[%s1 + $0x4d0] sm:$0xff]
      %v494 = vld [vmem:[%s1 + $0x4d8] sm:$0xff]
      %v495 = vld [vmem:[%s1 + $0x4e0] sm:$0xff]
      %v496 = vld [vmem:[%s1 + $0x4e8] sm:$0xff]
      %v497 = vld [vmem:[%s1 + $0x4f0] sm:$0xff]
      %v498 = vld [vmem:[%s1 + $0x4f8] sm:$0xff]
      %v499 = vld [vmem:[%s1 + $0x500] sm:$0xff]
      %v500 = vld [vmem:[%s1 + $0x508] sm:$0xff]
      %v501 = vld [vmem:[%s1 + $0x510] sm:$0xff]
      %v502 = vld [vmem:[%s1 + $0x518] sm:$0xff]
      %v503 = vld [vmem:[%s1 + $0x520] sm:$0xff]
      %v504 = vld [vmem:[%s1 + $0x528] sm:$0xff]
      %v505 = vld [vmem:[%s1 + $0x530] sm:$0xff]
      %v506 = vld [vmem:[%s1 + $0x538] sm:$0xff]
      %v507 = vld [vmem:[%s1 + $0x540] sm:$0xff]
      %v508 = vld [vmem:[%s1 + $0x548] sm:$0xff]
      %v509 = vld [vmem:[%s1 + $0x550] sm:$0xff]
      %v510 = vld [vmem:[%s1 + $0x558] sm:$0xff]
      %v511 = vld [vmem:[%s1 + $0x560] sm:$0xff]
      %v512 = vld [vmem:[%s1 + $0x568] sm:$0xff]
      %v513 = vld [vmem:[%s1 + $0x570] sm:$0xff]
      %v514 = vld [vmem:[%s1 + $0x578] sm:$0xff]
      %v515 = vld [vmem:[%s1 + $0x580] sm:$0xff]
      %v516 = vld [vmem:[%s1 + $0x588] sm:$0xff]
      %v517 = vld [vmem:[%s1 + $0x590] sm:$0xff]
      %v518 = vld [vmem:[%s1 + $0x598] sm:$0xff]
      %v519 = vld [vmem:[%s1 + $0x5a0] sm:$0xff]
      %v520 = vld [vmem:[%s1 + $0x5a8] sm:$0xff]
      %v521 = vld [vmem:[%s1 + $0x5b0] sm:$0xff]
      %v522 = vld [vmem:[%s1 + $0x5b8] sm:$0xff]
      %v523 = vld [vmem:[%s1 + $0x5c0] sm:$0xff]
      %v524 = vld [vmem:[%s1 + $0x5c8] sm:$0xff]
      %v525 = vld [vmem:[%s1 + $0x5d0] sm:$0xff]
      %v526 = vld [vmem:[%s1 + $0x5d8] sm:$0xff]
      %v527 = vld [vmem:[%s1 + $0x5e0] sm:$0xff]
      %v528 = vld [vmem:[%s1 + $0x5e8] sm:$0xff]
      %v529 = vld [vmem:[%s1 + $0x5f0] sm:$0xff]
      %v530 = vld [vmem:[%s1 + $0x5f8] sm:$0xff]
      %v531 = vld [vmem:[%s1 + $0x600] sm:$0xff]
      %v532 = vld [vmem:[%s1 + $0x608] sm:$0xff]
      %v533 = vld [vmem:[%s1 + $0x610] sm:$0xff]
      %v534 = vld [vmem:[%s1 + $0x618] sm:$0xff]
      %v535 = vld [vmem:[%s1 + $0x620] sm:$0xff]
      %v536 = vld [vmem:[%s1 + $0x628] sm:$0xff]
      %v537 = vld [vmem:[%s1 + $0x630] sm:$0xff]
      %v538 = vld [vmem:[%s1 + $0x638] sm:$0xff]
      %v539 = vld [vmem:[%s1 + $0x640] sm:$0xff]
      %v540 = vld [vmem:[%s1 + $0x648] sm:$0xff]
      %v541 = vld [vmem:[%s1 + $0x650] sm:$0xff]
      %v542 = vld [vmem:[%s1 + $0x658] sm:$0xff]
      %v543 = vld [vmem:[%s1 + $0x660] sm:$0xff]
      %v544 = vld [vmem:[%s1 + $0x668] sm:$0xff]
      %v545 = vld [vmem:[%s1 + $0x670] sm:$0xff]
      %v546 = vld [vmem:[%s1 + $0x678] sm:$0xff]
      %v547 = vld [vmem:[%s1 + $0x680] sm:$0xff]
      %v548 = vld [vmem:[%s1 + $0x688] sm:$0xff]
      %v549 = vld [vmem:[%s1 + $0x690] sm:$0xff]
      %v550 = vld [vmem:[%s1 + $0x698] sm:$0xff]
      %v551 = vld [vmem:[%s1 + $0x6a0] sm:$0xff]
      %v552 = vld [vmem:[%s1 + $0x6a8] sm:$0xff]
      %v553 = vld [vmem:[%s1 + $0x6b0] sm:$0xff]
      %v554 = vld [vmem:[%s1 + $0x6b8] sm:$0xff]
      %v555 = vld [vmem:[%s1 + $0x6c0] sm:$0xff]
      %v556 = vld [vmem:[%s1 + $0x6c8] sm:$0xff]
      %v557 = vld [vmem:[%s1 + $0x6d0] sm:$0xff]
      %v558 = vld [vmem:[%s1 + $0x6d8] sm:$0xff]
      %v559 = vld [vmem:[%s1 + $0x6e0] sm:$0xff]
      %v560 = vld [vmem:[%s1 + $0x6e8] sm:$0xff]
      %v561 = vld [vmem:[%s1 + $0x6f0] sm:$0xff]
      %v562 = vld [vmem:[%s1 + $0x6f8] sm:$0xff]
      %v563 = vld [vmem:[%s1 + $0x700] sm:$0xff]
      %v564 = vld [vmem:[%s1 + $0x708] sm:$0xff]
      %v565 = vld [vmem:[%s1 + $0x710] sm:$0xff]
      %v566 = vld [vmem:[%s1 + $0x718] sm:$0xff]
      %v567 = vld [vmem:[%s1 + $0x720] sm:$0xff]
      %v568 = vld [vmem:[%s1 + $0x728] sm:$0xff]
      %v569 = vld [vmem:[%s1 + $0x730] sm:$0xff]
      %v570 = vld [vmem:[%s1 + $0x738] sm:$0xff]
      %v571 = vld [vmem:[%s1 + $0x740] sm:$0xff]
      %v572 = vld [vmem:[%s1 + $0x748] sm:$0xff]
      %v573 = vld [vmem:[%s1 + $0x750] sm:$0xff]
      %v574 = vld [vmem:[%s1 + $0x758] sm:$0xff]
      %v575 = vld [vmem:[%s1 + $0x760] sm:$0xff]
      %v576 = vld [vmem:[%s1 + $0x768] sm:$0xff]
      %v577 = vld [vmem:[%s1 + $0x770] sm:$0xff]
      %v578 = vld [vmem:[%s1 + $0x778] sm:$0xff]
      %v579 = vld [vmem:[%s1 + $0x780] sm:$0xff]
      %v580 = vld [vmem:[%s1 + $0x788] sm:$0xff]
      %v581 = vld [vmem:[%s1 + $0x790] sm:$0xff]
      %v582 = vld [vmem:[%s1 + $0x798] sm:$0xff]
      %v583 = vld [vmem:[%s1 + $0x7a0] sm:$0xff]
      %v584 = vld [vmem:[%s1 + $0x7a8] sm:$0xff]
      %v585 = vld [vmem:[%s1 + $0x7b0] sm:$0xff]
      %v586 = vld [vmem:[%s1 + $0x7b8] sm:$0xff]
      %v587 = vld [vmem:[%s1 + $0x7c0] sm:$0xff]
      %v588 = vld [vmem:[%s1 + $0x7c8] sm:$0xff]
      %v589 = vld [vmem:[%s1 + $0x7d0] sm:$0xff]
      %v590 = vld [vmem:[%s1 + $0x7d8] sm:$0xff]
      %v591 = vld [vmem:[%s1 + $0x7e0] sm:$0xff]
      %v592 = vld [vmem:[%s1 + $0x7e8] sm:$0xff]
      %v593 = vld [vmem:[%s1 + $0x7f0] sm:$0xff]
      %v594 = vld [vmem:[%s1 + $0x7f8] sm:$0xff]
      %v595 = vld [vmem:[%s1 + $0x800] sm:$0xff]
      %v596 = vld [vmem:[%s1 + $0x808] sm:$0xff]
      %v597 = vld [vmem:[%s1 + $0x810] sm:$0xff]
      %v598 = vld [vmem:[%s1 + $0x818] sm:$0xff]
      %v599 = vld [vmem:[%s1 + $0x820] sm:$0xff]
      %v600 = vld [vmem:[%s1 + $0x828] sm:$0xff]
      %v601 = vld [vmem:[%s1 + $0x830] sm:$0xff]
      %v602 = vld [vmem:[%s1 + $0x838] sm:$0xff]
      %v603 = vld [vmem:[%s1 + $0x840] sm:$0xff]
      %v604 = vld [vmem:[%s1 + $0x848] sm:$0xff]
      %v605 = vld [vmem:[%s1 + $0x850] sm:$0xff]
      %v606 = vld [vmem:[%s1 + $0x858] sm:$0xff]
      %v607 = vld [vmem:[%s1 + $0x860] sm:$0xff]
      %v608 = vld [vmem:[%s1 + $0x868] sm:$0xff]
      %v609 = vld [vmem:[%s1 + $0x870] sm:$0xff]
      %v610 = vld [vmem:[%s1 + $0x878] sm:$0xff]
      %v611 = vld [vmem:[%s1 + $0x880] sm:$0xff]
      %v612 = vld [vmem:[%s1 + $0x888] sm:$0xff]
      %v613 = vld [vmem:[%s1 + $0x890] sm:$0xff]
      %v614 = vld [vmem:[%s1 + $0x898] sm:$0xff]
      %v615 = vld [vmem:[%s1 + $0x8a0] sm:$0xff]
      %v616 = vld [vmem:[%s1 + $0x8a8] sm:$0xff]
      %v617 = vld [vmem:[%s1 + $0x8b0] sm:$0xff]
      %v618 = vld [vmem:[%s1 + $0x8b8] sm:$0xff]
      %v619 = vld [vmem:[%s1 + $0x8c0] sm:$0xff]
      %v620 = vld [vmem:[%s1 + $0x8c8] sm:$0xff]
      %v621 = vld [vmem:[%s1 + $0x8d0] sm:$0xff]
      %v622 = vld [vmem:[%s1 + $0x8d8] sm:$0xff]
      %v623 = vld [vmem:[%s1 + $0x8e0] sm:$0xff]
      %v624 = vld [vmem:[%s1 + $0x8e8] sm:$0xff]
      %v625 = vld [vmem:[%s1 + $0x8f0] sm:$0xff]
      %v626 = vld [vmem:[%s1 + $0x8f8] sm:$0xff]
      %v627 = vld [vmem:[%s1 + $0x900] sm:$0xff]
      %v628 = vld [vmem:[%s1 + $0x908] sm:$0xff]
      %v629 = vld [vmem:[%s1 + $0x910] sm:$0xff]
      %v630 = vld [vmem:[%s1 + $0x918] sm:$0xff]
      %v631 = vld [vmem:[%s1 + $0x920] sm:$0xff]
      %v632 = vld [vmem:[%s1 + $0x928] sm:$0xff]
      %v633 = vld [vmem:[%s1 + $0x930] sm:$0xff]
      %v634 = vld [vmem:[%s1 + $0x938] sm:$0xff]
      %v635 = vld [vmem:[%s1 + $0x940] sm:$0xff]
      %v636 = vld [vmem:[%s1 + $0x948] sm:$0xff]
      %v637 = vld [vmem:[%s1 + $0x950] sm:$0xff]
      %v638 = vld [vmem:[%s1 + $0x958] sm:$0xff]
      %v639 = vld [vmem:[%s1 + $0x960] sm:$0xff]
      %v640 = vld [vmem:[%s1 + $0x968] sm:$0xff]
      %v641 = vld [vmem:[%s1 + $0x970] sm:$0xff]
      %v642 = vld [vmem:[%s1 + $0x978] sm:$0xff]
      %v643 = vld [vmem:[%s1 + $0x980] sm:$0xff]
      %v644 = vld [vmem:[%s1 + $0x988] sm:$0xff]
      %v645 = vld [vmem:[%s1 + $0x990] sm:$0xff]
      %v646 = vld [vmem:[%s1 + $0x998] sm:$0xff]
      %v647 = vld [vmem:[%s1 + $0x9a0] sm:$0xff]
      %v648 = vld [vmem:[%s1 + $0x9a8] sm:$0xff]
      %v649 = vld [vmem:[%s1 + $0x9b0] sm:$0xff]
      %v650 = vld [vmem:[%s1 + $0x9b8] sm:$0xff]
      %v651 = vld [vmem:[%s1 + $0x9c0] sm:$0xff]
      %v652 = vld [vmem:[%s1 + $0x9c8] sm:$0xff]
      %v653 = vld [vmem:[%s1 + $0x9d0] sm:$0xff]
      %v654 = vld [vmem:[%s1 + $0x9d8] sm:$0xff]
      %v655 = vld [vmem:[%s1 + $0x9e0] sm:$0xff]
      %v656 = vld [vmem:[%s1 + $0x9e8] sm:$0xff]
      %v657 = vld [vmem:[%s1 + $0x9f0] sm:$0xff]
      %v658 = vld [vmem:[%s1 + $0x9f8] sm:$0xff]
      %v659 = vld [vmem:[%s1 + $0xa00] sm:$0xff]
      %v660 = vld [vmem:[%s1 + $0xa08] sm:$0xff]
      %v661 = vld [vmem:[%s1 + $0xa10] sm:$0xff]
      %v662 = vld [vmem:[%s1 + $0xa18] sm:$0xff]
      %v663 = vld [vmem:[%s1 + $0xa20] sm:$0xff]
      %v664 = vld [vmem:[%s1 + $0xa28] sm:$0xff]
      %v665 = vld [vmem:[%s1 + $0xa30] sm:$0xff]
      %v666 = vld [vmem:[%s1 + $0xa38] sm:$0xff]
      %v667 = vld [vmem:[%s1 + $0xa40] sm:$0xff]
      %v668 = vld [vmem:[%s1 + $0xa48] sm:$0xff]
      %v669 = vld [vmem:[%s1 + $0xa50] sm:$0xff]
      %v670 = vld [vmem:[%s1 + $0xa58] sm:$0xff]
      %v671 = vld [vmem:[%s1 + $0xa60] sm:$0xff]
      %v672 = vld [vmem:[%s1 + $0xa68] sm:$0xff]
      %v673 = vld [vmem:[%s1 + $0xa70] sm:$0xff]
      %v674 = vld [vmem:[%s1 + $0xa78] sm:$0xff]
      %v675 = vld [vmem:[%s1 + $0xa80] sm:$0xff]
      %v676 = vld [vmem:[%s1 + $0xa88] sm:$0xff]
      %v677 = vld [vmem:[%s1 + $0xa90] sm:$0xff]
      %v678 = vld [vmem:[%s1 + $0xa98] sm:$0xff]
      %v679 = vld [vmem:[%s1 + $0xaa0] sm:$0xff]
      %v680 = vld [vmem:[%s1 + $0xaa8] sm:$0xff]
      %v681 = vld [vmem:[%s1 + $0xab0] sm:$0xff]
      %v682 = vld [vmem:[%s1 + $0xab8] sm:$0xff]
      %v683 = vld [vmem:[%s1 + $0xac0] sm:$0xff]
      %v684 = vld [vmem:[%s1 + $0xac8] sm:$0xff]
      %v685 = vld [vmem:[%s1 + $0xad0] sm:$0xff]
      %v686 = vld [vmem:[%s1 + $0xad8] sm:$0xff]
      %v687 = vld [vmem:[%s1 + $0xae0] sm:$0xff]
      %v688 = vld [vmem:[%s1 + $0xae8] sm:$0xff]
      %v689 = vld [vmem:[%s1 + $0xaf0] sm:$0xff]
      %v690 = vld [vmem:[%s1 + $0xaf8] sm:$0xff]
      %v691 = vld [vmem:[%s1 + $0xb00] sm:$0xff]
      %v692 = vld [vmem:[%s1 + $0xb08] sm:$0xff]
      %v693 = vld [vmem:[%s1 + $0xb10] sm:$0xff]
      %v694 = vld [vmem:[%s1 + $0xb18] sm:$0xff]
      %v695 = vld [vmem:[%s1 + $0xb20] sm:$0xff]
      %v696 = vld [vmem:[%s1 + $0xb28] sm:$0xff]
      %v697 = vld [vmem:[%s1 + $0xb30] sm:$0xff]
      %v698 = vld [vmem:[%s1 + $0xb38] sm:$0xff]
      %v699 = vld [vmem:[%s1 + $0xb40] sm:$0xff]
      %v700 = vld [vmem:[%s1 + $0xb48] sm:$0xff]
      %v701 = vld [vmem:[%s1 + $0xb50] sm:$0xff]
      %v702 = vld [vmem:[%s1 + $0xb58] sm:$0xff]
      %v703 = vld [vmem:[%s1 + $0xb60] sm:$0xff]
      %v704 = vld [vmem:[%s1 + $0xb68] sm:$0xff]
      %v705 = vld [vmem:[%s1 + $0xb70] sm:$0xff]
      %v706 = vld [vmem:[%s1 + $0xb78] sm:$0xff]
      %v707 = vld [vmem:[%s1 + $0xb80] sm:$0xff]
      %v708 = vld [vmem:[%s1 + $0xb88] sm:$0xff]
      %v709 = vld [vmem:[%s1 + $0xb90] sm:$0xff]
      %v710 = vld [vmem:[%s1 + $0xb98] sm:$0xff]
      %v711 = vld [vmem:[%s1 + $0xba0] sm:$0xff]
      %v712 = vld [vmem:[%s1 + $0xba8] sm:$0xff]
      %v713 = vld [vmem:[%s1 + $0xbb0] sm:$0xff]
      %v714 = vld [vmem:[%s1 + $0xbb8] sm:$0xff]
      %v715 = vld [vmem:[%s1 + $0xbc0] sm:$0xff]
      %v716 = vld [vmem:[%s1 + $0xbc8] sm:$0xff]
      %v717 = vld [vmem:[%s1 + $0xbd0] sm:$0xff]
      %v718 = vld [vmem:[%s1 + $0xbd8] sm:$0xff]
      %v719 = vld [vmem:[%s1 + $0xbe0] sm:$0xff]
      %v720 = vld [vmem:[%s1 + $0xbe8] sm:$0xff]
      %v721 = vld [vmem:[%s1 + $0xbf0] sm:$0xff]
      %v722 = vld [vmem:[%s1 + $0xbf8] sm:$0xff]
      %v723 = vld [vmem:[%s1 + $0xc00] sm:$0xff]
      %v724 = vld [vmem:[%s1 + $0xc08] sm:$0xff]
      %v725 = vld [vmem:[%s1 + $0xc10] sm:$0xff]
      %v726 = vld [vmem:[%s1 + $0xc18] sm:$0xff]
      %v727 = vld [vmem:[%s1 + $0xc20] sm:$0xff]
      %v728 = vld [vmem:[%s1 + $0xc28] sm:$0xff]
      %v729 = vld [vmem:[%s1 + $0xc30] sm:$0xff]
      %v730 = vld [vmem:[%s1 + $0xc38] sm:$0xff]
      %v731 = vld [vmem:[%s2] sm:$0xf]
      %v733 = vperm.slane %v731, 0
      %v734 = vperm.slane %v731, 1
      %v735 = vperm.slane %v731, 2
      %v736 = vperm.slane %v731, 3
      %v748 = vunpack.c.l.b16 %v332
      %v749 = vunpack.c.h.b16 %v332
      %v750 = vunpack.c.l.b16 %v333
      %v751 = vunpack.c.h.b16 %v333
      %v752 = vunpack.c.l.b16 %v334
      %v753 = vunpack.c.h.b16 %v334
      %v754 = vunpack.c.l.b16 %v335
      %v755 = vunpack.c.h.b16 %v335
      %v756 = vunpack.c.l.b16 %v336
      %v757 = vunpack.c.h.b16 %v336
      %v758 = vunpack.c.l.b16 %v337
      %v759 = vunpack.c.h.b16 %v337
      %v760 = vunpack.c.l.b16 %v338
      %v761 = vpack.c.b16 %v748, %v748
      %v762 = vpack.c.b16 %v749, %v749
      %v763 = vpack.c.b16 %v750, %v750
      %v764 = vpack.c.b16 %v751, %v751
      %v765 = vpack.c.b16 %v752, %v752
      %v766 = vpack.c.b16 %v753, %v753
      %v767 = vpack.c.b16 %v754, %v754
      %v768 = vpack.c.b16 %v755, %v755
      %v769 = vpack.c.b16 %v756, %v756
      %v770 = vpack.c.b16 %v757, %v757
      %v771 = vpack.c.b16 %v758, %v758
      %v772 = vpack.c.b16 %v759, %v759
      %v773 = vpack.c.b16 %v760, %v760
      %v1178 = vunpack.c.l.b16 %v339
      %v1179 = vunpack.c.h.b16 %v339
      %v1180 = vunpack.c.l.b16 %v340
      %v1181 = vunpack.c.h.b16 %v340
      %v1182 = vunpack.c.l.b16 %v341
      %v1183 = vunpack.c.h.b16 %v341
      %v1184 = vunpack.c.l.b16 %v342
      %v1185 = vunpack.c.h.b16 %v342
      %v1186 = vunpack.c.l.b16 %v343
      %v1187 = vunpack.c.h.b16 %v343
      %v1188 = vunpack.c.l.b16 %v344
      %v1189 = vunpack.c.h.b16 %v344
      %v1190 = vunpack.c.l.b16 %v345
      %v1191 = vunpack.c.h.b16 %v345
      %v1192 = vunpack.c.l.b16 %v346
      %v1193 = vunpack.c.h.b16 %v346
      %v1194 = vunpack.c.l.b16 %v347
      %v1195 = vunpack.c.h.b16 %v347
      %v1196 = vunpack.c.l.b16 %v348
      %v1197 = vunpack.c.h.b16 %v348
      %v1198 = vunpack.c.l.b16 %v349
      %v1199 = vunpack.c.h.b16 %v349
      %v1200 = vunpack.c.l.b16 %v350
      %v1201 = vunpack.c.h.b16 %v350
      %v1202 = vunpack.c.l.b16 %v351
      %v1203 = vunpack.c.h.b16 %v351
      %v1204 = vunpack.c.l.b16 %v352
      %v1205 = vunpack.c.h.b16 %v352
      %v1206 = vunpack.c.l.b16 %v353
      %v1207 = vunpack.c.h.b16 %v353
      %v1208 = vunpack.c.l.b16 %v354
      %v1209 = vunpack.c.h.b16 %v354
      %v1210 = vunpack.c.l.b16 %v355
      %v1211 = vunpack.c.h.b16 %v355
      %v1212 = vunpack.c.l.b16 %v356
      %v1213 = vunpack.c.h.b16 %v356
      %v1214 = vunpack.c.l.b16 %v357
      %v1215 = vunpack.c.h.b16 %v357
      %v1216 = vunpack.c.l.b16 %v358
      %v1217 = vunpack.c.h.b16 %v358
      %v1218 = vunpack.c.l.b16 %v359
      %v1219 = vunpack.c.h.b16 %v359
      %v1220 = vunpack.c.l.b16 %v360
      %v1221 = vunpack.c.h.b16 %v360
      %v1222 = vunpack.c.l.b16 %v361
      %v1223 = vunpack.c.h.b16 %v361
      %v1224 = vunpack.c.l.b16 %v362
      %v1225 = vunpack.c.h.b16 %v362
      %v1226 = vunpack.c.l.b16 %v363
      %v1227 = vunpack.c.h.b16 %v363
      %v1228 = vunpack.c.l.b16 %v364
      %v1229 = vunpack.c.h.b16 %v364
      %v1230 = vunpack.c.l.b16 %v365
      %v1231 = vunpack.c.h.b16 %v365
      %v1232 = vunpack.c.l.b16 %v366
      %v1233 = vunpack.c.h.b16 %v366
      %v1234 = vunpack.c.l.b16 %v367
      %v1235 = vunpack.c.h.b16 %v367
      %v1236 = vunpack.c.l.b16 %v368
      %v1237 = vunpack.c.h.b16 %v368
      %v1238 = vunpack.c.l.b16 %v369
      %v1239 = vunpack.c.h.b16 %v369
      %v1240 = vunpack.c.l.b16 %v370
      %v1241 = vunpack.c.h.b16 %v370
      %v1242 = vunpack.c.l.b16 %v371
      %v1243 = vunpack.c.h.b16 %v371
      %v1244 = vunpack.c.l.b16 %v372
      %v1245 = vunpack.c.h.b16 %v372
      %v1246 = vunpack.c.l.b16 %v373
      %v1247 = vunpack.c.h.b16 %v373
      %v1248 = vunpack.c.l.b16 %v374
      %v1249 = vunpack.c.h.b16 %v374
      %v1250 = vunpack.c.l.b16 %v375
      %v1251 = vunpack.c.h.b16 %v375
      %v1252 = vunpack.c.l.b16 %v376
      %v1253 = vunpack.c.h.b16 %v376
      %v1254 = vunpack.c.l.b16 %v377
      %v1255 = vunpack.c.h.b16 %v377
      %v1256 = vunpack.c.l.b16 %v378
      %v1257 = vunpack.c.h.b16 %v378
      %v1258 = vunpack.c.l.b16 %v379
      %v1259 = vunpack.c.h.b16 %v379
      %v1260 = vunpack.c.l.b16 %v380
      %v1261 = vunpack.c.h.b16 %v380
      %v1262 = vunpack.c.l.b16 %v381
      %v1263 = vunpack.c.h.b16 %v381
      %v1264 = vunpack.c.l.b16 %v382
      %v1265 = vunpack.c.h.b16 %v382
      %v1266 = vunpack.c.l.b16 %v383
      %v1267 = vunpack.c.h.b16 %v383
      %v1268 = vunpack.c.l.b16 %v384
      %v1269 = vunpack.c.h.b16 %v384
      %v1270 = vunpack.c.l.b16 %v385
      %v1271 = vunpack.c.h.b16 %v385
      %v1272 = vunpack.c.l.b16 %v386
      %v1273 = vunpack.c.h.b16 %v386
      %v1274 = vunpack.c.l.b16 %v387
      %v1275 = vunpack.c.h.b16 %v387
      %v1276 = vunpack.c.l.b16 %v388
      %v1277 = vunpack.c.h.b16 %v388
      %v1278 = vunpack.c.l.b16 %v389
      %v1279 = vunpack.c.h.b16 %v389
      %v1280 = vunpack.c.l.b16 %v390
      %v1281 = vunpack.c.h.b16 %v390
      %v1282 = vunpack.c.l.b16 %v391
      %v1283 = vunpack.c.h.b16 %v391
      %v1284 = vunpack.c.l.b16 %v392
      %v1285 = vunpack.c.h.b16 %v392
      %v1286 = vunpack.c.l.b16 %v393
      %v1287 = vunpack.c.h.b16 %v393
      %v1288 = vunpack.c.l.b16 %v394
      %v1289 = vunpack.c.h.b16 %v394
      %v1290 = vunpack.c.l.b16 %v395
      %v1291 = vunpack.c.h.b16 %v395
      %v1292 = vunpack.c.l.b16 %v396
      %v1293 = vunpack.c.h.b16 %v396
      %v1294 = vunpack.c.l.b16 %v397
      %v1295 = vunpack.c.h.b16 %v397
      %v1296 = vunpack.c.l.b16 %v398
      %v1297 = vunpack.c.h.b16 %v398
      %v1298 = vunpack.c.l.b16 %v399
      %v1299 = vunpack.c.h.b16 %v399
      %v1300 = vunpack.c.l.b16 %v400
      %v1301 = vunpack.c.h.b16 %v400
      %v1302 = vunpack.c.l.b16 %v401
      %v1303 = vunpack.c.h.b16 %v401
      %v1304 = vunpack.c.l.b16 %v402
      %v1305 = vunpack.c.h.b16 %v402
      %v1306 = vunpack.c.l.b16 %v403
      %v1307 = vunpack.c.h.b16 %v403
      %v1308 = vunpack.c.l.b16 %v404
      %v1309 = vunpack.c.h.b16 %v404
      %v1310 = vunpack.c.l.b16 %v405
      %v1311 = vunpack.c.h.b16 %v405
      %v1312 = vunpack.c.l.b16 %v406
      %v1313 = vunpack.c.h.b16 %v406
      %v1314 = vunpack.c.l.b16 %v407
      %v1315 = vunpack.c.h.b16 %v407
      %v1316 = vunpack.c.l.b16 %v408
      %v1317 = vunpack.c.h.b16 %v408
      %v1318 = vunpack.c.l.b16 %v409
      %v1319 = vunpack.c.h.b16 %v409
      %v1320 = vunpack.c.l.b16 %v410
      %v1321 = vunpack.c.h.b16 %v410
      %v1322 = vunpack.c.l.b16 %v411
      %v1323 = vunpack.c.h.b16 %v411
      %v1324 = vunpack.c.l.b16 %v412
      %v1325 = vunpack.c.h.b16 %v412
      %v1326 = vunpack.c.l.b16 %v413
      %v1327 = vunpack.c.h.b16 %v413
      %v1328 = vunpack.c.l.b16 %v414
      %v1329 = vunpack.c.h.b16 %v414
      %v1330 = vunpack.c.l.b16 %v415
      %v1331 = vunpack.c.h.b16 %v415
      %v1332 = vunpack.c.l.b16 %v416
      %v1333 = vunpack.c.h.b16 %v416
      %v1334 = vunpack.c.l.b16 %v417
      %v1335 = vunpack.c.h.b16 %v417
      %v1336 = vunpack.c.l.b16 %v418
      %v1337 = vunpack.c.h.b16 %v418
      %v1338 = vunpack.c.l.b16 %v419
      %v1339 = vunpack.c.h.b16 %v419
      %v1340 = vunpack.c.l.b16 %v420
      %v1341 = vunpack.c.h.b16 %v420
      %v1342 = vunpack.c.l.b16 %v421
      %v1343 = vunpack.c.h.b16 %v421
      %v1344 = vunpack.c.l.b16 %v422
      %v1345 = vunpack.c.h.b16 %v422
      %v1346 = vunpack.c.l.b16 %v423
      %v1347 = vunpack.c.h.b16 %v423
      %v1348 = vunpack.c.l.b16 %v424
      %v1349 = vunpack.c.h.b16 %v424
      %v1350 = vunpack.c.l.b16 %v425
      %v1351 = vunpack.c.h.b16 %v425
      %v1352 = vunpack.c.l.b16 %v426
      %v1353 = vunpack.c.h.b16 %v426
      %v1354 = vunpack.c.l.b16 %v427
      %v1355 = vunpack.c.h.b16 %v427
      %v1356 = vunpack.c.l.b16 %v428
      %v1357 = vunpack.c.h.b16 %v428
      %v1358 = vunpack.c.l.b16 %v429
      %v1359 = vunpack.c.h.b16 %v429
      %v1360 = vunpack.c.l.b16 %v430
      %v1361 = vunpack.c.h.b16 %v430
      %v1362 = vunpack.c.l.b16 %v431
      %v1363 = vunpack.c.h.b16 %v431
      %v1364 = vunpack.c.l.b16 %v432
      %v1365 = vunpack.c.h.b16 %v432
      %v1366 = vunpack.c.l.b16 %v433
      %v1367 = vunpack.c.h.b16 %v433
      %v1368 = vunpack.c.l.b16 %v434
      %v1369 = vunpack.c.h.b16 %v434
      %v1370 = vunpack.c.l.b16 %v435
      %v1371 = vunpack.c.h.b16 %v435
      %v1372 = vunpack.c.l.b16 %v436
      %v1373 = vunpack.c.h.b16 %v436
      %v1374 = vunpack.c.l.b16 %v437
      %v1375 = vunpack.c.h.b16 %v437
      %v1376 = vunpack.c.l.b16 %v438
      %v1377 = vunpack.c.h.b16 %v438
      %v1378 = vunpack.c.l.b16 %v439
      %v1379 = vunpack.c.h.b16 %v439
      %v1380 = vunpack.c.l.b16 %v440
      %v1381 = vunpack.c.h.b16 %v440
      %v1382 = vunpack.c.l.b16 %v441
      %v1383 = vunpack.c.h.b16 %v441
      %v1384 = vunpack.c.l.b16 %v442
      %v1385 = vunpack.c.h.b16 %v442
      %v1386 = vunpack.c.l.b16 %v443
      %v1387 = vunpack.c.h.b16 %v443
      %v1388 = vunpack.c.l.b16 %v444
      %v1389 = vunpack.c.h.b16 %v444
      %v1390 = vunpack.c.l.b16 %v445
      %v1391 = vunpack.c.h.b16 %v445
      %v1392 = vunpack.c.l.b16 %v446
      %v1393 = vunpack.c.h.b16 %v446
      %v1394 = vunpack.c.l.b16 %v447
      %v1395 = vunpack.c.h.b16 %v447
      %v1396 = vunpack.c.l.b16 %v448
      %v1397 = vunpack.c.h.b16 %v448
      %v1398 = vunpack.c.l.b16 %v449
      %v1399 = vunpack.c.h.b16 %v449
      %v1400 = vunpack.c.l.b16 %v450
      %v1401 = vunpack.c.h.b16 %v450
      %v1402 = vunpack.c.l.b16 %v451
      %v1403 = vunpack.c.h.b16 %v451
      %v1404 = vunpack.c.l.b16 %v452
      %v1405 = vunpack.c.h.b16 %v452
      %v1406 = vunpack.c.l.b16 %v453
      %v1407 = vunpack.c.h.b16 %v453
      %v1408 = vunpack.c.l.b16 %v454
      %v1409 = vunpack.c.h.b16 %v454
      %v1410 = vunpack.c.l.b16 %v455
      %v1411 = vunpack.c.h.b16 %v455
      %v1412 = vunpack.c.l.b16 %v456
      %v1413 = vunpack.c.h.b16 %v456
      %v1414 = vunpack.c.l.b16 %v457
      %v1415 = vunpack.c.h.b16 %v457
      %v1416 = vunpack.c.l.b16 %v458
      %v1417 = vunpack.c.h.b16 %v458
      %v1418 = vunpack.c.l.b16 %v459
      %v1419 = vunpack.c.h.b16 %v459
      %v1420 = vunpack.c.l.b16 %v460
      %v1421 = vunpack.c.h.b16 %v460
      %v1422 = vunpack.c.l.b16 %v461
      %v1423 = vunpack.c.h.b16 %v461
      %v1424 = vunpack.c.l.b16 %v462
      %v1425 = vunpack.c.h.b16 %v462
      %v1426 = vunpack.c.l.b16 %v463
      %v1427 = vunpack.c.h.b16 %v463
      %v1428 = vunpack.c.l.b16 %v464
      %v1429 = vunpack.c.h.b16 %v464
      %v1430 = vunpack.c.l.b16 %v465
      %v1431 = vunpack.c.h.b16 %v465
      %v1432 = vunpack.c.l.b16 %v466
      %v1433 = vunpack.c.h.b16 %v466
      %v1434 = vunpack.c.l.b16 %v467
      %v1435 = vunpack.c.h.b16 %v467
      %v1436 = vunpack.c.l.b16 %v468
      %v1437 = vunpack.c.h.b16 %v468
      %v1438 = vunpack.c.l.b16 %v469
      %v1439 = vunpack.c.h.b16 %v469
      %v1440 = vunpack.c.l.b16 %v470
      %v1441 = vunpack.c.h.b16 %v470
      %v1442 = vunpack.c.l.b16 %v471
      %v1443 = vunpack.c.h.b16 %v471
      %v1444 = vunpack.c.l.b16 %v472
      %v1445 = vunpack.c.h.b16 %v472
      %v1446 = vunpack.c.l.b16 %v473
      %v1447 = vunpack.c.h.b16 %v473
      %v1448 = vunpack.c.l.b16 %v474
      %v1449 = vunpack.c.h.b16 %v474
      %v1450 = vunpack.c.l.b16 %v475
      %v1451 = vunpack.c.h.b16 %v475
      %v1452 = vunpack.c.l.b16 %v476
      %v1453 = vunpack.c.h.b16 %v476
      %v1454 = vunpack.c.l.b16 %v477
      %v1455 = vunpack.c.h.b16 %v477
      %v1456 = vunpack.c.l.b16 %v478
      %v1457 = vunpack.c.h.b16 %v478
      %v1458 = vunpack.c.l.b16 %v479
      %v1459 = vunpack.c.h.b16 %v479
      %v1460 = vunpack.c.l.b16 %v480
      %v1461 = vunpack.c.h.b16 %v480
      %v1462 = vunpack.c.l.b16 %v481
      %v1463 = vunpack.c.h.b16 %v481
      %v1464 = vunpack.c.l.b16 %v482
      %v1465 = vunpack.c.h.b16 %v482
      %v1466 = vunpack.c.l.b16 %v483
      %v1467 = vunpack.c.h.b16 %v483
      %v1468 = vunpack.c.l.b16 %v484
      %v1469 = vunpack.c.h.b16 %v484
      %v1470 = vunpack.c.l.b16 %v485
      %v1471 = vunpack.c.h.b16 %v485
      %v1472 = vunpack.c.l.b16 %v486
      %v1473 = vunpack.c.h.b16 %v486
      %v1474 = vunpack.c.l.b16 %v487
      %v1475 = vunpack.c.h.b16 %v487
      %v1476 = vunpack.c.l.b16 %v488
      %v1477 = vunpack.c.h.b16 %v488
      %v1478 = vunpack.c.l.b16 %v489
      %v1479 = vunpack.c.h.b16 %v489
      %v1480 = vunpack.c.l.b16 %v490
      %v1481 = vunpack.c.h.b16 %v490
      %v1482 = vunpack.c.l.b16 %v491
      %v1483 = vunpack.c.h.b16 %v491
      %v1484 = vunpack.c.l.b16 %v492
      %v1485 = vunpack.c.h.b16 %v492
      %v1486 = vunpack.c.l.b16 %v493
      %v1487 = vunpack.c.h.b16 %v493
      %v1488 = vunpack.c.l.b16 %v494
      %v1489 = vunpack.c.h.b16 %v494
      %v1490 = vunpack.c.l.b16 %v495
      %v1491 = vunpack.c.h.b16 %v495
      %v1492 = vunpack.c.l.b16 %v496
      %v1493 = vunpack.c.h.b16 %v496
      %v1494 = vunpack.c.l.b16 %v497
      %v1495 = vunpack.c.h.b16 %v497
      %v1496 = vunpack.c.l.b16 %v498
      %v1497 = vunpack.c.h.b16 %v498
      %v1498 = vunpack.c.l.b16 %v499
      %v1499 = vunpack.c.h.b16 %v499
      %v1500 = vunpack.c.l.b16 %v500
      %v1501 = vunpack.c.h.b16 %v500
      %v1502 = vunpack.c.l.b16 %v501
      %v1503 = vunpack.c.h.b16 %v501
      %v1504 = vunpack.c.l.b16 %v502
      %v1505 = vunpack.c.h.b16 %v502
      %v1506 = vunpack.c.l.b16 %v503
      %v1507 = vunpack.c.h.b16 %v503
      %v1508 = vunpack.c.l.b16 %v504
      %v1509 = vunpack.c.h.b16 %v504
      %v1510 = vunpack.c.l.b16 %v505
      %v1511 = vunpack.c.h.b16 %v505
      %v1512 = vunpack.c.l.b16 %v506
      %v1513 = vunpack.c.h.b16 %v506
      %v1514 = vunpack.c.l.b16 %v507
      %v1515 = vunpack.c.h.b16 %v507
      %v1516 = vunpack.c.l.b16 %v508
      %v1517 = vunpack.c.h.b16 %v508
      %v1518 = vunpack.c.l.b16 %v509
      %v1519 = vunpack.c.h.b16 %v509
      %v1520 = vunpack.c.l.b16 %v510
      %v1521 = vunpack.c.h.b16 %v510
      %v1522 = vunpack.c.l.b16 %v511
      %v1523 = vunpack.c.h.b16 %v511
      %v1524 = vunpack.c.l.b16 %v512
      %v1525 = vunpack.c.h.b16 %v512
      %v1526 = vunpack.c.l.b16 %v513
      %v1527 = vunpack.c.h.b16 %v513
      %v1528 = vunpack.c.l.b16 %v514
      %v1529 = vunpack.c.h.b16 %v514
      %v1530 = vunpack.c.l.b16 %v515
      %v1531 = vunpack.c.h.b16 %v515
      %v1532 = vunpack.c.l.b16 %v516
      %v1533 = vunpack.c.h.b16 %v516
      %v1534 = vunpack.c.l.b16 %v517
      %v1535 = vunpack.c.h.b16 %v517
      %v1536 = vunpack.c.l.b16 %v518
      %v1537 = vunpack.c.h.b16 %v518
      %v1538 = vunpack.c.l.b16 %v519
      %v1539 = vunpack.c.h.b16 %v519
      %v1540 = vunpack.c.l.b16 %v520
      %v1541 = vunpack.c.h.b16 %v520
      %v1542 = vunpack.c.l.b16 %v521
      %v1543 = vunpack.c.h.b16 %v521
      %v1544 = vunpack.c.l.b16 %v522
      %v1545 = vunpack.c.h.b16 %v522
      %v1546 = vunpack.c.l.b16 %v523
      %v1547 = vunpack.c.h.b16 %v523
      %v1548 = vunpack.c.l.b16 %v524
      %v1549 = vunpack.c.h.b16 %v524
      %v1550 = vunpack.c.l.b16 %v525
      %v1551 = vunpack.c.h.b16 %v525
      %v1552 = vunpack.c.l.b16 %v526
      %v1553 = vunpack.c.h.b16 %v526
      %v1554 = vunpack.c.l.b16 %v527
      %v1555 = vunpack.c.h.b16 %v527
      %v1556 = vunpack.c.l.b16 %v528
      %v1557 = vunpack.c.h.b16 %v528
      %v1558 = vunpack.c.l.b16 %v529
      %v1559 = vunpack.c.h.b16 %v529
      %v1560 = vunpack.c.l.b16 %v530
      %v1561 = vunpack.c.h.b16 %v530
      %v1562 = vunpack.c.l.b16 %v531
      %v1563 = vunpack.c.h.b16 %v531
      %v1564 = vunpack.c.l.b16 %v532
      %v1565 = vunpack.c.h.b16 %v532
      %v1566 = vunpack.c.l.b16 %v533
      %v1567 = vunpack.c.h.b16 %v533
      %v1568 = vunpack.c.l.b16 %v534
      %v1569 = vunpack.c.h.b16 %v534
      %v1570 = vunpack.c.l.b16 %v535
      %v1571 = vunpack.c.h.b16 %v535
      %v1572 = vunpack.c.l.b16 %v536
      %v1573 = vunpack.c.h.b16 %v536
      %v1574 = vunpack.c.l.b16 %v537
      %v1575 = vunpack.c.h.b16 %v537
      %v1576 = vunpack.c.l.b16 %v538
      %v1577 = vunpack.c.h.b16 %v538
      %v1578 = vunpack.c.l.b16 %v539
      %v1579 = vunpack.c.h.b16 %v539
      %v1580 = vunpack.c.l.b16 %v540
      %v1581 = vunpack.c.h.b16 %v540
      %v1582 = vunpack.c.l.b16 %v541
      %v1583 = vunpack.c.h.b16 %v541
      %v1584 = vunpack.c.l.b16 %v542
      %v1585 = vunpack.c.h.b16 %v542
      %v1586 = vunpack.c.l.b16 %v543
      %v1587 = vunpack.c.h.b16 %v543
      %v1588 = vunpack.c.l.b16 %v544
      %v1589 = vunpack.c.h.b16 %v544
      %v1590 = vunpack.c.l.b16 %v545
      %v1591 = vunpack.c.h.b16 %v545
      %v1592 = vunpack.c.l.b16 %v546
      %v1593 = vunpack.c.h.b16 %v546
      %v1594 = vunpack.c.l.b16 %v547
      %v1595 = vunpack.c.h.b16 %v547
      %v1596 = vunpack.c.l.b16 %v548
      %v1597 = vunpack.c.h.b16 %v548
      %v1598 = vunpack.c.l.b16 %v549
      %v1599 = vunpack.c.h.b16 %v549
      %v1600 = vunpack.c.l.b16 %v550
      %v1601 = vunpack.c.h.b16 %v550
      %v1602 = vunpack.c.l.b16 %v551
      %v1603 = vunpack.c.h.b16 %v551
      %v1604 = vunpack.c.l.b16 %v552
      %v1605 = vunpack.c.h.b16 %v552
      %v1606 = vunpack.c.l.b16 %v553
      %v1607 = vunpack.c.h.b16 %v553
      %v1608 = vunpack.c.l.b16 %v554
      %v1609 = vunpack.c.h.b16 %v554
      %v1610 = vunpack.c.l.b16 %v555
      %v1611 = vunpack.c.h.b16 %v555
      %v1612 = vunpack.c.l.b16 %v556
      %v1613 = vunpack.c.h.b16 %v556
      %v1614 = vunpack.c.l.b16 %v557
      %v1615 = vunpack.c.h.b16 %v557
      %v1616 = vunpack.c.l.b16 %v558
      %v1617 = vunpack.c.h.b16 %v558
      %v1618 = vunpack.c.l.b16 %v559
      %v1619 = vunpack.c.h.b16 %v559
      %v1620 = vunpack.c.l.b16 %v560
      %v1621 = vunpack.c.h.b16 %v560
      %v1622 = vunpack.c.l.b16 %v561
      %v1623 = vunpack.c.h.b16 %v561
      %v1624 = vunpack.c.l.b16 %v562
      %v1625 = vunpack.c.h.b16 %v562
      %v1626 = vunpack.c.l.b16 %v563
      %v1627 = vunpack.c.h.b16 %v563
      %v1628 = vunpack.c.l.b16 %v564
      %v1629 = vunpack.c.h.b16 %v564
      %v1630 = vunpack.c.l.b16 %v565
      %v1631 = vunpack.c.h.b16 %v565
      %v1632 = vunpack.c.l.b16 %v566
      %v1633 = vunpack.c.h.b16 %v566
      %v1634 = vunpack.c.l.b16 %v567
      %v1635 = vunpack.c.h.b16 %v567
      %v1636 = vunpack.c.l.b16 %v568
      %v1637 = vunpack.c.h.b16 %v568
      %v1638 = vunpack.c.l.b16 %v569
      %v1639 = vunpack.c.h.b16 %v569
      %v1640 = vunpack.c.l.b16 %v570
      %v1641 = vunpack.c.h.b16 %v570
      %v1642 = vunpack.c.l.b16 %v571
      %v1643 = vunpack.c.h.b16 %v571
      %v1644 = vunpack.c.l.b16 %v572
      %v1645 = vunpack.c.h.b16 %v572
      %v1646 = vunpack.c.l.b16 %v573
      %v1647 = vunpack.c.h.b16 %v573
      %v1648 = vunpack.c.l.b16 %v574
      %v1649 = vunpack.c.h.b16 %v574
      %v1650 = vunpack.c.l.b16 %v575
      %v1651 = vunpack.c.h.b16 %v575
      %v1652 = vunpack.c.l.b16 %v576
      %v1653 = vunpack.c.h.b16 %v576
      %v1654 = vunpack.c.l.b16 %v577
      %v1655 = vunpack.c.h.b16 %v577
      %v1656 = vunpack.c.l.b16 %v578
      %v1657 = vunpack.c.h.b16 %v578
      %v1658 = vunpack.c.l.b16 %v579
      %v1659 = vunpack.c.h.b16 %v579
      %v1660 = vunpack.c.l.b16 %v580
      %v1661 = vunpack.c.h.b16 %v580
      %v1662 = vunpack.c.l.b16 %v581
      %v1663 = vunpack.c.h.b16 %v581
      %v1664 = vunpack.c.l.b16 %v582
      %v1665 = vunpack.c.h.b16 %v582
      %v1666 = vunpack.c.l.b16 %v583
      %v1667 = vunpack.c.h.b16 %v583
      %v1668 = vunpack.c.l.b16 %v584
      %v1669 = vunpack.c.h.b16 %v584
      %v1670 = vunpack.c.l.b16 %v585
      %v1671 = vunpack.c.h.b16 %v585
      %v1672 = vunpack.c.l.b16 %v586
      %v1673 = vunpack.c.h.b16 %v586
      %v1674 = vunpack.c.l.b16 %v587
      %v1675 = vunpack.c.h.b16 %v587
      %v1676 = vunpack.c.l.b16 %v588
      %v1677 = vunpack.c.h.b16 %v588
      %v1678 = vunpack.c.l.b16 %v589
      %v1679 = vunpack.c.h.b16 %v589
      %v1680 = vunpack.c.l.b16 %v590
      %v1681 = vunpack.c.h.b16 %v590
      %v1682 = vunpack.c.l.b16 %v591
      %v1683 = vunpack.c.h.b16 %v591
      %v1684 = vunpack.c.l.b16 %v592
      %v1685 = vunpack.c.h.b16 %v592
      %v1686 = vunpack.c.l.b16 %v593
      %v1687 = vunpack.c.h.b16 %v593
      %v1688 = vunpack.c.l.b16 %v594
      %v1689 = vunpack.c.h.b16 %v594
      %v1690 = vunpack.c.l.b16 %v595
      %v1691 = vunpack.c.h.b16 %v595
      %v1692 = vunpack.c.l.b16 %v596
      %v1693 = vunpack.c.h.b16 %v596
      %v1694 = vunpack.c.l.b16 %v597
      %v1695 = vunpack.c.h.b16 %v597
      %v1696 = vunpack.c.l.b16 %v598
      %v1697 = vunpack.c.h.b16 %v598
      %v1698 = vunpack.c.l.b16 %v599
      %v1699 = vunpack.c.h.b16 %v599
      %v1700 = vunpack.c.l.b16 %v600
      %v1701 = vunpack.c.h.b16 %v600
      %v1702 = vunpack.c.l.b16 %v601
      %v1703 = vunpack.c.h.b16 %v601
      %v1704 = vunpack.c.l.b16 %v602
      %v1705 = vunpack.c.h.b16 %v602
      %v1706 = vunpack.c.l.b16 %v603
      %v1707 = vunpack.c.h.b16 %v603
      %v1708 = vunpack.c.l.b16 %v604
      %v1709 = vunpack.c.h.b16 %v604
      %v1710 = vunpack.c.l.b16 %v605
      %v1711 = vunpack.c.h.b16 %v605
      %v1712 = vunpack.c.l.b16 %v606
      %v1713 = vunpack.c.h.b16 %v606
      %v1714 = vunpack.c.l.b16 %v607
      %v1715 = vunpack.c.h.b16 %v607
      %v1716 = vunpack.c.l.b16 %v608
      %v1717 = vunpack.c.h.b16 %v608
      %v1718 = vunpack.c.l.b16 %v609
      %v1719 = vunpack.c.h.b16 %v609
      %v1720 = vunpack.c.l.b16 %v610
      %v1721 = vunpack.c.h.b16 %v610
      %v1722 = vunpack.c.l.b16 %v611
      %v1723 = vunpack.c.h.b16 %v611
      %v1724 = vunpack.c.l.b16 %v612
      %v1725 = vunpack.c.h.b16 %v612
      %v1726 = vunpack.c.l.b16 %v613
      %v1727 = vunpack.c.h.b16 %v613
      %v1728 = vunpack.c.l.b16 %v614
      %v1729 = vunpack.c.h.b16 %v614
      %v1730 = vunpack.c.l.b16 %v615
      %v1731 = vunpack.c.h.b16 %v615
      %v1732 = vunpack.c.l.b16 %v616
      %v1733 = vunpack.c.h.b16 %v616
      %v1734 = vunpack.c.l.b16 %v617
      %v1735 = vunpack.c.h.b16 %v617
      %v1736 = vunpack.c.l.b16 %v618
      %v1737 = vunpack.c.h.b16 %v618
      %v1738 = vunpack.c.l.b16 %v619
      %v1739 = vunpack.c.h.b16 %v619
      %v1740 = vunpack.c.l.b16 %v620
      %v1741 = vunpack.c.h.b16 %v620
      %v1742 = vunpack.c.l.b16 %v621
      %v1743 = vunpack.c.h.b16 %v621
      %v1744 = vunpack.c.l.b16 %v622
      %v1745 = vunpack.c.h.b16 %v622
      %v1746 = vunpack.c.l.b16 %v623
      %v1747 = vunpack.c.h.b16 %v623
      %v1748 = vunpack.c.l.b16 %v624
      %v1749 = vunpack.c.h.b16 %v624
      %v1750 = vunpack.c.l.b16 %v625
      %v1751 = vunpack.c.h.b16 %v625
      %v1752 = vunpack.c.l.b16 %v626
      %v1753 = vunpack.c.h.b16 %v626
      %v1754 = vunpack.c.l.b16 %v627
      %v1755 = vunpack.c.h.b16 %v627
      %v1756 = vunpack.c.l.b16 %v628
      %v1757 = vunpack.c.h.b16 %v628
      %v1758 = vunpack.c.l.b16 %v629
      %v1759 = vunpack.c.h.b16 %v629
      %v1760 = vunpack.c.l.b16 %v630
      %v1761 = vunpack.c.h.b16 %v630
      %v1762 = vunpack.c.l.b16 %v631
      %v1763 = vunpack.c.h.b16 %v631
      %v1764 = vunpack.c.l.b16 %v632
      %v1765 = vunpack.c.h.b16 %v632
      %v1766 = vunpack.c.l.b16 %v633
      %v1767 = vunpack.c.h.b16 %v633
      %v1768 = vunpack.c.l.b16 %v634
      %v1769 = vunpack.c.h.b16 %v634
      %v1770 = vunpack.c.l.b16 %v635
      %v1771 = vunpack.c.h.b16 %v635
      %v1772 = vunpack.c.l.b16 %v636
      %v1773 = vunpack.c.h.b16 %v636
      %v1774 = vunpack.c.l.b16 %v637
      %v1775 = vunpack.c.h.b16 %v637
      %v1776 = vunpack.c.l.b16 %v638
      %v1777 = vunpack.c.h.b16 %v638
      %v1778 = vunpack.c.l.b16 %v639
      %v1779 = vunpack.c.h.b16 %v639
      %v1780 = vunpack.c.l.b16 %v640
      %v1781 = vunpack.c.h.b16 %v640
      %v1782 = vunpack.c.l.b16 %v641
      %v1783 = vunpack.c.h.b16 %v641
      %v1784 = vunpack.c.l.b16 %v642
      %v1785 = vunpack.c.h.b16 %v642
      %v1786 = vunpack.c.l.b16 %v643
      %v1787 = vunpack.c.h.b16 %v643
      %v1788 = vunpack.c.l.b16 %v644
      %v1789 = vunpack.c.h.b16 %v644
      %v1790 = vunpack.c.l.b16 %v645
      %v1791 = vunpack.c.h.b16 %v645
      %v1792 = vunpack.c.l.b16 %v646
      %v1793 = vunpack.c.h.b16 %v646
      %v1794 = vunpack.c.l.b16 %v647
      %v1795 = vunpack.c.h.b16 %v647
      %v1796 = vunpack.c.l.b16 %v648
      %v1797 = vunpack.c.h.b16 %v648
      %v1798 = vunpack.c.l.b16 %v649
      %v1799 = vunpack.c.h.b16 %v649
      %v1800 = vunpack.c.l.b16 %v650
      %v1801 = vunpack.c.h.b16 %v650
      %v1802 = vunpack.c.l.b16 %v651
      %v1803 = vunpack.c.h.b16 %v651
      %v1804 = vunpack.c.l.b16 %v652
      %v1805 = vunpack.c.h.b16 %v652
      %v1806 = vunpack.c.l.b16 %v653
      %v1807 = vunpack.c.h.b16 %v653
      %v1808 = vunpack.c.l.b16 %v654
      %v1809 = vunpack.c.h.b16 %v654
      %v1810 = vunpack.c.l.b16 %v655
      %v1811 = vunpack.c.h.b16 %v655
      %v1812 = vunpack.c.l.b16 %v656
      %v1813 = vunpack.c.h.b16 %v656
      %v1814 = vunpack.c.l.b16 %v657
      %v1815 = vunpack.c.h.b16 %v657
      %v1816 = vunpack.c.l.b16 %v658
      %v1817 = vunpack.c.h.b16 %v658
      %v1818 = vunpack.c.l.b16 %v659
      %v1819 = vunpack.c.h.b16 %v659
      %v1820 = vunpack.c.l.b16 %v660
      %v1821 = vunpack.c.h.b16 %v660
      %v1822 = vunpack.c.l.b16 %v661
      %v1823 = vunpack.c.h.b16 %v661
      %v1824 = vunpack.c.l.b16 %v662
      %v1825 = vunpack.c.h.b16 %v662
      %v1826 = vunpack.c.l.b16 %v663
      %v1827 = vunpack.c.h.b16 %v663
      %v1828 = vunpack.c.l.b16 %v664
      %v1829 = vunpack.c.h.b16 %v664
      %v1830 = vunpack.c.l.b16 %v665
      %v1831 = vunpack.c.h.b16 %v665
      %v1832 = vunpack.c.l.b16 %v666
      %v1833 = vunpack.c.h.b16 %v666
      %v1834 = vunpack.c.l.b16 %v667
      %v1835 = vunpack.c.h.b16 %v667
      %v1836 = vunpack.c.l.b16 %v668
      %v1837 = vunpack.c.h.b16 %v668
      %v1838 = vunpack.c.l.b16 %v669
      %v1839 = vunpack.c.h.b16 %v669
      %v1840 = vunpack.c.l.b16 %v670
      %v1841 = vunpack.c.h.b16 %v670
      %v1842 = vunpack.c.l.b16 %v671
      %v1843 = vunpack.c.h.b16 %v671
      %v1844 = vunpack.c.l.b16 %v672
      %v1845 = vunpack.c.h.b16 %v672
      %v1846 = vunpack.c.l.b16 %v673
      %v1847 = vunpack.c.h.b16 %v673
      %v1848 = vunpack.c.l.b16 %v674
      %v1849 = vunpack.c.h.b16 %v674
      %v1850 = vunpack.c.l.b16 %v675
      %v1851 = vunpack.c.h.b16 %v675
      %v1852 = vunpack.c.l.b16 %v676
      %v1853 = vunpack.c.h.b16 %v676
      %v1854 = vunpack.c.l.b16 %v677
      %v1855 = vunpack.c.h.b16 %v677
      %v1856 = vunpack.c.l.b16 %v678
      %v1857 = vunpack.c.h.b16 %v678
      %v1858 = vunpack.c.l.b16 %v679
      %v1859 = vunpack.c.h.b16 %v679
      %v1860 = vunpack.c.l.b16 %v680
      %v1861 = vunpack.c.h.b16 %v680
      %v1862 = vunpack.c.l.b16 %v681
      %v1863 = vunpack.c.h.b16 %v681
      %v1864 = vunpack.c.l.b16 %v682
      %v1865 = vunpack.c.h.b16 %v682
      %v1866 = vunpack.c.l.b16 %v683
      %v1867 = vunpack.c.h.b16 %v683
      %v1868 = vunpack.c.l.b16 %v684
      %v1869 = vunpack.c.h.b16 %v684
      %v1870 = vunpack.c.l.b16 %v685
      %v1871 = vunpack.c.h.b16 %v685
      %v1872 = vunpack.c.l.b16 %v686
      %v1873 = vunpack.c.h.b16 %v686
      %v1874 = vunpack.c.l.b16 %v687
      %v1875 = vunpack.c.h.b16 %v687
      %v1876 = vunpack.c.l.b16 %v688
      %v1877 = vunpack.c.h.b16 %v688
      %v1878 = vunpack.c.l.b16 %v689
      %v1879 = vunpack.c.h.b16 %v689
      %v1880 = vunpack.c.l.b16 %v690
      %v1881 = vunpack.c.h.b16 %v690
      %v1882 = vunpack.c.l.b16 %v691
      %v1883 = vunpack.c.h.b16 %v691
      %v1884 = vunpack.c.l.b16 %v692
      %v1885 = vunpack.c.h.b16 %v692
      %v1886 = vunpack.c.l.b16 %v693
      %v1887 = vunpack.c.h.b16 %v693
      %v1888 = vunpack.c.l.b16 %v694
      %v1889 = vunpack.c.h.b16 %v694
      %v1890 = vunpack.c.l.b16 %v695
      %v1891 = vunpack.c.h.b16 %v695
      %v1892 = vunpack.c.l.b16 %v696
      %v1893 = vunpack.c.h.b16 %v696
      %v1894 = vunpack.c.l.b16 %v697
      %v1895 = vunpack.c.h.b16 %v697
      %v1896 = vunpack.c.l.b16 %v698
      %v1897 = vunpack.c.h.b16 %v698
      %v1898 = vunpack.c.l.b16 %v699
      %v1899 = vunpack.c.h.b16 %v699
      %v1900 = vunpack.c.l.b16 %v700
      %v1901 = vunpack.c.h.b16 %v700
      %v1902 = vunpack.c.l.b16 %v701
      %v1903 = vunpack.c.h.b16 %v701
      %v1904 = vunpack.c.l.b16 %v702
      %v1905 = vunpack.c.h.b16 %v702
      %v1906 = vunpack.c.l.b16 %v703
      %v1907 = vunpack.c.h.b16 %v703
      %v1908 = vunpack.c.l.b16 %v704
      %v1909 = vunpack.c.h.b16 %v704
      %v1910 = vunpack.c.l.b16 %v705
      %v1911 = vunpack.c.h.b16 %v705
      %v1912 = vunpack.c.l.b16 %v706
      %v1913 = vunpack.c.h.b16 %v706
      %v1914 = vunpack.c.l.b16 %v707
      %v1915 = vunpack.c.h.b16 %v707
      %v1916 = vunpack.c.l.b16 %v708
      %v1917 = vunpack.c.h.b16 %v708
      %v1918 = vunpack.c.l.b16 %v709
      %v1919 = vunpack.c.h.b16 %v709
      %v1920 = vunpack.c.l.b16 %v710
      %v1921 = vunpack.c.h.b16 %v710
      %v1922 = vunpack.c.l.b16 %v711
      %v1923 = vunpack.c.h.b16 %v711
      %v1924 = vunpack.c.l.b16 %v712
      %v1925 = vunpack.c.h.b16 %v712
      %v1926 = vunpack.c.l.b16 %v713
      %v1927 = vunpack.c.h.b16 %v713
      %v1928 = vunpack.c.l.b16 %v714
      %v1929 = vunpack.c.h.b16 %v714
      %v1930 = vunpack.c.l.b16 %v715
      %v1931 = vunpack.c.h.b16 %v715
      %v1932 = vunpack.c.l.b16 %v716
      %v1933 = vunpack.c.h.b16 %v716
      %v1934 = vunpack.c.l.b16 %v717
      %v1935 = vunpack.c.h.b16 %v717
      %v1936 = vunpack.c.l.b16 %v718
      %v1937 = vunpack.c.h.b16 %v718
      %v1938 = vunpack.c.l.b16 %v719
      %v1939 = vunpack.c.h.b16 %v719
      %v1940 = vunpack.c.l.b16 %v720
      %v1941 = vunpack.c.h.b16 %v720
      %v1942 = vunpack.c.l.b16 %v721
      %v1943 = vunpack.c.h.b16 %v721
      %v1944 = vunpack.c.l.b16 %v722
      %v1945 = vunpack.c.h.b16 %v722
      %v1946 = vunpack.c.l.b16 %v723
      %v1947 = vunpack.c.h.b16 %v723
      %v1948 = vunpack.c.l.b16 %v724
      %v1949 = vunpack.c.h.b16 %v724
      %v1950 = vunpack.c.l.b16 %v725
      %v1951 = vunpack.c.h.b16 %v725
      %v1952 = vunpack.c.l.b16 %v726
      %v1953 = vunpack.c.h.b16 %v726
      %v1954 = vunpack.c.l.b16 %v727
      %v1955 = vunpack.c.h.b16 %v727
      %v1956 = vunpack.c.l.b16 %v728
      %v1957 = vunpack.c.h.b16 %v728
      %v1958 = vunpack.c.l.b16 %v729
      %v1959 = vunpack.c.h.b16 %v729
      %v1960 = vunpack.c.l.b16 %v730
      %v1961 = vunpack.c.h.b16 %v730
      %v1962 = vpack.c.b16 %v1182, %v1178
      %v1963 = vpack.c.b16 %v1183, %v1179
      %v1964 = vpack.c.b16 %v1184, %v1180
      %v1965 = vpack.c.b16 %v1185, %v1181
      %v1966 = vpack.c.b16 %v1190, %v1186
      %v1967 = vpack.c.b16 %v1191, %v1187
      %v1968 = vpack.c.b16 %v1192, %v1188
      %v1969 = vpack.c.b16 %v1193, %v1189
      %v1970 = vpack.c.b16 %v1198, %v1194
      %v1971 = vpack.c.b16 %v1199, %v1195
      %v1972 = vpack.c.b16 %v1200, %v1196
      %v1973 = vpack.c.b16 %v1201, %v1197
      %v1974 = vpack.c.b16 %v1206, %v1202
      %v1975 = vpack.c.b16 %v1207, %v1203
      %v1976 = vpack.c.b16 %v1208, %v1204
      %v1977 = vpack.c.b16 %v1209, %v1205
      %v1978 = vpack.c.b16 %v1214, %v1210
      %v1979 = vpack.c.b16 %v1215, %v1211
      %v1980 = vpack.c.b16 %v1216, %v1212
      %v1981 = vpack.c.b16 %v1217, %v1213
      %v1982 = vpack.c.b16 %v1222, %v1218
      %v1983 = vpack.c.b16 %v1223, %v1219
      %v1984 = vpack.c.b16 %v1224, %v1220
      %v1985 = vpack.c.b16 %v1225, %v1221
      %v1986 = vpack.c.b16 %v1230, %v1226
      %v1987 = vpack.c.b16 %v1231, %v1227
      %v1988 = vpack.c.b16 %v1232, %v1228
      %v1989 = vpack.c.b16 %v1233, %v1229
      %v1990 = vpack.c.b16 %v1238, %v1234
      %v1991 = vpack.c.b16 %v1239, %v1235
      %v1992 = vpack.c.b16 %v1240, %v1236
      %v1993 = vpack.c.b16 %v1241, %v1237
      %v1994 = vpack.c.b16 %v1246, %v1242
      %v1995 = vpack.c.b16 %v1247, %v1243
      %v1996 = vpack.c.b16 %v1248, %v1244
      %v1997 = vpack.c.b16 %v1249, %v1245
      %v1998 = vpack.c.b16 %v1254, %v1250
      %v1999 = vpack.c.b16 %v1255, %v1251
      %v2000 = vpack.c.b16 %v1256, %v1252
      %v2001 = vpack.c.b16 %v1257, %v1253
      %v2002 = vpack.c.b16 %v1262, %v1258
      %v2003 = vpack.c.b16 %v1263, %v1259
      %v2004 = vpack.c.b16 %v1264, %v1260
      %v2005 = vpack.c.b16 %v1265, %v1261
      %v2006 = vpack.c.b16 %v1270, %v1266
      %v2007 = vpack.c.b16 %v1271, %v1267
      %v2008 = vpack.c.b16 %v1272, %v1268
      %v2009 = vpack.c.b16 %v1273, %v1269
      %v2010 = vpack.c.b16 %v1278, %v1274
      %v2011 = vpack.c.b16 %v1279, %v1275
      %v2012 = vpack.c.b16 %v1280, %v1276
      %v2013 = vpack.c.b16 %v1281, %v1277
      %v2014 = vpack.c.b16 %v1286, %v1282
      %v2015 = vpack.c.b16 %v1287, %v1283
      %v2016 = vpack.c.b16 %v1288, %v1284
      %v2017 = vpack.c.b16 %v1289, %v1285
      %v2018 = vpack.c.b16 %v1294, %v1290
      %v2019 = vpack.c.b16 %v1295, %v1291
      %v2020 = vpack.c.b16 %v1296, %v1292
      %v2021 = vpack.c.b16 %v1297, %v1293
      %v2022 = vpack.c.b16 %v1302, %v1298
      %v2023 = vpack.c.b16 %v1303, %v1299
      %v2024 = vpack.c.b16 %v1304, %v1300
      %v2025 = vpack.c.b16 %v1305, %v1301
      %v2026 = vpack.c.b16 %v1310, %v1306
      %v2027 = vpack.c.b16 %v1311, %v1307
      %v2028 = vpack.c.b16 %v1312, %v1308
      %v2029 = vpack.c.b16 %v1313, %v1309
      %v2030 = vpack.c.b16 %v1318, %v1314
      %v2031 = vpack.c.b16 %v1319, %v1315
      %v2032 = vpack.c.b16 %v1320, %v1316
      %v2033 = vpack.c.b16 %v1321, %v1317
      %v2034 = vpack.c.b16 %v1326, %v1322
      %v2035 = vpack.c.b16 %v1327, %v1323
      %v2036 = vpack.c.b16 %v1328, %v1324
      %v2037 = vpack.c.b16 %v1329, %v1325
      %v2038 = vpack.c.b16 %v1334, %v1330
      %v2039 = vpack.c.b16 %v1335, %v1331
      %v2040 = vpack.c.b16 %v1336, %v1332
      %v2041 = vpack.c.b16 %v1337, %v1333
      %v2042 = vpack.c.b16 %v1342, %v1338
      %v2043 = vpack.c.b16 %v1343, %v1339
      %v2044 = vpack.c.b16 %v1344, %v1340
      %v2045 = vpack.c.b16 %v1345, %v1341
      %v2046 = vpack.c.b16 %v1350, %v1346
      %v2047 = vpack.c.b16 %v1351, %v1347
      %v2048 = vpack.c.b16 %v1352, %v1348
      %v2049 = vpack.c.b16 %v1353, %v1349
      %v2050 = vpack.c.b16 %v1358, %v1354
      %v2051 = vpack.c.b16 %v1359, %v1355
      %v2052 = vpack.c.b16 %v1360, %v1356
      %v2053 = vpack.c.b16 %v1361, %v1357
      %v2054 = vpack.c.b16 %v1366, %v1362
      %v2055 = vpack.c.b16 %v1367, %v1363
      %v2056 = vpack.c.b16 %v1368, %v1364
      %v2057 = vpack.c.b16 %v1369, %v1365
      %v2058 = vpack.c.b16 %v1374, %v1370
      %v2059 = vpack.c.b16 %v1375, %v1371
      %v2060 = vpack.c.b16 %v1376, %v1372
      %v2061 = vpack.c.b16 %v1377, %v1373
      %v2062 = vpack.c.b16 %v1382, %v1378
      %v2063 = vpack.c.b16 %v1383, %v1379
      %v2064 = vpack.c.b16 %v1384, %v1380
      %v2065 = vpack.c.b16 %v1385, %v1381
      %v2066 = vpack.c.b16 %v1390, %v1386
      %v2067 = vpack.c.b16 %v1391, %v1387
      %v2068 = vpack.c.b16 %v1392, %v1388
      %v2069 = vpack.c.b16 %v1393, %v1389
      %v2070 = vpack.c.b16 %v1398, %v1394
      %v2071 = vpack.c.b16 %v1399, %v1395
      %v2072 = vpack.c.b16 %v1400, %v1396
      %v2073 = vpack.c.b16 %v1401, %v1397
      %v2074 = vpack.c.b16 %v1406, %v1402
      %v2075 = vpack.c.b16 %v1407, %v1403
      %v2076 = vpack.c.b16 %v1408, %v1404
      %v2077 = vpack.c.b16 %v1409, %v1405
      %v2078 = vpack.c.b16 %v1414, %v1410
      %v2079 = vpack.c.b16 %v1415, %v1411
      %v2080 = vpack.c.b16 %v1416, %v1412
      %v2081 = vpack.c.b16 %v1417, %v1413
      %v2082 = vpack.c.b16 %v1422, %v1418
      %v2083 = vpack.c.b16 %v1423, %v1419
      %v2084 = vpack.c.b16 %v1424, %v1420
      %v2085 = vpack.c.b16 %v1425, %v1421
      %v2086 = vpack.c.b16 %v1430, %v1426
      %v2087 = vpack.c.b16 %v1431, %v1427
      %v2088 = vpack.c.b16 %v1432, %v1428
      %v2089 = vpack.c.b16 %v1433, %v1429
      %v2090 = vpack.c.b16 %v1438, %v1434
      %v2091 = vpack.c.b16 %v1439, %v1435
      %v2092 = vpack.c.b16 %v1440, %v1436
      %v2093 = vpack.c.b16 %v1441, %v1437
      %v2094 = vpack.c.b16 %v1446, %v1442
      %v2095 = vpack.c.b16 %v1447, %v1443
      %v2096 = vpack.c.b16 %v1448, %v1444
      %v2097 = vpack.c.b16 %v1449, %v1445
      %v2098 = vpack.c.b16 %v1454, %v1450
      %v2099 = vpack.c.b16 %v1455, %v1451
      %v2100 = vpack.c.b16 %v1456, %v1452
      %v2101 = vpack.c.b16 %v1457, %v1453
      %v2102 = vpack.c.b16 %v1462, %v1458
      %v2103 = vpack.c.b16 %v1463, %v1459
      %v2104 = vpack.c.b16 %v1464, %v1460
      %v2105 = vpack.c.b16 %v1465, %v1461
      %v2106 = vpack.c.b16 %v1470, %v1466
      %v2107 = vpack.c.b16 %v1471, %v1467
      %v2108 = vpack.c.b16 %v1472, %v1468
      %v2109 = vpack.c.b16 %v1473, %v1469
      %v2110 = vpack.c.b16 %v1478, %v1474
      %v2111 = vpack.c.b16 %v1479, %v1475
      %v2112 = vpack.c.b16 %v1480, %v1476
      %v2113 = vpack.c.b16 %v1481, %v1477
      %v2114 = vpack.c.b16 %v1486, %v1482
      %v2115 = vpack.c.b16 %v1487, %v1483
      %v2116 = vpack.c.b16 %v1488, %v1484
      %v2117 = vpack.c.b16 %v1489, %v1485
      %v2118 = vpack.c.b16 %v1494, %v1490
      %v2119 = vpack.c.b16 %v1495, %v1491
      %v2120 = vpack.c.b16 %v1496, %v1492
      %v2121 = vpack.c.b16 %v1497, %v1493
      %v2122 = vpack.c.b16 %v1502, %v1498
      %v2123 = vpack.c.b16 %v1503, %v1499
      %v2124 = vpack.c.b16 %v1504, %v1500
      %v2125 = vpack.c.b16 %v1505, %v1501
      %v2126 = vpack.c.b16 %v1510, %v1506
      %v2127 = vpack.c.b16 %v1511, %v1507
      %v2128 = vpack.c.b16 %v1512, %v1508
      %v2129 = vpack.c.b16 %v1513, %v1509
      %v2130 = vpack.c.b16 %v1518, %v1514
      %v2131 = vpack.c.b16 %v1519, %v1515
      %v2132 = vpack.c.b16 %v1520, %v1516
      %v2133 = vpack.c.b16 %v1521, %v1517
      %v2134 = vpack.c.b16 %v1526, %v1522
      %v2135 = vpack.c.b16 %v1527, %v1523
      %v2136 = vpack.c.b16 %v1528, %v1524
      %v2137 = vpack.c.b16 %v1529, %v1525
      %v2138 = vpack.c.b16 %v1534, %v1530
      %v2139 = vpack.c.b16 %v1535, %v1531
      %v2140 = vpack.c.b16 %v1536, %v1532
      %v2141 = vpack.c.b16 %v1537, %v1533
      %v2142 = vpack.c.b16 %v1542, %v1538
      %v2143 = vpack.c.b16 %v1543, %v1539
      %v2144 = vpack.c.b16 %v1544, %v1540
      %v2145 = vpack.c.b16 %v1545, %v1541
      %v2146 = vpack.c.b16 %v1550, %v1546
      %v2147 = vpack.c.b16 %v1551, %v1547
      %v2148 = vpack.c.b16 %v1552, %v1548
      %v2149 = vpack.c.b16 %v1553, %v1549
      %v2150 = vpack.c.b16 %v1558, %v1554
      %v2151 = vpack.c.b16 %v1559, %v1555
      %v2152 = vpack.c.b16 %v1560, %v1556
      %v2153 = vpack.c.b16 %v1561, %v1557
      %v2154 = vpack.c.b16 %v1566, %v1562
      %v2155 = vpack.c.b16 %v1567, %v1563
      %v2156 = vpack.c.b16 %v1568, %v1564
      %v2157 = vpack.c.b16 %v1569, %v1565
      %v2158 = vpack.c.b16 %v1574, %v1570
      %v2159 = vpack.c.b16 %v1575, %v1571
      %v2160 = vpack.c.b16 %v1576, %v1572
      %v2161 = vpack.c.b16 %v1577, %v1573
      %v2162 = vpack.c.b16 %v1582, %v1578
      %v2163 = vpack.c.b16 %v1583, %v1579
      %v2164 = vpack.c.b16 %v1584, %v1580
      %v2165 = vpack.c.b16 %v1585, %v1581
      %v2166 = vpack.c.b16 %v1590, %v1586
      %v2167 = vpack.c.b16 %v1591, %v1587
      %v2168 = vpack.c.b16 %v1592, %v1588
      %v2169 = vpack.c.b16 %v1593, %v1589
      %v2170 = vpack.c.b16 %v1598, %v1594
      %v2171 = vpack.c.b16 %v1599, %v1595
      %v2172 = vpack.c.b16 %v1600, %v1596
      %v2173 = vpack.c.b16 %v1601, %v1597
      %v2174 = vpack.c.b16 %v1606, %v1602
      %v2175 = vpack.c.b16 %v1607, %v1603
      %v2176 = vpack.c.b16 %v1608, %v1604
      %v2177 = vpack.c.b16 %v1609, %v1605
      %v2178 = vpack.c.b16 %v1614, %v1610
      %v2179 = vpack.c.b16 %v1615, %v1611
      %v2180 = vpack.c.b16 %v1616, %v1612
      %v2181 = vpack.c.b16 %v1617, %v1613
      %v2182 = vpack.c.b16 %v1622, %v1618
      %v2183 = vpack.c.b16 %v1623, %v1619
      %v2184 = vpack.c.b16 %v1624, %v1620
      %v2185 = vpack.c.b16 %v1625, %v1621
      %v2186 = vpack.c.b16 %v1630, %v1626
      %v2187 = vpack.c.b16 %v1631, %v1627
      %v2188 = vpack.c.b16 %v1632, %v1628
      %v2189 = vpack.c.b16 %v1633, %v1629
      %v2190 = vpack.c.b16 %v1638, %v1634
      %v2191 = vpack.c.b16 %v1639, %v1635
      %v2192 = vpack.c.b16 %v1640, %v1636
      %v2193 = vpack.c.b16 %v1641, %v1637
      %v2194 = vpack.c.b16 %v1646, %v1642
      %v2195 = vpack.c.b16 %v1647, %v1643
      %v2196 = vpack.c.b16 %v1648, %v1644
      %v2197 = vpack.c.b16 %v1649, %v1645
      %v2198 = vpack.c.b16 %v1654, %v1650
      %v2199 = vpack.c.b16 %v1655, %v1651
      %v2200 = vpack.c.b16 %v1656, %v1652
      %v2201 = vpack.c.b16 %v1657, %v1653
      %v2202 = vpack.c.b16 %v1662, %v1658
      %v2203 = vpack.c.b16 %v1663, %v1659
      %v2204 = vpack.c.b16 %v1664, %v1660
      %v2205 = vpack.c.b16 %v1665, %v1661
      %v2206 = vpack.c.b16 %v1670, %v1666
      %v2207 = vpack.c.b16 %v1671, %v1667
      %v2208 = vpack.c.b16 %v1672, %v1668
      %v2209 = vpack.c.b16 %v1673, %v1669
      %v2210 = vpack.c.b16 %v1678, %v1674
      %v2211 = vpack.c.b16 %v1679, %v1675
      %v2212 = vpack.c.b16 %v1680, %v1676
      %v2213 = vpack.c.b16 %v1681, %v1677
      %v2214 = vpack.c.b16 %v1686, %v1682
      %v2215 = vpack.c.b16 %v1687, %v1683
      %v2216 = vpack.c.b16 %v1688, %v1684
      %v2217 = vpack.c.b16 %v1689, %v1685
      %v2218 = vpack.c.b16 %v1694, %v1690
      %v2219 = vpack.c.b16 %v1695, %v1691
      %v2220 = vpack.c.b16 %v1696, %v1692
      %v2221 = vpack.c.b16 %v1697, %v1693
      %v2222 = vpack.c.b16 %v1702, %v1698
      %v2223 = vpack.c.b16 %v1703, %v1699
      %v2224 = vpack.c.b16 %v1704, %v1700
      %v2225 = vpack.c.b16 %v1705, %v1701
      %v2226 = vpack.c.b16 %v1710, %v1706
      %v2227 = vpack.c.b16 %v1711, %v1707
      %v2228 = vpack.c.b16 %v1712, %v1708
      %v2229 = vpack.c.b16 %v1713, %v1709
      %v2230 = vpack.c.b16 %v1718, %v1714
      %v2231 = vpack.c.b16 %v1719, %v1715
      %v2232 = vpack.c.b16 %v1720, %v1716
      %v2233 = vpack.c.b16 %v1721, %v1717
      %v2234 = vpack.c.b16 %v1726, %v1722
      %v2235 = vpack.c.b16 %v1727, %v1723
      %v2236 = vpack.c.b16 %v1728, %v1724
      %v2237 = vpack.c.b16 %v1729, %v1725
      %v2238 = vpack.c.b16 %v1734, %v1730
      %v2239 = vpack.c.b16 %v1735, %v1731
      %v2240 = vpack.c.b16 %v1736, %v1732
      %v2241 = vpack.c.b16 %v1737, %v1733
      %v2242 = vpack.c.b16 %v1742, %v1738
      %v2243 = vpack.c.b16 %v1743, %v1739
      %v2244 = vpack.c.b16 %v1744, %v1740
      %v2245 = vpack.c.b16 %v1745, %v1741
      %v2246 = vpack.c.b16 %v1750, %v1746
      %v2247 = vpack.c.b16 %v1751, %v1747
      %v2248 = vpack.c.b16 %v1752, %v1748
      %v2249 = vpack.c.b16 %v1753, %v1749
      %v2250 = vpack.c.b16 %v1758, %v1754
      %v2251 = vpack.c.b16 %v1759, %v1755
      %v2252 = vpack.c.b16 %v1760, %v1756
      %v2253 = vpack.c.b16 %v1761, %v1757
      %v2254 = vpack.c.b16 %v1766, %v1762
      %v2255 = vpack.c.b16 %v1767, %v1763
      %v2256 = vpack.c.b16 %v1768, %v1764
      %v2257 = vpack.c.b16 %v1769, %v1765
      %v2258 = vpack.c.b16 %v1774, %v1770
      %v2259 = vpack.c.b16 %v1775, %v1771
      %v2260 = vpack.c.b16 %v1776, %v1772
      %v2261 = vpack.c.b16 %v1777, %v1773
      %v2262 = vpack.c.b16 %v1782, %v1778
      %v2263 = vpack.c.b16 %v1783, %v1779
      %v2264 = vpack.c.b16 %v1784, %v1780
      %v2265 = vpack.c.b16 %v1785, %v1781
      %v2266 = vpack.c.b16 %v1790, %v1786
      %v2267 = vpack.c.b16 %v1791, %v1787
      %v2268 = vpack.c.b16 %v1792, %v1788
      %v2269 = vpack.c.b16 %v1793, %v1789
      %v2270 = vpack.c.b16 %v1798, %v1794
      %v2271 = vpack.c.b16 %v1799, %v1795
      %v2272 = vpack.c.b16 %v1800, %v1796
      %v2273 = vpack.c.b16 %v1801, %v1797
      %v2274 = vpack.c.b16 %v1806, %v1802
      %v2275 = vpack.c.b16 %v1807, %v1803
      %v2276 = vpack.c.b16 %v1808, %v1804
      %v2277 = vpack.c.b16 %v1809, %v1805
      %v2278 = vpack.c.b16 %v1814, %v1810
      %v2279 = vpack.c.b16 %v1815, %v1811
      %v2280 = vpack.c.b16 %v1816, %v1812
      %v2281 = vpack.c.b16 %v1817, %v1813
      %v2282 = vpack.c.b16 %v1822, %v1818
      %v2283 = vpack.c.b16 %v1823, %v1819
      %v2284 = vpack.c.b16 %v1824, %v1820
      %v2285 = vpack.c.b16 %v1825, %v1821
      %v2286 = vpack.c.b16 %v1830, %v1826
      %v2287 = vpack.c.b16 %v1831, %v1827
      %v2288 = vpack.c.b16 %v1832, %v1828
      %v2289 = vpack.c.b16 %v1833, %v1829
      %v2290 = vpack.c.b16 %v1838, %v1834
      %v2291 = vpack.c.b16 %v1839, %v1835
      %v2292 = vpack.c.b16 %v1840, %v1836
      %v2293 = vpack.c.b16 %v1841, %v1837
      %v2294 = vpack.c.b16 %v1846, %v1842
      %v2295 = vpack.c.b16 %v1847, %v1843
      %v2296 = vpack.c.b16 %v1848, %v1844
      %v2297 = vpack.c.b16 %v1849, %v1845
      %v2298 = vpack.c.b16 %v1854, %v1850
      %v2299 = vpack.c.b16 %v1855, %v1851
      %v2300 = vpack.c.b16 %v1856, %v1852
      %v2301 = vpack.c.b16 %v1857, %v1853
      %v2302 = vpack.c.b16 %v1862, %v1858
      %v2303 = vpack.c.b16 %v1863, %v1859
      %v2304 = vpack.c.b16 %v1864, %v1860
      %v2305 = vpack.c.b16 %v1865, %v1861
      %v2306 = vpack.c.b16 %v1870, %v1866
      %v2307 = vpack.c.b16 %v1871, %v1867
      %v2308 = vpack.c.b16 %v1872, %v1868
      %v2309 = vpack.c.b16 %v1873, %v1869
      %v2310 = vpack.c.b16 %v1878, %v1874
      %v2311 = vpack.c.b16 %v1879, %v1875
      %v2312 = vpack.c.b16 %v1880, %v1876
      %v2313 = vpack.c.b16 %v1881, %v1877
      %v2314 = vpack.c.b16 %v1886, %v1882
      %v2315 = vpack.c.b16 %v1887, %v1883
      %v2316 = vpack.c.b16 %v1888, %v1884
      %v2317 = vpack.c.b16 %v1889, %v1885
      %v2318 = vpack.c.b16 %v1894, %v1890
      %v2319 = vpack.c.b16 %v1895, %v1891
      %v2320 = vpack.c.b16 %v1896, %v1892
      %v2321 = vpack.c.b16 %v1897, %v1893
      %v2322 = vpack.c.b16 %v1902, %v1898
      %v2323 = vpack.c.b16 %v1903, %v1899
      %v2324 = vpack.c.b16 %v1904, %v1900
      %v2325 = vpack.c.b16 %v1905, %v1901
      %v2326 = vpack.c.b16 %v1910, %v1906
      %v2327 = vpack.c.b16 %v1911, %v1907
      %v2328 = vpack.c.b16 %v1912, %v1908
      %v2329 = vpack.c.b16 %v1913, %v1909
      %v2330 = vpack.c.b16 %v1918, %v1914
      %v2331 = vpack.c.b16 %v1919, %v1915
      %v2332 = vpack.c.b16 %v1920, %v1916
      %v2333 = vpack.c.b16 %v1921, %v1917
      %v2334 = vpack.c.b16 %v1926, %v1922
      %v2335 = vpack.c.b16 %v1927, %v1923
      %v2336 = vpack.c.b16 %v1928, %v1924
      %v2337 = vpack.c.b16 %v1929, %v1925
      %v2338 = vpack.c.b16 %v1934, %v1930
      %v2339 = vpack.c.b16 %v1935, %v1931
      %v2340 = vpack.c.b16 %v1936, %v1932
      %v2341 = vpack.c.b16 %v1937, %v1933
      %v2342 = vpack.c.b16 %v1942, %v1938
      %v2343 = vpack.c.b16 %v1943, %v1939
      %v2344 = vpack.c.b16 %v1944, %v1940
      %v2345 = vpack.c.b16 %v1945, %v1941
      %v2346 = vpack.c.b16 %v1950, %v1946
      %v2347 = vpack.c.b16 %v1951, %v1947
      %v2348 = vpack.c.b16 %v1952, %v1948
      %v2349 = vpack.c.b16 %v1953, %v1949
      %v2350 = vpack.c.b16 %v1958, %v1954
      %v2351 = vpack.c.b16 %v1959, %v1955
      %v2352 = vpack.c.b16 %v1960, %v1956
      %v2353 = vpack.c.b16 %v1961, %v1957
      %vm2746 = vcmask 261120
      %v2748 = vsel %vm2746, %v773, 0
      %2750 = vmatpush.bf16.msra.mxu0 %v1990
      %2751 = vmatpush.bf16.msra.mxu0 %v1986
      %2752 = vmatpush.bf16.msra.mxu0 %v1982
      %2753 = vmatpush.bf16.msra.mxu0 %v1978
      %2754 = vmatpush.bf16.msra.mxu0 %v1974
      %2755 = vmatpush.bf16.msra.mxu0 %v1970
      %2756 = vmatpush.bf16.msra.mxu0 %v1966
      %2757 = vmatpush.bf16.msra.mxu0 %v1962
      %2758 = vmatmul.bf16.gmra.mxu0 %v761
      %v2759 = vpop.f32.mrf.mxu0
      %v2760 = vadd.f32 %v733, %v2759
      %v2761 = vpop.f32.mrf.mxu0
      %2762 = vdwg.mxu0
      %2763 = vmatpush.bf16.msra.mxu0 %v2022
      %2764 = vmatpush.bf16.msra.mxu0 %v2018
      %2765 = vmatpush.bf16.msra.mxu0 %v2014
      %2766 = vmatpush.bf16.msra.mxu0 %v2010
      %2767 = vmatpush.bf16.msra.mxu0 %v2006
      %2768 = vmatpush.bf16.msra.mxu0 %v2002
      %2769 = vmatpush.bf16.msra.mxu0 %v1998
      %2770 = vmatpush.bf16.msra.mxu0 %v1994
      %2771 = vmatmul.bf16.gmra.mxu0 %v762
      %v2772 = vpop.f32.mrf.mxu0
      %v2773 = vadd.f32 %v2760, %v2772
      %v2774 = vpop.f32.mrf.mxu0
      %2775 = vdwg.mxu0
      %2776 = vmatpush.bf16.msra.mxu0 %v2054
      %2777 = vmatpush.bf16.msra.mxu0 %v2050
      %2778 = vmatpush.bf16.msra.mxu0 %v2046
      %2779 = vmatpush.bf16.msra.mxu0 %v2042
      %2780 = vmatpush.bf16.msra.mxu0 %v2038
      %2781 = vmatpush.bf16.msra.mxu0 %v2034
      %2782 = vmatpush.bf16.msra.mxu0 %v2030
      %2783 = vmatpush.bf16.msra.mxu0 %v2026
      %2784 = vmatmul.bf16.gmra.mxu0 %v763
      %v2785 = vpop.f32.mrf.mxu0
      %v2786 = vadd.f32 %v2773, %v2785
      %v2787 = vpop.f32.mrf.mxu0
      %2788 = vdwg.mxu0
      %2789 = vmatpush.bf16.msra.mxu0 %v2086
      %2790 = vmatpush.bf16.msra.mxu0 %v2082
      %2791 = vmatpush.bf16.msra.mxu0 %v2078
      %2792 = vmatpush.bf16.msra.mxu0 %v2074
      %2793 = vmatpush.bf16.msra.mxu0 %v2070
      %2794 = vmatpush.bf16.msra.mxu0 %v2066
      %2795 = vmatpush.bf16.msra.mxu0 %v2062
      %2796 = vmatpush.bf16.msra.mxu0 %v2058
      %2797 = vmatmul.bf16.gmra.mxu0 %v764
      %v2798 = vpop.f32.mrf.mxu0
      %v2799 = vadd.f32 %v2786, %v2798
      %v2800 = vpop.f32.mrf.mxu0
      %2801 = vdwg.mxu0
      %2802 = vmatpush.bf16.msra.mxu0 %v2118
      %2803 = vmatpush.bf16.msra.mxu0 %v2114
      %2804 = vmatpush.bf16.msra.mxu0 %v2110
      %2805 = vmatpush.bf16.msra.mxu0 %v2106
      %2806 = vmatpush.bf16.msra.mxu0 %v2102
      %2807 = vmatpush.bf16.msra.mxu0 %v2098
      %2808 = vmatpush.bf16.msra.mxu0 %v2094
      %2809 = vmatpush.bf16.msra.mxu0 %v2090
      %2810 = vmatmul.bf16.gmra.mxu0 %v765
      %v2811 = vpop.f32.mrf.mxu0
      %v2812 = vadd.f32 %v2799, %v2811
      %v2813 = vpop.f32.mrf.mxu0
      %2814 = vdwg.mxu0
      %2815 = vmatpush.bf16.msra.mxu0 %v2150
      %2816 = vmatpush.bf16.msra.mxu0 %v2146
      %2817 = vmatpush.bf16.msra.mxu0 %v2142
      %2818 = vmatpush.bf16.msra.mxu0 %v2138
      %2819 = vmatpush.bf16.msra.mxu0 %v2134
      %2820 = vmatpush.bf16.msra.mxu0 %v2130
      %2821 = vmatpush.bf16.msra.mxu0 %v2126
      %2822 = vmatpush.bf16.msra.mxu0 %v2122
      %2823 = vmatmul.bf16.gmra.mxu0 %v766
      %v2824 = vpop.f32.mrf.mxu0
      %v2825 = vadd.f32 %v2812, %v2824
      %v2826 = vpop.f32.mrf.mxu0
      %2827 = vdwg.mxu0
      %2828 = vmatpush.bf16.msra.mxu0 %v2182
      %2829 = vmatpush.bf16.msra.mxu0 %v2178
      %2830 = vmatpush.bf16.msra.mxu0 %v2174
      %2831 = vmatpush.bf16.msra.mxu0 %v2170
      %2832 = vmatpush.bf16.msra.mxu0 %v2166
      %2833 = vmatpush.bf16.msra.mxu0 %v2162
      %2834 = vmatpush.bf16.msra.mxu0 %v2158
      %2835 = vmatpush.bf16.msra.mxu0 %v2154
      %2836 = vmatmul.bf16.gmra.mxu0 %v767
      %v2837 = vpop.f32.mrf.mxu0
      %v2838 = vadd.f32 %v2825, %v2837
      %v2839 = vpop.f32.mrf.mxu0
      %2840 = vdwg.mxu0
      %2841 = vmatpush.bf16.msra.mxu0 %v2214
      %2842 = vmatpush.bf16.msra.mxu0 %v2210
      %2843 = vmatpush.bf16.msra.mxu0 %v2206
      %2844 = vmatpush.bf16.msra.mxu0 %v2202
      %2845 = vmatpush.bf16.msra.mxu0 %v2198
      %2846 = vmatpush.bf16.msra.mxu0 %v2194
      %2847 = vmatpush.bf16.msra.mxu0 %v2190
      %2848 = vmatpush.bf16.msra.mxu0 %v2186
      %2849 = vmatmul.bf16.gmra.mxu0 %v768
      %v2850 = vpop.f32.mrf.mxu0
      %v2851 = vadd.f32 %v2838, %v2850
      %v2852 = vpop.f32.mrf.mxu0
      %2853 = vdwg.mxu0
      %2854 = vmatpush.bf16.msra.mxu0 %v2246
      %2855 = vmatpush.bf16.msra.mxu0 %v2242
      %2856 = vmatpush.bf16.msra.mxu0 %v2238
      %2857 = vmatpush.bf16.msra.mxu0 %v2234
      %2858 = vmatpush.bf16.msra.mxu0 %v2230
      %2859 = vmatpush.bf16.msra.mxu0 %v2226
      %2860 = vmatpush.bf16.msra.mxu0 %v2222
      %2861 = vmatpush.bf16.msra.mxu0 %v2218
      %2862 = vmatmul.bf16.gmra.mxu0 %v769
      %v2863 = vpop.f32.mrf.mxu0
      %v2864 = vadd.f32 %v2851, %v2863
      %v2865 = vpop.f32.mrf.mxu0
      %2866 = vdwg.mxu0
      %2867 = vmatpush.bf16.msra.mxu0 %v2278
      %2868 = vmatpush.bf16.msra.mxu0 %v2274
      %2869 = vmatpush.bf16.msra.mxu0 %v2270
      %2870 = vmatpush.bf16.msra.mxu0 %v2266
      %2871 = vmatpush.bf16.msra.mxu0 %v2262
      %2872 = vmatpush.bf16.msra.mxu0 %v2258
      %2873 = vmatpush.bf16.msra.mxu0 %v2254
      %2874 = vmatpush.bf16.msra.mxu0 %v2250
      %2875 = vmatmul.bf16.gmra.mxu0 %v770
      %v2876 = vpop.f32.mrf.mxu0
      %v2877 = vadd.f32 %v2864, %v2876
      %v2878 = vpop.f32.mrf.mxu0
      %2879 = vdwg.mxu0
      %2880 = vmatpush.bf16.msra.mxu0 %v2310
      %2881 = vmatpush.bf16.msra.mxu0 %v2306
      %2882 = vmatpush.bf16.msra.mxu0 %v2302
      %2883 = vmatpush.bf16.msra.mxu0 %v2298
      %2884 = vmatpush.bf16.msra.mxu0 %v2294
      %2885 = vmatpush.bf16.msra.mxu0 %v2290
      %2886 = vmatpush.bf16.msra.mxu0 %v2286
      %2887 = vmatpush.bf16.msra.mxu0 %v2282
      %2888 = vmatmul.bf16.gmra.mxu0 %v771
      %v2889 = vpop.f32.mrf.mxu0
      %v2890 = vadd.f32 %v2877, %v2889
      %v2891 = vpop.f32.mrf.mxu0
      %2892 = vdwg.mxu0
      %2893 = vmatpush.bf16.msra.mxu0 %v2342
      %2894 = vmatpush.bf16.msra.mxu0 %v2338
      %2895 = vmatpush.bf16.msra.mxu0 %v2334
      %2896 = vmatpush.bf16.msra.mxu0 %v2330
      %2897 = vmatpush.bf16.msra.mxu0 %v2326
      %2898 = vmatpush.bf16.msra.mxu0 %v2322
      %2899 = vmatpush.bf16.msra.mxu0 %v2318
      %2900 = vmatpush.bf16.msra.mxu0 %v2314
      %2901 = vmatmul.bf16.gmra.mxu0 %v772
      %v2902 = vpop.f32.mrf.mxu0
      %v2903 = vadd.f32 %v2890, %v2902
      %v2904 = vpop.f32.mrf.mxu0
      %2905 = vdwg.mxu0
      %2906 = vmatpush.bf16.msra.mxu0 0
      %2907 = vmatpush.bf16.msra.mxu0 0
      %2908 = vmatpush.bf16.msra.mxu0 0
      %2909 = vmatpush.bf16.msra.mxu0 0
      %2910 = vmatpush.bf16.msra.mxu0 0
      %2911 = vmatpush.bf16.msra.mxu0 0
      %2912 = vmatpush.bf16.msra.mxu0 %v2350
      %2913 = vmatpush.bf16.msra.mxu0 %v2346
      %2914 = vmatmul.bf16.gmra.mxu0 %v2748
      %v2915 = vpop.f32.mrf.mxu0
      %v2916 = vadd.f32 %v2903, %v2915
      %v2917 = vpop.f32.mrf.mxu0
      %2918 = vdwg.mxu0
      %2919 = vmatpush.bf16.msra.mxu0 %v1991
      %2920 = vmatpush.bf16.msra.mxu0 %v1987
      %2921 = vmatpush.bf16.msra.mxu0 %v1983
      %2922 = vmatpush.bf16.msra.mxu0 %v1979
      %2923 = vmatpush.bf16.msra.mxu0 %v1975
      %2924 = vmatpush.bf16.msra.mxu0 %v1971
      %2925 = vmatpush.bf16.msra.mxu0 %v1967
      %2926 = vmatpush.bf16.msra.mxu0 %v1963
      %2927 = vmatmul.bf16.gmra.mxu0 %v761
      %v2928 = vpop.f32.mrf.mxu0
      %v2929 = vadd.f32 %v734, %v2928
      %v2930 = vpop.f32.mrf.mxu0
      %2931 = vdwg.mxu0
      %2932 = vmatpush.bf16.msra.mxu0 %v2023
      %2933 = vmatpush.bf16.msra.mxu0 %v2019
      %2934 = vmatpush.bf16.msra.mxu0 %v2015
      %2935 = vmatpush.bf16.msra.mxu0 %v2011
      %2936 = vmatpush.bf16.msra.mxu0 %v2007
      %2937 = vmatpush.bf16.msra.mxu0 %v2003
      %2938 = vmatpush.bf16.msra.mxu0 %v1999
      %2939 = vmatpush.bf16.msra.mxu0 %v1995
      %2940 = vmatmul.bf16.gmra.mxu0 %v762
      %v2941 = vpop.f32.mrf.mxu0
      %v2942 = vadd.f32 %v2929, %v2941
      %v2943 = vpop.f32.mrf.mxu0
      %2944 = vdwg.mxu0
      %2945 = vmatpush.bf16.msra.mxu0 %v2055
      %2946 = vmatpush.bf16.msra.mxu0 %v2051
      %2947 = vmatpush.bf16.msra.mxu0 %v2047
      %2948 = vmatpush.bf16.msra.mxu0 %v2043
      %2949 = vmatpush.bf16.msra.mxu0 %v2039
      %2950 = vmatpush.bf16.msra.mxu0 %v2035
      %2951 = vmatpush.bf16.msra.mxu0 %v2031
      %2952 = vmatpush.bf16.msra.mxu0 %v2027
      %2953 = vmatmul.bf16.gmra.mxu0 %v763
      %v2954 = vpop.f32.mrf.mxu0
      %v2955 = vadd.f32 %v2942, %v2954
      %v2956 = vpop.f32.mrf.mxu0
      %2957 = vdwg.mxu0
      %2958 = vmatpush.bf16.msra.mxu0 %v2087
      %2959 = vmatpush.bf16.msra.mxu0 %v2083
      %2960 = vmatpush.bf16.msra.mxu0 %v2079
      %2961 = vmatpush.bf16.msra.mxu0 %v2075
      %2962 = vmatpush.bf16.msra.mxu0 %v2071
      %2963 = vmatpush.bf16.msra.mxu0 %v2067
      %2964 = vmatpush.bf16.msra.mxu0 %v2063
      %2965 = vmatpush.bf16.msra.mxu0 %v2059
      %2966 = vmatmul.bf16.gmra.mxu0 %v764
      %v2967 = vpop.f32.mrf.mxu0
      %v2968 = vadd.f32 %v2955, %v2967
      %v2969 = vpop.f32.mrf.mxu0
      %2970 = vdwg.mxu0
      %2971 = vmatpush.bf16.msra.mxu0 %v2119
      %2972 = vmatpush.bf16.msra.mxu0 %v2115
      %2973 = vmatpush.bf16.msra.mxu0 %v2111
      %2974 = vmatpush.bf16.msra.mxu0 %v2107
      %2975 = vmatpush.bf16.msra.mxu0 %v2103
      %2976 = vmatpush.bf16.msra.mxu0 %v2099
      %2977 = vmatpush.bf16.msra.mxu0 %v2095
      %2978 = vmatpush.bf16.msra.mxu0 %v2091
      %2979 = vmatmul.bf16.gmra.mxu0 %v765
      %v2980 = vpop.f32.mrf.mxu0
      %v2981 = vadd.f32 %v2968, %v2980
      %v2982 = vpop.f32.mrf.mxu0
      %2983 = vdwg.mxu0
      %2984 = vmatpush.bf16.msra.mxu0 %v2151
      %2985 = vmatpush.bf16.msra.mxu0 %v2147
      %2986 = vmatpush.bf16.msra.mxu0 %v2143
      %2987 = vmatpush.bf16.msra.mxu0 %v2139
      %2988 = vmatpush.bf16.msra.mxu0 %v2135
      %2989 = vmatpush.bf16.msra.mxu0 %v2131
      %2990 = vmatpush.bf16.msra.mxu0 %v2127
      %2991 = vmatpush.bf16.msra.mxu0 %v2123
      %2992 = vmatmul.bf16.gmra.mxu0 %v766
      %v2993 = vpop.f32.mrf.mxu0
      %v2994 = vadd.f32 %v2981, %v2993
      %v2995 = vpop.f32.mrf.mxu0
      %2996 = vdwg.mxu0
      %2997 = vmatpush.bf16.msra.mxu0 %v2183
      %2998 = vmatpush.bf16.msra.mxu0 %v2179
      %2999 = vmatpush.bf16.msra.mxu0 %v2175
      %3000 = vmatpush.bf16.msra.mxu0 %v2171
      %3001 = vmatpush.bf16.msra.mxu0 %v2167
      %3002 = vmatpush.bf16.msra.mxu0 %v2163
      %3003 = vmatpush.bf16.msra.mxu0 %v2159
      %3004 = vmatpush.bf16.msra.mxu0 %v2155
      %3005 = vmatmul.bf16.gmra.mxu0 %v767
      %v3006 = vpop.f32.mrf.mxu0
      %v3007 = vadd.f32 %v2994, %v3006
      %v3008 = vpop.f32.mrf.mxu0
      %3009 = vdwg.mxu0
      %3010 = vmatpush.bf16.msra.mxu0 %v2215
      %3011 = vmatpush.bf16.msra.mxu0 %v2211
      %3012 = vmatpush.bf16.msra.mxu0 %v2207
      %3013 = vmatpush.bf16.msra.mxu0 %v2203
      %3014 = vmatpush.bf16.msra.mxu0 %v2199
      %3015 = vmatpush.bf16.msra.mxu0 %v2195
      %3016 = vmatpush.bf16.msra.mxu0 %v2191
      %3017 = vmatpush.bf16.msra.mxu0 %v2187
      %3018 = vmatmul.bf16.gmra.mxu0 %v768
      %v3019 = vpop.f32.mrf.mxu0
      %v3020 = vadd.f32 %v3007, %v3019
      %v3021 = vpop.f32.mrf.mxu0
      %3022 = vdwg.mxu0
      %3023 = vmatpush.bf16.msra.mxu0 %v2247
      %3024 = vmatpush.bf16.msra.mxu0 %v2243
      %3025 = vmatpush.bf16.msra.mxu0 %v2239
      %3026 = vmatpush.bf16.msra.mxu0 %v2235
      %3027 = vmatpush.bf16.msra.mxu0 %v2231
      %3028 = vmatpush.bf16.msra.mxu0 %v2227
      %3029 = vmatpush.bf16.msra.mxu0 %v2223
      %3030 = vmatpush.bf16.msra.mxu0 %v2219
      %3031 = vmatmul.bf16.gmra.mxu0 %v769
      %v3032 = vpop.f32.mrf.mxu0
      %v3033 = vadd.f32 %v3020, %v3032
      %v3034 = vpop.f32.mrf.mxu0
      %3035 = vdwg.mxu0
      %3036 = vmatpush.bf16.msra.mxu0 %v2279
      %3037 = vmatpush.bf16.msra.mxu0 %v2275
      %3038 = vmatpush.bf16.msra.mxu0 %v2271
      %3039 = vmatpush.bf16.msra.mxu0 %v2267
      %3040 = vmatpush.bf16.msra.mxu0 %v2263
      %3041 = vmatpush.bf16.msra.mxu0 %v2259
      %3042 = vmatpush.bf16.msra.mxu0 %v2255
      %3043 = vmatpush.bf16.msra.mxu0 %v2251
      %3044 = vmatmul.bf16.gmra.mxu0 %v770
      %v3045 = vpop.f32.mrf.mxu0
      %v3046 = vadd.f32 %v3033, %v3045
      %v3047 = vpop.f32.mrf.mxu0
      %3048 = vdwg.mxu0
      %3049 = vmatpush.bf16.msra.mxu0 %v2311
      %3050 = vmatpush.bf16.msra.mxu0 %v2307
      %3051 = vmatpush.bf16.msra.mxu0 %v2303
      %3052 = vmatpush.bf16.msra.mxu0 %v2299
      %3053 = vmatpush.bf16.msra.mxu0 %v2295
      %3054 = vmatpush.bf16.msra.mxu0 %v2291
      %3055 = vmatpush.bf16.msra.mxu0 %v2287
      %3056 = vmatpush.bf16.msra.mxu0 %v2283
      %3057 = vmatmul.bf16.gmra.mxu0 %v771
      %v3058 = vpop.f32.mrf.mxu0
      %v3059 = vadd.f32 %v3046, %v3058
      %v3060 = vpop.f32.mrf.mxu0
      %3061 = vdwg.mxu0
      %3062 = vmatpush.bf16.msra.mxu0 %v2343
      %3063 = vmatpush.bf16.msra.mxu0 %v2339
      %3064 = vmatpush.bf16.msra.mxu0 %v2335
      %3065 = vmatpush.bf16.msra.mxu0 %v2331
      %3066 = vmatpush.bf16.msra.mxu0 %v2327
      %3067 = vmatpush.bf16.msra.mxu0 %v2323
      %3068 = vmatpush.bf16.msra.mxu0 %v2319
      %3069 = vmatpush.bf16.msra.mxu0 %v2315
      %3070 = vmatmul.bf16.gmra.mxu0 %v772
      %v3071 = vpop.f32.mrf.mxu0
      %v3072 = vadd.f32 %v3059, %v3071
      %v3073 = vpop.f32.mrf.mxu0
      %3074 = vdwg.mxu0
      %3075 = vmatpush.bf16.msra.mxu0 0
      %3076 = vmatpush.bf16.msra.mxu0 0
      %3077 = vmatpush.bf16.msra.mxu0 0
      %3078 = vmatpush.bf16.msra.mxu0 0
      %3079 = vmatpush.bf16.msra.mxu0 0
      %3080 = vmatpush.bf16.msra.mxu0 0
      %3081 = vmatpush.bf16.msra.mxu0 %v2351
      %3082 = vmatpush.bf16.msra.mxu0 %v2347
      %3083 = vmatmul.bf16.gmra.mxu0 %v2748
      %v3084 = vpop.f32.mrf.mxu0
      %v3085 = vadd.f32 %v3072, %v3084
      %v3086 = vpop.f32.mrf.mxu0
      %3087 = vdwg.mxu0
      %3088 = vmatpush.bf16.msra.mxu0 %v1992
      %3089 = vmatpush.bf16.msra.mxu0 %v1988
      %3090 = vmatpush.bf16.msra.mxu0 %v1984
      %3091 = vmatpush.bf16.msra.mxu0 %v1980
      %3092 = vmatpush.bf16.msra.mxu0 %v1976
      %3093 = vmatpush.bf16.msra.mxu0 %v1972
      %3094 = vmatpush.bf16.msra.mxu0 %v1968
      %3095 = vmatpush.bf16.msra.mxu0 %v1964
      %3096 = vmatmul.bf16.gmra.mxu0 %v761
      %v3097 = vpop.f32.mrf.mxu0
      %v3098 = vadd.f32 %v735, %v3097
      %v3099 = vpop.f32.mrf.mxu0
      %3100 = vdwg.mxu0
      %3101 = vmatpush.bf16.msra.mxu0 %v2024
      %3102 = vmatpush.bf16.msra.mxu0 %v2020
      %3103 = vmatpush.bf16.msra.mxu0 %v2016
      %3104 = vmatpush.bf16.msra.mxu0 %v2012
      %3105 = vmatpush.bf16.msra.mxu0 %v2008
      %3106 = vmatpush.bf16.msra.mxu0 %v2004
      %3107 = vmatpush.bf16.msra.mxu0 %v2000
      %3108 = vmatpush.bf16.msra.mxu0 %v1996
      %3109 = vmatmul.bf16.gmra.mxu0 %v762
      %v3110 = vpop.f32.mrf.mxu0
      %v3111 = vadd.f32 %v3098, %v3110
      %v3112 = vpop.f32.mrf.mxu0
      %3113 = vdwg.mxu0
      %3114 = vmatpush.bf16.msra.mxu0 %v2056
      %3115 = vmatpush.bf16.msra.mxu0 %v2052
      %3116 = vmatpush.bf16.msra.mxu0 %v2048
      %3117 = vmatpush.bf16.msra.mxu0 %v2044
      %3118 = vmatpush.bf16.msra.mxu0 %v2040
      %3119 = vmatpush.bf16.msra.mxu0 %v2036
      %3120 = vmatpush.bf16.msra.mxu0 %v2032
      %3121 = vmatpush.bf16.msra.mxu0 %v2028
      %3122 = vmatmul.bf16.gmra.mxu0 %v763
      %v3123 = vpop.f32.mrf.mxu0
      %v3124 = vadd.f32 %v3111, %v3123
      %v3125 = vpop.f32.mrf.mxu0
      %3126 = vdwg.mxu0
      %3127 = vmatpush.bf16.msra.mxu0 %v2088
      %3128 = vmatpush.bf16.msra.mxu0 %v2084
      %3129 = vmatpush.bf16.msra.mxu0 %v2080
      %3130 = vmatpush.bf16.msra.mxu0 %v2076
      %3131 = vmatpush.bf16.msra.mxu0 %v2072
      %3132 = vmatpush.bf16.msra.mxu0 %v2068
      %3133 = vmatpush.bf16.msra.mxu0 %v2064
      %3134 = vmatpush.bf16.msra.mxu0 %v2060
      %3135 = vmatmul.bf16.gmra.mxu0 %v764
      %v3136 = vpop.f32.mrf.mxu0
      %v3137 = vadd.f32 %v3124, %v3136
      %v3138 = vpop.f32.mrf.mxu0
      %3139 = vdwg.mxu0
      %3140 = vmatpush.bf16.msra.mxu0 %v2120
      %3141 = vmatpush.bf16.msra.mxu0 %v2116
      %3142 = vmatpush.bf16.msra.mxu0 %v2112
      %3143 = vmatpush.bf16.msra.mxu0 %v2108
      %3144 = vmatpush.bf16.msra.mxu0 %v2104
      %3145 = vmatpush.bf16.msra.mxu0 %v2100
      %3146 = vmatpush.bf16.msra.mxu0 %v2096
      %3147 = vmatpush.bf16.msra.mxu0 %v2092
      %3148 = vmatmul.bf16.gmra.mxu0 %v765
      %v3149 = vpop.f32.mrf.mxu0
      %v3150 = vadd.f32 %v3137, %v3149
      %v3151 = vpop.f32.mrf.mxu0
      %3152 = vdwg.mxu0
      %3153 = vmatpush.bf16.msra.mxu0 %v2152
      %3154 = vmatpush.bf16.msra.mxu0 %v2148
      %3155 = vmatpush.bf16.msra.mxu0 %v2144
      %3156 = vmatpush.bf16.msra.mxu0 %v2140
      %3157 = vmatpush.bf16.msra.mxu0 %v2136
      %3158 = vmatpush.bf16.msra.mxu0 %v2132
      %3159 = vmatpush.bf16.msra.mxu0 %v2128
      %3160 = vmatpush.bf16.msra.mxu0 %v2124
      %3161 = vmatmul.bf16.gmra.mxu0 %v766
      %v3162 = vpop.f32.mrf.mxu0
      %v3163 = vadd.f32 %v3150, %v3162
      %v3164 = vpop.f32.mrf.mxu0
      %3165 = vdwg.mxu0
      %3166 = vmatpush.bf16.msra.mxu0 %v2184
      %3167 = vmatpush.bf16.msra.mxu0 %v2180
      %3168 = vmatpush.bf16.msra.mxu0 %v2176
      %3169 = vmatpush.bf16.msra.mxu0 %v2172
      %3170 = vmatpush.bf16.msra.mxu0 %v2168
      %3171 = vmatpush.bf16.msra.mxu0 %v2164
      %3172 = vmatpush.bf16.msra.mxu0 %v2160
      %3173 = vmatpush.bf16.msra.mxu0 %v2156
      %3174 = vmatmul.bf16.gmra.mxu0 %v767
      %v3175 = vpop.f32.mrf.mxu0
      %v3176 = vadd.f32 %v3163, %v3175
      %v3177 = vpop.f32.mrf.mxu0
      %3178 = vdwg.mxu0
      %3179 = vmatpush.bf16.msra.mxu0 %v2216
      %3180 = vmatpush.bf16.msra.mxu0 %v2212
      %3181 = vmatpush.bf16.msra.mxu0 %v2208
      %3182 = vmatpush.bf16.msra.mxu0 %v2204
      %3183 = vmatpush.bf16.msra.mxu0 %v2200
      %3184 = vmatpush.bf16.msra.mxu0 %v2196
      %3185 = vmatpush.bf16.msra.mxu0 %v2192
      %3186 = vmatpush.bf16.msra.mxu0 %v2188
      %3187 = vmatmul.bf16.gmra.mxu0 %v768
      %v3188 = vpop.f32.mrf.mxu0
      %v3189 = vadd.f32 %v3176, %v3188
      %v3190 = vpop.f32.mrf.mxu0
      %3191 = vdwg.mxu0
      %3192 = vmatpush.bf16.msra.mxu0 %v2248
      %3193 = vmatpush.bf16.msra.mxu0 %v2244
      %3194 = vmatpush.bf16.msra.mxu0 %v2240
      %3195 = vmatpush.bf16.msra.mxu0 %v2236
      %3196 = vmatpush.bf16.msra.mxu0 %v2232
      %3197 = vmatpush.bf16.msra.mxu0 %v2228
      %3198 = vmatpush.bf16.msra.mxu0 %v2224
      %3199 = vmatpush.bf16.msra.mxu0 %v2220
      %3200 = vmatmul.bf16.gmra.mxu0 %v769
      %v3201 = vpop.f32.mrf.mxu0
      %v3202 = vadd.f32 %v3189, %v3201
      %v3203 = vpop.f32.mrf.mxu0
      %3204 = vdwg.mxu0
      %3205 = vmatpush.bf16.msra.mxu0 %v2280
      %3206 = vmatpush.bf16.msra.mxu0 %v2276
      %3207 = vmatpush.bf16.msra.mxu0 %v2272
      %3208 = vmatpush.bf16.msra.mxu0 %v2268
      %3209 = vmatpush.bf16.msra.mxu0 %v2264
      %3210 = vmatpush.bf16.msra.mxu0 %v2260
      %3211 = vmatpush.bf16.msra.mxu0 %v2256
      %3212 = vmatpush.bf16.msra.mxu0 %v2252
      %3213 = vmatmul.bf16.gmra.mxu0 %v770
      %v3214 = vpop.f32.mrf.mxu0
      %v3215 = vadd.f32 %v3202, %v3214
      %v3216 = vpop.f32.mrf.mxu0
      %3217 = vdwg.mxu0
      %3218 = vmatpush.bf16.msra.mxu0 %v2312
      %3219 = vmatpush.bf16.msra.mxu0 %v2308
      %3220 = vmatpush.bf16.msra.mxu0 %v2304
      %3221 = vmatpush.bf16.msra.mxu0 %v2300
      %3222 = vmatpush.bf16.msra.mxu0 %v2296
      %3223 = vmatpush.bf16.msra.mxu0 %v2292
      %3224 = vmatpush.bf16.msra.mxu0 %v2288
      %3225 = vmatpush.bf16.msra.mxu0 %v2284
      %3226 = vmatmul.bf16.gmra.mxu0 %v771
      %v3227 = vpop.f32.mrf.mxu0
      %v3228 = vadd.f32 %v3215, %v3227
      %v3229 = vpop.f32.mrf.mxu0
      %3230 = vdwg.mxu0
      %3231 = vmatpush.bf16.msra.mxu0 %v2344
      %3232 = vmatpush.bf16.msra.mxu0 %v2340
      %3233 = vmatpush.bf16.msra.mxu0 %v2336
      %3234 = vmatpush.bf16.msra.mxu0 %v2332
      %3235 = vmatpush.bf16.msra.mxu0 %v2328
      %3236 = vmatpush.bf16.msra.mxu0 %v2324
      %3237 = vmatpush.bf16.msra.mxu0 %v2320
      %3238 = vmatpush.bf16.msra.mxu0 %v2316
      %3239 = vmatmul.bf16.gmra.mxu0 %v772
      %v3240 = vpop.f32.mrf.mxu0
      %v3241 = vadd.f32 %v3228, %v3240
      %v3242 = vpop.f32.mrf.mxu0
      %3243 = vdwg.mxu0
      %3244 = vmatpush.bf16.msra.mxu0 0
      %3245 = vmatpush.bf16.msra.mxu0 0
      %3246 = vmatpush.bf16.msra.mxu0 0
      %3247 = vmatpush.bf16.msra.mxu0 0
      %3248 = vmatpush.bf16.msra.mxu0 0
      %3249 = vmatpush.bf16.msra.mxu0 0
      %3250 = vmatpush.bf16.msra.mxu0 %v2352
      %3251 = vmatpush.bf16.msra.mxu0 %v2348
      %3252 = vmatmul.bf16.gmra.mxu0 %v2748
      %v3253 = vpop.f32.mrf.mxu0
      %v3254 = vadd.f32 %v3241, %v3253
      %v3255 = vpop.f32.mrf.mxu0
      %3256 = vdwg.mxu0
      %3257 = vmatpush.bf16.msra.mxu0 %v1993
      %3258 = vmatpush.bf16.msra.mxu0 %v1989
      %3259 = vmatpush.bf16.msra.mxu0 %v1985
      %3260 = vmatpush.bf16.msra.mxu0 %v1981
      %3261 = vmatpush.bf16.msra.mxu0 %v1977
      %3262 = vmatpush.bf16.msra.mxu0 %v1973
      %3263 = vmatpush.bf16.msra.mxu0 %v1969
      %3264 = vmatpush.bf16.msra.mxu0 %v1965
      %3265 = vmatmul.bf16.gmra.mxu0 %v761
      %v3266 = vpop.f32.mrf.mxu0
      %v3267 = vadd.f32 %v736, %v3266
      %v3268 = vpop.f32.mrf.mxu0
      %3269 = vdwg.mxu0
      %3270 = vmatpush.bf16.msra.mxu0 %v2025
      %3271 = vmatpush.bf16.msra.mxu0 %v2021
      %3272 = vmatpush.bf16.msra.mxu0 %v2017
      %3273 = vmatpush.bf16.msra.mxu0 %v2013
      %3274 = vmatpush.bf16.msra.mxu0 %v2009
      %3275 = vmatpush.bf16.msra.mxu0 %v2005
      %3276 = vmatpush.bf16.msra.mxu0 %v2001
      %3277 = vmatpush.bf16.msra.mxu0 %v1997
      %3278 = vmatmul.bf16.gmra.mxu0 %v762
      %v3279 = vpop.f32.mrf.mxu0
      %v3280 = vadd.f32 %v3267, %v3279
      %v3281 = vpop.f32.mrf.mxu0
      %3282 = vdwg.mxu0
      %3283 = vmatpush.bf16.msra.mxu0 %v2057
      %3284 = vmatpush.bf16.msra.mxu0 %v2053
      %3285 = vmatpush.bf16.msra.mxu0 %v2049
      %3286 = vmatpush.bf16.msra.mxu0 %v2045
      %3287 = vmatpush.bf16.msra.mxu0 %v2041
      %3288 = vmatpush.bf16.msra.mxu0 %v2037
      %3289 = vmatpush.bf16.msra.mxu0 %v2033
      %3290 = vmatpush.bf16.msra.mxu0 %v2029
      %3291 = vmatmul.bf16.gmra.mxu0 %v763
      %v3292 = vpop.f32.mrf.mxu0
      %v3293 = vadd.f32 %v3280, %v3292
      %v3294 = vpop.f32.mrf.mxu0
      %3295 = vdwg.mxu0
      %3296 = vmatpush.bf16.msra.mxu0 %v2089
      %3297 = vmatpush.bf16.msra.mxu0 %v2085
      %3298 = vmatpush.bf16.msra.mxu0 %v2081
      %3299 = vmatpush.bf16.msra.mxu0 %v2077
      %3300 = vmatpush.bf16.msra.mxu0 %v2073
      %3301 = vmatpush.bf16.msra.mxu0 %v2069
      %3302 = vmatpush.bf16.msra.mxu0 %v2065
      %3303 = vmatpush.bf16.msra.mxu0 %v2061
      %3304 = vmatmul.bf16.gmra.mxu0 %v764
      %v3305 = vpop.f32.mrf.mxu0
      %v3306 = vadd.f32 %v3293, %v3305
      %v3307 = vpop.f32.mrf.mxu0
      %3308 = vdwg.mxu0
      %3309 = vmatpush.bf16.msra.mxu0 %v2121
      %3310 = vmatpush.bf16.msra.mxu0 %v2117
      %3311 = vmatpush.bf16.msra.mxu0 %v2113
      %3312 = vmatpush.bf16.msra.mxu0 %v2109
      %3313 = vmatpush.bf16.msra.mxu0 %v2105
      %3314 = vmatpush.bf16.msra.mxu0 %v2101
      %3315 = vmatpush.bf16.msra.mxu0 %v2097
      %3316 = vmatpush.bf16.msra.mxu0 %v2093
      %3317 = vmatmul.bf16.gmra.mxu0 %v765
      %v3318 = vpop.f32.mrf.mxu0
      %v3319 = vadd.f32 %v3306, %v3318
      %v3320 = vpop.f32.mrf.mxu0
      %3321 = vdwg.mxu0
      %3322 = vmatpush.bf16.msra.mxu0 %v2153
      %3323 = vmatpush.bf16.msra.mxu0 %v2149
      %3324 = vmatpush.bf16.msra.mxu0 %v2145
      %3325 = vmatpush.bf16.msra.mxu0 %v2141
      %3326 = vmatpush.bf16.msra.mxu0 %v2137
      %3327 = vmatpush.bf16.msra.mxu0 %v2133
      %3328 = vmatpush.bf16.msra.mxu0 %v2129
      %3329 = vmatpush.bf16.msra.mxu0 %v2125
      %3330 = vmatmul.bf16.gmra.mxu0 %v766
      %v3331 = vpop.f32.mrf.mxu0
      %v3332 = vadd.f32 %v3319, %v3331
      %v3333 = vpop.f32.mrf.mxu0
      %3334 = vdwg.mxu0
      %3335 = vmatpush.bf16.msra.mxu0 %v2185
      %3336 = vmatpush.bf16.msra.mxu0 %v2181
      %3337 = vmatpush.bf16.msra.mxu0 %v2177
      %3338 = vmatpush.bf16.msra.mxu0 %v2173
      %3339 = vmatpush.bf16.msra.mxu0 %v2169
      %3340 = vmatpush.bf16.msra.mxu0 %v2165
      %3341 = vmatpush.bf16.msra.mxu0 %v2161
      %3342 = vmatpush.bf16.msra.mxu0 %v2157
      %3343 = vmatmul.bf16.gmra.mxu0 %v767
      %v3344 = vpop.f32.mrf.mxu0
      %v3345 = vadd.f32 %v3332, %v3344
      %v3346 = vpop.f32.mrf.mxu0
      %3347 = vdwg.mxu0
      %3348 = vmatpush.bf16.msra.mxu0 %v2217
      %3349 = vmatpush.bf16.msra.mxu0 %v2213
      %3350 = vmatpush.bf16.msra.mxu0 %v2209
      %3351 = vmatpush.bf16.msra.mxu0 %v2205
      %3352 = vmatpush.bf16.msra.mxu0 %v2201
      %3353 = vmatpush.bf16.msra.mxu0 %v2197
      %3354 = vmatpush.bf16.msra.mxu0 %v2193
      %3355 = vmatpush.bf16.msra.mxu0 %v2189
      %3356 = vmatmul.bf16.gmra.mxu0 %v768
      %v3357 = vpop.f32.mrf.mxu0
      %v3358 = vadd.f32 %v3345, %v3357
      %v3359 = vpop.f32.mrf.mxu0
      %3360 = vdwg.mxu0
      %3361 = vmatpush.bf16.msra.mxu0 %v2249
      %3362 = vmatpush.bf16.msra.mxu0 %v2245
      %3363 = vmatpush.bf16.msra.mxu0 %v2241
      %3364 = vmatpush.bf16.msra.mxu0 %v2237
      %3365 = vmatpush.bf16.msra.mxu0 %v2233
      %3366 = vmatpush.bf16.msra.mxu0 %v2229
      %3367 = vmatpush.bf16.msra.mxu0 %v2225
      %3368 = vmatpush.bf16.msra.mxu0 %v2221
      %3369 = vmatmul.bf16.gmra.mxu0 %v769
      %v3370 = vpop.f32.mrf.mxu0
      %v3371 = vadd.f32 %v3358, %v3370
      %v3372 = vpop.f32.mrf.mxu0
      %3373 = vdwg.mxu0
      %3374 = vmatpush.bf16.msra.mxu0 %v2281
      %3375 = vmatpush.bf16.msra.mxu0 %v2277
      %3376 = vmatpush.bf16.msra.mxu0 %v2273
      %3377 = vmatpush.bf16.msra.mxu0 %v2269
      %3378 = vmatpush.bf16.msra.mxu0 %v2265
      %3379 = vmatpush.bf16.msra.mxu0 %v2261
      %3380 = vmatpush.bf16.msra.mxu0 %v2257
      %3381 = vmatpush.bf16.msra.mxu0 %v2253
      %3382 = vmatmul.bf16.gmra.mxu0 %v770
      %v3383 = vpop.f32.mrf.mxu0
      %v3384 = vadd.f32 %v3371, %v3383
      %v3385 = vpop.f32.mrf.mxu0
      %3386 = vdwg.mxu0
      %3387 = vmatpush.bf16.msra.mxu0 %v2313
      %3388 = vmatpush.bf16.msra.mxu0 %v2309
      %3389 = vmatpush.bf16.msra.mxu0 %v2305
      %3390 = vmatpush.bf16.msra.mxu0 %v2301
      %3391 = vmatpush.bf16.msra.mxu0 %v2297
      %3392 = vmatpush.bf16.msra.mxu0 %v2293
      %3393 = vmatpush.bf16.msra.mxu0 %v2289
      %3394 = vmatpush.bf16.msra.mxu0 %v2285
      %3395 = vmatmul.bf16.gmra.mxu0 %v771
      %v3396 = vpop.f32.mrf.mxu0
      %v3397 = vadd.f32 %v3384, %v3396
      %v3398 = vpop.f32.mrf.mxu0
      %3399 = vdwg.mxu0
      %3400 = vmatpush.bf16.msra.mxu0 %v2345
      %3401 = vmatpush.bf16.msra.mxu0 %v2341
      %3402 = vmatpush.bf16.msra.mxu0 %v2337
      %3403 = vmatpush.bf16.msra.mxu0 %v2333
      %3404 = vmatpush.bf16.msra.mxu0 %v2329
      %3405 = vmatpush.bf16.msra.mxu0 %v2325
      %3406 = vmatpush.bf16.msra.mxu0 %v2321
      %3407 = vmatpush.bf16.msra.mxu0 %v2317
      %3408 = vmatmul.bf16.gmra.mxu0 %v772
      %v3409 = vpop.f32.mrf.mxu0
      %v3410 = vadd.f32 %v3397, %v3409
      %v3411 = vpop.f32.mrf.mxu0
      %3412 = vdwg.mxu0
      %3413 = vmatpush.bf16.msra.mxu0 0
      %3414 = vmatpush.bf16.msra.mxu0 0
      %3415 = vmatpush.bf16.msra.mxu0 0
      %3416 = vmatpush.bf16.msra.mxu0 0
      %3417 = vmatpush.bf16.msra.mxu0 0
      %3418 = vmatpush.bf16.msra.mxu0 0
      %3419 = vmatpush.bf16.msra.mxu0 %v2353
      %3420 = vmatpush.bf16.msra.mxu0 %v2349
      %3421 = vmatmul.bf16.gmra.mxu0 %v2748
      %v3422 = vpop.f32.mrf.mxu0
      %v3423 = vadd.f32 %v3410, %v3422
      %v3424 = vpop.f32.mrf.mxu0
      %3425 = vdwg.mxu0
      %v3426 = vmax.f32 %v2916, 0.0
      %v3427 = vmax.f32 %v3085, 0.0
      %v3428 = vmax.f32 %v3254, 0.0
      %v3429 = vmax.f32 %v3423, 0.0
      %v3430 = vpack.c.bf16 %v3426, %v3426
      %v3431 = vpack.c.bf16 %v3427, %v3427
      %v3432 = vpack.c.bf16 %v3428, %v3428
      %v3433 = vpack.c.bf16 %v3429, %v3429
      %v3434 = vld [vmem:[%s3] sm:$0xff]
      %v3435 = vld [vmem:[%s3 + $0x8] sm:$0xff]
      %v3436 = vld [vmem:[%s3 + $0x10] sm:$0xff]
      %v3437 = vld [vmem:[%s3 + $0x18] sm:$0xff]
      %v3438 = vld [vmem:[%s3 + $0x20] sm:$0xff]
      %v3439 = vld [vmem:[%s3 + $0x28] sm:$0xff]
      %v3440 = vld [vmem:[%s3 + $0x30] sm:$0xff]
      %v3441 = vld [vmem:[%s3 + $0x38] sm:$0xff]
      %v3442 = vld [vmem:[%s3 + $0x40] sm:$0xff]
      %v3443 = vld [vmem:[%s3 + $0x48] sm:$0xff]
      %v3444 = vld [vmem:[%s3 + $0x50] sm:$0xff]
      %v3445 = vld [vmem:[%s3 + $0x58] sm:$0xff]
      %v3446 = vld [vmem:[%s3 + $0x60] sm:$0xff]
      %v3447 = vld [vmem:[%s3 + $0x68] sm:$0xff]
      %v3448 = vld [vmem:[%s3 + $0x70] sm:$0xff]
      %v3449 = vld [vmem:[%s3 + $0x78] sm:$0xff]
      %v3450 = vld [vmem:[%s3 + $0x80] sm:$0xff]
      %v3451 = vld [vmem:[%s3 + $0x88] sm:$0xff]
      %v3452 = vld [vmem:[%s3 + $0x90] sm:$0xff]
      %v3453 = vld [vmem:[%s3 + $0x98] sm:$0xff]
      %v3454 = vld [vmem:[%s3 + $0xa0] sm:$0xff]
      %v3455 = vld [vmem:[%s3 + $0xa8] sm:$0xff]
      %v3456 = vld [vmem:[%s3 + $0xb0] sm:$0xff]
      %v3457 = vld [vmem:[%s3 + $0xb8] sm:$0xff]
      %v3458 = vld [vmem:[%s3 + $0xc0] sm:$0xff]
      %v3459 = vld [vmem:[%s3 + $0xc8] sm:$0xff]
      %v3460 = vld [vmem:[%s3 + $0xd0] sm:$0xff]
      %v3461 = vld [vmem:[%s3 + $0xd8] sm:$0xff]
      %v3462 = vld [vmem:[%s3 + $0xe0] sm:$0xff]
      %v3463 = vld [vmem:[%s3 + $0xe8] sm:$0xff]
      %v3464 = vld [vmem:[%s3 + $0xf0] sm:$0xff]
      %v3465 = vld [vmem:[%s3 + $0xf8] sm:$0xff]
      %v3466 = vld [vmem:[%s3 + $0x100] sm:$0xff]
      %v3467 = vld [vmem:[%s3 + $0x108] sm:$0xff]
      %v3468 = vld [vmem:[%s3 + $0x110] sm:$0xff]
      %v3469 = vld [vmem:[%s3 + $0x118] sm:$0xff]
      %v3470 = vld [vmem:[%s3 + $0x120] sm:$0xff]
      %v3471 = vld [vmem:[%s3 + $0x128] sm:$0xff]
      %v3472 = vld [vmem:[%s3 + $0x130] sm:$0xff]
      %v3473 = vld [vmem:[%s3 + $0x138] sm:$0xff]
      %v3474 = vld [vmem:[%s3 + $0x140] sm:$0xff]
      %v3475 = vld [vmem:[%s3 + $0x148] sm:$0xff]
      %v3476 = vld [vmem:[%s3 + $0x150] sm:$0xff]
      %v3477 = vld [vmem:[%s3 + $0x158] sm:$0xff]
      %v3478 = vld [vmem:[%s3 + $0x160] sm:$0xff]
      %v3479 = vld [vmem:[%s3 + $0x168] sm:$0xff]
      %v3480 = vld [vmem:[%s3 + $0x170] sm:$0xff]
      %v3481 = vld [vmem:[%s3 + $0x178] sm:$0xff]
      %v3482 = vld [vmem:[%s3 + $0x180] sm:$0xff]
      %v3483 = vld [vmem:[%s3 + $0x188] sm:$0xff]
      %v3484 = vld [vmem:[%s3 + $0x190] sm:$0xff]
      %v3485 = vld [vmem:[%s3 + $0x198] sm:$0xff]
      %v3486 = vld [vmem:[%s3 + $0x1a0] sm:$0xff]
      %v3487 = vld [vmem:[%s3 + $0x1a8] sm:$0xff]
      %v3488 = vld [vmem:[%s3 + $0x1b0] sm:$0xff]
      %v3489 = vld [vmem:[%s3 + $0x1b8] sm:$0xff]
      %v3490 = vld [vmem:[%s3 + $0x1c0] sm:$0xff]
      %v3491 = vld [vmem:[%s3 + $0x1c8] sm:$0xff]
      %v3492 = vld [vmem:[%s3 + $0x1d0] sm:$0xff]
      %v3493 = vld [vmem:[%s3 + $0x1d8] sm:$0xff]
      %v3494 = vld [vmem:[%s3 + $0x1e0] sm:$0xff]
      %v3495 = vld [vmem:[%s3 + $0x1e8] sm:$0xff]
      %v3496 = vld [vmem:[%s3 + $0x1f0] sm:$0xff]
      %v3497 = vld [vmem:[%s3 + $0x1f8] sm:$0xff]
      %v3498 = vld [vmem:[%s3 + $0x200] sm:$0xff]
      %v3499 = vld [vmem:[%s3 + $0x208] sm:$0xff]
      %v3500 = vld [vmem:[%s3 + $0x210] sm:$0xff]
      %v3501 = vld [vmem:[%s3 + $0x218] sm:$0xff]
      %v3502 = vld [vmem:[%s3 + $0x220] sm:$0xff]
      %v3503 = vld [vmem:[%s3 + $0x228] sm:$0xff]
      %v3504 = vld [vmem:[%s3 + $0x230] sm:$0xff]
      %v3505 = vld [vmem:[%s3 + $0x238] sm:$0xff]
      %v3506 = vld [vmem:[%s3 + $0x240] sm:$0xff]
      %v3507 = vld [vmem:[%s3 + $0x248] sm:$0xff]
      %v3508 = vld [vmem:[%s3 + $0x250] sm:$0xff]
      %v3509 = vld [vmem:[%s3 + $0x258] sm:$0xff]
      %v3510 = vld [vmem:[%s3 + $0x260] sm:$0xff]
      %v3511 = vld [vmem:[%s3 + $0x268] sm:$0xff]
      %v3512 = vld [vmem:[%s3 + $0x270] sm:$0xff]
      %v3513 = vld [vmem:[%s3 + $0x278] sm:$0xff]
      %v3514 = vld [vmem:[%s3 + $0x280] sm:$0xff]
      %v3515 = vld [vmem:[%s3 + $0x288] sm:$0xff]
      %v3516 = vld [vmem:[%s3 + $0x290] sm:$0xff]
      %v3517 = vld [vmem:[%s3 + $0x298] sm:$0xff]
      %v3518 = vld [vmem:[%s3 + $0x2a0] sm:$0xff]
      %v3519 = vld [vmem:[%s3 + $0x2a8] sm:$0xff]
      %v3520 = vld [vmem:[%s3 + $0x2b0] sm:$0xff]
      %v3521 = vld [vmem:[%s3 + $0x2b8] sm:$0xff]
      %v3522 = vld [vmem:[%s3 + $0x2c0] sm:$0xff]
      %v3523 = vld [vmem:[%s3 + $0x2c8] sm:$0xff]
      %v3524 = vld [vmem:[%s3 + $0x2d0] sm:$0xff]
      %v3525 = vld [vmem:[%s3 + $0x2d8] sm:$0xff]
      %v3526 = vld [vmem:[%s3 + $0x2e0] sm:$0xff]
      %v3527 = vld [vmem:[%s3 + $0x2e8] sm:$0xff]
      %v3528 = vld [vmem:[%s3 + $0x2f0] sm:$0xff]
      %v3529 = vld [vmem:[%s3 + $0x2f8] sm:$0xff]
      %v3530 = vld [vmem:[%s3 + $0x300] sm:$0xff]
      %v3531 = vld [vmem:[%s3 + $0x308] sm:$0xff]
      %v3532 = vld [vmem:[%s3 + $0x310] sm:$0xff]
      %v3533 = vld [vmem:[%s3 + $0x318] sm:$0xff]
      %v3534 = vld [vmem:[%s3 + $0x320] sm:$0xff]
      %v3535 = vld [vmem:[%s3 + $0x328] sm:$0xff]
      %v3536 = vld [vmem:[%s3 + $0x330] sm:$0xff]
      %v3537 = vld [vmem:[%s3 + $0x338] sm:$0xff]
      %v3538 = vld [vmem:[%s3 + $0x340] sm:$0xff]
      %v3539 = vld [vmem:[%s3 + $0x348] sm:$0xff]
      %v3540 = vld [vmem:[%s3 + $0x350] sm:$0xff]
      %v3541 = vld [vmem:[%s3 + $0x358] sm:$0xff]
      %v3542 = vld [vmem:[%s3 + $0x360] sm:$0xff]
      %v3543 = vld [vmem:[%s3 + $0x368] sm:$0xff]
      %v3544 = vld [vmem:[%s3 + $0x370] sm:$0xff]
      %v3545 = vld [vmem:[%s3 + $0x378] sm:$0xff]
      %v3546 = vld [vmem:[%s3 + $0x380] sm:$0xff]
      %v3547 = vld [vmem:[%s3 + $0x388] sm:$0xff]
      %v3548 = vld [vmem:[%s3 + $0x390] sm:$0xff]
      %v3549 = vld [vmem:[%s3 + $0x398] sm:$0xff]
      %v3550 = vld [vmem:[%s3 + $0x3a0] sm:$0xff]
      %v3551 = vld [vmem:[%s3 + $0x3a8] sm:$0xff]
      %v3552 = vld [vmem:[%s3 + $0x3b0] sm:$0xff]
      %v3553 = vld [vmem:[%s3 + $0x3b8] sm:$0xff]
      %v3554 = vld [vmem:[%s3 + $0x3c0] sm:$0xff]
      %v3555 = vld [vmem:[%s3 + $0x3c8] sm:$0xff]
      %v3556 = vld [vmem:[%s3 + $0x3d0] sm:$0xff]
      %v3557 = vld [vmem:[%s3 + $0x3d8] sm:$0xff]
      %v3558 = vld [vmem:[%s3 + $0x3e0] sm:$0xff]
      %v3559 = vld [vmem:[%s3 + $0x3e8] sm:$0xff]
      %v3560 = vld [vmem:[%s3 + $0x3f0] sm:$0xff]
      %v3561 = vld [vmem:[%s3 + $0x3f8] sm:$0xff]
      %v3562 = vld [vmem:[%s4] sm:$0xf]
      %v3564 = vperm.slane %v3562, 0
      %v3565 = vperm.slane %v3562, 1
      %v3566 = vperm.slane %v3562, 2
      %v3567 = vperm.slane %v3562, 3
      %v3700 = vunpack.c.l.b16 %v3434
      %v3701 = vunpack.c.h.b16 %v3434
      %v3702 = vunpack.c.l.b16 %v3435
      %v3703 = vunpack.c.h.b16 %v3435
      %v3704 = vunpack.c.l.b16 %v3436
      %v3705 = vunpack.c.h.b16 %v3436
      %v3706 = vunpack.c.l.b16 %v3437
      %v3707 = vunpack.c.h.b16 %v3437
      %v3708 = vunpack.c.l.b16 %v3438
      %v3709 = vunpack.c.h.b16 %v3438
      %v3710 = vunpack.c.l.b16 %v3439
      %v3711 = vunpack.c.h.b16 %v3439
      %v3712 = vunpack.c.l.b16 %v3440
      %v3713 = vunpack.c.h.b16 %v3440
      %v3714 = vunpack.c.l.b16 %v3441
      %v3715 = vunpack.c.h.b16 %v3441
      %v3716 = vunpack.c.l.b16 %v3442
      %v3717 = vunpack.c.h.b16 %v3442
      %v3718 = vunpack.c.l.b16 %v3443
      %v3719 = vunpack.c.h.b16 %v3443
      %v3720 = vunpack.c.l.b16 %v3444
      %v3721 = vunpack.c.h.b16 %v3444
      %v3722 = vunpack.c.l.b16 %v3445
      %v3723 = vunpack.c.h.b16 %v3445
      %v3724 = vunpack.c.l.b16 %v3446
      %v3725 = vunpack.c.h.b16 %v3446
      %v3726 = vunpack.c.l.b16 %v3447
      %v3727 = vunpack.c.h.b16 %v3447
      %v3728 = vunpack.c.l.b16 %v3448
      %v3729 = vunpack.c.h.b16 %v3448
      %v3730 = vunpack.c.l.b16 %v3449
      %v3731 = vunpack.c.h.b16 %v3449
      %v3732 = vunpack.c.l.b16 %v3450
      %v3733 = vunpack.c.h.b16 %v3450
      %v3734 = vunpack.c.l.b16 %v3451
      %v3735 = vunpack.c.h.b16 %v3451
      %v3736 = vunpack.c.l.b16 %v3452
      %v3737 = vunpack.c.h.b16 %v3452
      %v3738 = vunpack.c.l.b16 %v3453
      %v3739 = vunpack.c.h.b16 %v3453
      %v3740 = vunpack.c.l.b16 %v3454
      %v3741 = vunpack.c.h.b16 %v3454
      %v3742 = vunpack.c.l.b16 %v3455
      %v3743 = vunpack.c.h.b16 %v3455
      %v3744 = vunpack.c.l.b16 %v3456
      %v3745 = vunpack.c.h.b16 %v3456
      %v3746 = vunpack.c.l.b16 %v3457
      %v3747 = vunpack.c.h.b16 %v3457
      %v3748 = vunpack.c.l.b16 %v3458
      %v3749 = vunpack.c.h.b16 %v3458
      %v3750 = vunpack.c.l.b16 %v3459
      %v3751 = vunpack.c.h.b16 %v3459
      %v3752 = vunpack.c.l.b16 %v3460
      %v3753 = vunpack.c.h.b16 %v3460
      %v3754 = vunpack.c.l.b16 %v3461
      %v3755 = vunpack.c.h.b16 %v3461
      %v3756 = vunpack.c.l.b16 %v3462
      %v3757 = vunpack.c.h.b16 %v3462
      %v3758 = vunpack.c.l.b16 %v3463
      %v3759 = vunpack.c.h.b16 %v3463
      %v3760 = vunpack.c.l.b16 %v3464
      %v3761 = vunpack.c.h.b16 %v3464
      %v3762 = vunpack.c.l.b16 %v3465
      %v3763 = vunpack.c.h.b16 %v3465
      %v3764 = vunpack.c.l.b16 %v3466
      %v3765 = vunpack.c.h.b16 %v3466
      %v3766 = vunpack.c.l.b16 %v3467
      %v3767 = vunpack.c.h.b16 %v3467
      %v3768 = vunpack.c.l.b16 %v3468
      %v3769 = vunpack.c.h.b16 %v3468
      %v3770 = vunpack.c.l.b16 %v3469
      %v3771 = vunpack.c.h.b16 %v3469
      %v3772 = vunpack.c.l.b16 %v3470
      %v3773 = vunpack.c.h.b16 %v3470
      %v3774 = vunpack.c.l.b16 %v3471
      %v3775 = vunpack.c.h.b16 %v3471
      %v3776 = vunpack.c.l.b16 %v3472
      %v3777 = vunpack.c.h.b16 %v3472
      %v3778 = vunpack.c.l.b16 %v3473
      %v3779 = vunpack.c.h.b16 %v3473
      %v3780 = vunpack.c.l.b16 %v3474
      %v3781 = vunpack.c.h.b16 %v3474
      %v3782 = vunpack.c.l.b16 %v3475
      %v3783 = vunpack.c.h.b16 %v3475
      %v3784 = vunpack.c.l.b16 %v3476
      %v3785 = vunpack.c.h.b16 %v3476
      %v3786 = vunpack.c.l.b16 %v3477
      %v3787 = vunpack.c.h.b16 %v3477
      %v3788 = vunpack.c.l.b16 %v3478
      %v3789 = vunpack.c.h.b16 %v3478
      %v3790 = vunpack.c.l.b16 %v3479
      %v3791 = vunpack.c.h.b16 %v3479
      %v3792 = vunpack.c.l.b16 %v3480
      %v3793 = vunpack.c.h.b16 %v3480
      %v3794 = vunpack.c.l.b16 %v3481
      %v3795 = vunpack.c.h.b16 %v3481
      %v3796 = vunpack.c.l.b16 %v3482
      %v3797 = vunpack.c.h.b16 %v3482
      %v3798 = vunpack.c.l.b16 %v3483
      %v3799 = vunpack.c.h.b16 %v3483
      %v3800 = vunpack.c.l.b16 %v3484
      %v3801 = vunpack.c.h.b16 %v3484
      %v3802 = vunpack.c.l.b16 %v3485
      %v3803 = vunpack.c.h.b16 %v3485
      %v3804 = vunpack.c.l.b16 %v3486
      %v3805 = vunpack.c.h.b16 %v3486
      %v3806 = vunpack.c.l.b16 %v3487
      %v3807 = vunpack.c.h.b16 %v3487
      %v3808 = vunpack.c.l.b16 %v3488
      %v3809 = vunpack.c.h.b16 %v3488
      %v3810 = vunpack.c.l.b16 %v3489
      %v3811 = vunpack.c.h.b16 %v3489
      %v3812 = vunpack.c.l.b16 %v3490
      %v3813 = vunpack.c.h.b16 %v3490
      %v3814 = vunpack.c.l.b16 %v3491
      %v3815 = vunpack.c.h.b16 %v3491
      %v3816 = vunpack.c.l.b16 %v3492
      %v3817 = vunpack.c.h.b16 %v3492
      %v3818 = vunpack.c.l.b16 %v3493
      %v3819 = vunpack.c.h.b16 %v3493
      %v3820 = vunpack.c.l.b16 %v3494
      %v3821 = vunpack.c.h.b16 %v3494
      %v3822 = vunpack.c.l.b16 %v3495
      %v3823 = vunpack.c.h.b16 %v3495
      %v3824 = vunpack.c.l.b16 %v3496
      %v3825 = vunpack.c.h.b16 %v3496
      %v3826 = vunpack.c.l.b16 %v3497
      %v3827 = vunpack.c.h.b16 %v3497
      %v3828 = vunpack.c.l.b16 %v3498
      %v3829 = vunpack.c.h.b16 %v3498
      %v3830 = vunpack.c.l.b16 %v3499
      %v3831 = vunpack.c.h.b16 %v3499
      %v3832 = vunpack.c.l.b16 %v3500
      %v3833 = vunpack.c.h.b16 %v3500
      %v3834 = vunpack.c.l.b16 %v3501
      %v3835 = vunpack.c.h.b16 %v3501
      %v3836 = vunpack.c.l.b16 %v3502
      %v3837 = vunpack.c.h.b16 %v3502
      %v3838 = vunpack.c.l.b16 %v3503
      %v3839 = vunpack.c.h.b16 %v3503
      %v3840 = vunpack.c.l.b16 %v3504
      %v3841 = vunpack.c.h.b16 %v3504
      %v3842 = vunpack.c.l.b16 %v3505
      %v3843 = vunpack.c.h.b16 %v3505
      %v3844 = vunpack.c.l.b16 %v3506
      %v3845 = vunpack.c.h.b16 %v3506
      %v3846 = vunpack.c.l.b16 %v3507
      %v3847 = vunpack.c.h.b16 %v3507
      %v3848 = vunpack.c.l.b16 %v3508
      %v3849 = vunpack.c.h.b16 %v3508
      %v3850 = vunpack.c.l.b16 %v3509
      %v3851 = vunpack.c.h.b16 %v3509
      %v3852 = vunpack.c.l.b16 %v3510
      %v3853 = vunpack.c.h.b16 %v3510
      %v3854 = vunpack.c.l.b16 %v3511
      %v3855 = vunpack.c.h.b16 %v3511
      %v3856 = vunpack.c.l.b16 %v3512
      %v3857 = vunpack.c.h.b16 %v3512
      %v3858 = vunpack.c.l.b16 %v3513
      %v3859 = vunpack.c.h.b16 %v3513
      %v3860 = vunpack.c.l.b16 %v3514
      %v3861 = vunpack.c.h.b16 %v3514
      %v3862 = vunpack.c.l.b16 %v3515
      %v3863 = vunpack.c.h.b16 %v3515
      %v3864 = vunpack.c.l.b16 %v3516
      %v3865 = vunpack.c.h.b16 %v3516
      %v3866 = vunpack.c.l.b16 %v3517
      %v3867 = vunpack.c.h.b16 %v3517
      %v3868 = vunpack.c.l.b16 %v3518
      %v3869 = vunpack.c.h.b16 %v3518
      %v3870 = vunpack.c.l.b16 %v3519
      %v3871 = vunpack.c.h.b16 %v3519
      %v3872 = vunpack.c.l.b16 %v3520
      %v3873 = vunpack.c.h.b16 %v3520
      %v3874 = vunpack.c.l.b16 %v3521
      %v3875 = vunpack.c.h.b16 %v3521
      %v3876 = vunpack.c.l.b16 %v3522
      %v3877 = vunpack.c.h.b16 %v3522
      %v3878 = vunpack.c.l.b16 %v3523
      %v3879 = vunpack.c.h.b16 %v3523
      %v3880 = vunpack.c.l.b16 %v3524
      %v3881 = vunpack.c.h.b16 %v3524
      %v3882 = vunpack.c.l.b16 %v3525
      %v3883 = vunpack.c.h.b16 %v3525
      %v3884 = vunpack.c.l.b16 %v3526
      %v3885 = vunpack.c.h.b16 %v3526
      %v3886 = vunpack.c.l.b16 %v3527
      %v3887 = vunpack.c.h.b16 %v3527
      %v3888 = vunpack.c.l.b16 %v3528
      %v3889 = vunpack.c.h.b16 %v3528
      %v3890 = vunpack.c.l.b16 %v3529
      %v3891 = vunpack.c.h.b16 %v3529
      %v3892 = vunpack.c.l.b16 %v3530
      %v3893 = vunpack.c.h.b16 %v3530
      %v3894 = vunpack.c.l.b16 %v3531
      %v3895 = vunpack.c.h.b16 %v3531
      %v3896 = vunpack.c.l.b16 %v3532
      %v3897 = vunpack.c.h.b16 %v3532
      %v3898 = vunpack.c.l.b16 %v3533
      %v3899 = vunpack.c.h.b16 %v3533
      %v3900 = vunpack.c.l.b16 %v3534
      %v3901 = vunpack.c.h.b16 %v3534
      %v3902 = vunpack.c.l.b16 %v3535
      %v3903 = vunpack.c.h.b16 %v3535
      %v3904 = vunpack.c.l.b16 %v3536
      %v3905 = vunpack.c.h.b16 %v3536
      %v3906 = vunpack.c.l.b16 %v3537
      %v3907 = vunpack.c.h.b16 %v3537
      %v3908 = vunpack.c.l.b16 %v3538
      %v3909 = vunpack.c.h.b16 %v3538
      %v3910 = vunpack.c.l.b16 %v3539
      %v3911 = vunpack.c.h.b16 %v3539
      %v3912 = vunpack.c.l.b16 %v3540
      %v3913 = vunpack.c.h.b16 %v3540
      %v3914 = vunpack.c.l.b16 %v3541
      %v3915 = vunpack.c.h.b16 %v3541
      %v3916 = vunpack.c.l.b16 %v3542
      %v3917 = vunpack.c.h.b16 %v3542
      %v3918 = vunpack.c.l.b16 %v3543
      %v3919 = vunpack.c.h.b16 %v3543
      %v3920 = vunpack.c.l.b16 %v3544
      %v3921 = vunpack.c.h.b16 %v3544
      %v3922 = vunpack.c.l.b16 %v3545
      %v3923 = vunpack.c.h.b16 %v3545
      %v3924 = vunpack.c.l.b16 %v3546
      %v3925 = vunpack.c.h.b16 %v3546
      %v3926 = vunpack.c.l.b16 %v3547
      %v3927 = vunpack.c.h.b16 %v3547
      %v3928 = vunpack.c.l.b16 %v3548
      %v3929 = vunpack.c.h.b16 %v3548
      %v3930 = vunpack.c.l.b16 %v3549
      %v3931 = vunpack.c.h.b16 %v3549
      %v3932 = vunpack.c.l.b16 %v3550
      %v3933 = vunpack.c.h.b16 %v3550
      %v3934 = vunpack.c.l.b16 %v3551
      %v3935 = vunpack.c.h.b16 %v3551
      %v3936 = vunpack.c.l.b16 %v3552
      %v3937 = vunpack.c.h.b16 %v3552
      %v3938 = vunpack.c.l.b16 %v3553
      %v3939 = vunpack.c.h.b16 %v3553
      %v3940 = vunpack.c.l.b16 %v3554
      %v3941 = vunpack.c.h.b16 %v3554
      %v3942 = vunpack.c.l.b16 %v3555
      %v3943 = vunpack.c.h.b16 %v3555
      %v3944 = vunpack.c.l.b16 %v3556
      %v3945 = vunpack.c.h.b16 %v3556
      %v3946 = vunpack.c.l.b16 %v3557
      %v3947 = vunpack.c.h.b16 %v3557
      %v3948 = vunpack.c.l.b16 %v3558
      %v3949 = vunpack.c.h.b16 %v3558
      %v3950 = vunpack.c.l.b16 %v3559
      %v3951 = vunpack.c.h.b16 %v3559
      %v3952 = vunpack.c.l.b16 %v3560
      %v3953 = vunpack.c.h.b16 %v3560
      %v3954 = vunpack.c.l.b16 %v3561
      %v3955 = vunpack.c.h.b16 %v3561
      %v3956 = vpack.c.b16 %v3704, %v3700
      %v3957 = vpack.c.b16 %v3705, %v3701
      %v3958 = vpack.c.b16 %v3706, %v3702
      %v3959 = vpack.c.b16 %v3707, %v3703
      %v3960 = vpack.c.b16 %v3712, %v3708
      %v3961 = vpack.c.b16 %v3713, %v3709
      %v3962 = vpack.c.b16 %v3714, %v3710
      %v3963 = vpack.c.b16 %v3715, %v3711
      %v3964 = vpack.c.b16 %v3720, %v3716
      %v3965 = vpack.c.b16 %v3721, %v3717
      %v3966 = vpack.c.b16 %v3722, %v3718
      %v3967 = vpack.c.b16 %v3723, %v3719
      %v3968 = vpack.c.b16 %v3728, %v3724
      %v3969 = vpack.c.b16 %v3729, %v3725
      %v3970 = vpack.c.b16 %v3730, %v3726
      %v3971 = vpack.c.b16 %v3731, %v3727
      %v3972 = vpack.c.b16 %v3736, %v3732
      %v3973 = vpack.c.b16 %v3737, %v3733
      %v3974 = vpack.c.b16 %v3738, %v3734
      %v3975 = vpack.c.b16 %v3739, %v3735
      %v3976 = vpack.c.b16 %v3744, %v3740
      %v3977 = vpack.c.b16 %v3745, %v3741
      %v3978 = vpack.c.b16 %v3746, %v3742
      %v3979 = vpack.c.b16 %v3747, %v3743
      %v3980 = vpack.c.b16 %v3752, %v3748
      %v3981 = vpack.c.b16 %v3753, %v3749
      %v3982 = vpack.c.b16 %v3754, %v3750
      %v3983 = vpack.c.b16 %v3755, %v3751
      %v3984 = vpack.c.b16 %v3760, %v3756
      %v3985 = vpack.c.b16 %v3761, %v3757
      %v3986 = vpack.c.b16 %v3762, %v3758
      %v3987 = vpack.c.b16 %v3763, %v3759
      %v3988 = vpack.c.b16 %v3768, %v3764
      %v3989 = vpack.c.b16 %v3769, %v3765
      %v3990 = vpack.c.b16 %v3770, %v3766
      %v3991 = vpack.c.b16 %v3771, %v3767
      %v3992 = vpack.c.b16 %v3776, %v3772
      %v3993 = vpack.c.b16 %v3777, %v3773
      %v3994 = vpack.c.b16 %v3778, %v3774
      %v3995 = vpack.c.b16 %v3779, %v3775
      %v3996 = vpack.c.b16 %v3784, %v3780
      %v3997 = vpack.c.b16 %v3785, %v3781
      %v3998 = vpack.c.b16 %v3786, %v3782
      %v3999 = vpack.c.b16 %v3787, %v3783
      %v4000 = vpack.c.b16 %v3792, %v3788
      %v4001 = vpack.c.b16 %v3793, %v3789
      %v4002 = vpack.c.b16 %v3794, %v3790
      %v4003 = vpack.c.b16 %v3795, %v3791
      %v4004 = vpack.c.b16 %v3800, %v3796
      %v4005 = vpack.c.b16 %v3801, %v3797
      %v4006 = vpack.c.b16 %v3802, %v3798
      %v4007 = vpack.c.b16 %v3803, %v3799
      %v4008 = vpack.c.b16 %v3808, %v3804
      %v4009 = vpack.c.b16 %v3809, %v3805
      %v4010 = vpack.c.b16 %v3810, %v3806
      %v4011 = vpack.c.b16 %v3811, %v3807
      %v4012 = vpack.c.b16 %v3816, %v3812
      %v4013 = vpack.c.b16 %v3817, %v3813
      %v4014 = vpack.c.b16 %v3818, %v3814
      %v4015 = vpack.c.b16 %v3819, %v3815
      %v4016 = vpack.c.b16 %v3824, %v3820
      %v4017 = vpack.c.b16 %v3825, %v3821
      %v4018 = vpack.c.b16 %v3826, %v3822
      %v4019 = vpack.c.b16 %v3827, %v3823
      %v4020 = vpack.c.b16 %v3832, %v3828
      %v4021 = vpack.c.b16 %v3833, %v3829
      %v4022 = vpack.c.b16 %v3834, %v3830
      %v4023 = vpack.c.b16 %v3835, %v3831
      %v4024 = vpack.c.b16 %v3840, %v3836
      %v4025 = vpack.c.b16 %v3841, %v3837
      %v4026 = vpack.c.b16 %v3842, %v3838
      %v4027 = vpack.c.b16 %v3843, %v3839
      %v4028 = vpack.c.b16 %v3848, %v3844
      %v4029 = vpack.c.b16 %v3849, %v3845
      %v4030 = vpack.c.b16 %v3850, %v3846
      %v4031 = vpack.c.b16 %v3851, %v3847
      %v4032 = vpack.c.b16 %v3856, %v3852
      %v4033 = vpack.c.b16 %v3857, %v3853
      %v4034 = vpack.c.b16 %v3858, %v3854
      %v4035 = vpack.c.b16 %v3859, %v3855
      %v4036 = vpack.c.b16 %v3864, %v3860
      %v4037 = vpack.c.b16 %v3865, %v3861
      %v4038 = vpack.c.b16 %v3866, %v3862
      %v4039 = vpack.c.b16 %v3867, %v3863
      %v4040 = vpack.c.b16 %v3872, %v3868
      %v4041 = vpack.c.b16 %v3873, %v3869
      %v4042 = vpack.c.b16 %v3874, %v3870
      %v4043 = vpack.c.b16 %v3875, %v3871
      %v4044 = vpack.c.b16 %v3880, %v3876
      %v4045 = vpack.c.b16 %v3881, %v3877
      %v4046 = vpack.c.b16 %v3882, %v3878
      %v4047 = vpack.c.b16 %v3883, %v3879
      %v4048 = vpack.c.b16 %v3888, %v3884
      %v4049 = vpack.c.b16 %v3889, %v3885
      %v4050 = vpack.c.b16 %v3890, %v3886
      %v4051 = vpack.c.b16 %v3891, %v3887
      %v4052 = vpack.c.b16 %v3896, %v3892
      %v4053 = vpack.c.b16 %v3897, %v3893
      %v4054 = vpack.c.b16 %v3898, %v3894
      %v4055 = vpack.c.b16 %v3899, %v3895
      %v4056 = vpack.c.b16 %v3904, %v3900
      %v4057 = vpack.c.b16 %v3905, %v3901
      %v4058 = vpack.c.b16 %v3906, %v3902
      %v4059 = vpack.c.b16 %v3907, %v3903
      %v4060 = vpack.c.b16 %v3912, %v3908
      %v4061 = vpack.c.b16 %v3913, %v3909
      %v4062 = vpack.c.b16 %v3914, %v3910
      %v4063 = vpack.c.b16 %v3915, %v3911
      %v4064 = vpack.c.b16 %v3920, %v3916
      %v4065 = vpack.c.b16 %v3921, %v3917
      %v4066 = vpack.c.b16 %v3922, %v3918
      %v4067 = vpack.c.b16 %v3923, %v3919
      %v4068 = vpack.c.b16 %v3928, %v3924
      %v4069 = vpack.c.b16 %v3929, %v3925
      %v4070 = vpack.c.b16 %v3930, %v3926
      %v4071 = vpack.c.b16 %v3931, %v3927
      %v4072 = vpack.c.b16 %v3936, %v3932
      %v4073 = vpack.c.b16 %v3937, %v3933
      %v4074 = vpack.c.b16 %v3938, %v3934
      %v4075 = vpack.c.b16 %v3939, %v3935
      %v4076 = vpack.c.b16 %v3944, %v3940
      %v4077 = vpack.c.b16 %v3945, %v3941
      %v4078 = vpack.c.b16 %v3946, %v3942
      %v4079 = vpack.c.b16 %v3947, %v3943
      %v4080 = vpack.c.b16 %v3952, %v3948
      %v4081 = vpack.c.b16 %v3953, %v3949
      %v4082 = vpack.c.b16 %v3954, %v3950
      %v4083 = vpack.c.b16 %v3955, %v3951
      %4212 = vmatpush.bf16.msra.mxu0 %v3984
      %4213 = vmatpush.bf16.msra.mxu0 %v3980
      %4214 = vmatpush.bf16.msra.mxu0 %v3976
      %4215 = vmatpush.bf16.msra.mxu0 %v3972
      %4216 = vmatpush.bf16.msra.mxu0 %v3968
      %4217 = vmatpush.bf16.msra.mxu0 %v3964
      %4218 = vmatpush.bf16.msra.mxu0 %v3960
      %4219 = vmatpush.bf16.msra.mxu0 %v3956
      %4220 = vmatmul.bf16.gmra.mxu0 %v3430
      %v4221 = vpop.f32.mrf.mxu0
      %v4222 = vadd.f32 %v3564, %v4221
      %v4223 = vpop.f32.mrf.mxu0
      %4224 = vdwg.mxu0
      %4225 = vmatpush.bf16.msra.mxu0 %v4016
      %4226 = vmatpush.bf16.msra.mxu0 %v4012
      %4227 = vmatpush.bf16.msra.mxu0 %v4008
      %4228 = vmatpush.bf16.msra.mxu0 %v4004
      %4229 = vmatpush.bf16.msra.mxu0 %v4000
      %4230 = vmatpush.bf16.msra.mxu0 %v3996
      %4231 = vmatpush.bf16.msra.mxu0 %v3992
      %4232 = vmatpush.bf16.msra.mxu0 %v3988
      %4233 = vmatmul.bf16.gmra.mxu0 %v3431
      %v4234 = vpop.f32.mrf.mxu0
      %v4235 = vadd.f32 %v4222, %v4234
      %v4236 = vpop.f32.mrf.mxu0
      %4237 = vdwg.mxu0
      %4238 = vmatpush.bf16.msra.mxu0 %v4048
      %4239 = vmatpush.bf16.msra.mxu0 %v4044
      %4240 = vmatpush.bf16.msra.mxu0 %v4040
      %4241 = vmatpush.bf16.msra.mxu0 %v4036
      %4242 = vmatpush.bf16.msra.mxu0 %v4032
      %4243 = vmatpush.bf16.msra.mxu0 %v4028
      %4244 = vmatpush.bf16.msra.mxu0 %v4024
      %4245 = vmatpush.bf16.msra.mxu0 %v4020
      %4246 = vmatmul.bf16.gmra.mxu0 %v3432
      %v4247 = vpop.f32.mrf.mxu0
      %v4248 = vadd.f32 %v4235, %v4247
      %v4249 = vpop.f32.mrf.mxu0
      %4250 = vdwg.mxu0
      %4251 = vmatpush.bf16.msra.mxu0 %v4080
      %4252 = vmatpush.bf16.msra.mxu0 %v4076
      %4253 = vmatpush.bf16.msra.mxu0 %v4072
      %4254 = vmatpush.bf16.msra.mxu0 %v4068
      %4255 = vmatpush.bf16.msra.mxu0 %v4064
      %4256 = vmatpush.bf16.msra.mxu0 %v4060
      %4257 = vmatpush.bf16.msra.mxu0 %v4056
      %4258 = vmatpush.bf16.msra.mxu0 %v4052
      %4259 = vmatmul.bf16.gmra.mxu0 %v3433
      %v4260 = vpop.f32.mrf.mxu0
      %v4261 = vadd.f32 %v4248, %v4260
      %v4262 = vpop.f32.mrf.mxu0
      %4263 = vdwg.mxu0
      %4264 = vmatpush.bf16.msra.mxu0 %v3985
      %4265 = vmatpush.bf16.msra.mxu0 %v3981
      %4266 = vmatpush.bf16.msra.mxu0 %v3977
      %4267 = vmatpush.bf16.msra.mxu0 %v3973
      %4268 = vmatpush.bf16.msra.mxu0 %v3969
      %4269 = vmatpush.bf16.msra.mxu0 %v3965
      %4270 = vmatpush.bf16.msra.mxu0 %v3961
      %4271 = vmatpush.bf16.msra.mxu0 %v3957
      %4272 = vmatmul.bf16.gmra.mxu0 %v3430
      %v4273 = vpop.f32.mrf.mxu0
      %v4274 = vadd.f32 %v3565, %v4273
      %v4275 = vpop.f32.mrf.mxu0
      %4276 = vdwg.mxu0
      %4277 = vmatpush.bf16.msra.mxu0 %v4017
      %4278 = vmatpush.bf16.msra.mxu0 %v4013
      %4279 = vmatpush.bf16.msra.mxu0 %v4009
      %4280 = vmatpush.bf16.msra.mxu0 %v4005
      %4281 = vmatpush.bf16.msra.mxu0 %v4001
      %4282 = vmatpush.bf16.msra.mxu0 %v3997
      %4283 = vmatpush.bf16.msra.mxu0 %v3993
      %4284 = vmatpush.bf16.msra.mxu0 %v3989
      %4285 = vmatmul.bf16.gmra.mxu0 %v3431
      %v4286 = vpop.f32.mrf.mxu0
      %v4287 = vadd.f32 %v4274, %v4286
      %v4288 = vpop.f32.mrf.mxu0
      %4289 = vdwg.mxu0
      %4290 = vmatpush.bf16.msra.mxu0 %v4049
      %4291 = vmatpush.bf16.msra.mxu0 %v4045
      %4292 = vmatpush.bf16.msra.mxu0 %v4041
      %4293 = vmatpush.bf16.msra.mxu0 %v4037
      %4294 = vmatpush.bf16.msra.mxu0 %v4033
      %4295 = vmatpush.bf16.msra.mxu0 %v4029
      %4296 = vmatpush.bf16.msra.mxu0 %v4025
      %4297 = vmatpush.bf16.msra.mxu0 %v4021
      %4298 = vmatmul.bf16.gmra.mxu0 %v3432
      %v4299 = vpop.f32.mrf.mxu0
      %v4300 = vadd.f32 %v4287, %v4299
      %v4301 = vpop.f32.mrf.mxu0
      %4302 = vdwg.mxu0
      %4303 = vmatpush.bf16.msra.mxu0 %v4081
      %4304 = vmatpush.bf16.msra.mxu0 %v4077
      %4305 = vmatpush.bf16.msra.mxu0 %v4073
      %4306 = vmatpush.bf16.msra.mxu0 %v4069
      %4307 = vmatpush.bf16.msra.mxu0 %v4065
      %4308 = vmatpush.bf16.msra.mxu0 %v4061
      %4309 = vmatpush.bf16.msra.mxu0 %v4057
      %4310 = vmatpush.bf16.msra.mxu0 %v4053
      %4311 = vmatmul.bf16.gmra.mxu0 %v3433
      %v4312 = vpop.f32.mrf.mxu0
      %v4313 = vadd.f32 %v4300, %v4312
      %v4314 = vpop.f32.mrf.mxu0
      %4315 = vdwg.mxu0
      %4316 = vmatpush.bf16.msra.mxu0 %v3986
      %4317 = vmatpush.bf16.msra.mxu0 %v3982
      %4318 = vmatpush.bf16.msra.mxu0 %v3978
      %4319 = vmatpush.bf16.msra.mxu0 %v3974
      %4320 = vmatpush.bf16.msra.mxu0 %v3970
      %4321 = vmatpush.bf16.msra.mxu0 %v3966
      %4322 = vmatpush.bf16.msra.mxu0 %v3962
      %4323 = vmatpush.bf16.msra.mxu0 %v3958
      %4324 = vmatmul.bf16.gmra.mxu0 %v3430
      %v4325 = vpop.f32.mrf.mxu0
      %v4326 = vadd.f32 %v3566, %v4325
      %v4327 = vpop.f32.mrf.mxu0
      %4328 = vdwg.mxu0
      %4329 = vmatpush.bf16.msra.mxu0 %v4018
      %4330 = vmatpush.bf16.msra.mxu0 %v4014
      %4331 = vmatpush.bf16.msra.mxu0 %v4010
      %4332 = vmatpush.bf16.msra.mxu0 %v4006
      %4333 = vmatpush.bf16.msra.mxu0 %v4002
      %4334 = vmatpush.bf16.msra.mxu0 %v3998
      %4335 = vmatpush.bf16.msra.mxu0 %v3994
      %4336 = vmatpush.bf16.msra.mxu0 %v3990
      %4337 = vmatmul.bf16.gmra.mxu0 %v3431
      %v4338 = vpop.f32.mrf.mxu0
      %v4339 = vadd.f32 %v4326, %v4338
      %v4340 = vpop.f32.mrf.mxu0
      %4341 = vdwg.mxu0
      %4342 = vmatpush.bf16.msra.mxu0 %v4050
      %4343 = vmatpush.bf16.msra.mxu0 %v4046
      %4344 = vmatpush.bf16.msra.mxu0 %v4042
      %4345 = vmatpush.bf16.msra.mxu0 %v4038
      %4346 = vmatpush.bf16.msra.mxu0 %v4034
      %4347 = vmatpush.bf16.msra.mxu0 %v4030
      %4348 = vmatpush.bf16.msra.mxu0 %v4026
      %4349 = vmatpush.bf16.msra.mxu0 %v4022
      %4350 = vmatmul.bf16.gmra.mxu0 %v3432
      %v4351 = vpop.f32.mrf.mxu0
      %v4352 = vadd.f32 %v4339, %v4351
      %v4353 = vpop.f32.mrf.mxu0
      %4354 = vdwg.mxu0
      %4355 = vmatpush.bf16.msra.mxu0 %v4082
      %4356 = vmatpush.bf16.msra.mxu0 %v4078
      %4357 = vmatpush.bf16.msra.mxu0 %v4074
      %4358 = vmatpush.bf16.msra.mxu0 %v4070
      %4359 = vmatpush.bf16.msra.mxu0 %v4066
      %4360 = vmatpush.bf16.msra.mxu0 %v4062
      %4361 = vmatpush.bf16.msra.mxu0 %v4058
      %4362 = vmatpush.bf16.msra.mxu0 %v4054
      %4363 = vmatmul.bf16.gmra.mxu0 %v3433
      %v4364 = vpop.f32.mrf.mxu0
      %v4365 = vadd.f32 %v4352, %v4364
      %v4366 = vpop.f32.mrf.mxu0
      %4367 = vdwg.mxu0
      %4368 = vmatpush.bf16.msra.mxu0 %v3987
      %4369 = vmatpush.bf16.msra.mxu0 %v3983
      %4370 = vmatpush.bf16.msra.mxu0 %v3979
      %4371 = vmatpush.bf16.msra.mxu0 %v3975
      %4372 = vmatpush.bf16.msra.mxu0 %v3971
      %4373 = vmatpush.bf16.msra.mxu0 %v3967
      %4374 = vmatpush.bf16.msra.mxu0 %v3963
      %4375 = vmatpush.bf16.msra.mxu0 %v3959
      %4376 = vmatmul.bf16.gmra.mxu0 %v3430
      %v4377 = vpop.f32.mrf.mxu0
      %v4378 = vadd.f32 %v3567, %v4377
      %v4379 = vpop.f32.mrf.mxu0
      %4380 = vdwg.mxu0
      %4381 = vmatpush.bf16.msra.mxu0 %v4019
      %4382 = vmatpush.bf16.msra.mxu0 %v4015
      %4383 = vmatpush.bf16.msra.mxu0 %v4011
      %4384 = vmatpush.bf16.msra.mxu0 %v4007
      %4385 = vmatpush.bf16.msra.mxu0 %v4003
      %4386 = vmatpush.bf16.msra.mxu0 %v3999
      %4387 = vmatpush.bf16.msra.mxu0 %v3995
      %4388 = vmatpush.bf16.msra.mxu0 %v3991
      %4389 = vmatmul.bf16.gmra.mxu0 %v3431
      %v4390 = vpop.f32.mrf.mxu0
      %v4391 = vadd.f32 %v4378, %v4390
      %v4392 = vpop.f32.mrf.mxu0
      %4393 = vdwg.mxu0
      %4394 = vmatpush.bf16.msra.mxu0 %v4051
      %4395 = vmatpush.bf16.msra.mxu0 %v4047
      %4396 = vmatpush.bf16.msra.mxu0 %v4043
      %4397 = vmatpush.bf16.msra.mxu0 %v4039
      %4398 = vmatpush.bf16.msra.mxu0 %v4035
      %4399 = vmatpush.bf16.msra.mxu0 %v4031
      %4400 = vmatpush.bf16.msra.mxu0 %v4027
      %4401 = vmatpush.bf16.msra.mxu0 %v4023
      %4402 = vmatmul.bf16.gmra.mxu0 %v3432
      %v4403 = vpop.f32.mrf.mxu0
      %v4404 = vadd.f32 %v4391, %v4403
      %v4405 = vpop.f32.mrf.mxu0
      %4406 = vdwg.mxu0
      %4407 = vmatpush.bf16.msra.mxu0 %v4083
      %4408 = vmatpush.bf16.msra.mxu0 %v4079
      %4409 = vmatpush.bf16.msra.mxu0 %v4075
      %4410 = vmatpush.bf16.msra.mxu0 %v4071
      %4411 = vmatpush.bf16.msra.mxu0 %v4067
      %4412 = vmatpush.bf16.msra.mxu0 %v4063
      %4413 = vmatpush.bf16.msra.mxu0 %v4059
      %4414 = vmatpush.bf16.msra.mxu0 %v4055
      %4415 = vmatmul.bf16.gmra.mxu0 %v3433
      %v4416 = vpop.f32.mrf.mxu0
      %v4417 = vadd.f32 %v4404, %v4416
      %v4418 = vpop.f32.mrf.mxu0
      %4419 = vdwg.mxu0
      %v4420 = vmax.f32 %v4261, 0.0
      %v4421 = vmax.f32 %v4313, 0.0
      %v4422 = vmax.f32 %v4365, 0.0
      %v4423 = vmax.f32 %v4417, 0.0
      %v4424 = vpack.c.bf16 %v4420, %v4420
      %v4425 = vpack.c.bf16 %v4421, %v4421
      %v4426 = vpack.c.bf16 %v4422, %v4422
      %v4427 = vpack.c.bf16 %v4423, %v4423
      %v4428 = vld [vmem:[%s5] sm:$0xf]
      %v4429 = vld [vmem:[%s5 + $0x4] sm:$0xf]
      %v4430 = vld [vmem:[%s5 + $0x8] sm:$0xf]
      %v4431 = vld [vmem:[%s5 + $0xc] sm:$0xf]
      %v4432 = vld [vmem:[%s5 + $0x10] sm:$0xf]
      %v4433 = vld [vmem:[%s5 + $0x14] sm:$0xf]
      %v4434 = vld [vmem:[%s5 + $0x18] sm:$0xf]
      %v4435 = vld [vmem:[%s5 + $0x1c] sm:$0xf]
      %v4436 = vld [vmem:[%s5 + $0x20] sm:$0xf]
      %v4437 = vld [vmem:[%s5 + $0x24] sm:$0xf]
      %v4438 = vld [vmem:[%s5 + $0x28] sm:$0xf]
      %v4439 = vld [vmem:[%s5 + $0x2c] sm:$0xf]
      %v4440 = vld [vmem:[%s5 + $0x30] sm:$0xf]
      %v4441 = vld [vmem:[%s5 + $0x34] sm:$0xf]
      %v4442 = vld [vmem:[%s5 + $0x38] sm:$0xf]
      %v4443 = vld [vmem:[%s5 + $0x3c] sm:$0xf]
      %v4444 = vld [vmem:[%s5 + $0x40] sm:$0xf]
      %v4445 = vld [vmem:[%s5 + $0x44] sm:$0xf]
      %v4446 = vld [vmem:[%s5 + $0x48] sm:$0xf]
      %v4447 = vld [vmem:[%s5 + $0x4c] sm:$0xf]
      %v4448 = vld [vmem:[%s5 + $0x50] sm:$0xf]
      %v4449 = vld [vmem:[%s5 + $0x54] sm:$0xf]
      %v4450 = vld [vmem:[%s5 + $0x58] sm:$0xf]
      %v4451 = vld [vmem:[%s5 + $0x5c] sm:$0xf]
      %v4452 = vld [vmem:[%s5 + $0x60] sm:$0xf]
      %v4453 = vld [vmem:[%s5 + $0x64] sm:$0xf]
      %v4454 = vld [vmem:[%s5 + $0x68] sm:$0xf]
      %v4455 = vld [vmem:[%s5 + $0x6c] sm:$0xf]
      %v4456 = vld [vmem:[%s5 + $0x70] sm:$0xf]
      %v4457 = vld [vmem:[%s5 + $0x74] sm:$0xf]
      %v4458 = vld [vmem:[%s5 + $0x78] sm:$0xf]
      %v4459 = vld [vmem:[%s5 + $0x7c] sm:$0xf]
      %v4460 = vld [vmem:[%s5 + $0x80] sm:$0xf]
      %v4461 = vld [vmem:[%s5 + $0x84] sm:$0xf]
      %v4462 = vld [vmem:[%s5 + $0x88] sm:$0xf]
      %v4463 = vld [vmem:[%s5 + $0x8c] sm:$0xf]
      %v4464 = vld [vmem:[%s5 + $0x90] sm:$0xf]
      %v4465 = vld [vmem:[%s5 + $0x94] sm:$0xf]
      %v4466 = vld [vmem:[%s5 + $0x98] sm:$0xf]
      %v4467 = vld [vmem:[%s5 + $0x9c] sm:$0xf]
      %v4468 = vld [vmem:[%s5 + $0xa0] sm:$0xf]
      %v4469 = vld [vmem:[%s5 + $0xa4] sm:$0xf]
      %v4470 = vld [vmem:[%s5 + $0xa8] sm:$0xf]
      %v4471 = vld [vmem:[%s5 + $0xac] sm:$0xf]
      %v4472 = vld [vmem:[%s5 + $0xb0] sm:$0xf]
      %v4473 = vld [vmem:[%s5 + $0xb4] sm:$0xf]
      %v4474 = vld [vmem:[%s5 + $0xb8] sm:$0xf]
      %v4475 = vld [vmem:[%s5 + $0xbc] sm:$0xf]
      %v4476 = vld [vmem:[%s5 + $0xc0] sm:$0xf]
      %v4477 = vld [vmem:[%s5 + $0xc4] sm:$0xf]
      %v4478 = vld [vmem:[%s5 + $0xc8] sm:$0xf]
      %v4479 = vld [vmem:[%s5 + $0xcc] sm:$0xf]
      %v4480 = vld [vmem:[%s5 + $0xd0] sm:$0xf]
      %v4481 = vld [vmem:[%s5 + $0xd4] sm:$0xf]
      %v4482 = vld [vmem:[%s5 + $0xd8] sm:$0xf]
      %v4483 = vld [vmem:[%s5 + $0xdc] sm:$0xf]
      %v4484 = vld [vmem:[%s5 + $0xe0] sm:$0xf]
      %v4485 = vld [vmem:[%s5 + $0xe4] sm:$0xf]
      %v4486 = vld [vmem:[%s5 + $0xe8] sm:$0xf]
      %v4487 = vld [vmem:[%s5 + $0xec] sm:$0xf]
      %v4488 = vld [vmem:[%s5 + $0xf0] sm:$0xf]
      %v4489 = vld [vmem:[%s5 + $0xf4] sm:$0xf]
      %v4490 = vld [vmem:[%s5 + $0xf8] sm:$0xf]
      %v4491 = vld [vmem:[%s5 + $0xfc] sm:$0xf]
      %v4492 = vld [vmem:[%s6] sm:$0x1]
      %v4494 = vperm.slane %v4492, 0
      %v4560 = vunpack.c.l.b16 %v4428
      %v4561 = vunpack.c.l.b16 %v4429
      %v4562 = vunpack.c.l.b16 %v4430
      %v4563 = vunpack.c.l.b16 %v4431
      %v4564 = vunpack.c.l.b16 %v4432
      %v4565 = vunpack.c.l.b16 %v4433
      %v4566 = vunpack.c.l.b16 %v4434
      %v4567 = vunpack.c.l.b16 %v4435
      %v4568 = vunpack.c.l.b16 %v4436
      %v4569 = vunpack.c.l.b16 %v4437
      %v4570 = vunpack.c.l.b16 %v4438
      %v4571 = vunpack.c.l.b16 %v4439
      %v4572 = vunpack.c.l.b16 %v4440
      %v4573 = vunpack.c.l.b16 %v4441
      %v4574 = vunpack.c.l.b16 %v4442
      %v4575 = vunpack.c.l.b16 %v4443
      %v4576 = vunpack.c.l.b16 %v4444
      %v4577 = vunpack.c.l.b16 %v4445
      %v4578 = vunpack.c.l.b16 %v4446
      %v4579 = vunpack.c.l.b16 %v4447
      %v4580 = vunpack.c.l.b16 %v4448
      %v4581 = vunpack.c.l.b16 %v4449
      %v4582 = vunpack.c.l.b16 %v4450
      %v4583 = vunpack.c.l.b16 %v4451
      %v4584 = vunpack.c.l.b16 %v4452
      %v4585 = vunpack.c.l.b16 %v4453
      %v4586 = vunpack.c.l.b16 %v4454
      %v4587 = vunpack.c.l.b16 %v4455
      %v4588 = vunpack.c.l.b16 %v4456
      %v4589 = vunpack.c.l.b16 %v4457
      %v4590 = vunpack.c.l.b16 %v4458
      %v4591 = vunpack.c.l.b16 %v4459
      %v4592 = vunpack.c.l.b16 %v4460
      %v4593 = vunpack.c.l.b16 %v4461
      %v4594 = vunpack.c.l.b16 %v4462
      %v4595 = vunpack.c.l.b16 %v4463
      %v4596 = vunpack.c.l.b16 %v4464
      %v4597 = vunpack.c.l.b16 %v4465
      %v4598 = vunpack.c.l.b16 %v4466
      %v4599 = vunpack.c.l.b16 %v4467
      %v4600 = vunpack.c.l.b16 %v4468
      %v4601 = vunpack.c.l.b16 %v4469
      %v4602 = vunpack.c.l.b16 %v4470
      %v4603 = vunpack.c.l.b16 %v4471
      %v4604 = vunpack.c.l.b16 %v4472
      %v4605 = vunpack.c.l.b16 %v4473
      %v4606 = vunpack.c.l.b16 %v4474
      %v4607 = vunpack.c.l.b16 %v4475
      %v4608 = vunpack.c.l.b16 %v4476
      %v4609 = vunpack.c.l.b16 %v4477
      %v4610 = vunpack.c.l.b16 %v4478
      %v4611 = vunpack.c.l.b16 %v4479
      %v4612 = vunpack.c.l.b16 %v4480
      %v4613 = vunpack.c.l.b16 %v4481
      %v4614 = vunpack.c.l.b16 %v4482
      %v4615 = vunpack.c.l.b16 %v4483
      %v4616 = vunpack.c.l.b16 %v4484
      %v4617 = vunpack.c.l.b16 %v4485
      %v4618 = vunpack.c.l.b16 %v4486
      %v4619 = vunpack.c.l.b16 %v4487
      %v4620 = vunpack.c.l.b16 %v4488
      %v4621 = vunpack.c.l.b16 %v4489
      %v4622 = vunpack.c.l.b16 %v4490
      %v4623 = vunpack.c.l.b16 %v4491
      %v4624 = vpack.c.b16 %v4561, %v4560
      %v4625 = vpack.c.b16 %v4563, %v4562
      %v4626 = vpack.c.b16 %v4565, %v4564
      %v4627 = vpack.c.b16 %v4567, %v4566
      %v4628 = vpack.c.b16 %v4569, %v4568
      %v4629 = vpack.c.b16 %v4571, %v4570
      %v4630 = vpack.c.b16 %v4573, %v4572
      %v4631 = vpack.c.b16 %v4575, %v4574
      %v4632 = vpack.c.b16 %v4577, %v4576
      %v4633 = vpack.c.b16 %v4579, %v4578
      %v4634 = vpack.c.b16 %v4581, %v4580
      %v4635 = vpack.c.b16 %v4583, %v4582
      %v4636 = vpack.c.b16 %v4585, %v4584
      %v4637 = vpack.c.b16 %v4587, %v4586
      %v4638 = vpack.c.b16 %v4589, %v4588
      %v4639 = vpack.c.b16 %v4591, %v4590
      %v4640 = vpack.c.b16 %v4593, %v4592
      %v4641 = vpack.c.b16 %v4595, %v4594
      %v4642 = vpack.c.b16 %v4597, %v4596
      %v4643 = vpack.c.b16 %v4599, %v4598
      %v4644 = vpack.c.b16 %v4601, %v4600
      %v4645 = vpack.c.b16 %v4603, %v4602
      %v4646 = vpack.c.b16 %v4605, %v4604
      %v4647 = vpack.c.b16 %v4607, %v4606
      %v4648 = vpack.c.b16 %v4609, %v4608
      %v4649 = vpack.c.b16 %v4611, %v4610
      %v4650 = vpack.c.b16 %v4613, %v4612
      %v4651 = vpack.c.b16 %v4615, %v4614
      %v4652 = vpack.c.b16 %v4617, %v4616
      %v4653 = vpack.c.b16 %v4619, %v4618
      %v4654 = vpack.c.b16 %v4621, %v4620
      %v4655 = vpack.c.b16 %v4623, %v4622
      %4688 = vmatpush.bf16.msra.mxu0 %v4631
      %4689 = vmatpush.bf16.msra.mxu0 %v4630
      %4690 = vmatpush.bf16.msra.mxu0 %v4629
      %4691 = vmatpush.bf16.msra.mxu0 %v4628
      %4692 = vmatpush.bf16.msra.mxu0 %v4627
      %4693 = vmatpush.bf16.msra.mxu0 %v4626
      %4694 = vmatpush.bf16.msra.mxu0 %v4625
      %4695 = vmatpush.bf16.msra.mxu0 %v4624
      %4696 = vmatmul.bf16.gmra.mxu0 %v4424
      %v4697 = vpop.f32.mrf.mxu0
      %v4698 = vadd.f32 %v4494, %v4697
      %v4699 = vpop.f32.mrf.mxu0
      %4700 = vdwg.mxu0
      %4701 = vmatpush.bf16.msra.mxu0 %v4639
      %4702 = vmatpush.bf16.msra.mxu0 %v4638
      %4703 = vmatpush.bf16.msra.mxu0 %v4637
      %4704 = vmatpush.bf16.msra.mxu0 %v4636
      %4705 = vmatpush.bf16.msra.mxu0 %v4635
      %4706 = vmatpush.bf16.msra.mxu0 %v4634
      %4707 = vmatpush.bf16.msra.mxu0 %v4633
      %4708 = vmatpush.bf16.msra.mxu0 %v4632
      %4709 = vmatmul.bf16.gmra.mxu0 %v4425
      %v4710 = vpop.f32.mrf.mxu0
      %v4711 = vadd.f32 %v4698, %v4710
      %v4712 = vpop.f32.mrf.mxu0
      %4713 = vdwg.mxu0
      %4714 = vmatpush.bf16.msra.mxu0 %v4647
      %4715 = vmatpush.bf16.msra.mxu0 %v4646
      %4716 = vmatpush.bf16.msra.mxu0 %v4645
      %4717 = vmatpush.bf16.msra.mxu0 %v4644
      %4718 = vmatpush.bf16.msra.mxu0 %v4643
      %4719 = vmatpush.bf16.msra.mxu0 %v4642
      %4720 = vmatpush.bf16.msra.mxu0 %v4641
      %4721 = vmatpush.bf16.msra.mxu0 %v4640
      %4722 = vmatmul.bf16.gmra.mxu0 %v4426
      %v4723 = vpop.f32.mrf.mxu0
      %v4724 = vadd.f32 %v4711, %v4723
      %v4725 = vpop.f32.mrf.mxu0
      %4726 = vdwg.mxu0
      %4727 = vmatpush.bf16.msra.mxu0 %v4655
      %4728 = vmatpush.bf16.msra.mxu0 %v4654
      %4729 = vmatpush.bf16.msra.mxu0 %v4653
      %4730 = vmatpush.bf16.msra.mxu0 %v4652
      %4731 = vmatpush.bf16.msra.mxu0 %v4651
      %4732 = vmatpush.bf16.msra.mxu0 %v4650
      %4733 = vmatpush.bf16.msra.mxu0 %v4649
      %4734 = vmatpush.bf16.msra.mxu0 %v4648
      %4735 = vmatmul.bf16.gmra.mxu0 %v4427
      %v4736 = vpop.f32.mrf.mxu0
      %v4737 = vadd.f32 %v4724, %v4736
      %v4738 = vpop.f32.mrf.mxu0
      %4739 = vdwg.mxu0
      %v4740 = vmax.f32 %v4737, 0.0
      %v4741 = vpack.c.bf16 %v4740, %v4740
      %v4742 = vld [vmem:[%s7] sm:$0xf]
      %v4743 = vld [vmem:[%s7 + $0x4] sm:$0xf]
      %v4744 = vld [vmem:[%s7 + $0x8] sm:$0xf]
      %v4745 = vld [vmem:[%s7 + $0xc] sm:$0xf]
      %v4746 = vld [vmem:[%s7 + $0x10] sm:$0xf]
      %v4747 = vld [vmem:[%s7 + $0x14] sm:$0xf]
      %v4748 = vld [vmem:[%s7 + $0x18] sm:$0xf]
      %v4749 = vld [vmem:[%s7 + $0x1c] sm:$0xf]
      %v4750 = vld [vmem:[%s7 + $0x20] sm:$0xf]
      %v4751 = vld [vmem:[%s7 + $0x24] sm:$0xf]
      %v4752 = vld [vmem:[%s7 + $0x28] sm:$0xf]
      %v4753 = vld [vmem:[%s7 + $0x2c] sm:$0xf]
      %v4754 = vld [vmem:[%s7 + $0x30] sm:$0xf]
      %v4755 = vld [vmem:[%s7 + $0x34] sm:$0xf]
      %v4756 = vld [vmem:[%s7 + $0x38] sm:$0xf]
      %v4757 = vld [vmem:[%s7 + $0x3c] sm:$0xf]
      %v4758 = vld [vmem:[%s8] sm:$0x1]
      %v4760 = vperm.slane %v4758, 0
      %v4778 = vunpack.c.l.b16 %v4742
      %v4779 = vunpack.c.l.b16 %v4743
      %v4780 = vunpack.c.l.b16 %v4744
      %v4781 = vunpack.c.l.b16 %v4745
      %v4782 = vunpack.c.l.b16 %v4746
      %v4783 = vunpack.c.l.b16 %v4747
      %v4784 = vunpack.c.l.b16 %v4748
      %v4785 = vunpack.c.l.b16 %v4749
      %v4786 = vunpack.c.l.b16 %v4750
      %v4787 = vunpack.c.l.b16 %v4751
      %v4788 = vunpack.c.l.b16 %v4752
      %v4789 = vunpack.c.l.b16 %v4753
      %v4790 = vunpack.c.l.b16 %v4754
      %v4791 = vunpack.c.l.b16 %v4755
      %v4792 = vunpack.c.l.b16 %v4756
      %v4793 = vunpack.c.l.b16 %v4757
      %v4794 = vpack.c.b16 %v4779, %v4778
      %v4795 = vpack.c.b16 %v4781, %v4780
      %v4796 = vpack.c.b16 %v4783, %v4782
      %v4797 = vpack.c.b16 %v4785, %v4784
      %v4798 = vpack.c.b16 %v4787, %v4786
      %v4799 = vpack.c.b16 %v4789, %v4788
      %v4800 = vpack.c.b16 %v4791, %v4790
      %v4801 = vpack.c.b16 %v4793, %v4792
      %4810 = vmatpush.bf16.msra.mxu0 %v4801
      %4811 = vmatpush.bf16.msra.mxu0 %v4800
      %4812 = vmatpush.bf16.msra.mxu0 %v4799
      %4813 = vmatpush.bf16.msra.mxu0 %v4798
      %4814 = vmatpush.bf16.msra.mxu0 %v4797
      %4815 = vmatpush.bf16.msra.mxu0 %v4796
      %4816 = vmatpush.bf16.msra.mxu0 %v4795
      %4817 = vmatpush.bf16.msra.mxu0 %v4794
      %4818 = vmatmul.bf16.gmra.mxu0 %v4741
      %v4819 = vpop.f32.mrf.mxu0
      %v4820 = vadd.f32 %v4760, %v4819
      %v4821 = vpop.f32.mrf.mxu0
      %4822 = vdwg.mxu0
      %vm4823 = vcmask 80896
      %4824 = vst.msk [vmem:[%s330] sm:$0xff] %vm4823, %v4820
      %p4825 = scmp.lt.s32.totalorder %s20, 1
      %s4826 = scalar_select %p4825, %s20, 1
      %s4827 = smul.addr %s4826, 8
      %s4828 = scalar_lea.vmem %s9, %s4827
      // Predicated region
      $region57: #{cnn_forward.5} parent=55 // pred_check
        %p4829 = pneg %p232
      $region58: #{cnn_forward.5} parent=55 // pred_check_branch
        %4831 = sbr.rel (%p4829) target = $region60
      $region59: #{cnn_forward.5} parent=55 // pred_region
        _
      $region60: #{cnn_forward.5} parent=55 // pred_fallthru
        _
    $region56: #{cnn_forward.5} parent=5 // pred_fallthru
      _
    %p4832 = scmp.le.s32.totalorder 2, %s15
    // Predicated region
    $region61: #{cnn_forward.5} parent=5 // pred_check
      %p4833 = pneg %p4832
    $region62: #{cnn_forward.5} parent=5 // pred_check_branch
      %4835 = sbr.rel (%p4833) target = $region64
    $region63: #{cnn_forward.5} parent=5 // pred_region
      %s4836 = ssub.s32 %s15, 2
      // Predicated region
      $region65: #{cnn_forward.5} parent=63 // pred_check
        %p4837 = pneg %p238
      $region66: #{cnn_forward.5} parent=63 // pred_check_branch
        %4839 = sbr.rel (%p4837) target = $region68
      $region67: #{cnn_forward.5} parent=63 // pred_region
        %p4840 = scmp.lt.s32.totalorder %s21, 1
        %s4841 = scalar_select %p4840, %s21, 1
        %s4842 = smul.addr %s4841, 8
        %s4843 = scalar_lea.vmem %s9, %s4842
      $region68: #{cnn_forward.5} parent=63 // pred_fallthru
        _
    $region64: #{cnn_forward.5} parent=5 // pred_fallthru
      _
  $region6: #{cnn_forward.5} parent=0 // loop_footer
    %s19 = sadd.s32 1, %s15
  $region7: #{cnn_forward.5} parent=0 // loop_footer_branch
    %14 = sbr.rel target = $region3
  $region8: #{cnn_forward.5} parent=0 // loop_exit
    _

</llo_original>
